<compile_context>
chip_gen: v7x
topology: tpu7x:2x2x1
jax: 0.10.0
libtpu: 0.0.40
codegen_flags: <defaults>
</compile_context>

<pallas_src>
import functools
import math

import jax
import jax.numpy as jnp
from jax.experimental import pallas as pl
from jax.experimental.pallas import tpu as pltpu


# ----------------------------------------------------------------------------
# Parameter setup (plain JAX, done once): RelativeSinusoidalEmbeddings.__init__
# ----------------------------------------------------------------------------
def build_relative_sinusoidal_embeddings(window_size: int, overlap: float = 0.0):
    W = window_size
    We = int(W * (overlap + 1))          # expanded window
    C = 2 * W - 1
    D = 2 * We - 1

    positions = jnp.arange(C, dtype=jnp.float32)[:, None]                  # (C, 1)
    divisor = jnp.exp(jnp.arange(0, D, 2, dtype=jnp.float32)
                      * (-math.log(10000.0) / D))                          # (ceil(D/2),)
    angles = positions * divisor                                           # (C, ceil(D/2))

    B = jnp.zeros((C, D), dtype=jnp.float32)
    B = B.at[:, 0::2].set(jnp.sin(angles))
    if C % 2 == 0 and D % 2 == 0:
        B = B.at[:, 1::2].set(jnp.cos(angles))
    else:
        B = B.at[:, 1::2].set(jnp.cos(angles[:, :-1]))

    # torch.arange(1, W+1, 1/W) == 1 + i/W for i in [0, W*W).
    xrows = 1.0 + jnp.arange(W * W, dtype=jnp.float32) / W
    xcols = 1.0 + jnp.arange(We * We, dtype=jnp.float32) / We
    # torch `.int()` truncates toward zero; jnp astype(int32) matches that.
    xi = (xcols[None, :] - xrows[:, None]).astype(jnp.int32)
    yrows = jnp.tile(jnp.arange(1, W + 1, dtype=jnp.int32), (W,))
    ycols = jnp.tile(jnp.arange(1, We + 1, dtype=jnp.int32), (We,))
    yi = ycols[None, :] - yrows[:, None]

    # PyTorch negative indices wrap; emulate explicitly for the JAX gather.
    xi = jnp.where(xi < 0, xi + C, xi)
    yi = jnp.where(yi < 0, yi + D, yi)
    return B[xi, yi]                                            # (W*W, We*We)


# ----------------------------------------------------------------------------
# Kernel 1 (hot path): fused window attention with relative-position bias.
#   out = softmax( Q K^T / sqrt(E) + emb ) @ V   (computed transposed)
# ----------------------------------------------------------------------------
def _fused_window_attn_kernel(qt_ref, k_ref, vt_ref, embt_ref, o_ref, *,
                              scale, gb):
    # qt/vt/o blocks: (gb, E, N)   (lane-dense, N on the 128-lane axis)
    # k block       : (gb, N, E)
    # embt          : (N_k, N_q) f32, resident in VMEM (constant index_map)
    emb_t = embt_ref[...]
    for b in range(gb):   # unrolled; bounds the live range of each score tile
        # Scale the small (E, N) Q tile, not the (N, N) scores.
        q_t = qt_ref[b] * scale                                   # (E, N_q)
        k = k_ref[b]                                              # (N_k, E)

        # Transposed scores S^T[j, i] = k_j . q_i  -- plain A@B, f32 accumulate.
        s_t = jax.lax.dot_general(k, q_t, (((1,), (0,)), ((), ())),
                                  preferred_element_type=jnp.float32)
        s_t = s_t + emb_t                                         # fused bias

        # Softmax over keys (sublane axis) for every query column.
        m = jnp.max(s_t, axis=0, keepdims=True)                   # (1, N_q)
        p = jnp.exp(s_t - m)                                      # (N_k, N_q)
        l = jnp.sum(p, axis=0, keepdims=True)                     # (1, N_q)

        # Transposed PV matmul: (E, N_k) @ (N_k, N_q) -> (E, N_q).
        # Contraction 256, output width 256 (near-full MXU), lane-dense store.
        out_t = jax.lax.dot_general(vt_ref[b], p.astype(vt_ref.dtype),
                                    (((1,), (0,)), ((), ())),
                                    preferred_element_type=jnp.float32)

        # Deferred normalization on the small (E, N_q) tile: EUP approximate
        # reciprocal + one Newton step (restores f32 accuracy).
        inv = pl.reciprocal(l, approx=True)
        inv = inv * (2.0 - l * inv)
        o_ref[b] = (out_t * inv).astype(o_ref.dtype)


def _pick_window_block(G: int, want: int) -> int:
    gb = max(1, min(want, G))
    while G % gb:
        gb -= 1
    # Keep >=2 grid steps so v7x's two TensorCores both get work.
    if G // gb < 2 and G >= 2:
        gb = max(1, G // 2)
        while G % gb:
            gb -= 1
    return gb


def fused_window_attention(q, k, v, emb, *, block_g=8):
    """q, k, v: (G, N, E) with G = batch*heads*windows, N = window_size**2.
    emb: (N_q, N_k) relative-position bias broadcast over G.

    Returns the TRANSPOSED attention output (G, E, N); callers fold the
    transpose into their following rearrange ('... (m1 m2) E -> ...')."""
    G, N, E = q.shape
    assert k.shape == (G, N, E) and v.shape == (G, N, E) and emb.shape == (N, N)
    scale = 1.0 / math.sqrt(E)
    gb = _pick_window_block(G, block_g)

    # Wrapper-side layout plumbing: lane-dense (E, N) presentation of Q and V
    # and the transposed bias table.  Bias kept f32: it adds straight into the
    # f32 score accumulator (no per-window up-convert) and is only ~256 KB,
    # DMA'd once thanks to the constant index_map.
    q_t = jnp.swapaxes(q, 1, 2)                  # (G, E, N)
    v_t = jnp.swapaxes(v, 1, 2)                  # (G, E, N)
    emb_t = emb.T.astype(jnp.float32)            # (N_k, N_q)

    kernel = functools.partial(_fused_window_attn_kernel, scale=scale, gb=gb)
    return pl.pallas_call(
        kernel,
        out_shape=jax.ShapeDtypeStruct((G, E, N), q.dtype),
        grid=(G // gb,),
        in_specs=[
            pl.BlockSpec((gb, E, N), lambda g: (g, 0, 0)),
            pl.BlockSpec((gb, N, E), lambda g: (g, 0, 0)),
            pl.BlockSpec((gb, E, N), lambda g: (g, 0, 0)),
            # Constant block index -> bias DMA'd once and kept resident in VMEM.
            pl.BlockSpec((N, N), lambda g: (0, 0)),
        ],
        out_specs=pl.BlockSpec((gb, E, N), lambda g: (g, 0, 0)),
        compiler_params=pltpu.CompilerParams(
            dimension_semantics=("parallel",),
        ),
    )(q_t, k, v_t, emb_t)


# ----------------------------------------------------------------------------
# Kernel 2 (standalone path): lane-dense broadcast bias add (x + embeddings).
# ----------------------------------------------------------------------------
def _bias_add_kernel(x_ref, e_ref, o_ref):
    o_ref[...] = (x_ref[...] + e_ref[...]).astype(o_ref.dtype)


def add_relative_bias(scores, emb, *, tm=16):
    """scores: (..., N, N); emb: (N, N). Returns scores + emb (broadcast)."""
    *lead, N, N2 = scores.shape
    assert N == N2 and emb.shape == (N, N)
    rows = math.prod(lead) if lead else 1

    # Lane-dense layout: flatten (N, N) -> N*N so the last block dim is a
    # large multiple of 128 (full-width stores, no masked vst.msk).
    x2 = scores.reshape(rows, N * N)
    e2 = emb.reshape(1, N * N).astype(scores.dtype)

    # Generation-aware tiling: tm=16 -> 2 x (4+4) MiB double-buffered blocks
    # + bias ~= 16.5 MiB; the explicit 32 MiB VMEM limit makes this safe on
    # v5e (16 MiB default scoped VMEM) and fits v6e / v7x defaults.
    tm = max(1, min(tm, rows))
    if rows >= 2:
        tm = min(tm, max(1, rows // 2))   # keep >=2 grid steps (v7x megacore)
    grid = (pl.cdiv(rows, tm),)

    out = pl.pallas_call(
        _bias_add_kernel,
        out_shape=jax.ShapeDtypeStruct((rows, N * N), scores.dtype),
        grid=grid,
        in_specs=[
            pl.BlockSpec((tm, N * N), lambda i: (i, 0)),
            pl.BlockSpec((1, N * N), lambda i: (0, 0)),   # bias stays resident
        ],
        out_specs=pl.BlockSpec((tm, N * N), lambda i: (i, 0)),
        # x += emb is in-place compatible: reuse the input HBM buffer.
        input_output_aliases={0: 0},
        compiler_params=pltpu.CompilerParams(
            dimension_semantics=("parallel",),
            vmem_limit_bytes=32 * 1024 * 1024,
        ),
    )(x2, e2)
    return out.reshape(*lead, N, N)


# ----------------------------------------------------------------------------
if __name__ == "__main__":
    # Shapes consistent with the module defaults:
    # window_size = 16 -> N = 256 tokens per window, num_heads = 6,
    # head_dim E = 8 (embed_dim 48), 32x32 feature map -> 4 windows, batch = 2.
    window_size = 16
    num_heads = 6
    head_dim = 8
    batch = 2
    n_windows = 4
    N = window_size * window_size            # 256
    G = batch * num_heads * n_windows        # 48

    emb = build_relative_sinusoidal_embeddings(window_size, overlap=0.0)  # (256, 256)

    key = jax.random.PRNGKey(0)
    kq, kk, kv, ks = jax.random.split(key, 4)
    q = jax.random.normal(kq, (G, N, head_dim), jnp.float32)
    k = jax.random.normal(kk, (G, N, head_dim), jnp.float32)
    v = jax.random.normal(kv, (G, N, head_dim), jnp.float32)

    # 1) Fused hot path: QK^T/sqrt(E) + bias -> softmax -> @V (output is (G, E, N)).
    out_t = fused_window_attention(q, k, v, emb, block_g=8)
    out_t = jax.block_until_ready(out_t)

    scale = 1.0 / math.sqrt(head_dim)
    hi = jax.lax.Precision.HIGHEST
    s_ref = jnp.einsum("gne,gme->gnm", q, k, precision=hi) * scale + emb[None]
    ref = jnp.einsum("gnm,gme->gne", jax.nn.softmax(s_ref, axis=-1), v, precision=hi)
    out = jnp.swapaxes(out_t, 1, 2)           # (G, N, E) for the comparison
    assert out.shape == ref.shape
    assert jnp.allclose(out, ref, atol=5e-3, rtol=5e-3), "fused attention mismatch"

    # 2) Standalone bias add (lane-dense, row-tiled) for `x + embeddings`.
    scores = jax.random.normal(ks, (batch, num_heads, n_windows, N, N), jnp.float32)
    out2 = add_relative_bias(scores, emb, tm=16)
    out2 = jax.block_until_ready(out2)
    assert out2.shape == scores.shape
    assert jnp.allclose(out2, scores + emb, atol=1e-6), "bias add mismatch"

    print("KERNEL_OK")
</pallas_src>

<mosaic_0001>
module attributes {stable_mosaic.version = 11 : i64} {
  func.func @_fused_window_attn_kernel(%arg0: i32, %arg1: memref<8x8x256xf32, #tpu.memory_space<vmem>>, %arg2: memref<8x256x8xf32, #tpu.memory_space<vmem>>, %arg3: memref<8x8x256xf32, #tpu.memory_space<vmem>>, %arg4: memref<256x256xf32, #tpu.memory_space<vmem>>, %arg5: memref<8x8x256xf32, #tpu.memory_space<vmem>>) attributes {dimension_semantics = [#tpu.dimension_semantics<parallel>], iteration_bounds = array<i64: 6>, scalar_prefetch = 0 : i64, scratch_operands = 0 : i64, tpu.core_type = #tpu.core_type<tc>, window_params = [{transform_indices = @transform_0, window_bounds = array<i64: 8, 8, 256>}, {transform_indices = @transform_1, window_bounds = array<i64: 8, 256, 8>}, {transform_indices = @transform_2, window_bounds = array<i64: 8, 8, 256>}, {pipeline_mode = #tpu.pipeline_mode<synchronous>, transform_indices = @transform_3, window_bounds = array<i64: 256, 256>}, {transform_indices = @transform_4, window_bounds = array<i64: 8, 8, 256>}]} {
    %c0 = arith.constant 0 : index
    %c0_0 = arith.constant 0 : index
    %0 = vector.load %arg4[%c0, %c0_0] : memref<256x256xf32, #tpu.memory_space<vmem>>, vector<256x256xf32>
    %c0_1 = arith.constant 0 : index
    %c0_2 = arith.constant 0 : index
    %c0_3 = arith.constant 0 : index
    %1 = vector.load %arg1[%c0_1, %c0_2, %c0_3] : memref<8x8x256xf32, #tpu.memory_space<vmem>>, vector<1x8x256xf32>
    %2 = vector.shape_cast %1 : vector<1x8x256xf32> to vector<8x256xf32>
    %cst = arith.constant 0.353553385 : f32
    %3 = vector.broadcast %cst : f32 to vector<8x256xf32>
    %4 = arith.mulf %2, %3 : vector<8x256xf32>
    %c0_4 = arith.constant 0 : index
    %c0_5 = arith.constant 0 : index
    %c0_6 = arith.constant 0 : index
    %5 = vector.load %arg2[%c0_4, %c0_5, %c0_6] : memref<8x256x8xf32, #tpu.memory_space<vmem>>, vector<1x256x8xf32>
    %6 = vector.shape_cast %5 : vector<1x256x8xf32> to vector<256x8xf32>
    %cst_7 = arith.constant dense<0.000000e+00> : vector<256x256xf32>
    %7 = tpu.matmul %6, %4, %cst_7 {dimension_numbers = #tpu.dot_dimension_numbers<[1], [0], [0], [1], [0, 0, 1, 1], [], []>} : vector<256x8xf32>, vector<8x256xf32>, vector<256x256xf32> -> vector<256x256xf32>
    %8 = arith.addf %7, %0 : vector<256x256xf32>
    %cst_8 = arith.constant dense<0xFF800000> : vector<256xf32>
    %9 = vector.multi_reduction <maximumf>, %8, %cst_8 [0] : vector<256x256xf32> to vector<256xf32>
    %10 = vector.shape_cast %9 : vector<256xf32> to vector<1x256xf32>
    %11 = vector.broadcast %10 : vector<1x256xf32> to vector<256x256xf32>
    %12 = arith.subf %8, %11 : vector<256x256xf32>
    %13 = math.exp %12 : vector<256x256xf32>
    %cst_9 = arith.constant dense<0.000000e+00> : vector<256xf32>
    %14 = vector.multi_reduction <add>, %13, %cst_9 [0] : vector<256x256xf32> to vector<256xf32>
    %15 = vector.shape_cast %14 : vector<256xf32> to vector<1x256xf32>
    %c0_10 = arith.constant 0 : index
    %c0_11 = arith.constant 0 : index
    %c0_12 = arith.constant 0 : index
    %16 = vector.load %arg3[%c0_10, %c0_11, %c0_12] : memref<8x8x256xf32, #tpu.memory_space<vmem>>, vector<1x8x256xf32>
    %17 = vector.shape_cast %16 : vector<1x8x256xf32> to vector<8x256xf32>
    %cst_13 = arith.constant dense<0.000000e+00> : vector<8x256xf32>
    %18 = tpu.matmul %17, %13, %cst_13 {dimension_numbers = #tpu.dot_dimension_numbers<[1], [0], [0], [1], [0, 0, 1, 1], [], []>} : vector<8x256xf32>, vector<256x256xf32>, vector<8x256xf32> -> vector<8x256xf32>
    %19 = tpu.reciprocal %15 {approx = true} : vector<1x256xf32> -> vector<1x256xf32>
    %20 = arith.mulf %15, %19 : vector<1x256xf32>
    %cst_14 = arith.constant 2.000000e+00 : f32
    %21 = vector.broadcast %cst_14 : f32 to vector<1x256xf32>
    %22 = arith.subf %21, %20 : vector<1x256xf32>
    %23 = arith.mulf %19, %22 : vector<1x256xf32>
    %24 = vector.broadcast %23 : vector<1x256xf32> to vector<8x256xf32>
    %25 = arith.mulf %18, %24 : vector<8x256xf32>
    %c0_15 = arith.constant 0 : index
    %c0_16 = arith.constant 0 : index
    %c0_17 = arith.constant 0 : index
    %26 = vector.load %arg5[%c0_15, %c0_16, %c0_17] : memref<8x8x256xf32, #tpu.memory_space<vmem>>, vector<1x8x256xf32>
    %27 = vector.shape_cast %26 : vector<1x8x256xf32> to vector<8x256xf32>
    %28 = vector.shape_cast %25 : vector<8x256xf32> to vector<1x8x256xf32>
    tpu.vector_store %arg5[%c0_15, %c0_16, %c0_17], %28 {strides = array<i32>} : memref<8x8x256xf32, #tpu.memory_space<vmem>>, vector<1x8x256xf32>,
    %c1 = arith.constant 1 : index
    %c0_18 = arith.constant 0 : index
    %c0_19 = arith.constant 0 : index
    %29 = vector.load %arg1[%c1, %c0_18, %c0_19] : memref<8x8x256xf32, #tpu.memory_space<vmem>>, vector<1x8x256xf32>
    %30 = vector.shape_cast %29 : vector<1x8x256xf32> to vector<8x256xf32>
    %cst_20 = arith.constant 0.353553385 : f32
    %31 = vector.broadcast %cst_20 : f32 to vector<8x256xf32>
    %32 = arith.mulf %30, %31 : vector<8x256xf32>
    %c1_21 = arith.constant 1 : index
    %c0_22 = arith.constant 0 : index
    %c0_23 = arith.constant 0 : index
    %33 = vector.load %arg2[%c1_21, %c0_22, %c0_23] : memref<8x256x8xf32, #tpu.memory_space<vmem>>, vector<1x256x8xf32>
    %34 = vector.shape_cast %33 : vector<1x256x8xf32> to vector<256x8xf32>
    %cst_24 = arith.constant dense<0.000000e+00> : vector<256x256xf32>
    %35 = tpu.matmul %34, %32, %cst_24 {dimension_numbers = #tpu.dot_dimension_numbers<[1], [0], [0], [1], [0, 0, 1, 1], [], []>} : vector<256x8xf32>, vector<8x256xf32>, vector<256x256xf32> -> vector<256x256xf32>
    %36 = arith.addf %35, %0 : vector<256x256xf32>
    %cst_25 = arith.constant dense<0xFF800000> : vector<256xf32>
    %37 = vector.multi_reduction <maximumf>, %36, %cst_25 [0] : vector<256x256xf32> to vector<256xf32>
    %38 = vector.shape_cast %37 : vector<256xf32> to vector<1x256xf32>
    %39 = vector.broadcast %38 : vector<1x256xf32> to vector<256x256xf32>
    %40 = arith.subf %36, %39 : vector<256x256xf32>
    %41 = math.exp %40 : vector<256x256xf32>
    %cst_26 = arith.constant dense<0.000000e+00> : vector<256xf32>
    %42 = vector.multi_reduction <add>, %41, %cst_26 [0] : vector<256x256xf32> to vector<256xf32>
    %43 = vector.shape_cast %42 : vector<256xf32> to vector<1x256xf32>
    %c1_27 = arith.constant 1 : index
    %c0_28 = arith.constant 0 : index
    %c0_29 = arith.constant 0 : index
    %44 = vector.load %arg3[%c1_27, %c0_28, %c0_29] : memref<8x8x256xf32, #tpu.memory_space<vmem>>, vector<1x8x256xf32>
    %45 = vector.shape_cast %44 : vector<1x8x256xf32> to vector<8x256xf32>
    %cst_30 = arith.constant dense<0.000000e+00> : vector<8x256xf32>
    %46 = tpu.matmul %45, %41, %cst_30 {dimension_numbers = #tpu.dot_dimension_numbers<[1], [0], [0], [1], [0, 0, 1, 1], [], []>} : vector<8x256xf32>, vector<256x256xf32>, vector<8x256xf32> -> vector<8x256xf32>
    %47 = tpu.reciprocal %43 {approx = true} : vector<1x256xf32> -> vector<1x256xf32>
    %48 = arith.mulf %43, %47 : vector<1x256xf32>
    %cst_31 = arith.constant 2.000000e+00 : f32
    %49 = vector.broadcast %cst_31 : f32 to vector<1x256xf32>
    %50 = arith.subf %49, %48 : vector<1x256xf32>
    %51 = arith.mulf %47, %50 : vector<1x256xf32>
    %52 = vector.broadcast %51 : vector<1x256xf32> to vector<8x256xf32>
    %53 = arith.mulf %46, %52 : vector<8x256xf32>
    %c1_32 = arith.constant 1 : index
    %c0_33 = arith.constant 0 : index
    %c0_34 = arith.constant 0 : index
    %54 = vector.load %arg5[%c1_32, %c0_33, %c0_34] : memref<8x8x256xf32, #tpu.memory_space<vmem>>, vector<1x8x256xf32>
    %55 = vector.shape_cast %54 : vector<1x8x256xf32> to vector<8x256xf32>
    %56 = vector.shape_cast %53 : vector<8x256xf32> to vector<1x8x256xf32>
    tpu.vector_store %arg5[%c1_32, %c0_33, %c0_34], %56 {strides = array<i32>} : memref<8x8x256xf32, #tpu.memory_space<vmem>>, vector<1x8x256xf32>,
    %c2 = arith.constant 2 : index
    %c0_35 = arith.constant 0 : index
    %c0_36 = arith.constant 0 : index
    %57 = vector.load %arg1[%c2, %c0_35, %c0_36] : memref<8x8x256xf32, #tpu.memory_space<vmem>>, vector<1x8x256xf32>
    %58 = vector.shape_cast %57 : vector<1x8x256xf32> to vector<8x256xf32>
    %cst_37 = arith.constant 0.353553385 : f32
    %59 = vector.broadcast %cst_37 : f32 to vector<8x256xf32>
    %60 = arith.mulf %58, %59 : vector<8x256xf32>
    %c2_38 = arith.constant 2 : index
    %c0_39 = arith.constant 0 : index
    %c0_40 = arith.constant 0 : index
    %61 = vector.load %arg2[%c2_38, %c0_39, %c0_40] : memref<8x256x8xf32, #tpu.memory_space<vmem>>, vector<1x256x8xf32>
    %62 = vector.shape_cast %61 : vector<1x256x8xf32> to vector<256x8xf32>
    %cst_41 = arith.constant dense<0.000000e+00> : vector<256x256xf32>
    %63 = tpu.matmul %62, %60, %cst_41 {dimension_numbers = #tpu.dot_dimension_numbers<[1], [0], [0], [1], [0, 0, 1, 1], [], []>} : vector<256x8xf32>, vector<8x256xf32>, vector<256x256xf32> -> vector<256x256xf32>
    %64 = arith.addf %63, %0 : vector<256x256xf32>
    %cst_42 = arith.constant dense<0xFF800000> : vector<256xf32>
    %65 = vector.multi_reduction <maximumf>, %64, %cst_42 [0] : vector<256x256xf32> to vector<256xf32>
    %66 = vector.shape_cast %65 : vector<256xf32> to vector<1x256xf32>
    %67 = vector.broadcast %66 : vector<1x256xf32> to vector<256x256xf32>
    %68 = arith.subf %64, %67 : vector<256x256xf32>
    %69 = math.exp %68 : vector<256x256xf32>
    %cst_43 = arith.constant dense<0.000000e+00> : vector<256xf32>
    %70 = vector.multi_reduction <add>, %69, %cst_43 [0] : vector<256x256xf32> to vector<256xf32>
    %71 = vector.shape_cast %70 : vector<256xf32> to vector<1x256xf32>
    %c2_44 = arith.constant 2 : index
    %c0_45 = arith.constant 0 : index
    %c0_46 = arith.constant 0 : index
    %72 = vector.load %arg3[%c2_44, %c0_45, %c0_46] : memref<8x8x256xf32, #tpu.memory_space<vmem>>, vector<1x8x256xf32>
    %73 = vector.shape_cast %72 : vector<1x8x256xf32> to vector<8x256xf32>
    %cst_47 = arith.constant dense<0.000000e+00> : vector<8x256xf32>
    %74 = tpu.matmul %73, %69, %cst_47 {dimension_numbers = #tpu.dot_dimension_numbers<[1], [0], [0], [1], [0, 0, 1, 1], [], []>} : vector<8x256xf32>, vector<256x256xf32>, vector<8x256xf32> -> vector<8x256xf32>
    %75 = tpu.reciprocal %71 {approx = true} : vector<1x256xf32> -> vector<1x256xf32>
    %76 = arith.mulf %71, %75 : vector<1x256xf32>
    %cst_48 = arith.constant 2.000000e+00 : f32
    %77 = vector.broadcast %cst_48 : f32 to vector<1x256xf32>
    %78 = arith.subf %77, %76 : vector<1x256xf32>
    %79 = arith.mulf %75, %78 : vector<1x256xf32>
    %80 = vector.broadcast %79 : vector<1x256xf32> to vector<8x256xf32>
    %81 = arith.mulf %74, %80 : vector<8x256xf32>
    %c2_49 = arith.constant 2 : index
    %c0_50 = arith.constant 0 : index
    %c0_51 = arith.constant 0 : index
    %82 = vector.load %arg5[%c2_49, %c0_50, %c0_51] : memref<8x8x256xf32, #tpu.memory_space<vmem>>, vector<1x8x256xf32>
    %83 = vector.shape_cast %82 : vector<1x8x256xf32> to vector<8x256xf32>
    %84 = vector.shape_cast %81 : vector<8x256xf32> to vector<1x8x256xf32>
    tpu.vector_store %arg5[%c2_49, %c0_50, %c0_51], %84 {strides = array<i32>} : memref<8x8x256xf32, #tpu.memory_space<vmem>>, vector<1x8x256xf32>,
    %c3 = arith.constant 3 : index
    %c0_52 = arith.constant 0 : index
    %c0_53 = arith.constant 0 : index
    %85 = vector.load %arg1[%c3, %c0_52, %c0_53] : memref<8x8x256xf32, #tpu.memory_space<vmem>>, vector<1x8x256xf32>
    %86 = vector.shape_cast %85 : vector<1x8x256xf32> to vector<8x256xf32>
    %cst_54 = arith.constant 0.353553385 : f32
    %87 = vector.broadcast %cst_54 : f32 to vector<8x256xf32>
    %88 = arith.mulf %86, %87 : vector<8x256xf32>
    %c3_55 = arith.constant 3 : index
    %c0_56 = arith.constant 0 : index
    %c0_57 = arith.constant 0 : index
    %89 = vector.load %arg2[%c3_55, %c0_56, %c0_57] : memref<8x256x8xf32, #tpu.memory_space<vmem>>, vector<1x256x8xf32>
    %90 = vector.shape_cast %89 : vector<1x256x8xf32> to vector<256x8xf32>
    %cst_58 = arith.constant dense<0.000000e+00> : vector<256x256xf32>
    %91 = tpu.matmul %90, %88, %cst_58 {dimension_numbers = #tpu.dot_dimension_numbers<[1], [0], [0], [1], [0, 0, 1, 1], [], []>} : vector<256x8xf32>, vector<8x256xf32>, vector<256x256xf32> -> vector<256x256xf32>
    %92 = arith.addf %91, %0 : vector<256x256xf32>
    %cst_59 = arith.constant dense<0xFF800000> : vector<256xf32>
    %93 = vector.multi_reduction <maximumf>, %92, %cst_59 [0] : vector<256x256xf32> to vector<256xf32>
    %94 = vector.shape_cast %93 : vector<256xf32> to vector<1x256xf32>
    %95 = vector.broadcast %94 : vector<1x256xf32> to vector<256x256xf32>
    %96 = arith.subf %92, %95 : vector<256x256xf32>
    %97 = math.exp %96 : vector<256x256xf32>
    %cst_60 = arith.constant dense<0.000000e+00> : vector<256xf32>
    %98 = vector.multi_reduction <add>, %97, %cst_60 [0] : vector<256x256xf32> to vector<256xf32>
    %99 = vector.shape_cast %98 : vector<256xf32> to vector<1x256xf32>
    %c3_61 = arith.constant 3 : index
    %c0_62 = arith.constant 0 : index
    %c0_63 = arith.constant 0 : index
    %100 = vector.load %arg3[%c3_61, %c0_62, %c0_63] : memref<8x8x256xf32, #tpu.memory_space<vmem>>, vector<1x8x256xf32>
    %101 = vector.shape_cast %100 : vector<1x8x256xf32> to vector<8x256xf32>
    %cst_64 = arith.constant dense<0.000000e+00> : vector<8x256xf32>
    %102 = tpu.matmul %101, %97, %cst_64 {dimension_numbers = #tpu.dot_dimension_numbers<[1], [0], [0], [1], [0, 0, 1, 1], [], []>} : vector<8x256xf32>, vector<256x256xf32>, vector<8x256xf32> -> vector<8x256xf32>
    %103 = tpu.reciprocal %99 {approx = true} : vector<1x256xf32> -> vector<1x256xf32>
    %104 = arith.mulf %99, %103 : vector<1x256xf32>
    %cst_65 = arith.constant 2.000000e+00 : f32
    %105 = vector.broadcast %cst_65 : f32 to vector<1x256xf32>
    %106 = arith.subf %105, %104 : vector<1x256xf32>
    %107 = arith.mulf %103, %106 : vector<1x256xf32>
    %108 = vector.broadcast %107 : vector<1x256xf32> to vector<8x256xf32>
    %109 = arith.mulf %102, %108 : vector<8x256xf32>
    %c3_66 = arith.constant 3 : index
    %c0_67 = arith.constant 0 : index
    %c0_68 = arith.constant 0 : index
    %110 = vector.load %arg5[%c3_66, %c0_67, %c0_68] : memref<8x8x256xf32, #tpu.memory_space<vmem>>, vector<1x8x256xf32>
    %111 = vector.shape_cast %110 : vector<1x8x256xf32> to vector<8x256xf32>
    %112 = vector.shape_cast %109 : vector<8x256xf32> to vector<1x8x256xf32>
    tpu.vector_store %arg5[%c3_66, %c0_67, %c0_68], %112 {strides = array<i32>} : memref<8x8x256xf32, #tpu.memory_space<vmem>>, vector<1x8x256xf32>,
    %c4 = arith.constant 4 : index
    %c0_69 = arith.constant 0 : index
    %c0_70 = arith.constant 0 : index
    %113 = vector.load %arg1[%c4, %c0_69, %c0_70] : memref<8x8x256xf32, #tpu.memory_space<vmem>>, vector<1x8x256xf32>
    %114 = vector.shape_cast %113 : vector<1x8x256xf32> to vector<8x256xf32>
    %cst_71 = arith.constant 0.353553385 : f32
    %115 = vector.broadcast %cst_71 : f32 to vector<8x256xf32>
    %116 = arith.mulf %114, %115 : vector<8x256xf32>
    %c4_72 = arith.constant 4 : index
    %c0_73 = arith.constant 0 : index
    %c0_74 = arith.constant 0 : index
    %117 = vector.load %arg2[%c4_72, %c0_73, %c0_74] : memref<8x256x8xf32, #tpu.memory_space<vmem>>, vector<1x256x8xf32>
    %118 = vector.shape_cast %117 : vector<1x256x8xf32> to vector<256x8xf32>
    %cst_75 = arith.constant dense<0.000000e+00> : vector<256x256xf32>
    %119 = tpu.matmul %118, %116, %cst_75 {dimension_numbers = #tpu.dot_dimension_numbers<[1], [0], [0], [1], [0, 0, 1, 1], [], []>} : vector<256x8xf32>, vector<8x256xf32>, vector<256x256xf32> -> vector<256x256xf32>
    %120 = arith.addf %119, %0 : vector<256x256xf32>
    %cst_76 = arith.constant dense<0xFF800000> : vector<256xf32>
    %121 = vector.multi_reduction <maximumf>, %120, %cst_76 [0] : vector<256x256xf32> to vector<256xf32>
    %122 = vector.shape_cast %121 : vector<256xf32> to vector<1x256xf32>
    %123 = vector.broadcast %122 : vector<1x256xf32> to vector<256x256xf32>
    %124 = arith.subf %120, %123 : vector<256x256xf32>
    %125 = math.exp %124 : vector<256x256xf32>
    %cst_77 = arith.constant dense<0.000000e+00> : vector<256xf32>
    %126 = vector.multi_reduction <add>, %125, %cst_77 [0] : vector<256x256xf32> to vector<256xf32>
    %127 = vector.shape_cast %126 : vector<256xf32> to vector<1x256xf32>
    %c4_78 = arith.constant 4 : index
    %c0_79 = arith.constant 0 : index
    %c0_80 = arith.constant 0 : index
    %128 = vector.load %arg3[%c4_78, %c0_79, %c0_80] : memref<8x8x256xf32, #tpu.memory_space<vmem>>, vector<1x8x256xf32>
    %129 = vector.shape_cast %128 : vector<1x8x256xf32> to vector<8x256xf32>
    %cst_81 = arith.constant dense<0.000000e+00> : vector<8x256xf32>
    %130 = tpu.matmul %129, %125, %cst_81 {dimension_numbers = #tpu.dot_dimension_numbers<[1], [0], [0], [1], [0, 0, 1, 1], [], []>} : vector<8x256xf32>, vector<256x256xf32>, vector<8x256xf32> -> vector<8x256xf32>
    %131 = tpu.reciprocal %127 {approx = true} : vector<1x256xf32> -> vector<1x256xf32>
    %132 = arith.mulf %127, %131 : vector<1x256xf32>
    %cst_82 = arith.constant 2.000000e+00 : f32
    %133 = vector.broadcast %cst_82 : f32 to vector<1x256xf32>
    %134 = arith.subf %133, %132 : vector<1x256xf32>
    %135 = arith.mulf %131, %134 : vector<1x256xf32>
    %136 = vector.broadcast %135 : vector<1x256xf32> to vector<8x256xf32>
    %137 = arith.mulf %130, %136 : vector<8x256xf32>
    %c4_83 = arith.constant 4 : index
    %c0_84 = arith.constant 0 : index
    %c0_85 = arith.constant 0 : index
    %138 = vector.load %arg5[%c4_83, %c0_84, %c0_85] : memref<8x8x256xf32, #tpu.memory_space<vmem>>, vector<1x8x256xf32>
    %139 = vector.shape_cast %138 : vector<1x8x256xf32> to vector<8x256xf32>
    %140 = vector.shape_cast %137 : vector<8x256xf32> to vector<1x8x256xf32>
    tpu.vector_store %arg5[%c4_83, %c0_84, %c0_85], %140 {strides = array<i32>} : memref<8x8x256xf32, #tpu.memory_space<vmem>>, vector<1x8x256xf32>,
    %c5 = arith.constant 5 : index
    %c0_86 = arith.constant 0 : index
    %c0_87 = arith.constant 0 : index
    %141 = vector.load %arg1[%c5, %c0_86, %c0_87] : memref<8x8x256xf32, #tpu.memory_space<vmem>>, vector<1x8x256xf32>
    %142 = vector.shape_cast %141 : vector<1x8x256xf32> to vector<8x256xf32>
    %cst_88 = arith.constant 0.353553385 : f32
    %143 = vector.broadcast %cst_88 : f32 to vector<8x256xf32>
    %144 = arith.mulf %142, %143 : vector<8x256xf32>
    %c5_89 = arith.constant 5 : index
    %c0_90 = arith.constant 0 : index
    %c0_91 = arith.constant 0 : index
    %145 = vector.load %arg2[%c5_89, %c0_90, %c0_91] : memref<8x256x8xf32, #tpu.memory_space<vmem>>, vector<1x256x8xf32>
    %146 = vector.shape_cast %145 : vector<1x256x8xf32> to vector<256x8xf32>
    %cst_92 = arith.constant dense<0.000000e+00> : vector<256x256xf32>
    %147 = tpu.matmul %146, %144, %cst_92 {dimension_numbers = #tpu.dot_dimension_numbers<[1], [0], [0], [1], [0, 0, 1, 1], [], []>} : vector<256x8xf32>, vector<8x256xf32>, vector<256x256xf32> -> vector<256x256xf32>
    %148 = arith.addf %147, %0 : vector<256x256xf32>
    %cst_93 = arith.constant dense<0xFF800000> : vector<256xf32>
    %149 = vector.multi_reduction <maximumf>, %148, %cst_93 [0] : vector<256x256xf32> to vector<256xf32>
    %150 = vector.shape_cast %149 : vector<256xf32> to vector<1x256xf32>
    %151 = vector.broadcast %150 : vector<1x256xf32> to vector<256x256xf32>
    %152 = arith.subf %148, %151 : vector<256x256xf32>
    %153 = math.exp %152 : vector<256x256xf32>
    %cst_94 = arith.constant dense<0.000000e+00> : vector<256xf32>
    %154 = vector.multi_reduction <add>, %153, %cst_94 [0] : vector<256x256xf32> to vector<256xf32>
    %155 = vector.shape_cast %154 : vector<256xf32> to vector<1x256xf32>
    %c5_95 = arith.constant 5 : index
    %c0_96 = arith.constant 0 : index
    %c0_97 = arith.constant 0 : index
    %156 = vector.load %arg3[%c5_95, %c0_96, %c0_97] : memref<8x8x256xf32, #tpu.memory_space<vmem>>, vector<1x8x256xf32>
    %157 = vector.shape_cast %156 : vector<1x8x256xf32> to vector<8x256xf32>
    %cst_98 = arith.constant dense<0.000000e+00> : vector<8x256xf32>
    %158 = tpu.matmul %157, %153, %cst_98 {dimension_numbers = #tpu.dot_dimension_numbers<[1], [0], [0], [1], [0, 0, 1, 1], [], []>} : vector<8x256xf32>, vector<256x256xf32>, vector<8x256xf32> -> vector<8x256xf32>
    %159 = tpu.reciprocal %155 {approx = true} : vector<1x256xf32> -> vector<1x256xf32>
    %160 = arith.mulf %155, %159 : vector<1x256xf32>
    %cst_99 = arith.constant 2.000000e+00 : f32
    %161 = vector.broadcast %cst_99 : f32 to vector<1x256xf32>
    %162 = arith.subf %161, %160 : vector<1x256xf32>
    %163 = arith.mulf %159, %162 : vector<1x256xf32>
    %164 = vector.broadcast %163 : vector<1x256xf32> to vector<8x256xf32>
    %165 = arith.mulf %158, %164 : vector<8x256xf32>
    %c5_100 = arith.constant 5 : index
    %c0_101 = arith.constant 0 : index
    %c0_102 = arith.constant 0 : index
    %166 = vector.load %arg5[%c5_100, %c0_101, %c0_102] : memref<8x8x256xf32, #tpu.memory_space<vmem>>, vector<1x8x256xf32>
    %167 = vector.shape_cast %166 : vector<1x8x256xf32> to vector<8x256xf32>
    %168 = vector.shape_cast %165 : vector<8x256xf32> to vector<1x8x256xf32>
    tpu.vector_store %arg5[%c5_100, %c0_101, %c0_102], %168 {strides = array<i32>} : memref<8x8x256xf32, #tpu.memory_space<vmem>>, vector<1x8x256xf32>,
    %c6 = arith.constant 6 : index
    %c0_103 = arith.constant 0 : index
    %c0_104 = arith.constant 0 : index
    %169 = vector.load %arg1[%c6, %c0_103, %c0_104] : memref<8x8x256xf32, #tpu.memory_space<vmem>>, vector<1x8x256xf32>
    %170 = vector.shape_cast %169 : vector<1x8x256xf32> to vector<8x256xf32>
    %cst_105 = arith.constant 0.353553385 : f32
    %171 = vector.broadcast %cst_105 : f32 to vector<8x256xf32>
    %172 = arith.mulf %170, %171 : vector<8x256xf32>
    %c6_106 = arith.constant 6 : index
    %c0_107 = arith.constant 0 : index
    %c0_108 = arith.constant 0 : index
    %173 = vector.load %arg2[%c6_106, %c0_107, %c0_108] : memref<8x256x8xf32, #tpu.memory_space<vmem>>, vector<1x256x8xf32>
    %174 = vector.shape_cast %173 : vector<1x256x8xf32> to vector<256x8xf32>
    %cst_109 = arith.constant dense<0.000000e+00> : vector<256x256xf32>
    %175 = tpu.matmul %174, %172, %cst_109 {dimension_numbers = #tpu.dot_dimension_numbers<[1], [0], [0], [1], [0, 0, 1, 1], [], []>} : vector<256x8xf32>, vector<8x256xf32>, vector<256x256xf32> -> vector<256x256xf32>
    %176 = arith.addf %175, %0 : vector<256x256xf32>
    %cst_110 = arith.constant dense<0xFF800000> : vector<256xf32>
    %177 = vector.multi_reduction <maximumf>, %176, %cst_110 [0] : vector<256x256xf32> to vector<256xf32>
    %178 = vector.shape_cast %177 : vector<256xf32> to vector<1x256xf32>
    %179 = vector.broadcast %178 : vector<1x256xf32> to vector<256x256xf32>
    %180 = arith.subf %176, %179 : vector<256x256xf32>
    %181 = math.exp %180 : vector<256x256xf32>
    %cst_111 = arith.constant dense<0.000000e+00> : vector<256xf32>
    %182 = vector.multi_reduction <add>, %181, %cst_111 [0] : vector<256x256xf32> to vector<256xf32>
    %183 = vector.shape_cast %182 : vector<256xf32> to vector<1x256xf32>
    %c6_112 = arith.constant 6 : index
    %c0_113 = arith.constant 0 : index
    %c0_114 = arith.constant 0 : index
    %184 = vector.load %arg3[%c6_112, %c0_113, %c0_114] : memref<8x8x256xf32, #tpu.memory_space<vmem>>, vector<1x8x256xf32>
    %185 = vector.shape_cast %184 : vector<1x8x256xf32> to vector<8x256xf32>
    %cst_115 = arith.constant dense<0.000000e+00> : vector<8x256xf32>
    %186 = tpu.matmul %185, %181, %cst_115 {dimension_numbers = #tpu.dot_dimension_numbers<[1], [0], [0], [1], [0, 0, 1, 1], [], []>} : vector<8x256xf32>, vector<256x256xf32>, vector<8x256xf32> -> vector<8x256xf32>
    %187 = tpu.reciprocal %183 {approx = true} : vector<1x256xf32> -> vector<1x256xf32>
    %188 = arith.mulf %183, %187 : vector<1x256xf32>
    %cst_116 = arith.constant 2.000000e+00 : f32
    %189 = vector.broadcast %cst_116 : f32 to vector<1x256xf32>
    %190 = arith.subf %189, %188 : vector<1x256xf32>
    %191 = arith.mulf %187, %190 : vector<1x256xf32>
    %192 = vector.broadcast %191 : vector<1x256xf32> to vector<8x256xf32>
    %193 = arith.mulf %186, %192 : vector<8x256xf32>
    %c6_117 = arith.constant 6 : index
    %c0_118 = arith.constant 0 : index
    %c0_119 = arith.constant 0 : index
    %194 = vector.load %arg5[%c6_117, %c0_118, %c0_119] : memref<8x8x256xf32, #tpu.memory_space<vmem>>, vector<1x8x256xf32>
    %195 = vector.shape_cast %194 : vector<1x8x256xf32> to vector<8x256xf32>
    %196 = vector.shape_cast %193 : vector<8x256xf32> to vector<1x8x256xf32>
    tpu.vector_store %arg5[%c6_117, %c0_118, %c0_119], %196 {strides = array<i32>} : memref<8x8x256xf32, #tpu.memory_space<vmem>>, vector<1x8x256xf32>,
    %c7 = arith.constant 7 : index
    %c0_120 = arith.constant 0 : index
    %c0_121 = arith.constant 0 : index
    %197 = vector.load %arg1[%c7, %c0_120, %c0_121] : memref<8x8x256xf32, #tpu.memory_space<vmem>>, vector<1x8x256xf32>
    %198 = vector.shape_cast %197 : vector<1x8x256xf32> to vector<8x256xf32>
    %cst_122 = arith.constant 0.353553385 : f32
    %199 = vector.broadcast %cst_122 : f32 to vector<8x256xf32>
    %200 = arith.mulf %198, %199 : vector<8x256xf32>
    %c7_123 = arith.constant 7 : index
    %c0_124 = arith.constant 0 : index
    %c0_125 = arith.constant 0 : index
    %201 = vector.load %arg2[%c7_123, %c0_124, %c0_125] : memref<8x256x8xf32, #tpu.memory_space<vmem>>, vector<1x256x8xf32>
    %202 = vector.shape_cast %201 : vector<1x256x8xf32> to vector<256x8xf32>
    %cst_126 = arith.constant dense<0.000000e+00> : vector<256x256xf32>
    %203 = tpu.matmul %202, %200, %cst_126 {dimension_numbers = #tpu.dot_dimension_numbers<[1], [0], [0], [1], [0, 0, 1, 1], [], []>} : vector<256x8xf32>, vector<8x256xf32>, vector<256x256xf32> -> vector<256x256xf32>
    %204 = arith.addf %203, %0 : vector<256x256xf32>
    %cst_127 = arith.constant dense<0xFF800000> : vector<256xf32>
    %205 = vector.multi_reduction <maximumf>, %204, %cst_127 [0] : vector<256x256xf32> to vector<256xf32>
    %206 = vector.shape_cast %205 : vector<256xf32> to vector<1x256xf32>
    %207 = vector.broadcast %206 : vector<1x256xf32> to vector<256x256xf32>
    %208 = arith.subf %204, %207 : vector<256x256xf32>
    %209 = math.exp %208 : vector<256x256xf32>
    %cst_128 = arith.constant dense<0.000000e+00> : vector<256xf32>
    %210 = vector.multi_reduction <add>, %209, %cst_128 [0] : vector<256x256xf32> to vector<256xf32>
    %211 = vector.shape_cast %210 : vector<256xf32> to vector<1x256xf32>
    %c7_129 = arith.constant 7 : index
    %c0_130 = arith.constant 0 : index
    %c0_131 = arith.constant 0 : index
    %212 = vector.load %arg3[%c7_129, %c0_130, %c0_131] : memref<8x8x256xf32, #tpu.memory_space<vmem>>, vector<1x8x256xf32>
    %213 = vector.shape_cast %212 : vector<1x8x256xf32> to vector<8x256xf32>
    %cst_132 = arith.constant dense<0.000000e+00> : vector<8x256xf32>
    %214 = tpu.matmul %213, %209, %cst_132 {dimension_numbers = #tpu.dot_dimension_numbers<[1], [0], [0], [1], [0, 0, 1, 1], [], []>} : vector<8x256xf32>, vector<256x256xf32>, vector<8x256xf32> -> vector<8x256xf32>
    %215 = tpu.reciprocal %211 {approx = true} : vector<1x256xf32> -> vector<1x256xf32>
    %216 = arith.mulf %211, %215 : vector<1x256xf32>
    %cst_133 = arith.constant 2.000000e+00 : f32
    %217 = vector.broadcast %cst_133 : f32 to vector<1x256xf32>
    %218 = arith.subf %217, %216 : vector<1x256xf32>
    %219 = arith.mulf %215, %218 : vector<1x256xf32>
    %220 = vector.broadcast %219 : vector<1x256xf32> to vector<8x256xf32>
    %221 = arith.mulf %214, %220 : vector<8x256xf32>
    %c7_134 = arith.constant 7 : index
    %c0_135 = arith.constant 0 : index
    %c0_136 = arith.constant 0 : index
    %222 = vector.load %arg5[%c7_134, %c0_135, %c0_136] : memref<8x8x256xf32, #tpu.memory_space<vmem>>, vector<1x8x256xf32>
    %223 = vector.shape_cast %222 : vector<1x8x256xf32> to vector<8x256xf32>
    %224 = vector.shape_cast %221 : vector<8x256xf32> to vector<1x8x256xf32>
    tpu.vector_store %arg5[%c7_134, %c0_135, %c0_136], %224 {strides = array<i32>} : memref<8x8x256xf32, #tpu.memory_space<vmem>>, vector<1x8x256xf32>,
    return
  }
  func.func @transform_0(%arg0: i32) -> (i32, i32, i32) {
    %c0_i32 = arith.constant 0 : i32
    %c0_i32_0 = arith.constant 0 : i32
    %c0_i32_1 = arith.constant 0 : i32
    return %arg0, %c0_i32, %c0_i32_0 : i32, i32, i32
  }
  func.func @transform_1(%arg0: i32) -> (i32, i32, i32) {
    %c0_i32 = arith.constant 0 : i32
    %c0_i32_0 = arith.constant 0 : i32
    %c0_i32_1 = arith.constant 0 : i32
    return %arg0, %c0_i32, %c0_i32_0 : i32, i32, i32
  }
  func.func @transform_2(%arg0: i32) -> (i32, i32, i32) {
    %c0_i32 = arith.constant 0 : i32
    %c0_i32_0 = arith.constant 0 : i32
    %c0_i32_1 = arith.constant 0 : i32
    return %arg0, %c0_i32, %c0_i32_0 : i32, i32, i32
  }
  func.func @transform_3(%arg0: i32) -> (i32, i32) {
    %c0_i32 = arith.constant 0 : i32
    %c0_i32_0 = arith.constant 0 : i32
    %c0_i32_1 = arith.constant 0 : i32
    return %c0_i32, %c0_i32_0 : i32, i32
  }
  func.func @transform_4(%arg0: i32) -> (i32, i32, i32) {
    %c0_i32 = arith.constant 0 : i32
    %c0_i32_0 = arith.constant 0 : i32
    %c0_i32_1 = arith.constant 0 : i32
    return %arg0, %c0_i32, %c0_i32_0 : i32, i32, i32
  }
}

</mosaic_0001>

<llo_original>
// kernel: tpu_custom_call.1
$region0: #{tpu_custom_call.1}
  #allocation0 [shape = 'u32[]', space=smem, size = 0x4, offset = 0x4, fixed_abs, tag = 'smem constant byte address 0x4 - core index']
  #allocation1 [shape = 'u32[144,128]{1,0:T(1,128)}', space=vmem, size = 0x12000, scoped, tag = 'internal scratch']
  %s0 = inlined_call_operand.vmem [shape: f32[48,8,256], index: 0, kind: input, shape index: {}]
  %s1 = inlined_call_operand.vmem [shape: f32[48,256,8], index: 1, kind: input, shape index: {}]
  %s2 = inlined_call_operand.vmem [shape: f32[48,8,256], index: 2, kind: input, shape index: {}]
  %s3 = inlined_call_operand.vmem [shape: f32[256,256], index: 3, kind: input, shape index: {}]
  %s4 = inlined_call_operand.hbm [shape: f32[48,8,256], index: 4, kind: output, shape index: {}]
  %s5 = sld [smem:[#allocation0]]
  $region49: #{tpu_custom_call.1} parent=0
    _
  %s7 = ssub.s32 1, %s5
  %s8 = scalar_select 0, %s7, %s5
  $region1: #{tpu_custom_call.1} parent=0
    #allocation2 [shape = 'u8[131072]{0}', space=vmem, size = 0x20000, scoped, tag = 'output window, operand 0']
    #allocation3 [shape = 's32[2]{0}', space=sflag, size = 0x8, scoped, tag = 'scoped memory for tpu_custom_call.1']
    %9 = vsyncpa [#allocation3], 0
    %s10 = scalar_lea.sflag [#allocation3], 1
    %11 = vsyncpa %s10, 0
    loop: start=0, step=1, limit=8
    $region2: #{tpu_custom_call.1} parent=1 // loop_pre_header
      _
    $region3: #{tpu_custom_call.1} parent=1 // loop_header
      %s13 = sphi 0, %s17
      %p14 = scmp.ge.s32.totalorder %s13, 8
      %s23 = sphi 0, %s25
      %s26 = sphi 0, %s23
      %s27 = sphi 0, %s26
      %s43 = sphi 0, %s27
      %s49 = sphi 0, %s51
      %s52 = sphi 0, %s49
      %s53 = sphi 0, %s52
      %s69 = sphi 0, %s53
      %s75 = sphi 0, %s77
      %s78 = sphi 0, %s75
      %s79 = sphi 0, %s78
      %s95 = sphi 0, %s79
      %s99 = sphi 0, %s99
      %s101 = sphi 0, %s99
      %s102 = sphi 0, %s101
      %s116 = sphi 0, %s102
      %s122 = sphi 0, %s124
      %s125 = sphi 0, %s122
      %s126 = sphi 0, %s125
      %s142 = sphi 0, %s126
    $region4: #{tpu_custom_call.1} parent=1 // loop_header_branch
      %16 = sbr.rel (%p14) target = $region8
    $region5: #{tpu_custom_call.1} parent=1 // loop_body
      %s18 = ssub.s32 %s13, 1
      %s19 = ssub.s32 %s13, 2
      %s20 = sadd.s32 %s13, 1
      %s21 = ssub.s32 %s13, %s20
      %p22 = scmp.eq.s32.totalorder %s21, 0
      %s24 = sadd.s32 %s23, 1
      %s25 = scalar_select %p22, %s23, %s24
      %p28 = pneg %p22
      %p29 = scmp.eq.s32.totalorder %s13, 5
      %p30 = por %p28, %p29
      %p31 = scmp.ne.s32.totalorder %s23, %s26
      %p32 = scmp.eq.s32.totalorder %s13, 0
      %p33 = por %p31, %p32
      %p34 = scmp.ne.s32.totalorder %s23, %s26
      %p35 = scmp.eq.s32.totalorder %s18, 5
      %p36 = por %p34, %p35
      %p37 = scmp.ne.s32.totalorder %s26, %s27
      %p38 = scmp.eq.s32.totalorder %s18, 0
      %p39 = por %p37, %p38
      %p40 = scmp.ne.s32.totalorder %s26, %s27
      %p41 = scmp.eq.s32.totalorder %s19, 5
      %p42 = por %p40, %p41
      %p44 = scmp.ne.s32.totalorder %s27, %s43
      %p45 = scmp.eq.s32.totalorder %s19, 0
      %p46 = por %p44, %p45
      %s47 = ssub.s32 %s13, %s20
      %p48 = scmp.eq.s32.totalorder %s47, 0
      %s50 = sadd.s32 %s49, 1
      %s51 = scalar_select %p48, %s49, %s50
      %p54 = pneg %p48
      %p55 = scmp.eq.s32.totalorder %s13, 5
      %p56 = por %p54, %p55
      %p57 = scmp.ne.s32.totalorder %s49, %s52
      %p58 = scmp.eq.s32.totalorder %s13, 0
      %p59 = por %p57, %p58
      %p60 = scmp.ne.s32.totalorder %s49, %s52
      %p61 = scmp.eq.s32.totalorder %s18, 5
      %p62 = por %p60, %p61
      %p63 = scmp.ne.s32.totalorder %s52, %s53
      %p64 = scmp.eq.s32.totalorder %s18, 0
      %p65 = por %p63, %p64
      %p66 = scmp.ne.s32.totalorder %s52, %s53
      %p67 = scmp.eq.s32.totalorder %s19, 5
      %p68 = por %p66, %p67
      %p70 = scmp.ne.s32.totalorder %s53, %s69
      %p71 = scmp.eq.s32.totalorder %s19, 0
      %p72 = por %p70, %p71
      %s73 = ssub.s32 %s13, %s20
      %p74 = scmp.eq.s32.totalorder %s73, 0
      %s76 = sadd.s32 %s75, 1
      %s77 = scalar_select %p74, %s75, %s76
      %p80 = pneg %p74
      %p81 = scmp.eq.s32.totalorder %s13, 5
      %p82 = por %p80, %p81
      %p83 = scmp.ne.s32.totalorder %s75, %s78
      %p84 = scmp.eq.s32.totalorder %s13, 0
      %p85 = por %p83, %p84
      %p86 = scmp.ne.s32.totalorder %s75, %s78
      %p87 = scmp.eq.s32.totalorder %s18, 5
      %p88 = por %p86, %p87
      %p89 = scmp.ne.s32.totalorder %s78, %s79
      %p90 = scmp.eq.s32.totalorder %s18, 0
      %p91 = por %p89, %p90
      %p92 = scmp.ne.s32.totalorder %s78, %s79
      %p93 = scmp.eq.s32.totalorder %s19, 5
      %p94 = por %p92, %p93
      %p96 = scmp.ne.s32.totalorder %s79, %s95
      %p97 = scmp.eq.s32.totalorder %s19, 0
      %p98 = por %p96, %p97
      %s100 = sadd.s32 %s99, 1
      %p103 = scmp.eq.s32.totalorder %s13, 5
      %p104 = scmp.ne.s32.totalorder %s99, %s101
      %p105 = scmp.eq.s32.totalorder %s13, 0
      %p106 = por %p104, %p105
      %p107 = scmp.ne.s32.totalorder %s99, %s101
      %p108 = scmp.eq.s32.totalorder %s18, 5
      %p109 = por %p107, %p108
      %p110 = scmp.ne.s32.totalorder %s101, %s102
      %p111 = scmp.eq.s32.totalorder %s18, 0
      %p112 = por %p110, %p111
      %p113 = scmp.ne.s32.totalorder %s101, %s102
      %p114 = scmp.eq.s32.totalorder %s19, 5
      %p115 = por %p113, %p114
      %p117 = scmp.ne.s32.totalorder %s102, %s116
      %p118 = scmp.eq.s32.totalorder %s19, 0
      %p119 = por %p117, %p118
      %s120 = ssub.s32 %s13, %s20
      %p121 = scmp.eq.s32.totalorder %s120, 0
      %s123 = sadd.s32 %s122, 1
      %s124 = scalar_select %p121, %s122, %s123
      %p127 = pneg %p121
      %p128 = scmp.eq.s32.totalorder %s13, 5
      %p129 = por %p127, %p128
      %p130 = scmp.ne.s32.totalorder %s122, %s125
      %p131 = scmp.eq.s32.totalorder %s13, 0
      %p132 = por %p130, %p131
      %p133 = scmp.ne.s32.totalorder %s122, %s125
      %p134 = scmp.eq.s32.totalorder %s18, 5
      %p135 = por %p133, %p134
      %p136 = scmp.ne.s32.totalorder %s125, %s126
      %p137 = scmp.eq.s32.totalorder %s18, 0
      %p138 = por %p136, %p137
      %p139 = scmp.ne.s32.totalorder %s125, %s126
      %p140 = scmp.eq.s32.totalorder %s19, 5
      %p141 = por %p139, %p140
      %p143 = scmp.ne.s32.totalorder %s126, %s142
      %p144 = scmp.eq.s32.totalorder %s19, 0
      %p145 = por %p143, %p144
      %p146 = scmp.le.s32.totalorder 1, %s13
      %p147 = scmp.lt.s32.totalorder %s13, 7
      %p148 = pnand %p146, %p147
      %p149 = pneg %p148
      // Predicated region
      $region9: #{tpu_custom_call.1} parent=5 // pred_check
        _
      $region10: #{tpu_custom_call.1} parent=5 // pred_check_branch
        %151 = sbr.rel (%p148) target = $region12
      $region11: #{tpu_custom_call.1} parent=5 // pred_region
        %s152 = ssub.s32 %s13, 1
        // Predicated region
        $region13: #{tpu_custom_call.1} parent=11 // pred_check
          %p153 = pneg %p112
        $region14: #{tpu_custom_call.1} parent=11 // pred_check_branch
          %155 = sbr.rel (%p153) target = $region16
        $region15: #{tpu_custom_call.1} parent=11 // pred_region
          _
        $region16: #{tpu_custom_call.1} parent=11 // pred_fallthru
          _
      $region12: #{tpu_custom_call.1} parent=5 // pred_fallthru
        _
      %p156 = scmp.lt.s32.totalorder %s13, 6
      // Predicated region
      $region17: #{tpu_custom_call.1} parent=5 // pred_check
        %p157 = pneg %p156
      $region18: #{tpu_custom_call.1} parent=5 // pred_check_branch
        %159 = sbr.rel (%p157) target = $region20
      $region19: #{tpu_custom_call.1} parent=5 // pred_region
        // Predicated region
        $region21: #{tpu_custom_call.1} parent=19 // pred_check
          %p160 = pneg %p33
        $region22: #{tpu_custom_call.1} parent=19 // pred_check_branch
          %162 = sbr.rel (%p160) target = $region24
        $region23: #{tpu_custom_call.1} parent=19 // pred_region
          %s163 = smul.u32 8, %s13
          %p164 = scmp.lt.s32.totalorder %s163, 47
          %s165 = scalar_select %p164, %s163, 47
          %s166 = smul.addr %s165, 2
          %s167 = smul.addr %s166, 8
          %s168 = scalar_lea.vmem %s0, %s167
          %s169 = smul.u32 8, %s13
        $region24: #{tpu_custom_call.1} parent=19 // pred_fallthru
          _
        // Predicated region
        $region25: #{tpu_custom_call.1} parent=19 // pred_check
          %p170 = pneg %p59
        $region26: #{tpu_custom_call.1} parent=19 // pred_check_branch
          %172 = sbr.rel (%p170) target = $region28
        $region27: #{tpu_custom_call.1} parent=19 // pred_region
          %s173 = smul.u32 8, %s13
          %p174 = scmp.lt.s32.totalorder %s173, 47
          %s175 = scalar_select %p174, %s173, 47
          %s176 = smul.addr %s175, 32
          %s177 = smul.addr %s176, 8
          %s178 = scalar_lea.vmem %s1, %s177
          %s179 = smul.u32 8, %s13
        $region28: #{tpu_custom_call.1} parent=19 // pred_fallthru
          _
        // Predicated region
        $region29: #{tpu_custom_call.1} parent=19 // pred_check
          %p180 = pneg %p85
        $region30: #{tpu_custom_call.1} parent=19 // pred_check_branch
          %182 = sbr.rel (%p180) target = $region32
        $region31: #{tpu_custom_call.1} parent=19 // pred_region
          %s183 = smul.u32 8, %s13
          %p184 = scmp.lt.s32.totalorder %s183, 47
          %s185 = scalar_select %p184, %s183, 47
          %s186 = smul.addr %s185, 2
          %s187 = smul.addr %s186, 8
          %s188 = scalar_lea.vmem %s2, %s187
          %s189 = smul.u32 8, %s13
        $region32: #{tpu_custom_call.1} parent=19 // pred_fallthru
          _
      $region20: #{tpu_custom_call.1} parent=5 // pred_fallthru
        _
      %p190 = scmp.le.s32.totalorder 1, %s13
      %p191 = scmp.lt.s32.totalorder %s13, 7
      %p192 = pnand %p190, %p191
      %p193 = pneg %p192
      // Predicated region
      $region33: #{tpu_custom_call.1} parent=5 // pred_check
        _
      $region34: #{tpu_custom_call.1} parent=5 // pred_check_branch
        %195 = sbr.rel (%p192) target = $region36
      $region35: #{tpu_custom_call.1} parent=5 // pred_region
        %s196 = ssub.s32 %s13, 1
        %s197 = smul.u32 8, %s18
        %p198 = scmp.lt.s32.totalorder %s197, 47
        %s199 = scalar_select %p198, %s197, 47
        %s200 = smul.addr %s199, 2
        %s201 = smul.addr %s200, 8
        %s202 = scalar_lea.vmem %s0, %s201
        %p203 = pneg %p39
        %p204 = pneg %p36
        %s205 = smul.u32 8, %s18
        %p206 = scmp.lt.s32.totalorder %s205, 47
        %s207 = scalar_select %p206, %s205, 47
        %s208 = smul.addr %s207, 32
        %s209 = smul.addr %s208, 8
        %s210 = scalar_lea.vmem %s1, %s209
        %p211 = pneg %p65
        %p212 = pneg %p62
        %s213 = smul.u32 8, %s18
        %p214 = scmp.lt.s32.totalorder %s213, 47
        %s215 = scalar_select %p214, %s213, 47
        %s216 = smul.addr %s215, 2
        %s217 = smul.addr %s216, 8
        %s218 = scalar_lea.vmem %s2, %s217
        %p219 = pneg %p91
        %p220 = pneg %p88
        %p221 = pneg %p112
        %p222 = pneg %p109
        %p223 = pneg %p138
        %p224 = pneg %p135
        %s225 = sand.u32 %s125, 1
        %s226 = scalar_lea.sflag [#allocation3], %s225
        %s227 = sand.u32 %s125, 1
        %s228 = smul.addr %s227, 128
        %s229 = scalar_lea.vmem [#allocation2], %s228
        %s230 = smul.u32 8, %s18
        %p231 = scmp.lt.s32.totalorder %s230, 47
        %s232 = scalar_select %p231, %s230, 47
        %s233 = smul.addr %s232, 2
        %s234 = smul.addr %s233, 8
        %s235 = scalar_lea.vmem %s0, %s234
        %s236 = smul.u32 8, %s18
        %s237 = smul.u32 8, %s18
        %p238 = scmp.lt.s32.totalorder %s237, 47
        %s239 = scalar_select %p238, %s237, 47
        %s240 = smul.addr %s239, 32
        %s241 = smul.addr %s240, 8
        %s242 = scalar_lea.vmem %s1, %s241
        %s243 = smul.u32 8, %s18
        %s244 = smul.u32 8, %s18
        %p245 = scmp.lt.s32.totalorder %s244, 47
        %s246 = scalar_select %p245, %s244, 47
        %s247 = smul.addr %s246, 2
        %s248 = smul.addr %s247, 8
        %s249 = scalar_lea.vmem %s2, %s248
        %s250 = smul.u32 8, %s18
        %s251 = smul.u32 8, %s18
        %v252 = vld [vmem:[%s3] sm:$0xff]
        %v253 = vld [vmem:[%s3 + $0x8] sm:$0xff]
        %v254 = vld [vmem:[%s3 + $0x10] sm:$0xff]
        %v255 = vld [vmem:[%s3 + $0x18] sm:$0xff]
        %v256 = vld [vmem:[%s3 + $0x20] sm:$0xff]
        %v257 = vld [vmem:[%s3 + $0x28] sm:$0xff]
        %v258 = vld [vmem:[%s3 + $0x30] sm:$0xff]
        %v259 = vld [vmem:[%s3 + $0x38] sm:$0xff]
        %v260 = vld [vmem:[%s3 + $0x40] sm:$0xff]
        %v261 = vld [vmem:[%s3 + $0x48] sm:$0xff]
        %v262 = vld [vmem:[%s3 + $0x50] sm:$0xff]
        %v263 = vld [vmem:[%s3 + $0x58] sm:$0xff]
        %v264 = vld [vmem:[%s3 + $0x60] sm:$0xff]
        %v265 = vld [vmem:[%s3 + $0x68] sm:$0xff]
        %v266 = vld [vmem:[%s3 + $0x70] sm:$0xff]
        %v267 = vld [vmem:[%s3 + $0x78] sm:$0xff]
        %v268 = vld [vmem:[%s3 + $0x80] sm:$0xff]
        %v269 = vld [vmem:[%s3 + $0x88] sm:$0xff]
        %v270 = vld [vmem:[%s3 + $0x90] sm:$0xff]
        %v271 = vld [vmem:[%s3 + $0x98] sm:$0xff]
        %v272 = vld [vmem:[%s3 + $0xa0] sm:$0xff]
        %v273 = vld [vmem:[%s3 + $0xa8] sm:$0xff]
        %v274 = vld [vmem:[%s3 + $0xb0] sm:$0xff]
        %v275 = vld [vmem:[%s3 + $0xb8] sm:$0xff]
        %v276 = vld [vmem:[%s3 + $0xc0] sm:$0xff]
        %v277 = vld [vmem:[%s3 + $0xc8] sm:$0xff]
        %v278 = vld [vmem:[%s3 + $0xd0] sm:$0xff]
        %v279 = vld [vmem:[%s3 + $0xd8] sm:$0xff]
        %v280 = vld [vmem:[%s3 + $0xe0] sm:$0xff]
        %v281 = vld [vmem:[%s3 + $0xe8] sm:$0xff]
        %v282 = vld [vmem:[%s3 + $0xf0] sm:$0xff]
        %v283 = vld [vmem:[%s3 + $0xf8] sm:$0xff]
        %v284 = vld [vmem:[%s3 + $0x100] sm:$0xff]
        %v285 = vld [vmem:[%s3 + $0x108] sm:$0xff]
        %v286 = vld [vmem:[%s3 + $0x110] sm:$0xff]
        %v287 = vld [vmem:[%s3 + $0x118] sm:$0xff]
        %v288 = vld [vmem:[%s3 + $0x120] sm:$0xff]
        %v289 = vld [vmem:[%s3 + $0x128] sm:$0xff]
        %v290 = vld [vmem:[%s3 + $0x130] sm:$0xff]
        %v291 = vld [vmem:[%s3 + $0x138] sm:$0xff]
        %v292 = vld [vmem:[%s3 + $0x140] sm:$0xff]
        %v293 = vld [vmem:[%s3 + $0x148] sm:$0xff]
        %v294 = vld [vmem:[%s3 + $0x150] sm:$0xff]
        %v295 = vld [vmem:[%s3 + $0x158] sm:$0xff]
        %v296 = vld [vmem:[%s3 + $0x160] sm:$0xff]
        %v297 = vld [vmem:[%s3 + $0x168] sm:$0xff]
        %v298 = vld [vmem:[%s3 + $0x170] sm:$0xff]
        %v299 = vld [vmem:[%s3 + $0x178] sm:$0xff]
        %v300 = vld [vmem:[%s3 + $0x180] sm:$0xff]
        %v301 = vld [vmem:[%s3 + $0x188] sm:$0xff]
        %v302 = vld [vmem:[%s3 + $0x190] sm:$0xff]
        %v303 = vld [vmem:[%s3 + $0x198] sm:$0xff]
        %v304 = vld [vmem:[%s3 + $0x1a0] sm:$0xff]
        %v305 = vld [vmem:[%s3 + $0x1a8] sm:$0xff]
        %v306 = vld [vmem:[%s3 + $0x1b0] sm:$0xff]
        %v307 = vld [vmem:[%s3 + $0x1b8] sm:$0xff]
        %v308 = vld [vmem:[%s3 + $0x1c0] sm:$0xff]
        %v309 = vld [vmem:[%s3 + $0x1c8] sm:$0xff]
        %v310 = vld [vmem:[%s3 + $0x1d0] sm:$0xff]
        %v311 = vld [vmem:[%s3 + $0x1d8] sm:$0xff]
        %v312 = vld [vmem:[%s3 + $0x1e0] sm:$0xff]
        %v313 = vld [vmem:[%s3 + $0x1e8] sm:$0xff]
        %v314 = vld [vmem:[%s3 + $0x1f0] sm:$0xff]
        %v315 = vld [vmem:[%s3 + $0x1f8] sm:$0xff]
        %v316 = vld [vmem:[%s235] sm:$0xff]
        %v317 = vld [vmem:[%s235 + $0x8] sm:$0xff]
        %v318 = vmul.f32 %v316, 0.35355338
        %v319 = vmul.f32 %v317, 0.35355338
        %v320 = vld [vmem:[%s242] sm:$0xff]
        %v321 = vld [vmem:[%s242 + $0x8] sm:$0xff]
        %v322 = vld [vmem:[%s242 + $0x10] sm:$0xff]
        %v323 = vld [vmem:[%s242 + $0x18] sm:$0xff]
        %v324 = vld [vmem:[%s242 + $0x20] sm:$0xff]
        %v325 = vld [vmem:[%s242 + $0x28] sm:$0xff]
        %v326 = vld [vmem:[%s242 + $0x30] sm:$0xff]
        %v327 = vld [vmem:[%s242 + $0x38] sm:$0xff]
        %v328 = vld [vmem:[%s242 + $0x40] sm:$0xff]
        %v329 = vld [vmem:[%s242 + $0x48] sm:$0xff]
        %v330 = vld [vmem:[%s242 + $0x50] sm:$0xff]
        %v331 = vld [vmem:[%s242 + $0x58] sm:$0xff]
        %v332 = vld [vmem:[%s242 + $0x60] sm:$0xff]
        %v333 = vld [vmem:[%s242 + $0x68] sm:$0xff]
        %v334 = vld [vmem:[%s242 + $0x70] sm:$0xff]
        %v335 = vld [vmem:[%s242 + $0x78] sm:$0xff]
        %v336 = vld [vmem:[%s242 + $0x80] sm:$0xff]
        %v337 = vld [vmem:[%s242 + $0x88] sm:$0xff]
        %v338 = vld [vmem:[%s242 + $0x90] sm:$0xff]
        %v339 = vld [vmem:[%s242 + $0x98] sm:$0xff]
        %v340 = vld [vmem:[%s242 + $0xa0] sm:$0xff]
        %v341 = vld [vmem:[%s242 + $0xa8] sm:$0xff]
        %v342 = vld [vmem:[%s242 + $0xb0] sm:$0xff]
        %v343 = vld [vmem:[%s242 + $0xb8] sm:$0xff]
        %v344 = vld [vmem:[%s242 + $0xc0] sm:$0xff]
        %v345 = vld [vmem:[%s242 + $0xc8] sm:$0xff]
        %v346 = vld [vmem:[%s242 + $0xd0] sm:$0xff]
        %v347 = vld [vmem:[%s242 + $0xd8] sm:$0xff]
        %v348 = vld [vmem:[%s242 + $0xe0] sm:$0xff]
        %v349 = vld [vmem:[%s242 + $0xe8] sm:$0xff]
        %v350 = vld [vmem:[%s242 + $0xf0] sm:$0xff]
        %v351 = vld [vmem:[%s242 + $0xf8] sm:$0xff]
        %vm352 = vcmask 64512
        %v354 = vsel %vm352, %v320, 0
        %v357 = vsel %vm352, %v321, 0
        %v360 = vsel %vm352, %v322, 0
        %v363 = vsel %vm352, %v323, 0
        %v366 = vsel %vm352, %v324, 0
        %v369 = vsel %vm352, %v325, 0
        %v372 = vsel %vm352, %v326, 0
        %v375 = vsel %vm352, %v327, 0
        %v378 = vsel %vm352, %v328, 0
        %v381 = vsel %vm352, %v329, 0
        %v384 = vsel %vm352, %v330, 0
        %v387 = vsel %vm352, %v331, 0
        %v390 = vsel %vm352, %v332, 0
        %v393 = vsel %vm352, %v333, 0
        %v396 = vsel %vm352, %v334, 0
        %v399 = vsel %vm352, %v335, 0
        %v402 = vsel %vm352, %v336, 0
        %v405 = vsel %vm352, %v337, 0
        %v408 = vsel %vm352, %v338, 0
        %v411 = vsel %vm352, %v339, 0
        %v414 = vsel %vm352, %v340, 0
        %v417 = vsel %vm352, %v341, 0
        %v420 = vsel %vm352, %v342, 0
        %v423 = vsel %vm352, %v343, 0
        %v426 = vsel %vm352, %v344, 0
        %v429 = vsel %vm352, %v345, 0
        %v432 = vsel %vm352, %v346, 0
        %v435 = vsel %vm352, %v347, 0
        %v438 = vsel %vm352, %v348, 0
        %v441 = vsel %vm352, %v349, 0
        %v444 = vsel %vm352, %v350, 0
        %v447 = vsel %vm352, %v351, 0
        %449 = vmatprep.subr.mxu0 %v319
        %450 = vmatpush1.msra.mxu0 %v318
        %451 = vmatprep.subr.mxu0 0.0
        %452 = vmatpush1.msra.mxu0 0.0
        %453 = vmatprep.subr.mxu0 0.0
        %454 = vmatpush1.msra.mxu0 0.0
        %455 = vmatprep.subr.mxu0 0.0
        %456 = vmatpush1.msra.mxu0 0.0
        %457 = vmatprep.subr.mxu0 0.0
        %458 = vmatpush1.msra.mxu0 0.0
        %459 = vmatprep.subr.mxu0 0.0
        %460 = vmatpush1.msra.mxu0 0.0
        %461 = vmatprep.subr.mxu0 0.0
        %462 = vmatpush1.msra.mxu0 0.0
        %463 = vmatprep.subr.mxu0 0.0
        %464 = vmatpush1.msra.mxu0 0.0
        %465 = vmatprep.subr.mxu0 0.0
        %466 = vmatpush1.msra.mxu0 0.0
        %467 = vmatprep.subr.mxu0 0.0
        %468 = vmatpush1.msra.mxu0 0.0
        %469 = vmatprep.subr.mxu0 0.0
        %470 = vmatpush1.msra.mxu0 0.0
        %471 = vmatprep.subr.mxu0 0.0
        %472 = vmatpush1.msra.mxu0 0.0
        %473 = vmatprep.subr.mxu0 0.0
        %474 = vmatpush1.msra.mxu0 0.0
        %475 = vmatprep.subr.mxu0 0.0
        %476 = vmatpush1.msra.mxu0 0.0
        %477 = vmatprep.subr.mxu0 0.0
        %478 = vmatpush1.msra.mxu0 0.0
        %479 = vmatprep.subr.mxu0 0.0
        %480 = vmatpush1.msra.mxu0 0.0
        %481 = vmatprep.subr.mxu0 0.0
        %482 = vmatpush1.msra.mxu0 0.0
        %483 = vmatprep.subr.mxu0 0.0
        %484 = vmatpush1.msra.mxu0 0.0
        %485 = vmatprep.subr.mxu0 0.0
        %486 = vmatpush1.msra.mxu0 0.0
        %487 = vmatprep.subr.mxu0 0.0
        %488 = vmatpush1.msra.mxu0 0.0
        %489 = vmatprep.subr.mxu0 0.0
        %490 = vmatpush1.msra.mxu0 0.0
        %491 = vmatprep.subr.mxu0 0.0
        %492 = vmatpush1.msra.mxu0 0.0
        %493 = vmatprep.subr.mxu0 0.0
        %494 = vmatpush1.msra.mxu0 0.0
        %495 = vmatprep.subr.mxu0 0.0
        %496 = vmatpush1.msra.mxu0 0.0
        %497 = vmatprep.subr.mxu0 0.0
        %498 = vmatpush1.msra.mxu0 0.0
        %499 = vmatprep.subr.mxu0 0.0
        %500 = vmatpush1.msra.mxu0 0.0
        %501 = vmatprep.subr.mxu0 0.0
        %502 = vmatpush1.msra.mxu0 0.0
        %503 = vmatprep.subr.mxu0 0.0
        %504 = vmatpush1.msra.mxu0 0.0
        %505 = vmatprep.subr.mxu0 0.0
        %506 = vmatpush1.msra.mxu0 0.0
        %507 = vmatprep.subr.mxu0 0.0
        %508 = vmatpush1.msra.mxu0 0.0
        %509 = vmatprep.subr.mxu0 0.0
        %510 = vmatpush1.msra.mxu0 0.0
        %511 = vmatprep.subr.mxu0 0.0
        %512 = vmatpush1.msra.mxu0 0.0
        %513 = vmatprep.mubr.f32.mxu0 0.0
        %514 = vmatmul.mubr.f32.gmra.mrb[0].mxu0 %v354
        %v515 = vpop.f32.mrb[0].mxu0
        %v516 = vadd.f32 %v252, %v515
        %v517 = vpop.f32.mrb[0].mxu0
        %v518 = vadd.f32 %v253, %v517
        %519 = vmatprep.mubr.f32.mxu0 0.0
        %520 = vmatmul.mubr.f32.gmra.mrb[0].mxu0 %v357
        %v521 = vpop.f32.mrb[0].mxu0
        %v522 = vadd.f32 %v254, %v521
        %v523 = vpop.f32.mrb[0].mxu0
        %v524 = vadd.f32 %v255, %v523
        %525 = vmatprep.mubr.f32.mxu0 0.0
        %526 = vmatmul.mubr.f32.gmra.mrb[0].mxu0 %v360
        %v527 = vpop.f32.mrb[0].mxu0
        %v528 = vadd.f32 %v256, %v527
        %v529 = vpop.f32.mrb[0].mxu0
        %v530 = vadd.f32 %v257, %v529
        %531 = vmatprep.mubr.f32.mxu0 0.0
        %532 = vmatmul.mubr.f32.gmra.mrb[0].mxu0 %v363
        %v533 = vpop.f32.mrb[0].mxu0
        %v534 = vadd.f32 %v258, %v533
        %v535 = vpop.f32.mrb[0].mxu0
        %v536 = vadd.f32 %v259, %v535
        %537 = vmatprep.mubr.f32.mxu0 0.0
        %538 = vmatmul.mubr.f32.gmra.mrb[0].mxu0 %v366
        %v539 = vpop.f32.mrb[0].mxu0
        %v540 = vadd.f32 %v260, %v539
        %v541 = vpop.f32.mrb[0].mxu0
        %v542 = vadd.f32 %v261, %v541
        %543 = vmatprep.mubr.f32.mxu0 0.0
        %544 = vmatmul.mubr.f32.gmra.mrb[0].mxu0 %v369
        %v545 = vpop.f32.mrb[0].mxu0
        %v546 = vadd.f32 %v262, %v545
        %v547 = vpop.f32.mrb[0].mxu0
        %v548 = vadd.f32 %v263, %v547
        %549 = vmatprep.mubr.f32.mxu0 0.0
        %550 = vmatmul.mubr.f32.gmra.mrb[0].mxu0 %v372
        %v551 = vpop.f32.mrb[0].mxu0
        %v552 = vadd.f32 %v264, %v551
        %v553 = vpop.f32.mrb[0].mxu0
        %v554 = vadd.f32 %v265, %v553
        %555 = vmatprep.mubr.f32.mxu0 0.0
        %556 = vmatmul.mubr.f32.gmra.mrb[0].mxu0 %v375
        %v557 = vpop.f32.mrb[0].mxu0
        %v558 = vadd.f32 %v266, %v557
        %v559 = vpop.f32.mrb[0].mxu0
        %v560 = vadd.f32 %v267, %v559
        %561 = vmatprep.mubr.f32.mxu0 0.0
        %562 = vmatmul.mubr.f32.gmra.mrb[0].mxu0 %v378
        %v563 = vpop.f32.mrb[0].mxu0
        %v564 = vadd.f32 %v268, %v563
        %v565 = vpop.f32.mrb[0].mxu0
        %v566 = vadd.f32 %v269, %v565
        %567 = vmatprep.mubr.f32.mxu0 0.0
        %568 = vmatmul.mubr.f32.gmra.mrb[0].mxu0 %v381
        %v569 = vpop.f32.mrb[0].mxu0
        %v570 = vadd.f32 %v270, %v569
        %v571 = vpop.f32.mrb[0].mxu0
        %v572 = vadd.f32 %v271, %v571
        %573 = vmatprep.mubr.f32.mxu0 0.0
        %574 = vmatmul.mubr.f32.gmra.mrb[0].mxu0 %v384
        %v575 = vpop.f32.mrb[0].mxu0
        %v576 = vadd.f32 %v272, %v575
        %v577 = vpop.f32.mrb[0].mxu0
        %v578 = vadd.f32 %v273, %v577
        %579 = vmatprep.mubr.f32.mxu0 0.0
        %580 = vmatmul.mubr.f32.gmra.mrb[0].mxu0 %v387
        %v581 = vpop.f32.mrb[0].mxu0
        %v582 = vadd.f32 %v274, %v581
        %v583 = vpop.f32.mrb[0].mxu0
        %v584 = vadd.f32 %v275, %v583
        %585 = vmatprep.mubr.f32.mxu0 0.0
        %586 = vmatmul.mubr.f32.gmra.mrb[0].mxu0 %v390
        %v587 = vpop.f32.mrb[0].mxu0
        %v588 = vadd.f32 %v276, %v587
        %v589 = vpop.f32.mrb[0].mxu0
        %v590 = vadd.f32 %v277, %v589
        %591 = vmatprep.mubr.f32.mxu0 0.0
        %592 = vmatmul.mubr.f32.gmra.mrb[0].mxu0 %v393
        %v593 = vpop.f32.mrb[0].mxu0
        %v594 = vadd.f32 %v278, %v593
        %v595 = vpop.f32.mrb[0].mxu0
        %v596 = vadd.f32 %v279, %v595
        %597 = vmatprep.mubr.f32.mxu0 0.0
        %598 = vmatmul.mubr.f32.gmra.mrb[0].mxu0 %v396
        %v599 = vpop.f32.mrb[0].mxu0
        %v600 = vadd.f32 %v280, %v599
        %v601 = vpop.f32.mrb[0].mxu0
        %v602 = vadd.f32 %v281, %v601
        %603 = vmatprep.mubr.f32.mxu0 0.0
        %604 = vmatmul.mubr.f32.gmra.mrb[0].mxu0 %v399
        %v605 = vpop.f32.mrb[0].mxu0
        %v606 = vadd.f32 %v282, %v605
        %v607 = vpop.f32.mrb[0].mxu0
        %v608 = vadd.f32 %v283, %v607
        %609 = vmatprep.mubr.f32.mxu0 0.0
        %610 = vmatmul.mubr.f32.gmra.mrb[0].mxu0 %v402
        %v611 = vpop.f32.mrb[0].mxu0
        %v612 = vadd.f32 %v284, %v611
        %v613 = vpop.f32.mrb[0].mxu0
        %v614 = vadd.f32 %v285, %v613
        %615 = vmatprep.mubr.f32.mxu0 0.0
        %616 = vmatmul.mubr.f32.gmra.mrb[0].mxu0 %v405
        %v617 = vpop.f32.mrb[0].mxu0
        %v618 = vadd.f32 %v286, %v617
        %v619 = vpop.f32.mrb[0].mxu0
        %v620 = vadd.f32 %v287, %v619
        %621 = vmatprep.mubr.f32.mxu0 0.0
        %622 = vmatmul.mubr.f32.gmra.mrb[0].mxu0 %v408
        %v623 = vpop.f32.mrb[0].mxu0
        %v624 = vadd.f32 %v288, %v623
        %v625 = vpop.f32.mrb[0].mxu0
        %v626 = vadd.f32 %v289, %v625
        %627 = vmatprep.mubr.f32.mxu0 0.0
        %628 = vmatmul.mubr.f32.gmra.mrb[0].mxu0 %v411
        %v629 = vpop.f32.mrb[0].mxu0
        %v630 = vadd.f32 %v290, %v629
        %v631 = vpop.f32.mrb[0].mxu0
        %v632 = vadd.f32 %v291, %v631
        %633 = vmatprep.mubr.f32.mxu0 0.0
        %634 = vmatmul.mubr.f32.gmra.mrb[0].mxu0 %v414
        %v635 = vpop.f32.mrb[0].mxu0
        %v636 = vadd.f32 %v292, %v635
        %v637 = vpop.f32.mrb[0].mxu0
        %v638 = vadd.f32 %v293, %v637
        %639 = vmatprep.mubr.f32.mxu0 0.0
        %640 = vmatmul.mubr.f32.gmra.mrb[0].mxu0 %v417
        %v641 = vpop.f32.mrb[0].mxu0
        %v642 = vadd.f32 %v294, %v641
        %v643 = vpop.f32.mrb[0].mxu0
        %v644 = vadd.f32 %v295, %v643
        %645 = vmatprep.mubr.f32.mxu0 0.0
        %646 = vmatmul.mubr.f32.gmra.mrb[0].mxu0 %v420
        %v647 = vpop.f32.mrb[0].mxu0
        %v648 = vadd.f32 %v296, %v647
        %v649 = vpop.f32.mrb[0].mxu0
        %v650 = vadd.f32 %v297, %v649
        %651 = vmatprep.mubr.f32.mxu0 0.0
        %652 = vmatmul.mubr.f32.gmra.mrb[0].mxu0 %v423
        %v653 = vpop.f32.mrb[0].mxu0
        %v654 = vadd.f32 %v298, %v653
        %v655 = vpop.f32.mrb[0].mxu0
        %v656 = vadd.f32 %v299, %v655
        %657 = vmatprep.mubr.f32.mxu0 0.0
        %658 = vmatmul.mubr.f32.gmra.mrb[0].mxu0 %v426
        %v659 = vpop.f32.mrb[0].mxu0
        %v660 = vadd.f32 %v300, %v659
        %v661 = vpop.f32.mrb[0].mxu0
        %v662 = vadd.f32 %v301, %v661
        %663 = vmatprep.mubr.f32.mxu0 0.0
        %664 = vmatmul.mubr.f32.gmra.mrb[0].mxu0 %v429
        %v665 = vpop.f32.mrb[0].mxu0
        %v666 = vadd.f32 %v302, %v665
        %v667 = vpop.f32.mrb[0].mxu0
        %v668 = vadd.f32 %v303, %v667
        %669 = vmatprep.mubr.f32.mxu0 0.0
        %670 = vmatmul.mubr.f32.gmra.mrb[0].mxu0 %v432
        %v671 = vpop.f32.mrb[0].mxu0
        %v672 = vadd.f32 %v304, %v671
        %v673 = vpop.f32.mrb[0].mxu0
        %v674 = vadd.f32 %v305, %v673
        %675 = vmatprep.mubr.f32.mxu0 0.0
        %676 = vmatmul.mubr.f32.gmra.mrb[0].mxu0 %v435
        %v677 = vpop.f32.mrb[0].mxu0
        %v678 = vadd.f32 %v306, %v677
        %v679 = vpop.f32.mrb[0].mxu0
        %v680 = vadd.f32 %v307, %v679
        %681 = vmatprep.mubr.f32.mxu0 0.0
        %682 = vmatmul.mubr.f32.gmra.mrb[0].mxu0 %v438
        %v683 = vpop.f32.mrb[0].mxu0
        %v684 = vadd.f32 %v308, %v683
        %v685 = vpop.f32.mrb[0].mxu0
        %v686 = vadd.f32 %v309, %v685
        %687 = vmatprep.mubr.f32.mxu0 0.0
        %688 = vmatmul.mubr.f32.gmra.mrb[0].mxu0 %v441
        %v689 = vpop.f32.mrb[0].mxu0
        %v690 = vadd.f32 %v310, %v689
        %v691 = vpop.f32.mrb[0].mxu0
        %v692 = vadd.f32 %v311, %v691
        %693 = vmatprep.mubr.f32.mxu0 0.0
        %694 = vmatmul.mubr.f32.gmra.mrb[0].mxu0 %v444
        %v695 = vpop.f32.mrb[0].mxu0
        %v696 = vadd.f32 %v312, %v695
        %v697 = vpop.f32.mrb[0].mxu0
        %v698 = vadd.f32 %v313, %v697
        %699 = vmatprep.mubr.f32.mxu0 0.0
        %700 = vmatmul.mubr.f32.gmra.mrb[0].mxu0 %v447
        %v701 = vpop.f32.mrb[0].mxu0
        %v702 = vadd.f32 %v314, %v701
        %v703 = vpop.f32.mrb[0].mxu0
        %v704 = vadd.f32 %v315, %v703
        %705 = vdwg.mxu0
        %v706 = vmax.f32 %v516, %v528
        %v707 = vmax.f32 %v522, %v534
        %v708 = vmax.f32 %v706, %v540
        %v709 = vmax.f32 %v707, %v546
        %v710 = vmax.f32 %v708, %v552
        %v711 = vmax.f32 %v709, %v558
        %v712 = vmax.f32 %v710, %v564
        %v713 = vmax.f32 %v711, %v570
        %v714 = vmax.f32 %v712, %v576
        %v715 = vmax.f32 %v713, %v582
        %v716 = vmax.f32 %v714, %v588
        %v717 = vmax.f32 %v715, %v594
        %v718 = vmax.f32 %v716, %v600
        %v719 = vmax.f32 %v717, %v606
        %v720 = vmax.f32 %v718, %v612
        %v721 = vmax.f32 %v719, %v618
        %v722 = vmax.f32 %v720, %v624
        %v723 = vmax.f32 %v721, %v630
        %v724 = vmax.f32 %v722, %v636
        %v725 = vmax.f32 %v723, %v642
        %v726 = vmax.f32 %v724, %v648
        %v727 = vmax.f32 %v725, %v654
        %v728 = vmax.f32 %v726, %v660
        %v729 = vmax.f32 %v727, %v666
        %v730 = vmax.f32 %v728, %v672
        %v731 = vmax.f32 %v729, %v678
        %v732 = vmax.f32 %v730, %v684
        %v733 = vmax.f32 %v731, %v690
        %v734 = vmax.f32 %v732, %v696
        %v735 = vmax.f32 %v733, %v702
        %v736 = vmax.f32 %v734, %v735
        %v737 = vrot.slane %v736, 4
        %v738 = vmax.f32 %v736, %v737
        %v739 = vrot.slane %v738, 2
        %v740 = vmax.f32 %v738, %v739
        %v741 = vrot.slane %v740, 1
        %v742 = vmax.f32 %v740, %v741
        %v743 = vmax.f32 %v518, %v530
        %v744 = vmax.f32 %v524, %v536
        %v745 = vmax.f32 %v743, %v542
        %v746 = vmax.f32 %v744, %v548
        %v747 = vmax.f32 %v745, %v554
        %v748 = vmax.f32 %v746, %v560
        %v749 = vmax.f32 %v747, %v566
        %v750 = vmax.f32 %v748, %v572
        %v751 = vmax.f32 %v749, %v578
        %v752 = vmax.f32 %v750, %v584
        %v753 = vmax.f32 %v751, %v590
        %v754 = vmax.f32 %v752, %v596
        %v755 = vmax.f32 %v753, %v602
        %v756 = vmax.f32 %v754, %v608
        %v757 = vmax.f32 %v755, %v614
        %v758 = vmax.f32 %v756, %v620
        %v759 = vmax.f32 %v757, %v626
        %v760 = vmax.f32 %v758, %v632
        %v761 = vmax.f32 %v759, %v638
        %v762 = vmax.f32 %v760, %v644
        %v763 = vmax.f32 %v761, %v650
        %v764 = vmax.f32 %v762, %v656
        %v765 = vmax.f32 %v763, %v662
        %v766 = vmax.f32 %v764, %v668
        %v767 = vmax.f32 %v765, %v674
        %v768 = vmax.f32 %v766, %v680
        %v769 = vmax.f32 %v767, %v686
        %v770 = vmax.f32 %v768, %v692
        %v771 = vmax.f32 %v769, %v698
        %v772 = vmax.f32 %v770, %v704
        %v773 = vmax.f32 %v771, %v772
        %v774 = vrot.slane %v773, 4
        %v775 = vmax.f32 %v773, %v774
        %v776 = vrot.slane %v775, 2
        %v777 = vmax.f32 %v775, %v776
        %v778 = vrot.slane %v777, 1
        %v779 = vmax.f32 %v777, %v778
        %v780 = vsub.f32 %v516, %v742
        %v781 = vsub.f32 %v518, %v779
        %v782 = vsub.f32 %v522, %v742
        %v783 = vsub.f32 %v524, %v779
        %v784 = vsub.f32 %v528, %v742
        %v785 = vsub.f32 %v530, %v779
        %v786 = vsub.f32 %v534, %v742
        %v787 = vsub.f32 %v536, %v779
        %v788 = vsub.f32 %v540, %v742
        %v789 = vsub.f32 %v542, %v779
        %v790 = vsub.f32 %v546, %v742
        %v791 = vsub.f32 %v548, %v779
        %v792 = vsub.f32 %v552, %v742
        %v793 = vsub.f32 %v554, %v779
        %v794 = vsub.f32 %v558, %v742
        %v795 = vsub.f32 %v560, %v779
        %v796 = vsub.f32 %v564, %v742
        %v797 = vsub.f32 %v566, %v779
        %v798 = vsub.f32 %v570, %v742
        %v799 = vsub.f32 %v572, %v779
        %v800 = vsub.f32 %v576, %v742
        %v801 = vsub.f32 %v578, %v779
        %v802 = vsub.f32 %v582, %v742
        %v803 = vsub.f32 %v584, %v779
        %v804 = vsub.f32 %v588, %v742
        %v805 = vsub.f32 %v590, %v779
        %v806 = vsub.f32 %v594, %v742
        %v807 = vsub.f32 %v596, %v779
        %v808 = vsub.f32 %v600, %v742
        %v809 = vsub.f32 %v602, %v779
        %v810 = vsub.f32 %v606, %v742
        %v811 = vsub.f32 %v608, %v779
        %v812 = vsub.f32 %v612, %v742
        %v813 = vsub.f32 %v614, %v779
        %v814 = vsub.f32 %v618, %v742
        %v815 = vsub.f32 %v620, %v779
        %v816 = vsub.f32 %v624, %v742
        %v817 = vsub.f32 %v626, %v779
        %v818 = vsub.f32 %v630, %v742
        %v819 = vsub.f32 %v632, %v779
        %v820 = vsub.f32 %v636, %v742
        %v821 = vsub.f32 %v638, %v779
        %v822 = vsub.f32 %v642, %v742
        %v823 = vsub.f32 %v644, %v779
        %v824 = vsub.f32 %v648, %v742
        %v825 = vsub.f32 %v650, %v779
        %v826 = vsub.f32 %v654, %v742
        %v827 = vsub.f32 %v656, %v779
        %v828 = vsub.f32 %v660, %v742
        %v829 = vsub.f32 %v662, %v779
        %v830 = vsub.f32 %v666, %v742
        %v831 = vsub.f32 %v668, %v779
        %v832 = vsub.f32 %v672, %v742
        %v833 = vsub.f32 %v674, %v779
        %v834 = vsub.f32 %v678, %v742
        %v835 = vsub.f32 %v680, %v779
        %v836 = vsub.f32 %v684, %v742
        %v837 = vsub.f32 %v686, %v779
        %v838 = vsub.f32 %v690, %v742
        %v839 = vsub.f32 %v692, %v779
        %v840 = vsub.f32 %v696, %v742
        %v841 = vsub.f32 %v698, %v779
        %v842 = vsub.f32 %v702, %v742
        %v843 = vsub.f32 %v704, %v779
        %v844 = vmul.f32 %v780, 1.442695
        %v845 = vpow.pop %v844
        %v846 = vmul.f32 %v781, 1.442695
        %v847 = vpow.pop %v846
        %v848 = vmul.f32 %v782, 1.442695
        %v849 = vpow.pop %v848
        %v850 = vmul.f32 %v783, 1.442695
        %v851 = vpow.pop %v850
        %v852 = vmul.f32 %v784, 1.442695
        %v853 = vpow.pop %v852
        %v854 = vmul.f32 %v785, 1.442695
        %v855 = vpow.pop %v854
        %v856 = vmul.f32 %v786, 1.442695
        %v857 = vpow.pop %v856
        %v858 = vmul.f32 %v787, 1.442695
        %v859 = vpow.pop %v858
        %v860 = vmul.f32 %v788, 1.442695
        %v861 = vpow.pop %v860
        %v862 = vmul.f32 %v789, 1.442695
        %v863 = vpow.pop %v862
        %v864 = vmul.f32 %v790, 1.442695
        %v865 = vpow.pop %v864
        %v866 = vmul.f32 %v791, 1.442695
        %v867 = vpow.pop %v866
        %v868 = vmul.f32 %v792, 1.442695
        %v869 = vpow.pop %v868
        %v870 = vmul.f32 %v793, 1.442695
        %v871 = vpow.pop %v870
        %v872 = vmul.f32 %v794, 1.442695
        %v873 = vpow.pop %v872
        %v874 = vmul.f32 %v795, 1.442695
        %v875 = vpow.pop %v874
        %v876 = vmul.f32 %v796, 1.442695
        %v877 = vpow.pop %v876
        %v878 = vmul.f32 %v797, 1.442695
        %v879 = vpow.pop %v878
        %v880 = vmul.f32 %v798, 1.442695
        %v881 = vpow.pop %v880
        %v882 = vmul.f32 %v799, 1.442695
        %v883 = vpow.pop %v882
        %v884 = vmul.f32 %v800, 1.442695
        %v885 = vpow.pop %v884
        %v886 = vmul.f32 %v801, 1.442695
        %v887 = vpow.pop %v886
        %v888 = vmul.f32 %v802, 1.442695
        %v889 = vpow.pop %v888
        %v890 = vmul.f32 %v803, 1.442695
        %v891 = vpow.pop %v890
        %v892 = vmul.f32 %v804, 1.442695
        %v893 = vpow.pop %v892
        %v894 = vmul.f32 %v805, 1.442695
        %v895 = vpow.pop %v894
        %v896 = vmul.f32 %v806, 1.442695
        %v897 = vpow.pop %v896
        %v898 = vmul.f32 %v807, 1.442695
        %v899 = vpow.pop %v898
        %v900 = vmul.f32 %v808, 1.442695
        %v901 = vpow.pop %v900
        %v902 = vmul.f32 %v809, 1.442695
        %v903 = vpow.pop %v902
        %v904 = vmul.f32 %v810, 1.442695
        %v905 = vpow.pop %v904
        %v906 = vmul.f32 %v811, 1.442695
        %v907 = vpow.pop %v906
        %v908 = vmul.f32 %v812, 1.442695
        %v909 = vpow.pop %v908
        %v910 = vmul.f32 %v813, 1.442695
        %v911 = vpow.pop %v910
        %v912 = vmul.f32 %v814, 1.442695
        %v913 = vpow.pop %v912
        %v914 = vmul.f32 %v815, 1.442695
        %v915 = vpow.pop %v914
        %v916 = vmul.f32 %v816, 1.442695
        %v917 = vpow.pop %v916
        %v918 = vmul.f32 %v817, 1.442695
        %v919 = vpow.pop %v918
        %v920 = vmul.f32 %v818, 1.442695
        %v921 = vpow.pop %v920
        %v922 = vmul.f32 %v819, 1.442695
        %v923 = vpow.pop %v922
        %v924 = vmul.f32 %v820, 1.442695
        %v925 = vpow.pop %v924
        %v926 = vmul.f32 %v821, 1.442695
        %v927 = vpow.pop %v926
        %v928 = vmul.f32 %v822, 1.442695
        %v929 = vpow.pop %v928
        %v930 = vmul.f32 %v823, 1.442695
        %v931 = vpow.pop %v930
        %v932 = vmul.f32 %v824, 1.442695
        %v933 = vpow.pop %v932
        %v934 = vmul.f32 %v825, 1.442695
        %v935 = vpow.pop %v934
        %v936 = vmul.f32 %v826, 1.442695
        %v937 = vpow.pop %v936
        %v938 = vmul.f32 %v827, 1.442695
        %v939 = vpow.pop %v938
        %v940 = vmul.f32 %v828, 1.442695
        %v941 = vpow.pop %v940
        %v942 = vmul.f32 %v829, 1.442695
        %v943 = vpow.pop %v942
        %v944 = vmul.f32 %v830, 1.442695
        %v945 = vpow.pop %v944
        %v946 = vmul.f32 %v831, 1.442695
        %v947 = vpow.pop %v946
        %v948 = vmul.f32 %v832, 1.442695
        %v949 = vpow.pop %v948
        %v950 = vmul.f32 %v833, 1.442695
        %v951 = vpow.pop %v950
        %v952 = vmul.f32 %v834, 1.442695
        %v953 = vpow.pop %v952
        %v954 = vmul.f32 %v835, 1.442695
        %v955 = vpow.pop %v954
        %v956 = vmul.f32 %v836, 1.442695
        %v957 = vpow.pop %v956
        %v958 = vmul.f32 %v837, 1.442695
        %v959 = vpow.pop %v958
        %v960 = vmul.f32 %v838, 1.442695
        %v961 = vpow.pop %v960
        %v962 = vmul.f32 %v839, 1.442695
        %v963 = vpow.pop %v962
        %v964 = vmul.f32 %v840, 1.442695
        %v965 = vpow.pop %v964
        %v966 = vmul.f32 %v841, 1.442695
        %v967 = vpow.pop %v966
        %v968 = vmul.f32 %v842, 1.442695
        %v969 = vpow.pop %v968
        %v970 = vmul.f32 %v843, 1.442695
        %v971 = vpow.pop %v970
        %v972 = vadd.f32 %v845, %v849
        %v973 = vadd.f32 %v972, %v853
        %v974 = vadd.f32 %v973, %v857
        %v975 = vadd.f32 %v974, %v861
        %v976 = vadd.f32 %v975, %v865
        %v977 = vadd.f32 %v976, %v869
        %v978 = vadd.f32 %v977, %v873
        %v979 = vadd.f32 %v978, %v877
        %v980 = vadd.f32 %v979, %v881
        %v981 = vadd.f32 %v980, %v885
        %v982 = vadd.f32 %v981, %v889
        %v983 = vadd.f32 %v982, %v893
        %v984 = vadd.f32 %v983, %v897
        %v985 = vadd.f32 %v984, %v901
        %v986 = vadd.f32 %v985, %v905
        %v987 = vadd.f32 %v986, %v909
        %v988 = vadd.f32 %v987, %v913
        %v989 = vadd.f32 %v988, %v917
        %v990 = vadd.f32 %v989, %v921
        %v991 = vadd.f32 %v990, %v925
        %v992 = vadd.f32 %v991, %v929
        %v993 = vadd.f32 %v992, %v933
        %v994 = vadd.f32 %v993, %v937
        %v995 = vadd.f32 %v994, %v941
        %v996 = vadd.f32 %v995, %v945
        %v997 = vadd.f32 %v996, %v949
        %v998 = vadd.f32 %v997, %v953
        %v999 = vadd.f32 %v998, %v957
        %v1000 = vadd.f32 %v999, %v961
        %v1001 = vadd.f32 %v1000, %v965
        %v1002 = vadd.f32 %v1001, %v969
        %v1003 = vrot.slane %v1002, 4
        %v1004 = vadd.f32 %v1002, %v1003
        %v1005 = vrot.slane %v1004, 2
        %v1006 = vadd.f32 %v1004, %v1005
        %v1007 = vrot.slane %v1006, 1
        %v1008 = vadd.f32 %v1006, %v1007
        %v1009 = vadd.f32 %v847, %v851
        %v1010 = vadd.f32 %v1009, %v855
        %v1011 = vadd.f32 %v1010, %v859
        %v1012 = vadd.f32 %v1011, %v863
        %v1013 = vadd.f32 %v1012, %v867
        %v1014 = vadd.f32 %v1013, %v871
        %v1015 = vadd.f32 %v1014, %v875
        %v1016 = vadd.f32 %v1015, %v879
        %v1017 = vadd.f32 %v1016, %v883
        %v1018 = vadd.f32 %v1017, %v887
        %v1019 = vadd.f32 %v1018, %v891
        %v1020 = vadd.f32 %v1019, %v895
        %v1021 = vadd.f32 %v1020, %v899
        %v1022 = vadd.f32 %v1021, %v903
        %v1023 = vadd.f32 %v1022, %v907
        %v1024 = vadd.f32 %v1023, %v911
        %v1025 = vadd.f32 %v1024, %v915
        %v1026 = vadd.f32 %v1025, %v919
        %v1027 = vadd.f32 %v1026, %v923
        %v1028 = vadd.f32 %v1027, %v927
        %v1029 = vadd.f32 %v1028, %v931
        %v1030 = vadd.f32 %v1029, %v935
        %v1031 = vadd.f32 %v1030, %v939
        %v1032 = vadd.f32 %v1031, %v943
        %v1033 = vadd.f32 %v1032, %v947
        %v1034 = vadd.f32 %v1033, %v951
        %v1035 = vadd.f32 %v1034, %v955
        %v1036 = vadd.f32 %v1035, %v959
        %v1037 = vadd.f32 %v1036, %v963
        %v1038 = vadd.f32 %v1037, %v967
        %v1039 = vadd.f32 %v1038, %v971
        %v1040 = vrot.slane %v1039, 4
        %v1041 = vadd.f32 %v1039, %v1040
        %v1042 = vrot.slane %v1041, 2
        %v1043 = vadd.f32 %v1041, %v1042
        %v1044 = vrot.slane %v1043, 1
        %v1045 = vadd.f32 %v1043, %v1044
        %v1046 = vld [vmem:[%s249] sm:$0xff]
        %v1047 = vld [vmem:[%s249 + $0x8] sm:$0xff]
        %1048 = vmatprep.subr.mxu0 %v847
        %1049 = vmatpush1.msra.mxu0 %v845
        %1050 = vmatprep.subr.mxu0 %v851
        %1051 = vmatpush1.msra.mxu0 %v849
        %1052 = vmatprep.subr.mxu0 %v855
        %1053 = vmatpush1.msra.mxu0 %v853
        %1054 = vmatprep.subr.mxu0 %v859
        %1055 = vmatpush1.msra.mxu0 %v857
        %1056 = vmatprep.subr.mxu0 %v863
        %1057 = vmatpush1.msra.mxu0 %v861
        %1058 = vmatprep.subr.mxu0 %v867
        %1059 = vmatpush1.msra.mxu0 %v865
        %1060 = vmatprep.subr.mxu0 %v871
        %1061 = vmatpush1.msra.mxu0 %v869
        %1062 = vmatprep.subr.mxu0 %v875
        %1063 = vmatpush1.msra.mxu0 %v873
        %1064 = vmatprep.subr.mxu0 %v879
        %1065 = vmatpush1.msra.mxu0 %v877
        %1066 = vmatprep.subr.mxu0 %v883
        %1067 = vmatpush1.msra.mxu0 %v881
        %1068 = vmatprep.subr.mxu0 %v887
        %1069 = vmatpush1.msra.mxu0 %v885
        %1070 = vmatprep.subr.mxu0 %v891
        %1071 = vmatpush1.msra.mxu0 %v889
        %1072 = vmatprep.subr.mxu0 %v895
        %1073 = vmatpush1.msra.mxu0 %v893
        %1074 = vmatprep.subr.mxu0 %v899
        %1075 = vmatpush1.msra.mxu0 %v897
        %1076 = vmatprep.subr.mxu0 %v903
        %1077 = vmatpush1.msra.mxu0 %v901
        %1078 = vmatprep.subr.mxu0 %v907
        %1079 = vmatpush1.msra.mxu0 %v905
        %1080 = vmatprep.subr.mxu0 %v911
        %1081 = vmatpush1.msra.mxu0 %v909
        %1082 = vmatprep.subr.mxu0 %v915
        %1083 = vmatpush1.msra.mxu0 %v913
        %1084 = vmatprep.subr.mxu0 %v919
        %1085 = vmatpush1.msra.mxu0 %v917
        %1086 = vmatprep.subr.mxu0 %v923
        %1087 = vmatpush1.msra.mxu0 %v921
        %1088 = vmatprep.subr.mxu0 %v927
        %1089 = vmatpush1.msra.mxu0 %v925
        %1090 = vmatprep.subr.mxu0 %v931
        %1091 = vmatpush1.msra.mxu0 %v929
        %1092 = vmatprep.subr.mxu0 %v935
        %1093 = vmatpush1.msra.mxu0 %v933
        %1094 = vmatprep.subr.mxu0 %v939
        %1095 = vmatpush1.msra.mxu0 %v937
        %1096 = vmatprep.subr.mxu0 %v943
        %1097 = vmatpush1.msra.mxu0 %v941
        %1098 = vmatprep.subr.mxu0 %v947
        %1099 = vmatpush1.msra.mxu0 %v945
        %1100 = vmatprep.subr.mxu0 %v951
        %1101 = vmatpush1.msra.mxu0 %v949
        %1102 = vmatprep.subr.mxu0 %v955
        %1103 = vmatpush1.msra.mxu0 %v953
        %1104 = vmatprep.subr.mxu0 %v959
        %1105 = vmatpush1.msra.mxu0 %v957
        %1106 = vmatprep.subr.mxu0 %v963
        %1107 = vmatpush1.msra.mxu0 %v961
        %1108 = vmatprep.subr.mxu0 %v967
        %1109 = vmatpush1.msra.mxu0 %v965
        %1110 = vmatprep.subr.mxu0 %v971
        %1111 = vmatpush1.msra.mxu0 %v969
        %1112 = vmatprep.mubr.f32.mxu0 %v1047
        %1113 = vmatmul.mubr.f32.gmra.mrb[0].mxu0 %v1046
        %v1114 = vpop.f32.mrb[0].mxu0
        %v1115 = vadd.f32 0.0, %v1114
        %v1116 = vpop.f32.mrb[0].mxu0
        %v1117 = vadd.f32 0.0, %v1116
        %1118 = vdwg.mxu0
        %v1119 = vrcp.pop %v1008
        %v1120 = vrcp.pop %v1045
        %v1121 = vmul.f32 %v1008, %v1119
        %v1122 = vmul.f32 %v1045, %v1120
        %v1123 = vsub.f32 2.0, %v1121
        %v1124 = vsub.f32 2.0, %v1122
        %v1125 = vmul.f32 %v1119, %v1123
        %v1126 = vmul.f32 %v1120, %v1124
        %v1127 = vmul.f32 %v1115, %v1125
        %v1128 = vmul.f32 %v1117, %v1126
        %1129 = vst [vmem:[%s229] sm:$0xff] %v1127
        %1130 = vst [vmem:[%s229 + $0x8] sm:$0xff] %v1128
        %s1131 = scalar_lea.vmem %s235, 16
        %v1132 = vld [vmem:[%s1131] sm:$0xff]
        %v1133 = vld [vmem:[%s1131 + $0x8] sm:$0xff]
        %v1134 = vmul.f32 %v1132, 0.35355338
        %v1135 = vmul.f32 %v1133, 0.35355338
        %s1136 = scalar_lea.vmem %s242, 256
        %v1137 = vld [vmem:[%s1136] sm:$0xff]
        %v1138 = vld [vmem:[%s1136 + $0x8] sm:$0xff]
        %v1139 = vld [vmem:[%s1136 + $0x10] sm:$0xff]
        %v1140 = vld [vmem:[%s1136 + $0x18] sm:$0xff]
        %v1141 = vld [vmem:[%s1136 + $0x20] sm:$0xff]
        %v1142 = vld [vmem:[%s1136 + $0x28] sm:$0xff]
        %v1143 = vld [vmem:[%s1136 + $0x30] sm:$0xff]
        %v1144 = vld [vmem:[%s1136 + $0x38] sm:$0xff]
        %v1145 = vld [vmem:[%s1136 + $0x40] sm:$0xff]
        %v1146 = vld [vmem:[%s1136 + $0x48] sm:$0xff]
        %v1147 = vld [vmem:[%s1136 + $0x50] sm:$0xff]
        %v1148 = vld [vmem:[%s1136 + $0x58] sm:$0xff]
        %v1149 = vld [vmem:[%s1136 + $0x60] sm:$0xff]
        %v1150 = vld [vmem:[%s1136 + $0x68] sm:$0xff]
        %v1151 = vld [vmem:[%s1136 + $0x70] sm:$0xff]
        %v1152 = vld [vmem:[%s1136 + $0x78] sm:$0xff]
        %v1153 = vld [vmem:[%s1136 + $0x80] sm:$0xff]
        %v1154 = vld [vmem:[%s1136 + $0x88] sm:$0xff]
        %v1155 = vld [vmem:[%s1136 + $0x90] sm:$0xff]
        %v1156 = vld [vmem:[%s1136 + $0x98] sm:$0xff]
        %v1157 = vld [vmem:[%s1136 + $0xa0] sm:$0xff]
        %v1158 = vld [vmem:[%s1136 + $0xa8] sm:$0xff]
        %v1159 = vld [vmem:[%s1136 + $0xb0] sm:$0xff]
        %v1160 = vld [vmem:[%s1136 + $0xb8] sm:$0xff]
        %v1161 = vld [vmem:[%s1136 + $0xc0] sm:$0xff]
        %v1162 = vld [vmem:[%s1136 + $0xc8] sm:$0xff]
        %v1163 = vld [vmem:[%s1136 + $0xd0] sm:$0xff]
        %v1164 = vld [vmem:[%s1136 + $0xd8] sm:$0xff]
        %v1165 = vld [vmem:[%s1136 + $0xe0] sm:$0xff]
        %v1166 = vld [vmem:[%s1136 + $0xe8] sm:$0xff]
        %v1167 = vld [vmem:[%s1136 + $0xf0] sm:$0xff]
        %v1168 = vld [vmem:[%s1136 + $0xf8] sm:$0xff]
        %v1170 = vsel %vm352, %v1137, 0
        %v1173 = vsel %vm352, %v1138, 0
        %v1176 = vsel %vm352, %v1139, 0
        %v1179 = vsel %vm352, %v1140, 0
        %v1182 = vsel %vm352, %v1141, 0
        %v1185 = vsel %vm352, %v1142, 0
        %v1188 = vsel %vm352, %v1143, 0
        %v1191 = vsel %vm352, %v1144, 0
        %v1194 = vsel %vm352, %v1145, 0
        %v1197 = vsel %vm352, %v1146, 0
        %v1200 = vsel %vm352, %v1147, 0
        %v1203 = vsel %vm352, %v1148, 0
        %v1206 = vsel %vm352, %v1149, 0
        %v1209 = vsel %vm352, %v1150, 0
        %v1212 = vsel %vm352, %v1151, 0
        %v1215 = vsel %vm352, %v1152, 0
        %v1218 = vsel %vm352, %v1153, 0
        %v1221 = vsel %vm352, %v1154, 0
        %v1224 = vsel %vm352, %v1155, 0
        %v1227 = vsel %vm352, %v1156, 0
        %v1230 = vsel %vm352, %v1157, 0
        %v1233 = vsel %vm352, %v1158, 0
        %v1236 = vsel %vm352, %v1159, 0
        %v1239 = vsel %vm352, %v1160, 0
        %v1242 = vsel %vm352, %v1161, 0
        %v1245 = vsel %vm352, %v1162, 0
        %v1248 = vsel %vm352, %v1163, 0
        %v1251 = vsel %vm352, %v1164, 0
        %v1254 = vsel %vm352, %v1165, 0
        %v1257 = vsel %vm352, %v1166, 0
        %v1260 = vsel %vm352, %v1167, 0
        %v1263 = vsel %vm352, %v1168, 0
        %1265 = vmatprep.subr.mxu0 %v1135
        %1266 = vmatpush1.msra.mxu0 %v1134
        %1267 = vmatprep.subr.mxu0 0.0
        %1268 = vmatpush1.msra.mxu0 0.0
        %1269 = vmatprep.subr.mxu0 0.0
        %1270 = vmatpush1.msra.mxu0 0.0
        %1271 = vmatprep.subr.mxu0 0.0
        %1272 = vmatpush1.msra.mxu0 0.0
        %1273 = vmatprep.subr.mxu0 0.0
        %1274 = vmatpush1.msra.mxu0 0.0
        %1275 = vmatprep.subr.mxu0 0.0
        %1276 = vmatpush1.msra.mxu0 0.0
        %1277 = vmatprep.subr.mxu0 0.0
        %1278 = vmatpush1.msra.mxu0 0.0
        %1279 = vmatprep.subr.mxu0 0.0
        %1280 = vmatpush1.msra.mxu0 0.0
        %1281 = vmatprep.subr.mxu0 0.0
        %1282 = vmatpush1.msra.mxu0 0.0
        %1283 = vmatprep.subr.mxu0 0.0
        %1284 = vmatpush1.msra.mxu0 0.0
        %1285 = vmatprep.subr.mxu0 0.0
        %1286 = vmatpush1.msra.mxu0 0.0
        %1287 = vmatprep.subr.mxu0 0.0
        %1288 = vmatpush1.msra.mxu0 0.0
        %1289 = vmatprep.subr.mxu0 0.0
        %1290 = vmatpush1.msra.mxu0 0.0
        %1291 = vmatprep.subr.mxu0 0.0
        %1292 = vmatpush1.msra.mxu0 0.0
        %1293 = vmatprep.subr.mxu0 0.0
        %1294 = vmatpush1.msra.mxu0 0.0
        %1295 = vmatprep.subr.mxu0 0.0
        %1296 = vmatpush1.msra.mxu0 0.0
        %1297 = vmatprep.subr.mxu0 0.0
        %1298 = vmatpush1.msra.mxu0 0.0
        %1299 = vmatprep.subr.mxu0 0.0
        %1300 = vmatpush1.msra.mxu0 0.0
        %1301 = vmatprep.subr.mxu0 0.0
        %1302 = vmatpush1.msra.mxu0 0.0
        %1303 = vmatprep.subr.mxu0 0.0
        %1304 = vmatpush1.msra.mxu0 0.0
        %1305 = vmatprep.subr.mxu0 0.0
        %1306 = vmatpush1.msra.mxu0 0.0
        %1307 = vmatprep.subr.mxu0 0.0
        %1308 = vmatpush1.msra.mxu0 0.0
        %1309 = vmatprep.subr.mxu0 0.0
        %1310 = vmatpush1.msra.mxu0 0.0
        %1311 = vmatprep.subr.mxu0 0.0
        %1312 = vmatpush1.msra.mxu0 0.0
        %1313 = vmatprep.subr.mxu0 0.0
        %1314 = vmatpush1.msra.mxu0 0.0
        %1315 = vmatprep.subr.mxu0 0.0
        %1316 = vmatpush1.msra.mxu0 0.0
        %1317 = vmatprep.subr.mxu0 0.0
        %1318 = vmatpush1.msra.mxu0 0.0
        %1319 = vmatprep.subr.mxu0 0.0
        %1320 = vmatpush1.msra.mxu0 0.0
        %1321 = vmatprep.subr.mxu0 0.0
        %1322 = vmatpush1.msra.mxu0 0.0
        %1323 = vmatprep.subr.mxu0 0.0
        %1324 = vmatpush1.msra.mxu0 0.0
        %1325 = vmatprep.subr.mxu0 0.0
        %1326 = vmatpush1.msra.mxu0 0.0
        %1327 = vmatprep.subr.mxu0 0.0
        %1328 = vmatpush1.msra.mxu0 0.0
        %1329 = vmatprep.mubr.f32.mxu0 0.0
        %1330 = vmatmul.mubr.f32.gmra.mrb[0].mxu0 %v1170
        %v1331 = vpop.f32.mrb[0].mxu0
        %v1332 = vadd.f32 %v252, %v1331
        %v1333 = vpop.f32.mrb[0].mxu0
        %v1334 = vadd.f32 %v253, %v1333
        %1335 = vmatprep.mubr.f32.mxu0 0.0
        %1336 = vmatmul.mubr.f32.gmra.mrb[0].mxu0 %v1173
        %v1337 = vpop.f32.mrb[0].mxu0
        %v1338 = vadd.f32 %v254, %v1337
        %v1339 = vpop.f32.mrb[0].mxu0
        %v1340 = vadd.f32 %v255, %v1339
        %1341 = vmatprep.mubr.f32.mxu0 0.0
        %1342 = vmatmul.mubr.f32.gmra.mrb[0].mxu0 %v1176
        %v1343 = vpop.f32.mrb[0].mxu0
        %v1344 = vadd.f32 %v256, %v1343
        %v1345 = vpop.f32.mrb[0].mxu0
        %v1346 = vadd.f32 %v257, %v1345
        %1347 = vmatprep.mubr.f32.mxu0 0.0
        %1348 = vmatmul.mubr.f32.gmra.mrb[0].mxu0 %v1179
        %v1349 = vpop.f32.mrb[0].mxu0
        %v1350 = vadd.f32 %v258, %v1349
        %v1351 = vpop.f32.mrb[0].mxu0
        %v1352 = vadd.f32 %v259, %v1351
        %1353 = vmatprep.mubr.f32.mxu0 0.0
        %1354 = vmatmul.mubr.f32.gmra.mrb[0].mxu0 %v1182
        %v1355 = vpop.f32.mrb[0].mxu0
        %v1356 = vadd.f32 %v260, %v1355
        %v1357 = vpop.f32.mrb[0].mxu0
        %v1358 = vadd.f32 %v261, %v1357
        %1359 = vmatprep.mubr.f32.mxu0 0.0
        %1360 = vmatmul.mubr.f32.gmra.mrb[0].mxu0 %v1185
        %v1361 = vpop.f32.mrb[0].mxu0
        %v1362 = vadd.f32 %v262, %v1361
        %v1363 = vpop.f32.mrb[0].mxu0
        %v1364 = vadd.f32 %v263, %v1363
        %1365 = vmatprep.mubr.f32.mxu0 0.0
        %1366 = vmatmul.mubr.f32.gmra.mrb[0].mxu0 %v1188
        %v1367 = vpop.f32.mrb[0].mxu0
        %v1368 = vadd.f32 %v264, %v1367
        %v1369 = vpop.f32.mrb[0].mxu0
        %v1370 = vadd.f32 %v265, %v1369
        %1371 = vmatprep.mubr.f32.mxu0 0.0
        %1372 = vmatmul.mubr.f32.gmra.mrb[0].mxu0 %v1191
        %v1373 = vpop.f32.mrb[0].mxu0
        %v1374 = vadd.f32 %v266, %v1373
        %v1375 = vpop.f32.mrb[0].mxu0
        %v1376 = vadd.f32 %v267, %v1375
        %1377 = vmatprep.mubr.f32.mxu0 0.0
        %1378 = vmatmul.mubr.f32.gmra.mrb[0].mxu0 %v1194
        %v1379 = vpop.f32.mrb[0].mxu0
        %v1380 = vadd.f32 %v268, %v1379
        %v1381 = vpop.f32.mrb[0].mxu0
        %v1382 = vadd.f32 %v269, %v1381
        %1383 = vmatprep.mubr.f32.mxu0 0.0
        %1384 = vmatmul.mubr.f32.gmra.mrb[0].mxu0 %v1197
        %v1385 = vpop.f32.mrb[0].mxu0
        %v1386 = vadd.f32 %v270, %v1385
        %v1387 = vpop.f32.mrb[0].mxu0
        %v1388 = vadd.f32 %v271, %v1387
        %1389 = vmatprep.mubr.f32.mxu0 0.0
        %1390 = vmatmul.mubr.f32.gmra.mrb[0].mxu0 %v1200
        %v1391 = vpop.f32.mrb[0].mxu0
        %v1392 = vadd.f32 %v272, %v1391
        %v1393 = vpop.f32.mrb[0].mxu0
        %v1394 = vadd.f32 %v273, %v1393
        %1395 = vmatprep.mubr.f32.mxu0 0.0
        %1396 = vmatmul.mubr.f32.gmra.mrb[0].mxu0 %v1203
        %v1397 = vpop.f32.mrb[0].mxu0
        %v1398 = vadd.f32 %v274, %v1397
        %v1399 = vpop.f32.mrb[0].mxu0
        %v1400 = vadd.f32 %v275, %v1399
        %1401 = vmatprep.mubr.f32.mxu0 0.0
        %1402 = vmatmul.mubr.f32.gmra.mrb[0].mxu0 %v1206
        %v1403 = vpop.f32.mrb[0].mxu0
        %v1404 = vadd.f32 %v276, %v1403
        %v1405 = vpop.f32.mrb[0].mxu0
        %v1406 = vadd.f32 %v277, %v1405
        %1407 = vmatprep.mubr.f32.mxu0 0.0
        %1408 = vmatmul.mubr.f32.gmra.mrb[0].mxu0 %v1209
        %v1409 = vpop.f32.mrb[0].mxu0
        %v1410 = vadd.f32 %v278, %v1409
        %v1411 = vpop.f32.mrb[0].mxu0
        %v1412 = vadd.f32 %v279, %v1411
        %1413 = vmatprep.mubr.f32.mxu0 0.0
        %1414 = vmatmul.mubr.f32.gmra.mrb[0].mxu0 %v1212
        %v1415 = vpop.f32.mrb[0].mxu0
        %v1416 = vadd.f32 %v280, %v1415
        %v1417 = vpop.f32.mrb[0].mxu0
        %v1418 = vadd.f32 %v281, %v1417
        %1419 = vmatprep.mubr.f32.mxu0 0.0
        %1420 = vmatmul.mubr.f32.gmra.mrb[0].mxu0 %v1215
        %v1421 = vpop.f32.mrb[0].mxu0
        %v1422 = vadd.f32 %v282, %v1421
        %v1423 = vpop.f32.mrb[0].mxu0
        %v1424 = vadd.f32 %v283, %v1423
        %1425 = vmatprep.mubr.f32.mxu0 0.0
        %1426 = vmatmul.mubr.f32.gmra.mrb[0].mxu0 %v1218
        %v1427 = vpop.f32.mrb[0].mxu0
        %v1428 = vadd.f32 %v284, %v1427
        %v1429 = vpop.f32.mrb[0].mxu0
        %v1430 = vadd.f32 %v285, %v1429
        %1431 = vmatprep.mubr.f32.mxu0 0.0
        %1432 = vmatmul.mubr.f32.gmra.mrb[0].mxu0 %v1221
        %v1433 = vpop.f32.mrb[0].mxu0
        %v1434 = vadd.f32 %v286, %v1433
        %v1435 = vpop.f32.mrb[0].mxu0
        %v1436 = vadd.f32 %v287, %v1435
        %1437 = vmatprep.mubr.f32.mxu0 0.0
        %1438 = vmatmul.mubr.f32.gmra.mrb[0].mxu0 %v1224
        %v1439 = vpop.f32.mrb[0].mxu0
        %v1440 = vadd.f32 %v288, %v1439
        %v1441 = vpop.f32.mrb[0].mxu0
        %v1442 = vadd.f32 %v289, %v1441
        %1443 = vmatprep.mubr.f32.mxu0 0.0
        %1444 = vmatmul.mubr.f32.gmra.mrb[0].mxu0 %v1227
        %v1445 = vpop.f32.mrb[0].mxu0
        %v1446 = vadd.f32 %v290, %v1445
        %v1447 = vpop.f32.mrb[0].mxu0
        %v1448 = vadd.f32 %v291, %v1447
        %1449 = vmatprep.mubr.f32.mxu0 0.0
        %1450 = vmatmul.mubr.f32.gmra.mrb[0].mxu0 %v1230
        %v1451 = vpop.f32.mrb[0].mxu0
        %v1452 = vadd.f32 %v292, %v1451
        %v1453 = vpop.f32.mrb[0].mxu0
        %v1454 = vadd.f32 %v293, %v1453
        %1455 = vmatprep.mubr.f32.mxu0 0.0
        %1456 = vmatmul.mubr.f32.gmra.mrb[0].mxu0 %v1233
        %v1457 = vpop.f32.mrb[0].mxu0
        %v1458 = vadd.f32 %v294, %v1457
        %v1459 = vpop.f32.mrb[0].mxu0
        %v1460 = vadd.f32 %v295, %v1459
        %1461 = vmatprep.mubr.f32.mxu0 0.0
        %1462 = vmatmul.mubr.f32.gmra.mrb[0].mxu0 %v1236
        %v1463 = vpop.f32.mrb[0].mxu0
        %v1464 = vadd.f32 %v296, %v1463
        %v1465 = vpop.f32.mrb[0].mxu0
        %v1466 = vadd.f32 %v297, %v1465
        %1467 = vmatprep.mubr.f32.mxu0 0.0
        %1468 = vmatmul.mubr.f32.gmra.mrb[0].mxu0 %v1239
        %v1469 = vpop.f32.mrb[0].mxu0
        %v1470 = vadd.f32 %v298, %v1469
        %v1471 = vpop.f32.mrb[0].mxu0
        %v1472 = vadd.f32 %v299, %v1471
        %1473 = vmatprep.mubr.f32.mxu0 0.0
        %1474 = vmatmul.mubr.f32.gmra.mrb[0].mxu0 %v1242
        %v1475 = vpop.f32.mrb[0].mxu0
        %v1476 = vadd.f32 %v300, %v1475
        %v1477 = vpop.f32.mrb[0].mxu0
        %v1478 = vadd.f32 %v301, %v1477
        %1479 = vmatprep.mubr.f32.mxu0 0.0
        %1480 = vmatmul.mubr.f32.gmra.mrb[0].mxu0 %v1245
        %v1481 = vpop.f32.mrb[0].mxu0
        %v1482 = vadd.f32 %v302, %v1481
        %v1483 = vpop.f32.mrb[0].mxu0
        %v1484 = vadd.f32 %v303, %v1483
        %1485 = vmatprep.mubr.f32.mxu0 0.0
        %1486 = vmatmul.mubr.f32.gmra.mrb[0].mxu0 %v1248
        %v1487 = vpop.f32.mrb[0].mxu0
        %v1488 = vadd.f32 %v304, %v1487
        %v1489 = vpop.f32.mrb[0].mxu0
        %v1490 = vadd.f32 %v305, %v1489
        %1491 = vmatprep.mubr.f32.mxu0 0.0
        %1492 = vmatmul.mubr.f32.gmra.mrb[0].mxu0 %v1251
        %v1493 = vpop.f32.mrb[0].mxu0
        %v1494 = vadd.f32 %v306, %v1493
        %v1495 = vpop.f32.mrb[0].mxu0
        %v1496 = vadd.f32 %v307, %v1495
        %1497 = vmatprep.mubr.f32.mxu0 0.0
        %1498 = vmatmul.mubr.f32.gmra.mrb[0].mxu0 %v1254
        %v1499 = vpop.f32.mrb[0].mxu0
        %v1500 = vadd.f32 %v308, %v1499
        %v1501 = vpop.f32.mrb[0].mxu0
        %v1502 = vadd.f32 %v309, %v1501
        %1503 = vmatprep.mubr.f32.mxu0 0.0
        %1504 = vmatmul.mubr.f32.gmra.mrb[0].mxu0 %v1257
        %v1505 = vpop.f32.mrb[0].mxu0
        %v1506 = vadd.f32 %v310, %v1505
        %v1507 = vpop.f32.mrb[0].mxu0
        %v1508 = vadd.f32 %v311, %v1507
        %1509 = vmatprep.mubr.f32.mxu0 0.0
        %1510 = vmatmul.mubr.f32.gmra.mrb[0].mxu0 %v1260
        %v1511 = vpop.f32.mrb[0].mxu0
        %v1512 = vadd.f32 %v312, %v1511
        %v1513 = vpop.f32.mrb[0].mxu0
        %v1514 = vadd.f32 %v313, %v1513
        %1515 = vmatprep.mubr.f32.mxu0 0.0
        %1516 = vmatmul.mubr.f32.gmra.mrb[0].mxu0 %v1263
        %v1517 = vpop.f32.mrb[0].mxu0
        %v1518 = vadd.f32 %v314, %v1517
        %v1519 = vpop.f32.mrb[0].mxu0
        %v1520 = vadd.f32 %v315, %v1519
        %1521 = vdwg.mxu0
        %v1522 = vmax.f32 %v1332, %v1344
        %v1523 = vmax.f32 %v1338, %v1350
        %v1524 = vmax.f32 %v1522, %v1356
        %v1525 = vmax.f32 %v1523, %v1362
        %v1526 = vmax.f32 %v1524, %v1368
        %v1527 = vmax.f32 %v1525, %v1374
        %v1528 = vmax.f32 %v1526, %v1380
        %v1529 = vmax.f32 %v1527, %v1386
        %v1530 = vmax.f32 %v1528, %v1392
        %v1531 = vmax.f32 %v1529, %v1398
        %v1532 = vmax.f32 %v1530, %v1404
        %v1533 = vmax.f32 %v1531, %v1410
        %v1534 = vmax.f32 %v1532, %v1416
        %v1535 = vmax.f32 %v1533, %v1422
        %v1536 = vmax.f32 %v1534, %v1428
        %v1537 = vmax.f32 %v1535, %v1434
        %v1538 = vmax.f32 %v1536, %v1440
        %v1539 = vmax.f32 %v1537, %v1446
        %v1540 = vmax.f32 %v1538, %v1452
        %v1541 = vmax.f32 %v1539, %v1458
        %v1542 = vmax.f32 %v1540, %v1464
        %v1543 = vmax.f32 %v1541, %v1470
        %v1544 = vmax.f32 %v1542, %v1476
        %v1545 = vmax.f32 %v1543, %v1482
        %v1546 = vmax.f32 %v1544, %v1488
        %v1547 = vmax.f32 %v1545, %v1494
        %v1548 = vmax.f32 %v1546, %v1500
        %v1549 = vmax.f32 %v1547, %v1506
        %v1550 = vmax.f32 %v1548, %v1512
        %v1551 = vmax.f32 %v1549, %v1518
        %v1552 = vmax.f32 %v1550, %v1551
        %v1553 = vrot.slane %v1552, 4
        %v1554 = vmax.f32 %v1552, %v1553
        %v1555 = vrot.slane %v1554, 2
        %v1556 = vmax.f32 %v1554, %v1555
        %v1557 = vrot.slane %v1556, 1
        %v1558 = vmax.f32 %v1556, %v1557
        %v1559 = vmax.f32 %v1334, %v1346
        %v1560 = vmax.f32 %v1340, %v1352
        %v1561 = vmax.f32 %v1559, %v1358
        %v1562 = vmax.f32 %v1560, %v1364
        %v1563 = vmax.f32 %v1561, %v1370
        %v1564 = vmax.f32 %v1562, %v1376
        %v1565 = vmax.f32 %v1563, %v1382
        %v1566 = vmax.f32 %v1564, %v1388
        %v1567 = vmax.f32 %v1565, %v1394
        %v1568 = vmax.f32 %v1566, %v1400
        %v1569 = vmax.f32 %v1567, %v1406
        %v1570 = vmax.f32 %v1568, %v1412
        %v1571 = vmax.f32 %v1569, %v1418
        %v1572 = vmax.f32 %v1570, %v1424
        %v1573 = vmax.f32 %v1571, %v1430
        %v1574 = vmax.f32 %v1572, %v1436
        %v1575 = vmax.f32 %v1573, %v1442
        %v1576 = vmax.f32 %v1574, %v1448
        %v1577 = vmax.f32 %v1575, %v1454
        %v1578 = vmax.f32 %v1576, %v1460
        %v1579 = vmax.f32 %v1577, %v1466
        %v1580 = vmax.f32 %v1578, %v1472
        %v1581 = vmax.f32 %v1579, %v1478
        %v1582 = vmax.f32 %v1580, %v1484
        %v1583 = vmax.f32 %v1581, %v1490
        %v1584 = vmax.f32 %v1582, %v1496
        %v1585 = vmax.f32 %v1583, %v1502
        %v1586 = vmax.f32 %v1584, %v1508
        %v1587 = vmax.f32 %v1585, %v1514
        %v1588 = vmax.f32 %v1586, %v1520
        %v1589 = vmax.f32 %v1587, %v1588
        %v1590 = vrot.slane %v1589, 4
        %v1591 = vmax.f32 %v1589, %v1590
        %v1592 = vrot.slane %v1591, 2
        %v1593 = vmax.f32 %v1591, %v1592
        %v1594 = vrot.slane %v1593, 1
        %v1595 = vmax.f32 %v1593, %v1594
        %v1596 = vsub.f32 %v1332, %v1558
        %v1597 = vsub.f32 %v1334, %v1595
        %v1598 = vsub.f32 %v1338, %v1558
        %v1599 = vsub.f32 %v1340, %v1595
        %v1600 = vsub.f32 %v1344, %v1558
        %v1601 = vsub.f32 %v1346, %v1595
        %v1602 = vsub.f32 %v1350, %v1558
        %v1603 = vsub.f32 %v1352, %v1595
        %v1604 = vsub.f32 %v1356, %v1558
        %v1605 = vsub.f32 %v1358, %v1595
        %v1606 = vsub.f32 %v1362, %v1558
        %v1607 = vsub.f32 %v1364, %v1595
        %v1608 = vsub.f32 %v1368, %v1558
        %v1609 = vsub.f32 %v1370, %v1595
        %v1610 = vsub.f32 %v1374, %v1558
        %v1611 = vsub.f32 %v1376, %v1595
        %v1612 = vsub.f32 %v1380, %v1558
        %v1613 = vsub.f32 %v1382, %v1595
        %v1614 = vsub.f32 %v1386, %v1558
        %v1615 = vsub.f32 %v1388, %v1595
        %v1616 = vsub.f32 %v1392, %v1558
        %v1617 = vsub.f32 %v1394, %v1595
        %v1618 = vsub.f32 %v1398, %v1558
        %v1619 = vsub.f32 %v1400, %v1595
        %v1620 = vsub.f32 %v1404, %v1558
        %v1621 = vsub.f32 %v1406, %v1595
        %v1622 = vsub.f32 %v1410, %v1558
        %v1623 = vsub.f32 %v1412, %v1595
        %v1624 = vsub.f32 %v1416, %v1558
        %v1625 = vsub.f32 %v1418, %v1595
        %v1626 = vsub.f32 %v1422, %v1558
        %v1627 = vsub.f32 %v1424, %v1595
        %v1628 = vsub.f32 %v1428, %v1558
        %v1629 = vsub.f32 %v1430, %v1595
        %v1630 = vsub.f32 %v1434, %v1558
        %v1631 = vsub.f32 %v1436, %v1595
        %v1632 = vsub.f32 %v1440, %v1558
        %v1633 = vsub.f32 %v1442, %v1595
        %v1634 = vsub.f32 %v1446, %v1558
        %v1635 = vsub.f32 %v1448, %v1595
        %v1636 = vsub.f32 %v1452, %v1558
        %v1637 = vsub.f32 %v1454, %v1595
        %v1638 = vsub.f32 %v1458, %v1558
        %v1639 = vsub.f32 %v1460, %v1595
        %v1640 = vsub.f32 %v1464, %v1558
        %v1641 = vsub.f32 %v1466, %v1595
        %v1642 = vsub.f32 %v1470, %v1558
        %v1643 = vsub.f32 %v1472, %v1595
        %v1644 = vsub.f32 %v1476, %v1558
        %v1645 = vsub.f32 %v1478, %v1595
        %v1646 = vsub.f32 %v1482, %v1558
        %v1647 = vsub.f32 %v1484, %v1595
        %v1648 = vsub.f32 %v1488, %v1558
        %v1649 = vsub.f32 %v1490, %v1595
        %v1650 = vsub.f32 %v1494, %v1558
        %v1651 = vsub.f32 %v1496, %v1595
        %v1652 = vsub.f32 %v1500, %v1558
        %v1653 = vsub.f32 %v1502, %v1595
        %v1654 = vsub.f32 %v1506, %v1558
        %v1655 = vsub.f32 %v1508, %v1595
        %v1656 = vsub.f32 %v1512, %v1558
        %v1657 = vsub.f32 %v1514, %v1595
        %v1658 = vsub.f32 %v1518, %v1558
        %v1659 = vsub.f32 %v1520, %v1595
        %v1660 = vmul.f32 %v1596, 1.442695
        %v1661 = vpow.pop %v1660
        %v1662 = vmul.f32 %v1597, 1.442695
        %v1663 = vpow.pop %v1662
        %v1664 = vmul.f32 %v1598, 1.442695
        %v1665 = vpow.pop %v1664
        %v1666 = vmul.f32 %v1599, 1.442695
        %v1667 = vpow.pop %v1666
        %v1668 = vmul.f32 %v1600, 1.442695
        %v1669 = vpow.pop %v1668
        %v1670 = vmul.f32 %v1601, 1.442695
        %v1671 = vpow.pop %v1670
        %v1672 = vmul.f32 %v1602, 1.442695
        %v1673 = vpow.pop %v1672
        %v1674 = vmul.f32 %v1603, 1.442695
        %v1675 = vpow.pop %v1674
        %v1676 = vmul.f32 %v1604, 1.442695
        %v1677 = vpow.pop %v1676
        %v1678 = vmul.f32 %v1605, 1.442695
        %v1679 = vpow.pop %v1678
        %v1680 = vmul.f32 %v1606, 1.442695
        %v1681 = vpow.pop %v1680
        %v1682 = vmul.f32 %v1607, 1.442695
        %v1683 = vpow.pop %v1682
        %v1684 = vmul.f32 %v1608, 1.442695
        %v1685 = vpow.pop %v1684
        %v1686 = vmul.f32 %v1609, 1.442695
        %v1687 = vpow.pop %v1686
        %v1688 = vmul.f32 %v1610, 1.442695
        %v1689 = vpow.pop %v1688
        %v1690 = vmul.f32 %v1611, 1.442695
        %v1691 = vpow.pop %v1690
        %v1692 = vmul.f32 %v1612, 1.442695
        %v1693 = vpow.pop %v1692
        %v1694 = vmul.f32 %v1613, 1.442695
        %v1695 = vpow.pop %v1694
        %v1696 = vmul.f32 %v1614, 1.442695
        %v1697 = vpow.pop %v1696
        %v1698 = vmul.f32 %v1615, 1.442695
        %v1699 = vpow.pop %v1698
        %v1700 = vmul.f32 %v1616, 1.442695
        %v1701 = vpow.pop %v1700
        %v1702 = vmul.f32 %v1617, 1.442695
        %v1703 = vpow.pop %v1702
        %v1704 = vmul.f32 %v1618, 1.442695
        %v1705 = vpow.pop %v1704
        %v1706 = vmul.f32 %v1619, 1.442695
        %v1707 = vpow.pop %v1706
        %v1708 = vmul.f32 %v1620, 1.442695
        %v1709 = vpow.pop %v1708
        %v1710 = vmul.f32 %v1621, 1.442695
        %v1711 = vpow.pop %v1710
        %v1712 = vmul.f32 %v1622, 1.442695
        %v1713 = vpow.pop %v1712
        %v1714 = vmul.f32 %v1623, 1.442695
        %v1715 = vpow.pop %v1714
        %v1716 = vmul.f32 %v1624, 1.442695
        %v1717 = vpow.pop %v1716
        %v1718 = vmul.f32 %v1625, 1.442695
        %v1719 = vpow.pop %v1718
        %v1720 = vmul.f32 %v1626, 1.442695
        %v1721 = vpow.pop %v1720
        %v1722 = vmul.f32 %v1627, 1.442695
        %v1723 = vpow.pop %v1722
        %v1724 = vmul.f32 %v1628, 1.442695
        %v1725 = vpow.pop %v1724
        %v1726 = vmul.f32 %v1629, 1.442695
        %v1727 = vpow.pop %v1726
        %v1728 = vmul.f32 %v1630, 1.442695
        %v1729 = vpow.pop %v1728
        %v1730 = vmul.f32 %v1631, 1.442695
        %v1731 = vpow.pop %v1730
        %v1732 = vmul.f32 %v1632, 1.442695
        %v1733 = vpow.pop %v1732
        %v1734 = vmul.f32 %v1633, 1.442695
        %v1735 = vpow.pop %v1734
        %v1736 = vmul.f32 %v1634, 1.442695
        %v1737 = vpow.pop %v1736
        %v1738 = vmul.f32 %v1635, 1.442695
        %v1739 = vpow.pop %v1738
        %v1740 = vmul.f32 %v1636, 1.442695
        %v1741 = vpow.pop %v1740
        %v1742 = vmul.f32 %v1637, 1.442695
        %v1743 = vpow.pop %v1742
        %v1744 = vmul.f32 %v1638, 1.442695
        %v1745 = vpow.pop %v1744
        %v1746 = vmul.f32 %v1639, 1.442695
        %v1747 = vpow.pop %v1746
        %v1748 = vmul.f32 %v1640, 1.442695
        %v1749 = vpow.pop %v1748
        %v1750 = vmul.f32 %v1641, 1.442695
        %v1751 = vpow.pop %v1750
        %v1752 = vmul.f32 %v1642, 1.442695
        %v1753 = vpow.pop %v1752
        %v1754 = vmul.f32 %v1643, 1.442695
        %v1755 = vpow.pop %v1754
        %v1756 = vmul.f32 %v1644, 1.442695
        %v1757 = vpow.pop %v1756
        %v1758 = vmul.f32 %v1645, 1.442695
        %v1759 = vpow.pop %v1758
        %v1760 = vmul.f32 %v1646, 1.442695
        %v1761 = vpow.pop %v1760
        %v1762 = vmul.f32 %v1647, 1.442695
        %v1763 = vpow.pop %v1762
        %v1764 = vmul.f32 %v1648, 1.442695
        %v1765 = vpow.pop %v1764
        %v1766 = vmul.f32 %v1649, 1.442695
        %v1767 = vpow.pop %v1766
        %v1768 = vmul.f32 %v1650, 1.442695
        %v1769 = vpow.pop %v1768
        %v1770 = vmul.f32 %v1651, 1.442695
        %v1771 = vpow.pop %v1770
        %v1772 = vmul.f32 %v1652, 1.442695
        %v1773 = vpow.pop %v1772
        %v1774 = vmul.f32 %v1653, 1.442695
        %v1775 = vpow.pop %v1774
        %v1776 = vmul.f32 %v1654, 1.442695
        %v1777 = vpow.pop %v1776
        %v1778 = vmul.f32 %v1655, 1.442695
        %v1779 = vpow.pop %v1778
        %v1780 = vmul.f32 %v1656, 1.442695
        %v1781 = vpow.pop %v1780
        %v1782 = vmul.f32 %v1657, 1.442695
        %v1783 = vpow.pop %v1782
        %v1784 = vmul.f32 %v1658, 1.442695
        %v1785 = vpow.pop %v1784
        %v1786 = vmul.f32 %v1659, 1.442695
        %v1787 = vpow.pop %v1786
        %v1788 = vadd.f32 %v1661, %v1665
        %v1789 = vadd.f32 %v1788, %v1669
        %v1790 = vadd.f32 %v1789, %v1673
        %v1791 = vadd.f32 %v1790, %v1677
        %v1792 = vadd.f32 %v1791, %v1681
        %v1793 = vadd.f32 %v1792, %v1685
        %v1794 = vadd.f32 %v1793, %v1689
        %v1795 = vadd.f32 %v1794, %v1693
        %v1796 = vadd.f32 %v1795, %v1697
        %v1797 = vadd.f32 %v1796, %v1701
        %v1798 = vadd.f32 %v1797, %v1705
        %v1799 = vadd.f32 %v1798, %v1709
        %v1800 = vadd.f32 %v1799, %v1713
        %v1801 = vadd.f32 %v1800, %v1717
        %v1802 = vadd.f32 %v1801, %v1721
        %v1803 = vadd.f32 %v1802, %v1725
        %v1804 = vadd.f32 %v1803, %v1729
        %v1805 = vadd.f32 %v1804, %v1733
        %v1806 = vadd.f32 %v1805, %v1737
        %v1807 = vadd.f32 %v1806, %v1741
        %v1808 = vadd.f32 %v1807, %v1745
        %v1809 = vadd.f32 %v1808, %v1749
        %v1810 = vadd.f32 %v1809, %v1753
        %v1811 = vadd.f32 %v1810, %v1757
        %v1812 = vadd.f32 %v1811, %v1761
        %v1813 = vadd.f32 %v1812, %v1765
        %v1814 = vadd.f32 %v1813, %v1769
        %v1815 = vadd.f32 %v1814, %v1773
        %v1816 = vadd.f32 %v1815, %v1777
        %v1817 = vadd.f32 %v1816, %v1781
        %v1818 = vadd.f32 %v1817, %v1785
        %v1819 = vrot.slane %v1818, 4
        %v1820 = vadd.f32 %v1818, %v1819
        %v1821 = vrot.slane %v1820, 2
        %v1822 = vadd.f32 %v1820, %v1821
        %v1823 = vrot.slane %v1822, 1
        %v1824 = vadd.f32 %v1822, %v1823
        %v1825 = vadd.f32 %v1663, %v1667
        %v1826 = vadd.f32 %v1825, %v1671
        %v1827 = vadd.f32 %v1826, %v1675
        %v1828 = vadd.f32 %v1827, %v1679
        %v1829 = vadd.f32 %v1828, %v1683
        %v1830 = vadd.f32 %v1829, %v1687
        %v1831 = vadd.f32 %v1830, %v1691
        %v1832 = vadd.f32 %v1831, %v1695
        %v1833 = vadd.f32 %v1832, %v1699
        %v1834 = vadd.f32 %v1833, %v1703
        %v1835 = vadd.f32 %v1834, %v1707
        %v1836 = vadd.f32 %v1835, %v1711
        %v1837 = vadd.f32 %v1836, %v1715
        %v1838 = vadd.f32 %v1837, %v1719
        %v1839 = vadd.f32 %v1838, %v1723
        %v1840 = vadd.f32 %v1839, %v1727
        %v1841 = vadd.f32 %v1840, %v1731
        %v1842 = vadd.f32 %v1841, %v1735
        %v1843 = vadd.f32 %v1842, %v1739
        %v1844 = vadd.f32 %v1843, %v1743
        %v1845 = vadd.f32 %v1844, %v1747
        %v1846 = vadd.f32 %v1845, %v1751
        %v1847 = vadd.f32 %v1846, %v1755
        %v1848 = vadd.f32 %v1847, %v1759
        %v1849 = vadd.f32 %v1848, %v1763
        %v1850 = vadd.f32 %v1849, %v1767
        %v1851 = vadd.f32 %v1850, %v1771
        %v1852 = vadd.f32 %v1851, %v1775
        %v1853 = vadd.f32 %v1852, %v1779
        %v1854 = vadd.f32 %v1853, %v1783
        %v1855 = vadd.f32 %v1854, %v1787
        %v1856 = vrot.slane %v1855, 4
        %v1857 = vadd.f32 %v1855, %v1856
        %v1858 = vrot.slane %v1857, 2
        %v1859 = vadd.f32 %v1857, %v1858
        %v1860 = vrot.slane %v1859, 1
        %v1861 = vadd.f32 %v1859, %v1860
        %s1862 = scalar_lea.vmem %s249, 16
        %v1863 = vld [vmem:[%s1862] sm:$0xff]
        %v1864 = vld [vmem:[%s1862 + $0x8] sm:$0xff]
        %1865 = vmatprep.subr.mxu0 %v1663
        %1866 = vmatpush1.msra.mxu0 %v1661
        %1867 = vmatprep.subr.mxu0 %v1667
        %1868 = vmatpush1.msra.mxu0 %v1665
        %1869 = vmatprep.subr.mxu0 %v1671
        %1870 = vmatpush1.msra.mxu0 %v1669
        %1871 = vmatprep.subr.mxu0 %v1675
        %1872 = vmatpush1.msra.mxu0 %v1673
        %1873 = vmatprep.subr.mxu0 %v1679
        %1874 = vmatpush1.msra.mxu0 %v1677
        %1875 = vmatprep.subr.mxu0 %v1683
        %1876 = vmatpush1.msra.mxu0 %v1681
        %1877 = vmatprep.subr.mxu0 %v1687
        %1878 = vmatpush1.msra.mxu0 %v1685
        %1879 = vmatprep.subr.mxu0 %v1691
        %1880 = vmatpush1.msra.mxu0 %v1689
        %1881 = vmatprep.subr.mxu0 %v1695
        %1882 = vmatpush1.msra.mxu0 %v1693
        %1883 = vmatprep.subr.mxu0 %v1699
        %1884 = vmatpush1.msra.mxu0 %v1697
        %1885 = vmatprep.subr.mxu0 %v1703
        %1886 = vmatpush1.msra.mxu0 %v1701
        %1887 = vmatprep.subr.mxu0 %v1707
        %1888 = vmatpush1.msra.mxu0 %v1705
        %1889 = vmatprep.subr.mxu0 %v1711
        %1890 = vmatpush1.msra.mxu0 %v1709
        %1891 = vmatprep.subr.mxu0 %v1715
        %1892 = vmatpush1.msra.mxu0 %v1713
        %1893 = vmatprep.subr.mxu0 %v1719
        %1894 = vmatpush1.msra.mxu0 %v1717
        %1895 = vmatprep.subr.mxu0 %v1723
        %1896 = vmatpush1.msra.mxu0 %v1721
        %1897 = vmatprep.subr.mxu0 %v1727
        %1898 = vmatpush1.msra.mxu0 %v1725
        %1899 = vmatprep.subr.mxu0 %v1731
        %1900 = vmatpush1.msra.mxu0 %v1729
        %1901 = vmatprep.subr.mxu0 %v1735
        %1902 = vmatpush1.msra.mxu0 %v1733
        %1903 = vmatprep.subr.mxu0 %v1739
        %1904 = vmatpush1.msra.mxu0 %v1737
        %1905 = vmatprep.subr.mxu0 %v1743
        %1906 = vmatpush1.msra.mxu0 %v1741
        %1907 = vmatprep.subr.mxu0 %v1747
        %1908 = vmatpush1.msra.mxu0 %v1745
        %1909 = vmatprep.subr.mxu0 %v1751
        %1910 = vmatpush1.msra.mxu0 %v1749
        %1911 = vmatprep.subr.mxu0 %v1755
        %1912 = vmatpush1.msra.mxu0 %v1753
        %1913 = vmatprep.subr.mxu0 %v1759
        %1914 = vmatpush1.msra.mxu0 %v1757
        %1915 = vmatprep.subr.mxu0 %v1763
        %1916 = vmatpush1.msra.mxu0 %v1761
        %1917 = vmatprep.subr.mxu0 %v1767
        %1918 = vmatpush1.msra.mxu0 %v1765
        %1919 = vmatprep.subr.mxu0 %v1771
        %1920 = vmatpush1.msra.mxu0 %v1769
        %1921 = vmatprep.subr.mxu0 %v1775
        %1922 = vmatpush1.msra.mxu0 %v1773
        %1923 = vmatprep.subr.mxu0 %v1779
        %1924 = vmatpush1.msra.mxu0 %v1777
        %1925 = vmatprep.subr.mxu0 %v1783
        %1926 = vmatpush1.msra.mxu0 %v1781
        %1927 = vmatprep.subr.mxu0 %v1787
        %1928 = vmatpush1.msra.mxu0 %v1785
        %1929 = vmatprep.mubr.f32.mxu0 %v1864
        %1930 = vmatmul.mubr.f32.gmra.mrb[0].mxu0 %v1863
        %v1931 = vpop.f32.mrb[0].mxu0
        %v1932 = vadd.f32 0.0, %v1931
        %v1933 = vpop.f32.mrb[0].mxu0
        %v1934 = vadd.f32 0.0, %v1933
        %1935 = vdwg.mxu0
        %v1936 = vrcp.pop %v1824
        %v1937 = vrcp.pop %v1861
        %v1938 = vmul.f32 %v1824, %v1936
        %v1939 = vmul.f32 %v1861, %v1937
        %v1940 = vsub.f32 2.0, %v1938
        %v1941 = vsub.f32 2.0, %v1939
        %v1942 = vmul.f32 %v1936, %v1940
        %v1943 = vmul.f32 %v1937, %v1941
        %v1944 = vmul.f32 %v1932, %v1942
        %v1945 = vmul.f32 %v1934, %v1943
        %s1946 = scalar_lea.vmem %s229, 16 [#allocation2]
        %1947 = vst [vmem:[%s1946] sm:$0xff] %v1944
        %1948 = vst [vmem:[%s1946 + $0x8] sm:$0xff] %v1945
        %s1949 = scalar_lea.vmem %s235, 32
        %v1950 = vld [vmem:[%s1949] sm:$0xff]
        %v1951 = vld [vmem:[%s1949 + $0x8] sm:$0xff]
        %v1952 = vmul.f32 %v1950, 0.35355338
        %v1953 = vmul.f32 %v1951, 0.35355338
        %s1954 = scalar_lea.vmem %s242, 512
        %v1955 = vld [vmem:[%s1954] sm:$0xff]
        %v1956 = vld [vmem:[%s1954 + $0x8] sm:$0xff]
        %v1957 = vld [vmem:[%s1954 + $0x10] sm:$0xff]
        %v1958 = vld [vmem:[%s1954 + $0x18] sm:$0xff]
        %v1959 = vld [vmem:[%s1954 + $0x20] sm:$0xff]
        %v1960 = vld [vmem:[%s1954 + $0x28] sm:$0xff]
        %v1961 = vld [vmem:[%s1954 + $0x30] sm:$0xff]
        %v1962 = vld [vmem:[%s1954 + $0x38] sm:$0xff]
        %v1963 = vld [vmem:[%s1954 + $0x40] sm:$0xff]
        %v1964 = vld [vmem:[%s1954 + $0x48] sm:$0xff]
        %v1965 = vld [vmem:[%s1954 + $0x50] sm:$0xff]
        %v1966 = vld [vmem:[%s1954 + $0x58] sm:$0xff]
        %v1967 = vld [vmem:[%s1954 + $0x60] sm:$0xff]
        %v1968 = vld [vmem:[%s1954 + $0x68] sm:$0xff]
        %v1969 = vld [vmem:[%s1954 + $0x70] sm:$0xff]
        %v1970 = vld [vmem:[%s1954 + $0x78] sm:$0xff]
        %v1971 = vld [vmem:[%s1954 + $0x80] sm:$0xff]
        %v1972 = vld [vmem:[%s1954 + $0x88] sm:$0xff]
        %v1973 = vld [vmem:[%s1954 + $0x90] sm:$0xff]
        %v1974 = vld [vmem:[%s1954 + $0x98] sm:$0xff]
        %v1975 = vld [vmem:[%s1954 + $0xa0] sm:$0xff]
        %v1976 = vld [vmem:[%s1954 + $0xa8] sm:$0xff]
        %v1977 = vld [vmem:[%s1954 + $0xb0] sm:$0xff]
        %v1978 = vld [vmem:[%s1954 + $0xb8] sm:$0xff]
        %v1979 = vld [vmem:[%s1954 + $0xc0] sm:$0xff]
        %v1980 = vld [vmem:[%s1954 + $0xc8] sm:$0xff]
        %v1981 = vld [vmem:[%s1954 + $0xd0] sm:$0xff]
        %v1982 = vld [vmem:[%s1954 + $0xd8] sm:$0xff]
        %v1983 = vld [vmem:[%s1954 + $0xe0] sm:$0xff]
        %v1984 = vld [vmem:[%s1954 + $0xe8] sm:$0xff]
        %v1985 = vld [vmem:[%s1954 + $0xf0] sm:$0xff]
        %v1986 = vld [vmem:[%s1954 + $0xf8] sm:$0xff]
        %v1988 = vsel %vm352, %v1955, 0
        %v1991 = vsel %vm352, %v1956, 0
        %v1994 = vsel %vm352, %v1957, 0
        %v1997 = vsel %vm352, %v1958, 0
        %v2000 = vsel %vm352, %v1959, 0
        %v2003 = vsel %vm352, %v1960, 0
        %v2006 = vsel %vm352, %v1961, 0
        %v2009 = vsel %vm352, %v1962, 0
        %v2012 = vsel %vm352, %v1963, 0
        %v2015 = vsel %vm352, %v1964, 0
        %v2018 = vsel %vm352, %v1965, 0
        %v2021 = vsel %vm352, %v1966, 0
        %v2024 = vsel %vm352, %v1967, 0
        %v2027 = vsel %vm352, %v1968, 0
        %v2030 = vsel %vm352, %v1969, 0
        %v2033 = vsel %vm352, %v1970, 0
        %v2036 = vsel %vm352, %v1971, 0
        %v2039 = vsel %vm352, %v1972, 0
        %v2042 = vsel %vm352, %v1973, 0
        %v2045 = vsel %vm352, %v1974, 0
        %v2048 = vsel %vm352, %v1975, 0
        %v2051 = vsel %vm352, %v1976, 0
        %v2054 = vsel %vm352, %v1977, 0
        %v2057 = vsel %vm352, %v1978, 0
        %v2060 = vsel %vm352, %v1979, 0
        %v2063 = vsel %vm352, %v1980, 0
        %v2066 = vsel %vm352, %v1981, 0
        %v2069 = vsel %vm352, %v1982, 0
        %v2072 = vsel %vm352, %v1983, 0
        %v2075 = vsel %vm352, %v1984, 0
        %v2078 = vsel %vm352, %v1985, 0
        %v2081 = vsel %vm352, %v1986, 0
        %2083 = vmatprep.subr.mxu0 %v1953
        %2084 = vmatpush1.msra.mxu0 %v1952
        %2085 = vmatprep.subr.mxu0 0.0
        %2086 = vmatpush1.msra.mxu0 0.0
        %2087 = vmatprep.subr.mxu0 0.0
        %2088 = vmatpush1.msra.mxu0 0.0
        %2089 = vmatprep.subr.mxu0 0.0
        %2090 = vmatpush1.msra.mxu0 0.0
        %2091 = vmatprep.subr.mxu0 0.0
        %2092 = vmatpush1.msra.mxu0 0.0
        %2093 = vmatprep.subr.mxu0 0.0
        %2094 = vmatpush1.msra.mxu0 0.0
        %2095 = vmatprep.subr.mxu0 0.0
        %2096 = vmatpush1.msra.mxu0 0.0
        %2097 = vmatprep.subr.mxu0 0.0
        %2098 = vmatpush1.msra.mxu0 0.0
        %2099 = vmatprep.subr.mxu0 0.0
        %2100 = vmatpush1.msra.mxu0 0.0
        %2101 = vmatprep.subr.mxu0 0.0
        %2102 = vmatpush1.msra.mxu0 0.0
        %2103 = vmatprep.subr.mxu0 0.0
        %2104 = vmatpush1.msra.mxu0 0.0
        %2105 = vmatprep.subr.mxu0 0.0
        %2106 = vmatpush1.msra.mxu0 0.0
        %2107 = vmatprep.subr.mxu0 0.0
        %2108 = vmatpush1.msra.mxu0 0.0
        %2109 = vmatprep.subr.mxu0 0.0
        %2110 = vmatpush1.msra.mxu0 0.0
        %2111 = vmatprep.subr.mxu0 0.0
        %2112 = vmatpush1.msra.mxu0 0.0
        %2113 = vmatprep.subr.mxu0 0.0
        %2114 = vmatpush1.msra.mxu0 0.0
        %2115 = vmatprep.subr.mxu0 0.0
        %2116 = vmatpush1.msra.mxu0 0.0
        %2117 = vmatprep.subr.mxu0 0.0
        %2118 = vmatpush1.msra.mxu0 0.0
        %2119 = vmatprep.subr.mxu0 0.0
        %2120 = vmatpush1.msra.mxu0 0.0
        %2121 = vmatprep.subr.mxu0 0.0
        %2122 = vmatpush1.msra.mxu0 0.0
        %2123 = vmatprep.subr.mxu0 0.0
        %2124 = vmatpush1.msra.mxu0 0.0
        %2125 = vmatprep.subr.mxu0 0.0
        %2126 = vmatpush1.msra.mxu0 0.0
        %2127 = vmatprep.subr.mxu0 0.0
        %2128 = vmatpush1.msra.mxu0 0.0
        %2129 = vmatprep.subr.mxu0 0.0
        %2130 = vmatpush1.msra.mxu0 0.0
        %2131 = vmatprep.subr.mxu0 0.0
        %2132 = vmatpush1.msra.mxu0 0.0
        %2133 = vmatprep.subr.mxu0 0.0
        %2134 = vmatpush1.msra.mxu0 0.0
        %2135 = vmatprep.subr.mxu0 0.0
        %2136 = vmatpush1.msra.mxu0 0.0
        %2137 = vmatprep.subr.mxu0 0.0
        %2138 = vmatpush1.msra.mxu0 0.0
        %2139 = vmatprep.subr.mxu0 0.0
        %2140 = vmatpush1.msra.mxu0 0.0
        %2141 = vmatprep.subr.mxu0 0.0
        %2142 = vmatpush1.msra.mxu0 0.0
        %2143 = vmatprep.subr.mxu0 0.0
        %2144 = vmatpush1.msra.mxu0 0.0
        %2145 = vmatprep.subr.mxu0 0.0
        %2146 = vmatpush1.msra.mxu0 0.0
        %2147 = vmatprep.mubr.f32.mxu0 0.0
        %2148 = vmatmul.mubr.f32.gmra.mrb[0].mxu0 %v1988
        %v2149 = vpop.f32.mrb[0].mxu0
        %v2150 = vadd.f32 %v252, %v2149
        %v2151 = vpop.f32.mrb[0].mxu0
        %v2152 = vadd.f32 %v253, %v2151
        %2153 = vmatprep.mubr.f32.mxu0 0.0
        %2154 = vmatmul.mubr.f32.gmra.mrb[0].mxu0 %v1991
        %v2155 = vpop.f32.mrb[0].mxu0
        %v2156 = vadd.f32 %v254, %v2155
        %v2157 = vpop.f32.mrb[0].mxu0
        %v2158 = vadd.f32 %v255, %v2157
        %2159 = vmatprep.mubr.f32.mxu0 0.0
        %2160 = vmatmul.mubr.f32.gmra.mrb[0].mxu0 %v1994
        %v2161 = vpop.f32.mrb[0].mxu0
        %v2162 = vadd.f32 %v256, %v2161
        %v2163 = vpop.f32.mrb[0].mxu0
        %v2164 = vadd.f32 %v257, %v2163
        %2165 = vmatprep.mubr.f32.mxu0 0.0
        %2166 = vmatmul.mubr.f32.gmra.mrb[0].mxu0 %v1997
        %v2167 = vpop.f32.mrb[0].mxu0
        %v2168 = vadd.f32 %v258, %v2167
        %v2169 = vpop.f32.mrb[0].mxu0
        %v2170 = vadd.f32 %v259, %v2169
        %2171 = vmatprep.mubr.f32.mxu0 0.0
        %2172 = vmatmul.mubr.f32.gmra.mrb[0].mxu0 %v2000
        %v2173 = vpop.f32.mrb[0].mxu0
        %v2174 = vadd.f32 %v260, %v2173
        %v2175 = vpop.f32.mrb[0].mxu0
        %v2176 = vadd.f32 %v261, %v2175
        %2177 = vmatprep.mubr.f32.mxu0 0.0
        %2178 = vmatmul.mubr.f32.gmra.mrb[0].mxu0 %v2003
        %v2179 = vpop.f32.mrb[0].mxu0
        %v2180 = vadd.f32 %v262, %v2179
        %v2181 = vpop.f32.mrb[0].mxu0
        %v2182 = vadd.f32 %v263, %v2181
        %2183 = vmatprep.mubr.f32.mxu0 0.0
        %2184 = vmatmul.mubr.f32.gmra.mrb[0].mxu0 %v2006
        %v2185 = vpop.f32.mrb[0].mxu0
        %v2186 = vadd.f32 %v264, %v2185
        %v2187 = vpop.f32.mrb[0].mxu0
        %v2188 = vadd.f32 %v265, %v2187
        %2189 = vmatprep.mubr.f32.mxu0 0.0
        %2190 = vmatmul.mubr.f32.gmra.mrb[0].mxu0 %v2009
        %v2191 = vpop.f32.mrb[0].mxu0
        %v2192 = vadd.f32 %v266, %v2191
        %v2193 = vpop.f32.mrb[0].mxu0
        %v2194 = vadd.f32 %v267, %v2193
        %2195 = vmatprep.mubr.f32.mxu0 0.0
        %2196 = vmatmul.mubr.f32.gmra.mrb[0].mxu0 %v2012
        %v2197 = vpop.f32.mrb[0].mxu0
        %v2198 = vadd.f32 %v268, %v2197
        %v2199 = vpop.f32.mrb[0].mxu0
        %v2200 = vadd.f32 %v269, %v2199
        %2201 = vmatprep.mubr.f32.mxu0 0.0
        %2202 = vmatmul.mubr.f32.gmra.mrb[0].mxu0 %v2015
        %v2203 = vpop.f32.mrb[0].mxu0
        %v2204 = vadd.f32 %v270, %v2203
        %v2205 = vpop.f32.mrb[0].mxu0
        %v2206 = vadd.f32 %v271, %v2205
        %2207 = vmatprep.mubr.f32.mxu0 0.0
        %2208 = vmatmul.mubr.f32.gmra.mrb[0].mxu0 %v2018
        %v2209 = vpop.f32.mrb[0].mxu0
        %v2210 = vadd.f32 %v272, %v2209
        %v2211 = vpop.f32.mrb[0].mxu0
        %v2212 = vadd.f32 %v273, %v2211
        %2213 = vmatprep.mubr.f32.mxu0 0.0
        %2214 = vmatmul.mubr.f32.gmra.mrb[0].mxu0 %v2021
        %v2215 = vpop.f32.mrb[0].mxu0
        %v2216 = vadd.f32 %v274, %v2215
        %v2217 = vpop.f32.mrb[0].mxu0
        %v2218 = vadd.f32 %v275, %v2217
        %2219 = vmatprep.mubr.f32.mxu0 0.0
        %2220 = vmatmul.mubr.f32.gmra.mrb[0].mxu0 %v2024
        %v2221 = vpop.f32.mrb[0].mxu0
        %v2222 = vadd.f32 %v276, %v2221
        %v2223 = vpop.f32.mrb[0].mxu0
        %v2224 = vadd.f32 %v277, %v2223
        %2225 = vmatprep.mubr.f32.mxu0 0.0
        %2226 = vmatmul.mubr.f32.gmra.mrb[0].mxu0 %v2027
        %v2227 = vpop.f32.mrb[0].mxu0
        %v2228 = vadd.f32 %v278, %v2227
        %v2229 = vpop.f32.mrb[0].mxu0
        %v2230 = vadd.f32 %v279, %v2229
        %2231 = vmatprep.mubr.f32.mxu0 0.0
        %2232 = vmatmul.mubr.f32.gmra.mrb[0].mxu0 %v2030
        %v2233 = vpop.f32.mrb[0].mxu0
        %v2234 = vadd.f32 %v280, %v2233
        %v2235 = vpop.f32.mrb[0].mxu0
        %v2236 = vadd.f32 %v281, %v2235
        %2237 = vmatprep.mubr.f32.mxu0 0.0
        %2238 = vmatmul.mubr.f32.gmra.mrb[0].mxu0 %v2033
        %v2239 = vpop.f32.mrb[0].mxu0
        %v2240 = vadd.f32 %v282, %v2239
        %v2241 = vpop.f32.mrb[0].mxu0
        %v2242 = vadd.f32 %v283, %v2241
        %2243 = vmatprep.mubr.f32.mxu0 0.0
        %2244 = vmatmul.mubr.f32.gmra.mrb[0].mxu0 %v2036
        %v2245 = vpop.f32.mrb[0].mxu0
        %v2246 = vadd.f32 %v284, %v2245
        %v2247 = vpop.f32.mrb[0].mxu0
        %v2248 = vadd.f32 %v285, %v2247
        %2249 = vmatprep.mubr.f32.mxu0 0.0
        %2250 = vmatmul.mubr.f32.gmra.mrb[0].mxu0 %v2039
        %v2251 = vpop.f32.mrb[0].mxu0
        %v2252 = vadd.f32 %v286, %v2251
        %v2253 = vpop.f32.mrb[0].mxu0
        %v2254 = vadd.f32 %v287, %v2253
        %2255 = vmatprep.mubr.f32.mxu0 0.0
        %2256 = vmatmul.mubr.f32.gmra.mrb[0].mxu0 %v2042
        %v2257 = vpop.f32.mrb[0].mxu0
        %v2258 = vadd.f32 %v288, %v2257
        %v2259 = vpop.f32.mrb[0].mxu0
        %v2260 = vadd.f32 %v289, %v2259
        %2261 = vmatprep.mubr.f32.mxu0 0.0
        %2262 = vmatmul.mubr.f32.gmra.mrb[0].mxu0 %v2045
        %v2263 = vpop.f32.mrb[0].mxu0
        %v2264 = vadd.f32 %v290, %v2263
        %v2265 = vpop.f32.mrb[0].mxu0
        %v2266 = vadd.f32 %v291, %v2265
        %2267 = vmatprep.mubr.f32.mxu0 0.0
        %2268 = vmatmul.mubr.f32.gmra.mrb[0].mxu0 %v2048
        %v2269 = vpop.f32.mrb[0].mxu0
        %v2270 = vadd.f32 %v292, %v2269
        %v2271 = vpop.f32.mrb[0].mxu0
        %v2272 = vadd.f32 %v293, %v2271
        %2273 = vmatprep.mubr.f32.mxu0 0.0
        %2274 = vmatmul.mubr.f32.gmra.mrb[0].mxu0 %v2051
        %v2275 = vpop.f32.mrb[0].mxu0
        %v2276 = vadd.f32 %v294, %v2275
        %v2277 = vpop.f32.mrb[0].mxu0
        %v2278 = vadd.f32 %v295, %v2277
        %2279 = vmatprep.mubr.f32.mxu0 0.0
        %2280 = vmatmul.mubr.f32.gmra.mrb[0].mxu0 %v2054
        %v2281 = vpop.f32.mrb[0].mxu0
        %v2282 = vadd.f32 %v296, %v2281
        %v2283 = vpop.f32.mrb[0].mxu0
        %v2284 = vadd.f32 %v297, %v2283
        %2285 = vmatprep.mubr.f32.mxu0 0.0
        %2286 = vmatmul.mubr.f32.gmra.mrb[0].mxu0 %v2057
        %v2287 = vpop.f32.mrb[0].mxu0
        %v2288 = vadd.f32 %v298, %v2287
        %v2289 = vpop.f32.mrb[0].mxu0
        %v2290 = vadd.f32 %v299, %v2289
        %2291 = vmatprep.mubr.f32.mxu0 0.0
        %2292 = vmatmul.mubr.f32.gmra.mrb[0].mxu0 %v2060
        %v2293 = vpop.f32.mrb[0].mxu0
        %v2294 = vadd.f32 %v300, %v2293
        %v2295 = vpop.f32.mrb[0].mxu0
        %v2296 = vadd.f32 %v301, %v2295
        %2297 = vmatprep.mubr.f32.mxu0 0.0
        %2298 = vmatmul.mubr.f32.gmra.mrb[0].mxu0 %v2063
        %v2299 = vpop.f32.mrb[0].mxu0
        %v2300 = vadd.f32 %v302, %v2299
        %v2301 = vpop.f32.mrb[0].mxu0
        %v2302 = vadd.f32 %v303, %v2301
        %2303 = vmatprep.mubr.f32.mxu0 0.0
        %2304 = vmatmul.mubr.f32.gmra.mrb[0].mxu0 %v2066
        %v2305 = vpop.f32.mrb[0].mxu0
        %v2306 = vadd.f32 %v304, %v2305
        %v2307 = vpop.f32.mrb[0].mxu0
        %v2308 = vadd.f32 %v305, %v2307
        %2309 = vmatprep.mubr.f32.mxu0 0.0
        %2310 = vmatmul.mubr.f32.gmra.mrb[0].mxu0 %v2069
        %v2311 = vpop.f32.mrb[0].mxu0
        %v2312 = vadd.f32 %v306, %v2311
        %v2313 = vpop.f32.mrb[0].mxu0
        %v2314 = vadd.f32 %v307, %v2313
        %2315 = vmatprep.mubr.f32.mxu0 0.0
        %2316 = vmatmul.mubr.f32.gmra.mrb[0].mxu0 %v2072
        %v2317 = vpop.f32.mrb[0].mxu0
        %v2318 = vadd.f32 %v308, %v2317
        %v2319 = vpop.f32.mrb[0].mxu0
        %v2320 = vadd.f32 %v309, %v2319
        %2321 = vmatprep.mubr.f32.mxu0 0.0
        %2322 = vmatmul.mubr.f32.gmra.mrb[0].mxu0 %v2075
        %v2323 = vpop.f32.mrb[0].mxu0
        %v2324 = vadd.f32 %v310, %v2323
        %v2325 = vpop.f32.mrb[0].mxu0
        %v2326 = vadd.f32 %v311, %v2325
        %2327 = vmatprep.mubr.f32.mxu0 0.0
        %2328 = vmatmul.mubr.f32.gmra.mrb[0].mxu0 %v2078
        %v2329 = vpop.f32.mrb[0].mxu0
        %v2330 = vadd.f32 %v312, %v2329
        %v2331 = vpop.f32.mrb[0].mxu0
        %v2332 = vadd.f32 %v313, %v2331
        %2333 = vmatprep.mubr.f32.mxu0 0.0
        %2334 = vmatmul.mubr.f32.gmra.mrb[0].mxu0 %v2081
        %v2335 = vpop.f32.mrb[0].mxu0
        %v2336 = vadd.f32 %v314, %v2335
        %v2337 = vpop.f32.mrb[0].mxu0
        %v2338 = vadd.f32 %v315, %v2337
        %2339 = vdwg.mxu0
        %v2340 = vmax.f32 %v2150, %v2162
        %v2341 = vmax.f32 %v2156, %v2168
        %v2342 = vmax.f32 %v2340, %v2174
        %v2343 = vmax.f32 %v2341, %v2180
        %v2344 = vmax.f32 %v2342, %v2186
        %v2345 = vmax.f32 %v2343, %v2192
        %v2346 = vmax.f32 %v2344, %v2198
        %v2347 = vmax.f32 %v2345, %v2204
        %v2348 = vmax.f32 %v2346, %v2210
        %v2349 = vmax.f32 %v2347, %v2216
        %v2350 = vmax.f32 %v2348, %v2222
        %v2351 = vmax.f32 %v2349, %v2228
        %v2352 = vmax.f32 %v2350, %v2234
        %v2353 = vmax.f32 %v2351, %v2240
        %v2354 = vmax.f32 %v2352, %v2246
        %v2355 = vmax.f32 %v2353, %v2252
        %v2356 = vmax.f32 %v2354, %v2258
        %v2357 = vmax.f32 %v2355, %v2264
        %v2358 = vmax.f32 %v2356, %v2270
        %v2359 = vmax.f32 %v2357, %v2276
        %v2360 = vmax.f32 %v2358, %v2282
        %v2361 = vmax.f32 %v2359, %v2288
        %v2362 = vmax.f32 %v2360, %v2294
        %v2363 = vmax.f32 %v2361, %v2300
        %v2364 = vmax.f32 %v2362, %v2306
        %v2365 = vmax.f32 %v2363, %v2312
        %v2366 = vmax.f32 %v2364, %v2318
        %v2367 = vmax.f32 %v2365, %v2324
        %v2368 = vmax.f32 %v2366, %v2330
        %v2369 = vmax.f32 %v2367, %v2336
        %v2370 = vmax.f32 %v2368, %v2369
        %v2371 = vrot.slane %v2370, 4
        %v2372 = vmax.f32 %v2370, %v2371
        %v2373 = vrot.slane %v2372, 2
        %v2374 = vmax.f32 %v2372, %v2373
        %v2375 = vrot.slane %v2374, 1
        %v2376 = vmax.f32 %v2374, %v2375
        %v2377 = vmax.f32 %v2152, %v2164
        %v2378 = vmax.f32 %v2158, %v2170
        %v2379 = vmax.f32 %v2377, %v2176
        %v2380 = vmax.f32 %v2378, %v2182
        %v2381 = vmax.f32 %v2379, %v2188
        %v2382 = vmax.f32 %v2380, %v2194
        %v2383 = vmax.f32 %v2381, %v2200
        %v2384 = vmax.f32 %v2382, %v2206
        %v2385 = vmax.f32 %v2383, %v2212
        %v2386 = vmax.f32 %v2384, %v2218
        %v2387 = vmax.f32 %v2385, %v2224
        %v2388 = vmax.f32 %v2386, %v2230
        %v2389 = vmax.f32 %v2387, %v2236
        %v2390 = vmax.f32 %v2388, %v2242
        %v2391 = vmax.f32 %v2389, %v2248
        %v2392 = vmax.f32 %v2390, %v2254
        %v2393 = vmax.f32 %v2391, %v2260
        %v2394 = vmax.f32 %v2392, %v2266
        %v2395 = vmax.f32 %v2393, %v2272
        %v2396 = vmax.f32 %v2394, %v2278
        %v2397 = vmax.f32 %v2395, %v2284
        %v2398 = vmax.f32 %v2396, %v2290
        %v2399 = vmax.f32 %v2397, %v2296
        %v2400 = vmax.f32 %v2398, %v2302
        %v2401 = vmax.f32 %v2399, %v2308
        %v2402 = vmax.f32 %v2400, %v2314
        %v2403 = vmax.f32 %v2401, %v2320
        %v2404 = vmax.f32 %v2402, %v2326
        %v2405 = vmax.f32 %v2403, %v2332
        %v2406 = vmax.f32 %v2404, %v2338
        %v2407 = vmax.f32 %v2405, %v2406
        %v2408 = vrot.slane %v2407, 4
        %v2409 = vmax.f32 %v2407, %v2408
        %v2410 = vrot.slane %v2409, 2
        %v2411 = vmax.f32 %v2409, %v2410
        %v2412 = vrot.slane %v2411, 1
        %v2413 = vmax.f32 %v2411, %v2412
        %v2414 = vsub.f32 %v2150, %v2376
        %v2415 = vsub.f32 %v2152, %v2413
        %v2416 = vsub.f32 %v2156, %v2376
        %v2417 = vsub.f32 %v2158, %v2413
        %v2418 = vsub.f32 %v2162, %v2376
        %v2419 = vsub.f32 %v2164, %v2413
        %v2420 = vsub.f32 %v2168, %v2376
        %v2421 = vsub.f32 %v2170, %v2413
        %v2422 = vsub.f32 %v2174, %v2376
        %v2423 = vsub.f32 %v2176, %v2413
        %v2424 = vsub.f32 %v2180, %v2376
        %v2425 = vsub.f32 %v2182, %v2413
        %v2426 = vsub.f32 %v2186, %v2376
        %v2427 = vsub.f32 %v2188, %v2413
        %v2428 = vsub.f32 %v2192, %v2376
        %v2429 = vsub.f32 %v2194, %v2413
        %v2430 = vsub.f32 %v2198, %v2376
        %v2431 = vsub.f32 %v2200, %v2413
        %v2432 = vsub.f32 %v2204, %v2376
        %v2433 = vsub.f32 %v2206, %v2413
        %v2434 = vsub.f32 %v2210, %v2376
        %v2435 = vsub.f32 %v2212, %v2413
        %v2436 = vsub.f32 %v2216, %v2376
        %v2437 = vsub.f32 %v2218, %v2413
        %v2438 = vsub.f32 %v2222, %v2376
        %v2439 = vsub.f32 %v2224, %v2413
        %v2440 = vsub.f32 %v2228, %v2376
        %v2441 = vsub.f32 %v2230, %v2413
        %v2442 = vsub.f32 %v2234, %v2376
        %v2443 = vsub.f32 %v2236, %v2413
        %v2444 = vsub.f32 %v2240, %v2376
        %v2445 = vsub.f32 %v2242, %v2413
        %v2446 = vsub.f32 %v2246, %v2376
        %v2447 = vsub.f32 %v2248, %v2413
        %v2448 = vsub.f32 %v2252, %v2376
        %v2449 = vsub.f32 %v2254, %v2413
        %v2450 = vsub.f32 %v2258, %v2376
        %v2451 = vsub.f32 %v2260, %v2413
        %v2452 = vsub.f32 %v2264, %v2376
        %v2453 = vsub.f32 %v2266, %v2413
        %v2454 = vsub.f32 %v2270, %v2376
        %v2455 = vsub.f32 %v2272, %v2413
        %v2456 = vsub.f32 %v2276, %v2376
        %v2457 = vsub.f32 %v2278, %v2413
        %v2458 = vsub.f32 %v2282, %v2376
        %v2459 = vsub.f32 %v2284, %v2413
        %v2460 = vsub.f32 %v2288, %v2376
        %v2461 = vsub.f32 %v2290, %v2413
        %v2462 = vsub.f32 %v2294, %v2376
        %v2463 = vsub.f32 %v2296, %v2413
        %v2464 = vsub.f32 %v2300, %v2376
        %v2465 = vsub.f32 %v2302, %v2413
        %v2466 = vsub.f32 %v2306, %v2376
        %v2467 = vsub.f32 %v2308, %v2413
        %v2468 = vsub.f32 %v2312, %v2376
        %v2469 = vsub.f32 %v2314, %v2413
        %v2470 = vsub.f32 %v2318, %v2376
        %v2471 = vsub.f32 %v2320, %v2413
        %v2472 = vsub.f32 %v2324, %v2376
        %v2473 = vsub.f32 %v2326, %v2413
        %v2474 = vsub.f32 %v2330, %v2376
        %v2475 = vsub.f32 %v2332, %v2413
        %v2476 = vsub.f32 %v2336, %v2376
        %v2477 = vsub.f32 %v2338, %v2413
        %v2478 = vmul.f32 %v2414, 1.442695
        %v2479 = vpow.pop %v2478
        %v2480 = vmul.f32 %v2415, 1.442695
        %v2481 = vpow.pop %v2480
        %v2482 = vmul.f32 %v2416, 1.442695
        %v2483 = vpow.pop %v2482
        %v2484 = vmul.f32 %v2417, 1.442695
        %v2485 = vpow.pop %v2484
        %v2486 = vmul.f32 %v2418, 1.442695
        %v2487 = vpow.pop %v2486
        %v2488 = vmul.f32 %v2419, 1.442695
        %v2489 = vpow.pop %v2488
        %v2490 = vmul.f32 %v2420, 1.442695
        %v2491 = vpow.pop %v2490
        %v2492 = vmul.f32 %v2421, 1.442695
        %v2493 = vpow.pop %v2492
        %v2494 = vmul.f32 %v2422, 1.442695
        %v2495 = vpow.pop %v2494
        %v2496 = vmul.f32 %v2423, 1.442695
        %v2497 = vpow.pop %v2496
        %v2498 = vmul.f32 %v2424, 1.442695
        %v2499 = vpow.pop %v2498
        %v2500 = vmul.f32 %v2425, 1.442695
        %v2501 = vpow.pop %v2500
        %v2502 = vmul.f32 %v2426, 1.442695
        %v2503 = vpow.pop %v2502
        %v2504 = vmul.f32 %v2427, 1.442695
        %v2505 = vpow.pop %v2504
        %v2506 = vmul.f32 %v2428, 1.442695
        %v2507 = vpow.pop %v2506
        %v2508 = vmul.f32 %v2429, 1.442695
        %v2509 = vpow.pop %v2508
        %v2510 = vmul.f32 %v2430, 1.442695
        %v2511 = vpow.pop %v2510
        %v2512 = vmul.f32 %v2431, 1.442695
        %v2513 = vpow.pop %v2512
        %v2514 = vmul.f32 %v2432, 1.442695
        %v2515 = vpow.pop %v2514
        %v2516 = vmul.f32 %v2433, 1.442695
        %v2517 = vpow.pop %v2516
        %v2518 = vmul.f32 %v2434, 1.442695
        %v2519 = vpow.pop %v2518
        %v2520 = vmul.f32 %v2435, 1.442695
        %v2521 = vpow.pop %v2520
        %v2522 = vmul.f32 %v2436, 1.442695
        %v2523 = vpow.pop %v2522
        %v2524 = vmul.f32 %v2437, 1.442695
        %v2525 = vpow.pop %v2524
        %v2526 = vmul.f32 %v2438, 1.442695
        %v2527 = vpow.pop %v2526
        %v2528 = vmul.f32 %v2439, 1.442695
        %v2529 = vpow.pop %v2528
        %v2530 = vmul.f32 %v2440, 1.442695
        %v2531 = vpow.pop %v2530
        %v2532 = vmul.f32 %v2441, 1.442695
        %v2533 = vpow.pop %v2532
        %v2534 = vmul.f32 %v2442, 1.442695
        %v2535 = vpow.pop %v2534
        %v2536 = vmul.f32 %v2443, 1.442695
        %v2537 = vpow.pop %v2536
        %v2538 = vmul.f32 %v2444, 1.442695
        %v2539 = vpow.pop %v2538
        %v2540 = vmul.f32 %v2445, 1.442695
        %v2541 = vpow.pop %v2540
        %v2542 = vmul.f32 %v2446, 1.442695
        %v2543 = vpow.pop %v2542
        %v2544 = vmul.f32 %v2447, 1.442695
        %v2545 = vpow.pop %v2544
        %v2546 = vmul.f32 %v2448, 1.442695
        %v2547 = vpow.pop %v2546
        %v2548 = vmul.f32 %v2449, 1.442695
        %v2549 = vpow.pop %v2548
        %v2550 = vmul.f32 %v2450, 1.442695
        %v2551 = vpow.pop %v2550
        %v2552 = vmul.f32 %v2451, 1.442695
        %v2553 = vpow.pop %v2552
        %v2554 = vmul.f32 %v2452, 1.442695
        %v2555 = vpow.pop %v2554
        %v2556 = vmul.f32 %v2453, 1.442695
        %v2557 = vpow.pop %v2556
        %v2558 = vmul.f32 %v2454, 1.442695
        %v2559 = vpow.pop %v2558
        %v2560 = vmul.f32 %v2455, 1.442695
        %v2561 = vpow.pop %v2560
        %v2562 = vmul.f32 %v2456, 1.442695
        %v2563 = vpow.pop %v2562
        %v2564 = vmul.f32 %v2457, 1.442695
        %v2565 = vpow.pop %v2564
        %v2566 = vmul.f32 %v2458, 1.442695
        %v2567 = vpow.pop %v2566
        %v2568 = vmul.f32 %v2459, 1.442695
        %v2569 = vpow.pop %v2568
        %v2570 = vmul.f32 %v2460, 1.442695
        %v2571 = vpow.pop %v2570
        %v2572 = vmul.f32 %v2461, 1.442695
        %v2573 = vpow.pop %v2572
        %v2574 = vmul.f32 %v2462, 1.442695
        %v2575 = vpow.pop %v2574
        %v2576 = vmul.f32 %v2463, 1.442695
        %v2577 = vpow.pop %v2576
        %v2578 = vmul.f32 %v2464, 1.442695
        %v2579 = vpow.pop %v2578
        %v2580 = vmul.f32 %v2465, 1.442695
        %v2581 = vpow.pop %v2580
        %v2582 = vmul.f32 %v2466, 1.442695
        %v2583 = vpow.pop %v2582
        %v2584 = vmul.f32 %v2467, 1.442695
        %v2585 = vpow.pop %v2584
        %v2586 = vmul.f32 %v2468, 1.442695
        %v2587 = vpow.pop %v2586
        %v2588 = vmul.f32 %v2469, 1.442695
        %v2589 = vpow.pop %v2588
        %v2590 = vmul.f32 %v2470, 1.442695
        %v2591 = vpow.pop %v2590
        %v2592 = vmul.f32 %v2471, 1.442695
        %v2593 = vpow.pop %v2592
        %v2594 = vmul.f32 %v2472, 1.442695
        %v2595 = vpow.pop %v2594
        %v2596 = vmul.f32 %v2473, 1.442695
        %v2597 = vpow.pop %v2596
        %v2598 = vmul.f32 %v2474, 1.442695
        %v2599 = vpow.pop %v2598
        %v2600 = vmul.f32 %v2475, 1.442695
        %v2601 = vpow.pop %v2600
        %v2602 = vmul.f32 %v2476, 1.442695
        %v2603 = vpow.pop %v2602
        %v2604 = vmul.f32 %v2477, 1.442695
        %v2605 = vpow.pop %v2604
        %v2606 = vadd.f32 %v2479, %v2483
        %v2607 = vadd.f32 %v2606, %v2487
        %v2608 = vadd.f32 %v2607, %v2491
        %v2609 = vadd.f32 %v2608, %v2495
        %v2610 = vadd.f32 %v2609, %v2499
        %v2611 = vadd.f32 %v2610, %v2503
        %v2612 = vadd.f32 %v2611, %v2507
        %v2613 = vadd.f32 %v2612, %v2511
        %v2614 = vadd.f32 %v2613, %v2515
        %v2615 = vadd.f32 %v2614, %v2519
        %v2616 = vadd.f32 %v2615, %v2523
        %v2617 = vadd.f32 %v2616, %v2527
        %v2618 = vadd.f32 %v2617, %v2531
        %v2619 = vadd.f32 %v2618, %v2535
        %v2620 = vadd.f32 %v2619, %v2539
        %v2621 = vadd.f32 %v2620, %v2543
        %v2622 = vadd.f32 %v2621, %v2547
        %v2623 = vadd.f32 %v2622, %v2551
        %v2624 = vadd.f32 %v2623, %v2555
        %v2625 = vadd.f32 %v2624, %v2559
        %v2626 = vadd.f32 %v2625, %v2563
        %v2627 = vadd.f32 %v2626, %v2567
        %v2628 = vadd.f32 %v2627, %v2571
        %v2629 = vadd.f32 %v2628, %v2575
        %v2630 = vadd.f32 %v2629, %v2579
        %v2631 = vadd.f32 %v2630, %v2583
        %v2632 = vadd.f32 %v2631, %v2587
        %v2633 = vadd.f32 %v2632, %v2591
        %v2634 = vadd.f32 %v2633, %v2595
        %v2635 = vadd.f32 %v2634, %v2599
        %v2636 = vadd.f32 %v2635, %v2603
        %v2637 = vrot.slane %v2636, 4
        %v2638 = vadd.f32 %v2636, %v2637
        %v2639 = vrot.slane %v2638, 2
        %v2640 = vadd.f32 %v2638, %v2639
        %v2641 = vrot.slane %v2640, 1
        %v2642 = vadd.f32 %v2640, %v2641
        %v2643 = vadd.f32 %v2481, %v2485
        %v2644 = vadd.f32 %v2643, %v2489
        %v2645 = vadd.f32 %v2644, %v2493
        %v2646 = vadd.f32 %v2645, %v2497
        %v2647 = vadd.f32 %v2646, %v2501
        %v2648 = vadd.f32 %v2647, %v2505
        %v2649 = vadd.f32 %v2648, %v2509
        %v2650 = vadd.f32 %v2649, %v2513
        %v2651 = vadd.f32 %v2650, %v2517
        %v2652 = vadd.f32 %v2651, %v2521
        %v2653 = vadd.f32 %v2652, %v2525
        %v2654 = vadd.f32 %v2653, %v2529
        %v2655 = vadd.f32 %v2654, %v2533
        %v2656 = vadd.f32 %v2655, %v2537
        %v2657 = vadd.f32 %v2656, %v2541
        %v2658 = vadd.f32 %v2657, %v2545
        %v2659 = vadd.f32 %v2658, %v2549
        %v2660 = vadd.f32 %v2659, %v2553
        %v2661 = vadd.f32 %v2660, %v2557
        %v2662 = vadd.f32 %v2661, %v2561
        %v2663 = vadd.f32 %v2662, %v2565
        %v2664 = vadd.f32 %v2663, %v2569
        %v2665 = vadd.f32 %v2664, %v2573
        %v2666 = vadd.f32 %v2665, %v2577
        %v2667 = vadd.f32 %v2666, %v2581
        %v2668 = vadd.f32 %v2667, %v2585
        %v2669 = vadd.f32 %v2668, %v2589
        %v2670 = vadd.f32 %v2669, %v2593
        %v2671 = vadd.f32 %v2670, %v2597
        %v2672 = vadd.f32 %v2671, %v2601
        %v2673 = vadd.f32 %v2672, %v2605
        %v2674 = vrot.slane %v2673, 4
        %v2675 = vadd.f32 %v2673, %v2674
        %v2676 = vrot.slane %v2675, 2
        %v2677 = vadd.f32 %v2675, %v2676
        %v2678 = vrot.slane %v2677, 1
        %v2679 = vadd.f32 %v2677, %v2678
        %s2680 = scalar_lea.vmem %s249, 32
        %v2681 = vld [vmem:[%s2680] sm:$0xff]
        %v2682 = vld [vmem:[%s2680 + $0x8] sm:$0xff]
        %2683 = vmatprep.subr.mxu0 %v2481
        %2684 = vmatpush1.msra.mxu0 %v2479
        %2685 = vmatprep.subr.mxu0 %v2485
        %2686 = vmatpush1.msra.mxu0 %v2483
        %2687 = vmatprep.subr.mxu0 %v2489
        %2688 = vmatpush1.msra.mxu0 %v2487
        %2689 = vmatprep.subr.mxu0 %v2493
        %2690 = vmatpush1.msra.mxu0 %v2491
        %2691 = vmatprep.subr.mxu0 %v2497
        %2692 = vmatpush1.msra.mxu0 %v2495
        %2693 = vmatprep.subr.mxu0 %v2501
        %2694 = vmatpush1.msra.mxu0 %v2499
        %2695 = vmatprep.subr.mxu0 %v2505
        %2696 = vmatpush1.msra.mxu0 %v2503
        %2697 = vmatprep.subr.mxu0 %v2509
        %2698 = vmatpush1.msra.mxu0 %v2507
        %2699 = vmatprep.subr.mxu0 %v2513
        %2700 = vmatpush1.msra.mxu0 %v2511
        %2701 = vmatprep.subr.mxu0 %v2517
        %2702 = vmatpush1.msra.mxu0 %v2515
        %2703 = vmatprep.subr.mxu0 %v2521
        %2704 = vmatpush1.msra.mxu0 %v2519
        %2705 = vmatprep.subr.mxu0 %v2525
        %2706 = vmatpush1.msra.mxu0 %v2523
        %2707 = vmatprep.subr.mxu0 %v2529
        %2708 = vmatpush1.msra.mxu0 %v2527
        %2709 = vmatprep.subr.mxu0 %v2533
        %2710 = vmatpush1.msra.mxu0 %v2531
        %2711 = vmatprep.subr.mxu0 %v2537
        %2712 = vmatpush1.msra.mxu0 %v2535
        %2713 = vmatprep.subr.mxu0 %v2541
        %2714 = vmatpush1.msra.mxu0 %v2539
        %2715 = vmatprep.subr.mxu0 %v2545
        %2716 = vmatpush1.msra.mxu0 %v2543
        %2717 = vmatprep.subr.mxu0 %v2549
        %2718 = vmatpush1.msra.mxu0 %v2547
        %2719 = vmatprep.subr.mxu0 %v2553
        %2720 = vmatpush1.msra.mxu0 %v2551
        %2721 = vmatprep.subr.mxu0 %v2557
        %2722 = vmatpush1.msra.mxu0 %v2555
        %2723 = vmatprep.subr.mxu0 %v2561
        %2724 = vmatpush1.msra.mxu0 %v2559
        %2725 = vmatprep.subr.mxu0 %v2565
        %2726 = vmatpush1.msra.mxu0 %v2563
        %2727 = vmatprep.subr.mxu0 %v2569
        %2728 = vmatpush1.msra.mxu0 %v2567
        %2729 = vmatprep.subr.mxu0 %v2573
        %2730 = vmatpush1.msra.mxu0 %v2571
        %2731 = vmatprep.subr.mxu0 %v2577
        %2732 = vmatpush1.msra.mxu0 %v2575
        %2733 = vmatprep.subr.mxu0 %v2581
        %2734 = vmatpush1.msra.mxu0 %v2579
        %2735 = vmatprep.subr.mxu0 %v2585
        %2736 = vmatpush1.msra.mxu0 %v2583
        %2737 = vmatprep.subr.mxu0 %v2589
        %2738 = vmatpush1.msra.mxu0 %v2587
        %2739 = vmatprep.subr.mxu0 %v2593
        %2740 = vmatpush1.msra.mxu0 %v2591
        %2741 = vmatprep.subr.mxu0 %v2597
        %2742 = vmatpush1.msra.mxu0 %v2595
        %2743 = vmatprep.subr.mxu0 %v2601
        %2744 = vmatpush1.msra.mxu0 %v2599
        %2745 = vmatprep.subr.mxu0 %v2605
        %2746 = vmatpush1.msra.mxu0 %v2603
        %2747 = vmatprep.mubr.f32.mxu0 %v2682
        %2748 = vmatmul.mubr.f32.gmra.mrb[0].mxu0 %v2681
        %v2749 = vpop.f32.mrb[0].mxu0
        %v2750 = vadd.f32 0.0, %v2749
        %v2751 = vpop.f32.mrb[0].mxu0
        %v2752 = vadd.f32 0.0, %v2751
        %2753 = vdwg.mxu0
        %v2754 = vrcp.pop %v2642
        %v2755 = vrcp.pop %v2679
        %v2756 = vmul.f32 %v2642, %v2754
        %v2757 = vmul.f32 %v2679, %v2755
        %v2758 = vsub.f32 2.0, %v2756
        %v2759 = vsub.f32 2.0, %v2757
        %v2760 = vmul.f32 %v2754, %v2758
        %v2761 = vmul.f32 %v2755, %v2759
        %v2762 = vmul.f32 %v2750, %v2760
        %v2763 = vmul.f32 %v2752, %v2761
        %s2764 = scalar_lea.vmem %s229, 32 [#allocation2]
        %2765 = vst [vmem:[%s2764] sm:$0xff] %v2762
        %2766 = vst [vmem:[%s2764 + $0x8] sm:$0xff] %v2763
        %s2767 = scalar_lea.vmem %s235, 48
        %v2768 = vld [vmem:[%s2767] sm:$0xff]
        %v2769 = vld [vmem:[%s2767 + $0x8] sm:$0xff]
        %v2770 = vmul.f32 %v2768, 0.35355338
        %v2771 = vmul.f32 %v2769, 0.35355338
        %s2772 = scalar_lea.vmem %s242, 768
        %v2773 = vld [vmem:[%s2772] sm:$0xff]
        %v2774 = vld [vmem:[%s2772 + $0x8] sm:$0xff]
        %v2775 = vld [vmem:[%s2772 + $0x10] sm:$0xff]
        %v2776 = vld [vmem:[%s2772 + $0x18] sm:$0xff]
        %v2777 = vld [vmem:[%s2772 + $0x20] sm:$0xff]
        %v2778 = vld [vmem:[%s2772 + $0x28] sm:$0xff]
        %v2779 = vld [vmem:[%s2772 + $0x30] sm:$0xff]
        %v2780 = vld [vmem:[%s2772 + $0x38] sm:$0xff]
        %v2781 = vld [vmem:[%s2772 + $0x40] sm:$0xff]
        %v2782 = vld [vmem:[%s2772 + $0x48] sm:$0xff]
        %v2783 = vld [vmem:[%s2772 + $0x50] sm:$0xff]
        %v2784 = vld [vmem:[%s2772 + $0x58] sm:$0xff]
        %v2785 = vld [vmem:[%s2772 + $0x60] sm:$0xff]
        %v2786 = vld [vmem:[%s2772 + $0x68] sm:$0xff]
        %v2787 = vld [vmem:[%s2772 + $0x70] sm:$0xff]
        %v2788 = vld [vmem:[%s2772 + $0x78] sm:$0xff]
        %v2789 = vld [vmem:[%s2772 + $0x80] sm:$0xff]
        %v2790 = vld [vmem:[%s2772 + $0x88] sm:$0xff]
        %v2791 = vld [vmem:[%s2772 + $0x90] sm:$0xff]
        %v2792 = vld [vmem:[%s2772 + $0x98] sm:$0xff]
        %v2793 = vld [vmem:[%s2772 + $0xa0] sm:$0xff]
        %v2794 = vld [vmem:[%s2772 + $0xa8] sm:$0xff]
        %v2795 = vld [vmem:[%s2772 + $0xb0] sm:$0xff]
        %v2796 = vld [vmem:[%s2772 + $0xb8] sm:$0xff]
        %v2797 = vld [vmem:[%s2772 + $0xc0] sm:$0xff]
        %v2798 = vld [vmem:[%s2772 + $0xc8] sm:$0xff]
        %v2799 = vld [vmem:[%s2772 + $0xd0] sm:$0xff]
        %v2800 = vld [vmem:[%s2772 + $0xd8] sm:$0xff]
        %v2801 = vld [vmem:[%s2772 + $0xe0] sm:$0xff]
        %v2802 = vld [vmem:[%s2772 + $0xe8] sm:$0xff]
        %v2803 = vld [vmem:[%s2772 + $0xf0] sm:$0xff]
        %v2804 = vld [vmem:[%s2772 + $0xf8] sm:$0xff]
        %v2806 = vsel %vm352, %v2773, 0
        %v2809 = vsel %vm352, %v2774, 0
        %v2812 = vsel %vm352, %v2775, 0
        %v2815 = vsel %vm352, %v2776, 0
        %v2818 = vsel %vm352, %v2777, 0
        %v2821 = vsel %vm352, %v2778, 0
        %v2824 = vsel %vm352, %v2779, 0
        %v2827 = vsel %vm352, %v2780, 0
        %v2830 = vsel %vm352, %v2781, 0
        %v2833 = vsel %vm352, %v2782, 0
        %v2836 = vsel %vm352, %v2783, 0
        %v2839 = vsel %vm352, %v2784, 0
        %v2842 = vsel %vm352, %v2785, 0
        %v2845 = vsel %vm352, %v2786, 0
        %v2848 = vsel %vm352, %v2787, 0
        %v2851 = vsel %vm352, %v2788, 0
        %v2854 = vsel %vm352, %v2789, 0
        %v2857 = vsel %vm352, %v2790, 0
        %v2860 = vsel %vm352, %v2791, 0
        %v2863 = vsel %vm352, %v2792, 0
        %v2866 = vsel %vm352, %v2793, 0
        %v2869 = vsel %vm352, %v2794, 0
        %v2872 = vsel %vm352, %v2795, 0
        %v2875 = vsel %vm352, %v2796, 0
        %v2878 = vsel %vm352, %v2797, 0
        %v2881 = vsel %vm352, %v2798, 0
        %v2884 = vsel %vm352, %v2799, 0
        %v2887 = vsel %vm352, %v2800, 0
        %v2890 = vsel %vm352, %v2801, 0
        %v2893 = vsel %vm352, %v2802, 0
        %v2896 = vsel %vm352, %v2803, 0
        %v2899 = vsel %vm352, %v2804, 0
        %2901 = vmatprep.subr.mxu0 %v2771
        %2902 = vmatpush1.msra.mxu0 %v2770
        %2903 = vmatprep.subr.mxu0 0.0
        %2904 = vmatpush1.msra.mxu0 0.0
        %2905 = vmatprep.subr.mxu0 0.0
        %2906 = vmatpush1.msra.mxu0 0.0
        %2907 = vmatprep.subr.mxu0 0.0
        %2908 = vmatpush1.msra.mxu0 0.0
        %2909 = vmatprep.subr.mxu0 0.0
        %2910 = vmatpush1.msra.mxu0 0.0
        %2911 = vmatprep.subr.mxu0 0.0
        %2912 = vmatpush1.msra.mxu0 0.0
        %2913 = vmatprep.subr.mxu0 0.0
        %2914 = vmatpush1.msra.mxu0 0.0
        %2915 = vmatprep.subr.mxu0 0.0
        %2916 = vmatpush1.msra.mxu0 0.0
        %2917 = vmatprep.subr.mxu0 0.0
        %2918 = vmatpush1.msra.mxu0 0.0
        %2919 = vmatprep.subr.mxu0 0.0
        %2920 = vmatpush1.msra.mxu0 0.0
        %2921 = vmatprep.subr.mxu0 0.0
        %2922 = vmatpush1.msra.mxu0 0.0
        %2923 = vmatprep.subr.mxu0 0.0
        %2924 = vmatpush1.msra.mxu0 0.0
        %2925 = vmatprep.subr.mxu0 0.0
        %2926 = vmatpush1.msra.mxu0 0.0
        %2927 = vmatprep.subr.mxu0 0.0
        %2928 = vmatpush1.msra.mxu0 0.0
        %2929 = vmatprep.subr.mxu0 0.0
        %2930 = vmatpush1.msra.mxu0 0.0
        %2931 = vmatprep.subr.mxu0 0.0
        %2932 = vmatpush1.msra.mxu0 0.0
        %2933 = vmatprep.subr.mxu0 0.0
        %2934 = vmatpush1.msra.mxu0 0.0
        %2935 = vmatprep.subr.mxu0 0.0
        %2936 = vmatpush1.msra.mxu0 0.0
        %2937 = vmatprep.subr.mxu0 0.0
        %2938 = vmatpush1.msra.mxu0 0.0
        %2939 = vmatprep.subr.mxu0 0.0
        %2940 = vmatpush1.msra.mxu0 0.0
        %2941 = vmatprep.subr.mxu0 0.0
        %2942 = vmatpush1.msra.mxu0 0.0
        %2943 = vmatprep.subr.mxu0 0.0
        %2944 = vmatpush1.msra.mxu0 0.0
        %2945 = vmatprep.subr.mxu0 0.0
        %2946 = vmatpush1.msra.mxu0 0.0
        %2947 = vmatprep.subr.mxu0 0.0
        %2948 = vmatpush1.msra.mxu0 0.0
        %2949 = vmatprep.subr.mxu0 0.0
        %2950 = vmatpush1.msra.mxu0 0.0
        %2951 = vmatprep.subr.mxu0 0.0
        %2952 = vmatpush1.msra.mxu0 0.0
        %2953 = vmatprep.subr.mxu0 0.0
        %2954 = vmatpush1.msra.mxu0 0.0
        %2955 = vmatprep.subr.mxu0 0.0
        %2956 = vmatpush1.msra.mxu0 0.0
        %2957 = vmatprep.subr.mxu0 0.0
        %2958 = vmatpush1.msra.mxu0 0.0
        %2959 = vmatprep.subr.mxu0 0.0
        %2960 = vmatpush1.msra.mxu0 0.0
        %2961 = vmatprep.subr.mxu0 0.0
        %2962 = vmatpush1.msra.mxu0 0.0
        %2963 = vmatprep.subr.mxu0 0.0
        %2964 = vmatpush1.msra.mxu0 0.0
        %2965 = vmatprep.mubr.f32.mxu0 0.0
        %2966 = vmatmul.mubr.f32.gmra.mrb[0].mxu0 %v2806
        %v2967 = vpop.f32.mrb[0].mxu0
        %v2968 = vadd.f32 %v252, %v2967
        %v2969 = vpop.f32.mrb[0].mxu0
        %v2970 = vadd.f32 %v253, %v2969
        %2971 = vmatprep.mubr.f32.mxu0 0.0
        %2972 = vmatmul.mubr.f32.gmra.mrb[0].mxu0 %v2809
        %v2973 = vpop.f32.mrb[0].mxu0
        %v2974 = vadd.f32 %v254, %v2973
        %v2975 = vpop.f32.mrb[0].mxu0
        %v2976 = vadd.f32 %v255, %v2975
        %2977 = vmatprep.mubr.f32.mxu0 0.0
        %2978 = vmatmul.mubr.f32.gmra.mrb[0].mxu0 %v2812
        %v2979 = vpop.f32.mrb[0].mxu0
        %v2980 = vadd.f32 %v256, %v2979
        %v2981 = vpop.f32.mrb[0].mxu0
        %v2982 = vadd.f32 %v257, %v2981
        %2983 = vmatprep.mubr.f32.mxu0 0.0
        %2984 = vmatmul.mubr.f32.gmra.mrb[0].mxu0 %v2815
        %v2985 = vpop.f32.mrb[0].mxu0
        %v2986 = vadd.f32 %v258, %v2985
        %v2987 = vpop.f32.mrb[0].mxu0
        %v2988 = vadd.f32 %v259, %v2987
        %2989 = vmatprep.mubr.f32.mxu0 0.0
        %2990 = vmatmul.mubr.f32.gmra.mrb[0].mxu0 %v2818
        %v2991 = vpop.f32.mrb[0].mxu0
        %v2992 = vadd.f32 %v260, %v2991
        %v2993 = vpop.f32.mrb[0].mxu0
        %v2994 = vadd.f32 %v261, %v2993
        %2995 = vmatprep.mubr.f32.mxu0 0.0
        %2996 = vmatmul.mubr.f32.gmra.mrb[0].mxu0 %v2821
        %v2997 = vpop.f32.mrb[0].mxu0
        %v2998 = vadd.f32 %v262, %v2997
        %v2999 = vpop.f32.mrb[0].mxu0
        %v3000 = vadd.f32 %v263, %v2999
        %3001 = vmatprep.mubr.f32.mxu0 0.0
        %3002 = vmatmul.mubr.f32.gmra.mrb[0].mxu0 %v2824
        %v3003 = vpop.f32.mrb[0].mxu0
        %v3004 = vadd.f32 %v264, %v3003
        %v3005 = vpop.f32.mrb[0].mxu0
        %v3006 = vadd.f32 %v265, %v3005
        %3007 = vmatprep.mubr.f32.mxu0 0.0
        %3008 = vmatmul.mubr.f32.gmra.mrb[0].mxu0 %v2827
        %v3009 = vpop.f32.mrb[0].mxu0
        %v3010 = vadd.f32 %v266, %v3009
        %v3011 = vpop.f32.mrb[0].mxu0
        %v3012 = vadd.f32 %v267, %v3011
        %3013 = vmatprep.mubr.f32.mxu0 0.0
        %3014 = vmatmul.mubr.f32.gmra.mrb[0].mxu0 %v2830
        %v3015 = vpop.f32.mrb[0].mxu0
        %v3016 = vadd.f32 %v268, %v3015
        %v3017 = vpop.f32.mrb[0].mxu0
        %v3018 = vadd.f32 %v269, %v3017
        %3019 = vmatprep.mubr.f32.mxu0 0.0
        %3020 = vmatmul.mubr.f32.gmra.mrb[0].mxu0 %v2833
        %v3021 = vpop.f32.mrb[0].mxu0
        %v3022 = vadd.f32 %v270, %v3021
        %v3023 = vpop.f32.mrb[0].mxu0
        %v3024 = vadd.f32 %v271, %v3023
        %3025 = vmatprep.mubr.f32.mxu0 0.0
        %3026 = vmatmul.mubr.f32.gmra.mrb[0].mxu0 %v2836
        %v3027 = vpop.f32.mrb[0].mxu0
        %v3028 = vadd.f32 %v272, %v3027
        %v3029 = vpop.f32.mrb[0].mxu0
        %v3030 = vadd.f32 %v273, %v3029
        %3031 = vmatprep.mubr.f32.mxu0 0.0
        %3032 = vmatmul.mubr.f32.gmra.mrb[0].mxu0 %v2839
        %v3033 = vpop.f32.mrb[0].mxu0
        %v3034 = vadd.f32 %v274, %v3033
        %v3035 = vpop.f32.mrb[0].mxu0
        %v3036 = vadd.f32 %v275, %v3035
        %3037 = vmatprep.mubr.f32.mxu0 0.0
        %3038 = vmatmul.mubr.f32.gmra.mrb[0].mxu0 %v2842
        %v3039 = vpop.f32.mrb[0].mxu0
        %v3040 = vadd.f32 %v276, %v3039
        %v3041 = vpop.f32.mrb[0].mxu0
        %v3042 = vadd.f32 %v277, %v3041
        %3043 = vmatprep.mubr.f32.mxu0 0.0
        %3044 = vmatmul.mubr.f32.gmra.mrb[0].mxu0 %v2845
        %v3045 = vpop.f32.mrb[0].mxu0
        %v3046 = vadd.f32 %v278, %v3045
        %v3047 = vpop.f32.mrb[0].mxu0
        %v3048 = vadd.f32 %v279, %v3047
        %3049 = vmatprep.mubr.f32.mxu0 0.0
        %3050 = vmatmul.mubr.f32.gmra.mrb[0].mxu0 %v2848
        %v3051 = vpop.f32.mrb[0].mxu0
        %v3052 = vadd.f32 %v280, %v3051
        %v3053 = vpop.f32.mrb[0].mxu0
        %v3054 = vadd.f32 %v281, %v3053
        %3055 = vmatprep.mubr.f32.mxu0 0.0
        %3056 = vmatmul.mubr.f32.gmra.mrb[0].mxu0 %v2851
        %v3057 = vpop.f32.mrb[0].mxu0
        %v3058 = vadd.f32 %v282, %v3057
        %v3059 = vpop.f32.mrb[0].mxu0
        %v3060 = vadd.f32 %v283, %v3059
        %3061 = vmatprep.mubr.f32.mxu0 0.0
        %3062 = vmatmul.mubr.f32.gmra.mrb[0].mxu0 %v2854
        %v3063 = vpop.f32.mrb[0].mxu0
        %v3064 = vadd.f32 %v284, %v3063
        %v3065 = vpop.f32.mrb[0].mxu0
        %v3066 = vadd.f32 %v285, %v3065
        %3067 = vmatprep.mubr.f32.mxu0 0.0
        %3068 = vmatmul.mubr.f32.gmra.mrb[0].mxu0 %v2857
        %v3069 = vpop.f32.mrb[0].mxu0
        %v3070 = vadd.f32 %v286, %v3069
        %v3071 = vpop.f32.mrb[0].mxu0
        %v3072 = vadd.f32 %v287, %v3071
        %3073 = vmatprep.mubr.f32.mxu0 0.0
        %3074 = vmatmul.mubr.f32.gmra.mrb[0].mxu0 %v2860
        %v3075 = vpop.f32.mrb[0].mxu0
        %v3076 = vadd.f32 %v288, %v3075
        %v3077 = vpop.f32.mrb[0].mxu0
        %v3078 = vadd.f32 %v289, %v3077
        %3079 = vmatprep.mubr.f32.mxu0 0.0
        %3080 = vmatmul.mubr.f32.gmra.mrb[0].mxu0 %v2863
        %v3081 = vpop.f32.mrb[0].mxu0
        %v3082 = vadd.f32 %v290, %v3081
        %v3083 = vpop.f32.mrb[0].mxu0
        %v3084 = vadd.f32 %v291, %v3083
        %3085 = vmatprep.mubr.f32.mxu0 0.0
        %3086 = vmatmul.mubr.f32.gmra.mrb[0].mxu0 %v2866
        %v3087 = vpop.f32.mrb[0].mxu0
        %v3088 = vadd.f32 %v292, %v3087
        %v3089 = vpop.f32.mrb[0].mxu0
        %v3090 = vadd.f32 %v293, %v3089
        %3091 = vmatprep.mubr.f32.mxu0 0.0
        %3092 = vmatmul.mubr.f32.gmra.mrb[0].mxu0 %v2869
        %v3093 = vpop.f32.mrb[0].mxu0
        %v3094 = vadd.f32 %v294, %v3093
        %v3095 = vpop.f32.mrb[0].mxu0
        %v3096 = vadd.f32 %v295, %v3095
        %3097 = vmatprep.mubr.f32.mxu0 0.0
        %3098 = vmatmul.mubr.f32.gmra.mrb[0].mxu0 %v2872
        %v3099 = vpop.f32.mrb[0].mxu0
        %v3100 = vadd.f32 %v296, %v3099
        %v3101 = vpop.f32.mrb[0].mxu0
        %v3102 = vadd.f32 %v297, %v3101
        %3103 = vmatprep.mubr.f32.mxu0 0.0
        %3104 = vmatmul.mubr.f32.gmra.mrb[0].mxu0 %v2875
        %v3105 = vpop.f32.mrb[0].mxu0
        %v3106 = vadd.f32 %v298, %v3105
        %v3107 = vpop.f32.mrb[0].mxu0
        %v3108 = vadd.f32 %v299, %v3107
        %3109 = vmatprep.mubr.f32.mxu0 0.0
        %3110 = vmatmul.mubr.f32.gmra.mrb[0].mxu0 %v2878
        %v3111 = vpop.f32.mrb[0].mxu0
        %v3112 = vadd.f32 %v300, %v3111
        %v3113 = vpop.f32.mrb[0].mxu0
        %v3114 = vadd.f32 %v301, %v3113
        %3115 = vmatprep.mubr.f32.mxu0 0.0
        %3116 = vmatmul.mubr.f32.gmra.mrb[0].mxu0 %v2881
        %v3117 = vpop.f32.mrb[0].mxu0
        %v3118 = vadd.f32 %v302, %v3117
        %v3119 = vpop.f32.mrb[0].mxu0
        %v3120 = vadd.f32 %v303, %v3119
        %3121 = vmatprep.mubr.f32.mxu0 0.0
        %3122 = vmatmul.mubr.f32.gmra.mrb[0].mxu0 %v2884
        %v3123 = vpop.f32.mrb[0].mxu0
        %v3124 = vadd.f32 %v304, %v3123
        %v3125 = vpop.f32.mrb[0].mxu0
        %v3126 = vadd.f32 %v305, %v3125
        %3127 = vmatprep.mubr.f32.mxu0 0.0
        %3128 = vmatmul.mubr.f32.gmra.mrb[0].mxu0 %v2887
        %v3129 = vpop.f32.mrb[0].mxu0
        %v3130 = vadd.f32 %v306, %v3129
        %v3131 = vpop.f32.mrb[0].mxu0
        %v3132 = vadd.f32 %v307, %v3131
        %3133 = vmatprep.mubr.f32.mxu0 0.0
        %3134 = vmatmul.mubr.f32.gmra.mrb[0].mxu0 %v2890
        %v3135 = vpop.f32.mrb[0].mxu0
        %v3136 = vadd.f32 %v308, %v3135
        %v3137 = vpop.f32.mrb[0].mxu0
        %v3138 = vadd.f32 %v309, %v3137
        %3139 = vmatprep.mubr.f32.mxu0 0.0
        %3140 = vmatmul.mubr.f32.gmra.mrb[0].mxu0 %v2893
        %v3141 = vpop.f32.mrb[0].mxu0
        %v3142 = vadd.f32 %v310, %v3141
        %v3143 = vpop.f32.mrb[0].mxu0
        %v3144 = vadd.f32 %v311, %v3143
        %3145 = vmatprep.mubr.f32.mxu0 0.0
        %3146 = vmatmul.mubr.f32.gmra.mrb[0].mxu0 %v2896
        %v3147 = vpop.f32.mrb[0].mxu0
        %v3148 = vadd.f32 %v312, %v3147
        %v3149 = vpop.f32.mrb[0].mxu0
        %v3150 = vadd.f32 %v313, %v3149
        %3151 = vmatprep.mubr.f32.mxu0 0.0
        %3152 = vmatmul.mubr.f32.gmra.mrb[0].mxu0 %v2899
        %v3153 = vpop.f32.mrb[0].mxu0
        %v3154 = vadd.f32 %v314, %v3153
        %v3155 = vpop.f32.mrb[0].mxu0
        %v3156 = vadd.f32 %v315, %v3155
        %3157 = vdwg.mxu0
        %v3158 = vmax.f32 %v2968, %v2980
        %v3159 = vmax.f32 %v2974, %v2986
        %v3160 = vmax.f32 %v3158, %v2992
        %v3161 = vmax.f32 %v3159, %v2998
        %v3162 = vmax.f32 %v3160, %v3004
        %v3163 = vmax.f32 %v3161, %v3010
        %v3164 = vmax.f32 %v3162, %v3016
        %v3165 = vmax.f32 %v3163, %v3022
        %v3166 = vmax.f32 %v3164, %v3028
        %v3167 = vmax.f32 %v3165, %v3034
        %v3168 = vmax.f32 %v3166, %v3040
        %v3169 = vmax.f32 %v3167, %v3046
        %v3170 = vmax.f32 %v3168, %v3052
        %v3171 = vmax.f32 %v3169, %v3058
        %v3172 = vmax.f32 %v3170, %v3064
        %v3173 = vmax.f32 %v3171, %v3070
        %v3174 = vmax.f32 %v3172, %v3076
        %v3175 = vmax.f32 %v3173, %v3082
        %v3176 = vmax.f32 %v3174, %v3088
        %v3177 = vmax.f32 %v3175, %v3094
        %v3178 = vmax.f32 %v3176, %v3100
        %v3179 = vmax.f32 %v3177, %v3106
        %v3180 = vmax.f32 %v3178, %v3112
        %v3181 = vmax.f32 %v3179, %v3118
        %v3182 = vmax.f32 %v3180, %v3124
        %v3183 = vmax.f32 %v3181, %v3130
        %v3184 = vmax.f32 %v3182, %v3136
        %v3185 = vmax.f32 %v3183, %v3142
        %v3186 = vmax.f32 %v3184, %v3148
        %v3187 = vmax.f32 %v3185, %v3154
        %v3188 = vmax.f32 %v3186, %v3187
        %v3189 = vrot.slane %v3188, 4
        %v3190 = vmax.f32 %v3188, %v3189
        %v3191 = vrot.slane %v3190, 2
        %v3192 = vmax.f32 %v3190, %v3191
        %v3193 = vrot.slane %v3192, 1
        %v3194 = vmax.f32 %v3192, %v3193
        %v3195 = vmax.f32 %v2970, %v2982
        %v3196 = vmax.f32 %v2976, %v2988
        %v3197 = vmax.f32 %v3195, %v2994
        %v3198 = vmax.f32 %v3196, %v3000
        %v3199 = vmax.f32 %v3197, %v3006
        %v3200 = vmax.f32 %v3198, %v3012
        %v3201 = vmax.f32 %v3199, %v3018
        %v3202 = vmax.f32 %v3200, %v3024
        %v3203 = vmax.f32 %v3201, %v3030
        %v3204 = vmax.f32 %v3202, %v3036
        %v3205 = vmax.f32 %v3203, %v3042
        %v3206 = vmax.f32 %v3204, %v3048
        %v3207 = vmax.f32 %v3205, %v3054
        %v3208 = vmax.f32 %v3206, %v3060
        %v3209 = vmax.f32 %v3207, %v3066
        %v3210 = vmax.f32 %v3208, %v3072
        %v3211 = vmax.f32 %v3209, %v3078
        %v3212 = vmax.f32 %v3210, %v3084
        %v3213 = vmax.f32 %v3211, %v3090
        %v3214 = vmax.f32 %v3212, %v3096
        %v3215 = vmax.f32 %v3213, %v3102
        %v3216 = vmax.f32 %v3214, %v3108
        %v3217 = vmax.f32 %v3215, %v3114
        %v3218 = vmax.f32 %v3216, %v3120
        %v3219 = vmax.f32 %v3217, %v3126
        %v3220 = vmax.f32 %v3218, %v3132
        %v3221 = vmax.f32 %v3219, %v3138
        %v3222 = vmax.f32 %v3220, %v3144
        %v3223 = vmax.f32 %v3221, %v3150
        %v3224 = vmax.f32 %v3222, %v3156
        %v3225 = vmax.f32 %v3223, %v3224
        %v3226 = vrot.slane %v3225, 4
        %v3227 = vmax.f32 %v3225, %v3226
        %v3228 = vrot.slane %v3227, 2
        %v3229 = vmax.f32 %v3227, %v3228
        %v3230 = vrot.slane %v3229, 1
        %v3231 = vmax.f32 %v3229, %v3230
        %v3232 = vsub.f32 %v2968, %v3194
        %v3233 = vsub.f32 %v2970, %v3231
        %v3234 = vsub.f32 %v2974, %v3194
        %v3235 = vsub.f32 %v2976, %v3231
        %v3236 = vsub.f32 %v2980, %v3194
        %v3237 = vsub.f32 %v2982, %v3231
        %v3238 = vsub.f32 %v2986, %v3194
        %v3239 = vsub.f32 %v2988, %v3231
        %v3240 = vsub.f32 %v2992, %v3194
        %v3241 = vsub.f32 %v2994, %v3231
        %v3242 = vsub.f32 %v2998, %v3194
        %v3243 = vsub.f32 %v3000, %v3231
        %v3244 = vsub.f32 %v3004, %v3194
        %v3245 = vsub.f32 %v3006, %v3231
        %v3246 = vsub.f32 %v3010, %v3194
        %v3247 = vsub.f32 %v3012, %v3231
        %v3248 = vsub.f32 %v3016, %v3194
        %v3249 = vsub.f32 %v3018, %v3231
        %v3250 = vsub.f32 %v3022, %v3194
        %v3251 = vsub.f32 %v3024, %v3231
        %v3252 = vsub.f32 %v3028, %v3194
        %v3253 = vsub.f32 %v3030, %v3231
        %v3254 = vsub.f32 %v3034, %v3194
        %v3255 = vsub.f32 %v3036, %v3231
        %v3256 = vsub.f32 %v3040, %v3194
        %v3257 = vsub.f32 %v3042, %v3231
        %v3258 = vsub.f32 %v3046, %v3194
        %v3259 = vsub.f32 %v3048, %v3231
        %v3260 = vsub.f32 %v3052, %v3194
        %v3261 = vsub.f32 %v3054, %v3231
        %v3262 = vsub.f32 %v3058, %v3194
        %v3263 = vsub.f32 %v3060, %v3231
        %v3264 = vsub.f32 %v3064, %v3194
        %v3265 = vsub.f32 %v3066, %v3231
        %v3266 = vsub.f32 %v3070, %v3194
        %v3267 = vsub.f32 %v3072, %v3231
        %v3268 = vsub.f32 %v3076, %v3194
        %v3269 = vsub.f32 %v3078, %v3231
        %v3270 = vsub.f32 %v3082, %v3194
        %v3271 = vsub.f32 %v3084, %v3231
        %v3272 = vsub.f32 %v3088, %v3194
        %v3273 = vsub.f32 %v3090, %v3231
        %v3274 = vsub.f32 %v3094, %v3194
        %v3275 = vsub.f32 %v3096, %v3231
        %v3276 = vsub.f32 %v3100, %v3194
        %v3277 = vsub.f32 %v3102, %v3231
        %v3278 = vsub.f32 %v3106, %v3194
        %v3279 = vsub.f32 %v3108, %v3231
        %v3280 = vsub.f32 %v3112, %v3194
        %v3281 = vsub.f32 %v3114, %v3231
        %v3282 = vsub.f32 %v3118, %v3194
        %v3283 = vsub.f32 %v3120, %v3231
        %v3284 = vsub.f32 %v3124, %v3194
        %v3285 = vsub.f32 %v3126, %v3231
        %v3286 = vsub.f32 %v3130, %v3194
        %v3287 = vsub.f32 %v3132, %v3231
        %v3288 = vsub.f32 %v3136, %v3194
        %v3289 = vsub.f32 %v3138, %v3231
        %v3290 = vsub.f32 %v3142, %v3194
        %v3291 = vsub.f32 %v3144, %v3231
        %v3292 = vsub.f32 %v3148, %v3194
        %v3293 = vsub.f32 %v3150, %v3231
        %v3294 = vsub.f32 %v3154, %v3194
        %v3295 = vsub.f32 %v3156, %v3231
        %v3296 = vmul.f32 %v3232, 1.442695
        %v3297 = vpow.pop %v3296
        %v3298 = vmul.f32 %v3233, 1.442695
        %v3299 = vpow.pop %v3298
        %v3300 = vmul.f32 %v3234, 1.442695
        %v3301 = vpow.pop %v3300
        %v3302 = vmul.f32 %v3235, 1.442695
        %v3303 = vpow.pop %v3302
        %v3304 = vmul.f32 %v3236, 1.442695
        %v3305 = vpow.pop %v3304
        %v3306 = vmul.f32 %v3237, 1.442695
        %v3307 = vpow.pop %v3306
        %v3308 = vmul.f32 %v3238, 1.442695
        %v3309 = vpow.pop %v3308
        %v3310 = vmul.f32 %v3239, 1.442695
        %v3311 = vpow.pop %v3310
        %v3312 = vmul.f32 %v3240, 1.442695
        %v3313 = vpow.pop %v3312
        %v3314 = vmul.f32 %v3241, 1.442695
        %v3315 = vpow.pop %v3314
        %v3316 = vmul.f32 %v3242, 1.442695
        %v3317 = vpow.pop %v3316
        %v3318 = vmul.f32 %v3243, 1.442695
        %v3319 = vpow.pop %v3318
        %v3320 = vmul.f32 %v3244, 1.442695
        %v3321 = vpow.pop %v3320
        %v3322 = vmul.f32 %v3245, 1.442695
        %v3323 = vpow.pop %v3322
        %v3324 = vmul.f32 %v3246, 1.442695
        %v3325 = vpow.pop %v3324
        %v3326 = vmul.f32 %v3247, 1.442695
        %v3327 = vpow.pop %v3326
        %v3328 = vmul.f32 %v3248, 1.442695
        %v3329 = vpow.pop %v3328
        %v3330 = vmul.f32 %v3249, 1.442695
        %v3331 = vpow.pop %v3330
        %v3332 = vmul.f32 %v3250, 1.442695
        %v3333 = vpow.pop %v3332
        %v3334 = vmul.f32 %v3251, 1.442695
        %v3335 = vpow.pop %v3334
        %v3336 = vmul.f32 %v3252, 1.442695
        %v3337 = vpow.pop %v3336
        %v3338 = vmul.f32 %v3253, 1.442695
        %v3339 = vpow.pop %v3338
        %v3340 = vmul.f32 %v3254, 1.442695
        %v3341 = vpow.pop %v3340
        %v3342 = vmul.f32 %v3255, 1.442695
        %v3343 = vpow.pop %v3342
        %v3344 = vmul.f32 %v3256, 1.442695
        %v3345 = vpow.pop %v3344
        %v3346 = vmul.f32 %v3257, 1.442695
        %v3347 = vpow.pop %v3346
        %v3348 = vmul.f32 %v3258, 1.442695
        %v3349 = vpow.pop %v3348
        %v3350 = vmul.f32 %v3259, 1.442695
        %v3351 = vpow.pop %v3350
        %v3352 = vmul.f32 %v3260, 1.442695
        %v3353 = vpow.pop %v3352
        %v3354 = vmul.f32 %v3261, 1.442695
        %v3355 = vpow.pop %v3354
        %v3356 = vmul.f32 %v3262, 1.442695
        %v3357 = vpow.pop %v3356
        %v3358 = vmul.f32 %v3263, 1.442695
        %v3359 = vpow.pop %v3358
        %v3360 = vmul.f32 %v3264, 1.442695
        %v3361 = vpow.pop %v3360
        %v3362 = vmul.f32 %v3265, 1.442695
        %v3363 = vpow.pop %v3362
        %v3364 = vmul.f32 %v3266, 1.442695
        %v3365 = vpow.pop %v3364
        %v3366 = vmul.f32 %v3267, 1.442695
        %v3367 = vpow.pop %v3366
        %v3368 = vmul.f32 %v3268, 1.442695
        %v3369 = vpow.pop %v3368
        %v3370 = vmul.f32 %v3269, 1.442695
        %v3371 = vpow.pop %v3370
        %v3372 = vmul.f32 %v3270, 1.442695
        %v3373 = vpow.pop %v3372
        %v3374 = vmul.f32 %v3271, 1.442695
        %v3375 = vpow.pop %v3374
        %v3376 = vmul.f32 %v3272, 1.442695
        %v3377 = vpow.pop %v3376
        %v3378 = vmul.f32 %v3273, 1.442695
        %v3379 = vpow.pop %v3378
        %v3380 = vmul.f32 %v3274, 1.442695
        %v3381 = vpow.pop %v3380
        %v3382 = vmul.f32 %v3275, 1.442695
        %v3383 = vpow.pop %v3382
        %v3384 = vmul.f32 %v3276, 1.442695
        %v3385 = vpow.pop %v3384
        %v3386 = vmul.f32 %v3277, 1.442695
        %v3387 = vpow.pop %v3386
        %v3388 = vmul.f32 %v3278, 1.442695
        %v3389 = vpow.pop %v3388
        %v3390 = vmul.f32 %v3279, 1.442695
        %v3391 = vpow.pop %v3390
        %v3392 = vmul.f32 %v3280, 1.442695
        %v3393 = vpow.pop %v3392
        %v3394 = vmul.f32 %v3281, 1.442695
        %v3395 = vpow.pop %v3394
        %v3396 = vmul.f32 %v3282, 1.442695
        %v3397 = vpow.pop %v3396
        %v3398 = vmul.f32 %v3283, 1.442695
        %v3399 = vpow.pop %v3398
        %v3400 = vmul.f32 %v3284, 1.442695
        %v3401 = vpow.pop %v3400
        %v3402 = vmul.f32 %v3285, 1.442695
        %v3403 = vpow.pop %v3402
        %v3404 = vmul.f32 %v3286, 1.442695
        %v3405 = vpow.pop %v3404
        %v3406 = vmul.f32 %v3287, 1.442695
        %v3407 = vpow.pop %v3406
        %v3408 = vmul.f32 %v3288, 1.442695
        %v3409 = vpow.pop %v3408
        %v3410 = vmul.f32 %v3289, 1.442695
        %v3411 = vpow.pop %v3410
        %v3412 = vmul.f32 %v3290, 1.442695
        %v3413 = vpow.pop %v3412
        %v3414 = vmul.f32 %v3291, 1.442695
        %v3415 = vpow.pop %v3414
        %v3416 = vmul.f32 %v3292, 1.442695
        %v3417 = vpow.pop %v3416
        %v3418 = vmul.f32 %v3293, 1.442695
        %v3419 = vpow.pop %v3418
        %v3420 = vmul.f32 %v3294, 1.442695
        %v3421 = vpow.pop %v3420
        %v3422 = vmul.f32 %v3295, 1.442695
        %v3423 = vpow.pop %v3422
        %v3424 = vadd.f32 %v3297, %v3301
        %v3425 = vadd.f32 %v3424, %v3305
        %v3426 = vadd.f32 %v3425, %v3309
        %v3427 = vadd.f32 %v3426, %v3313
        %v3428 = vadd.f32 %v3427, %v3317
        %v3429 = vadd.f32 %v3428, %v3321
        %v3430 = vadd.f32 %v3429, %v3325
        %v3431 = vadd.f32 %v3430, %v3329
        %v3432 = vadd.f32 %v3431, %v3333
        %v3433 = vadd.f32 %v3432, %v3337
        %v3434 = vadd.f32 %v3433, %v3341
        %v3435 = vadd.f32 %v3434, %v3345
        %v3436 = vadd.f32 %v3435, %v3349
        %v3437 = vadd.f32 %v3436, %v3353
        %v3438 = vadd.f32 %v3437, %v3357
        %v3439 = vadd.f32 %v3438, %v3361
        %v3440 = vadd.f32 %v3439, %v3365
        %v3441 = vadd.f32 %v3440, %v3369
        %v3442 = vadd.f32 %v3441, %v3373
        %v3443 = vadd.f32 %v3442, %v3377
        %v3444 = vadd.f32 %v3443, %v3381
        %v3445 = vadd.f32 %v3444, %v3385
        %v3446 = vadd.f32 %v3445, %v3389
        %v3447 = vadd.f32 %v3446, %v3393
        %v3448 = vadd.f32 %v3447, %v3397
        %v3449 = vadd.f32 %v3448, %v3401
        %v3450 = vadd.f32 %v3449, %v3405
        %v3451 = vadd.f32 %v3450, %v3409
        %v3452 = vadd.f32 %v3451, %v3413
        %v3453 = vadd.f32 %v3452, %v3417
        %v3454 = vadd.f32 %v3453, %v3421
        %v3455 = vrot.slane %v3454, 4
        %v3456 = vadd.f32 %v3454, %v3455
        %v3457 = vrot.slane %v3456, 2
        %v3458 = vadd.f32 %v3456, %v3457
        %v3459 = vrot.slane %v3458, 1
        %v3460 = vadd.f32 %v3458, %v3459
        %v3461 = vadd.f32 %v3299, %v3303
        %v3462 = vadd.f32 %v3461, %v3307
        %v3463 = vadd.f32 %v3462, %v3311
        %v3464 = vadd.f32 %v3463, %v3315
        %v3465 = vadd.f32 %v3464, %v3319
        %v3466 = vadd.f32 %v3465, %v3323
        %v3467 = vadd.f32 %v3466, %v3327
        %v3468 = vadd.f32 %v3467, %v3331
        %v3469 = vadd.f32 %v3468, %v3335
        %v3470 = vadd.f32 %v3469, %v3339
        %v3471 = vadd.f32 %v3470, %v3343
        %v3472 = vadd.f32 %v3471, %v3347
        %v3473 = vadd.f32 %v3472, %v3351
        %v3474 = vadd.f32 %v3473, %v3355
        %v3475 = vadd.f32 %v3474, %v3359
        %v3476 = vadd.f32 %v3475, %v3363
        %v3477 = vadd.f32 %v3476, %v3367
        %v3478 = vadd.f32 %v3477, %v3371
        %v3479 = vadd.f32 %v3478, %v3375
        %v3480 = vadd.f32 %v3479, %v3379
        %v3481 = vadd.f32 %v3480, %v3383
        %v3482 = vadd.f32 %v3481, %v3387
        %v3483 = vadd.f32 %v3482, %v3391
        %v3484 = vadd.f32 %v3483, %v3395
        %v3485 = vadd.f32 %v3484, %v3399
        %v3486 = vadd.f32 %v3485, %v3403
        %v3487 = vadd.f32 %v3486, %v3407
        %v3488 = vadd.f32 %v3487, %v3411
        %v3489 = vadd.f32 %v3488, %v3415
        %v3490 = vadd.f32 %v3489, %v3419
        %v3491 = vadd.f32 %v3490, %v3423
        %v3492 = vrot.slane %v3491, 4
        %v3493 = vadd.f32 %v3491, %v3492
        %v3494 = vrot.slane %v3493, 2
        %v3495 = vadd.f32 %v3493, %v3494
        %v3496 = vrot.slane %v3495, 1
        %v3497 = vadd.f32 %v3495, %v3496
        %s3498 = scalar_lea.vmem %s249, 48
        %v3499 = vld [vmem:[%s3498] sm:$0xff]
        %v3500 = vld [vmem:[%s3498 + $0x8] sm:$0xff]
        %3501 = vmatprep.subr.mxu0 %v3299
        %3502 = vmatpush1.msra.mxu0 %v3297
        %3503 = vmatprep.subr.mxu0 %v3303
        %3504 = vmatpush1.msra.mxu0 %v3301
        %3505 = vmatprep.subr.mxu0 %v3307
        %3506 = vmatpush1.msra.mxu0 %v3305
        %3507 = vmatprep.subr.mxu0 %v3311
        %3508 = vmatpush1.msra.mxu0 %v3309
        %3509 = vmatprep.subr.mxu0 %v3315
        %3510 = vmatpush1.msra.mxu0 %v3313
        %3511 = vmatprep.subr.mxu0 %v3319
        %3512 = vmatpush1.msra.mxu0 %v3317
        %3513 = vmatprep.subr.mxu0 %v3323
        %3514 = vmatpush1.msra.mxu0 %v3321
        %3515 = vmatprep.subr.mxu0 %v3327
        %3516 = vmatpush1.msra.mxu0 %v3325
        %3517 = vmatprep.subr.mxu0 %v3331
        %3518 = vmatpush1.msra.mxu0 %v3329
        %3519 = vmatprep.subr.mxu0 %v3335
        %3520 = vmatpush1.msra.mxu0 %v3333
        %3521 = vmatprep.subr.mxu0 %v3339
        %3522 = vmatpush1.msra.mxu0 %v3337
        %3523 = vmatprep.subr.mxu0 %v3343
        %3524 = vmatpush1.msra.mxu0 %v3341
        %3525 = vmatprep.subr.mxu0 %v3347
        %3526 = vmatpush1.msra.mxu0 %v3345
        %3527 = vmatprep.subr.mxu0 %v3351
        %3528 = vmatpush1.msra.mxu0 %v3349
        %3529 = vmatprep.subr.mxu0 %v3355
        %3530 = vmatpush1.msra.mxu0 %v3353
        %3531 = vmatprep.subr.mxu0 %v3359
        %3532 = vmatpush1.msra.mxu0 %v3357
        %3533 = vmatprep.subr.mxu0 %v3363
        %3534 = vmatpush1.msra.mxu0 %v3361
        %3535 = vmatprep.subr.mxu0 %v3367
        %3536 = vmatpush1.msra.mxu0 %v3365
        %3537 = vmatprep.subr.mxu0 %v3371
        %3538 = vmatpush1.msra.mxu0 %v3369
        %3539 = vmatprep.subr.mxu0 %v3375
        %3540 = vmatpush1.msra.mxu0 %v3373
        %3541 = vmatprep.subr.mxu0 %v3379
        %3542 = vmatpush1.msra.mxu0 %v3377
        %3543 = vmatprep.subr.mxu0 %v3383
        %3544 = vmatpush1.msra.mxu0 %v3381
        %3545 = vmatprep.subr.mxu0 %v3387
        %3546 = vmatpush1.msra.mxu0 %v3385
        %3547 = vmatprep.subr.mxu0 %v3391
        %3548 = vmatpush1.msra.mxu0 %v3389
        %3549 = vmatprep.subr.mxu0 %v3395
        %3550 = vmatpush1.msra.mxu0 %v3393
        %3551 = vmatprep.subr.mxu0 %v3399
        %3552 = vmatpush1.msra.mxu0 %v3397
        %3553 = vmatprep.subr.mxu0 %v3403
        %3554 = vmatpush1.msra.mxu0 %v3401
        %3555 = vmatprep.subr.mxu0 %v3407
        %3556 = vmatpush1.msra.mxu0 %v3405
        %3557 = vmatprep.subr.mxu0 %v3411
        %3558 = vmatpush1.msra.mxu0 %v3409
        %3559 = vmatprep.subr.mxu0 %v3415
        %3560 = vmatpush1.msra.mxu0 %v3413
        %3561 = vmatprep.subr.mxu0 %v3419
        %3562 = vmatpush1.msra.mxu0 %v3417
        %3563 = vmatprep.subr.mxu0 %v3423
        %3564 = vmatpush1.msra.mxu0 %v3421
        %3565 = vmatprep.mubr.f32.mxu0 %v3500
        %3566 = vmatmul.mubr.f32.gmra.mrb[0].mxu0 %v3499
        %v3567 = vpop.f32.mrb[0].mxu0
        %v3568 = vadd.f32 0.0, %v3567
        %v3569 = vpop.f32.mrb[0].mxu0
        %v3570 = vadd.f32 0.0, %v3569
        %3571 = vdwg.mxu0
        %v3572 = vrcp.pop %v3460
        %v3573 = vrcp.pop %v3497
        %v3574 = vmul.f32 %v3460, %v3572
        %v3575 = vmul.f32 %v3497, %v3573
        %v3576 = vsub.f32 2.0, %v3574
        %v3577 = vsub.f32 2.0, %v3575
        %v3578 = vmul.f32 %v3572, %v3576
        %v3579 = vmul.f32 %v3573, %v3577
        %v3580 = vmul.f32 %v3568, %v3578
        %v3581 = vmul.f32 %v3570, %v3579
        %s3582 = scalar_lea.vmem %s229, 48 [#allocation2]
        %3583 = vst [vmem:[%s3582] sm:$0xff] %v3580
        %3584 = vst [vmem:[%s3582 + $0x8] sm:$0xff] %v3581
        %s3585 = scalar_lea.vmem %s235, 64
        %v3586 = vld [vmem:[%s3585] sm:$0xff]
        %v3587 = vld [vmem:[%s3585 + $0x8] sm:$0xff]
        %v3588 = vmul.f32 %v3586, 0.35355338
        %v3589 = vmul.f32 %v3587, 0.35355338
        %s3590 = scalar_lea.vmem %s242, 1024
        %v3591 = vld [vmem:[%s3590] sm:$0xff]
        %v3592 = vld [vmem:[%s3590 + $0x8] sm:$0xff]
        %v3593 = vld [vmem:[%s3590 + $0x10] sm:$0xff]
        %v3594 = vld [vmem:[%s3590 + $0x18] sm:$0xff]
        %v3595 = vld [vmem:[%s3590 + $0x20] sm:$0xff]
        %v3596 = vld [vmem:[%s3590 + $0x28] sm:$0xff]
        %v3597 = vld [vmem:[%s3590 + $0x30] sm:$0xff]
        %v3598 = vld [vmem:[%s3590 + $0x38] sm:$0xff]
        %v3599 = vld [vmem:[%s3590 + $0x40] sm:$0xff]
        %v3600 = vld [vmem:[%s3590 + $0x48] sm:$0xff]
        %v3601 = vld [vmem:[%s3590 + $0x50] sm:$0xff]
        %v3602 = vld [vmem:[%s3590 + $0x58] sm:$0xff]
        %v3603 = vld [vmem:[%s3590 + $0x60] sm:$0xff]
        %v3604 = vld [vmem:[%s3590 + $0x68] sm:$0xff]
        %v3605 = vld [vmem:[%s3590 + $0x70] sm:$0xff]
        %v3606 = vld [vmem:[%s3590 + $0x78] sm:$0xff]
        %v3607 = vld [vmem:[%s3590 + $0x80] sm:$0xff]
        %v3608 = vld [vmem:[%s3590 + $0x88] sm:$0xff]
        %v3609 = vld [vmem:[%s3590 + $0x90] sm:$0xff]
        %v3610 = vld [vmem:[%s3590 + $0x98] sm:$0xff]
        %v3611 = vld [vmem:[%s3590 + $0xa0] sm:$0xff]
        %v3612 = vld [vmem:[%s3590 + $0xa8] sm:$0xff]
        %v3613 = vld [vmem:[%s3590 + $0xb0] sm:$0xff]
        %v3614 = vld [vmem:[%s3590 + $0xb8] sm:$0xff]
        %v3615 = vld [vmem:[%s3590 + $0xc0] sm:$0xff]
        %v3616 = vld [vmem:[%s3590 + $0xc8] sm:$0xff]
        %v3617 = vld [vmem:[%s3590 + $0xd0] sm:$0xff]
        %v3618 = vld [vmem:[%s3590 + $0xd8] sm:$0xff]
        %v3619 = vld [vmem:[%s3590 + $0xe0] sm:$0xff]
        %v3620 = vld [vmem:[%s3590 + $0xe8] sm:$0xff]
        %v3621 = vld [vmem:[%s3590 + $0xf0] sm:$0xff]
        %v3622 = vld [vmem:[%s3590 + $0xf8] sm:$0xff]
        %v3624 = vsel %vm352, %v3591, 0
        %v3627 = vsel %vm352, %v3592, 0
        %v3630 = vsel %vm352, %v3593, 0
        %v3633 = vsel %vm352, %v3594, 0
        %v3636 = vsel %vm352, %v3595, 0
        %v3639 = vsel %vm352, %v3596, 0
        %v3642 = vsel %vm352, %v3597, 0
        %v3645 = vsel %vm352, %v3598, 0
        %v3648 = vsel %vm352, %v3599, 0
        %v3651 = vsel %vm352, %v3600, 0
        %v3654 = vsel %vm352, %v3601, 0
        %v3657 = vsel %vm352, %v3602, 0
        %v3660 = vsel %vm352, %v3603, 0
        %v3663 = vsel %vm352, %v3604, 0
        %v3666 = vsel %vm352, %v3605, 0
        %v3669 = vsel %vm352, %v3606, 0
        %v3672 = vsel %vm352, %v3607, 0
        %v3675 = vsel %vm352, %v3608, 0
        %v3678 = vsel %vm352, %v3609, 0
        %v3681 = vsel %vm352, %v3610, 0
        %v3684 = vsel %vm352, %v3611, 0
        %v3687 = vsel %vm352, %v3612, 0
        %v3690 = vsel %vm352, %v3613, 0
        %v3693 = vsel %vm352, %v3614, 0
        %v3696 = vsel %vm352, %v3615, 0
        %v3699 = vsel %vm352, %v3616, 0
        %v3702 = vsel %vm352, %v3617, 0
        %v3705 = vsel %vm352, %v3618, 0
        %v3708 = vsel %vm352, %v3619, 0
        %v3711 = vsel %vm352, %v3620, 0
        %v3714 = vsel %vm352, %v3621, 0
        %v3717 = vsel %vm352, %v3622, 0
        %3719 = vmatprep.subr.mxu0 %v3589
        %3720 = vmatpush1.msra.mxu0 %v3588
        %3721 = vmatprep.subr.mxu0 0.0
        %3722 = vmatpush1.msra.mxu0 0.0
        %3723 = vmatprep.subr.mxu0 0.0
        %3724 = vmatpush1.msra.mxu0 0.0
        %3725 = vmatprep.subr.mxu0 0.0
        %3726 = vmatpush1.msra.mxu0 0.0
        %3727 = vmatprep.subr.mxu0 0.0
        %3728 = vmatpush1.msra.mxu0 0.0
        %3729 = vmatprep.subr.mxu0 0.0
        %3730 = vmatpush1.msra.mxu0 0.0
        %3731 = vmatprep.subr.mxu0 0.0
        %3732 = vmatpush1.msra.mxu0 0.0
        %3733 = vmatprep.subr.mxu0 0.0
        %3734 = vmatpush1.msra.mxu0 0.0
        %3735 = vmatprep.subr.mxu0 0.0
        %3736 = vmatpush1.msra.mxu0 0.0
        %3737 = vmatprep.subr.mxu0 0.0
        %3738 = vmatpush1.msra.mxu0 0.0
        %3739 = vmatprep.subr.mxu0 0.0
        %3740 = vmatpush1.msra.mxu0 0.0
        %3741 = vmatprep.subr.mxu0 0.0
        %3742 = vmatpush1.msra.mxu0 0.0
        %3743 = vmatprep.subr.mxu0 0.0
        %3744 = vmatpush1.msra.mxu0 0.0
        %3745 = vmatprep.subr.mxu0 0.0
        %3746 = vmatpush1.msra.mxu0 0.0
        %3747 = vmatprep.subr.mxu0 0.0
        %3748 = vmatpush1.msra.mxu0 0.0
        %3749 = vmatprep.subr.mxu0 0.0
        %3750 = vmatpush1.msra.mxu0 0.0
        %3751 = vmatprep.subr.mxu0 0.0
        %3752 = vmatpush1.msra.mxu0 0.0
        %3753 = vmatprep.subr.mxu0 0.0
        %3754 = vmatpush1.msra.mxu0 0.0
        %3755 = vmatprep.subr.mxu0 0.0
        %3756 = vmatpush1.msra.mxu0 0.0
        %3757 = vmatprep.subr.mxu0 0.0
        %3758 = vmatpush1.msra.mxu0 0.0
        %3759 = vmatprep.subr.mxu0 0.0
        %3760 = vmatpush1.msra.mxu0 0.0
        %3761 = vmatprep.subr.mxu0 0.0
        %3762 = vmatpush1.msra.mxu0 0.0
        %3763 = vmatprep.subr.mxu0 0.0
        %3764 = vmatpush1.msra.mxu0 0.0
        %3765 = vmatprep.subr.mxu0 0.0
        %3766 = vmatpush1.msra.mxu0 0.0
        %3767 = vmatprep.subr.mxu0 0.0
        %3768 = vmatpush1.msra.mxu0 0.0
        %3769 = vmatprep.subr.mxu0 0.0
        %3770 = vmatpush1.msra.mxu0 0.0
        %3771 = vmatprep.subr.mxu0 0.0
        %3772 = vmatpush1.msra.mxu0 0.0
        %3773 = vmatprep.subr.mxu0 0.0
        %3774 = vmatpush1.msra.mxu0 0.0
        %3775 = vmatprep.subr.mxu0 0.0
        %3776 = vmatpush1.msra.mxu0 0.0
        %3777 = vmatprep.subr.mxu0 0.0
        %3778 = vmatpush1.msra.mxu0 0.0
        %3779 = vmatprep.subr.mxu0 0.0
        %3780 = vmatpush1.msra.mxu0 0.0
        %3781 = vmatprep.subr.mxu0 0.0
        %3782 = vmatpush1.msra.mxu0 0.0
        %3783 = vmatprep.mubr.f32.mxu0 0.0
        %3784 = vmatmul.mubr.f32.gmra.mrb[0].mxu0 %v3624
        %v3785 = vpop.f32.mrb[0].mxu0
        %v3786 = vadd.f32 %v252, %v3785
        %v3787 = vpop.f32.mrb[0].mxu0
        %v3788 = vadd.f32 %v253, %v3787
        %3789 = vmatprep.mubr.f32.mxu0 0.0
        %3790 = vmatmul.mubr.f32.gmra.mrb[0].mxu0 %v3627
        %v3791 = vpop.f32.mrb[0].mxu0
        %v3792 = vadd.f32 %v254, %v3791
        %v3793 = vpop.f32.mrb[0].mxu0
        %v3794 = vadd.f32 %v255, %v3793
        %3795 = vmatprep.mubr.f32.mxu0 0.0
        %3796 = vmatmul.mubr.f32.gmra.mrb[0].mxu0 %v3630
        %v3797 = vpop.f32.mrb[0].mxu0
        %v3798 = vadd.f32 %v256, %v3797
        %v3799 = vpop.f32.mrb[0].mxu0
        %v3800 = vadd.f32 %v257, %v3799
        %3801 = vmatprep.mubr.f32.mxu0 0.0
        %3802 = vmatmul.mubr.f32.gmra.mrb[0].mxu0 %v3633
        %v3803 = vpop.f32.mrb[0].mxu0
        %v3804 = vadd.f32 %v258, %v3803
        %v3805 = vpop.f32.mrb[0].mxu0
        %v3806 = vadd.f32 %v259, %v3805
        %3807 = vmatprep.mubr.f32.mxu0 0.0
        %3808 = vmatmul.mubr.f32.gmra.mrb[0].mxu0 %v3636
        %v3809 = vpop.f32.mrb[0].mxu0
        %v3810 = vadd.f32 %v260, %v3809
        %v3811 = vpop.f32.mrb[0].mxu0
        %v3812 = vadd.f32 %v261, %v3811
        %3813 = vmatprep.mubr.f32.mxu0 0.0
        %3814 = vmatmul.mubr.f32.gmra.mrb[0].mxu0 %v3639
        %v3815 = vpop.f32.mrb[0].mxu0
        %v3816 = vadd.f32 %v262, %v3815
        %v3817 = vpop.f32.mrb[0].mxu0
        %v3818 = vadd.f32 %v263, %v3817
        %3819 = vmatprep.mubr.f32.mxu0 0.0
        %3820 = vmatmul.mubr.f32.gmra.mrb[0].mxu0 %v3642
        %v3821 = vpop.f32.mrb[0].mxu0
        %v3822 = vadd.f32 %v264, %v3821
        %v3823 = vpop.f32.mrb[0].mxu0
        %v3824 = vadd.f32 %v265, %v3823
        %3825 = vmatprep.mubr.f32.mxu0 0.0
        %3826 = vmatmul.mubr.f32.gmra.mrb[0].mxu0 %v3645
        %v3827 = vpop.f32.mrb[0].mxu0
        %v3828 = vadd.f32 %v266, %v3827
        %v3829 = vpop.f32.mrb[0].mxu0
        %v3830 = vadd.f32 %v267, %v3829
        %3831 = vmatprep.mubr.f32.mxu0 0.0
        %3832 = vmatmul.mubr.f32.gmra.mrb[0].mxu0 %v3648
        %v3833 = vpop.f32.mrb[0].mxu0
        %v3834 = vadd.f32 %v268, %v3833
        %v3835 = vpop.f32.mrb[0].mxu0
        %v3836 = vadd.f32 %v269, %v3835
        %3837 = vmatprep.mubr.f32.mxu0 0.0
        %3838 = vmatmul.mubr.f32.gmra.mrb[0].mxu0 %v3651
        %v3839 = vpop.f32.mrb[0].mxu0
        %v3840 = vadd.f32 %v270, %v3839
        %v3841 = vpop.f32.mrb[0].mxu0
        %v3842 = vadd.f32 %v271, %v3841
        %3843 = vmatprep.mubr.f32.mxu0 0.0
        %3844 = vmatmul.mubr.f32.gmra.mrb[0].mxu0 %v3654
        %v3845 = vpop.f32.mrb[0].mxu0
        %v3846 = vadd.f32 %v272, %v3845
        %v3847 = vpop.f32.mrb[0].mxu0
        %v3848 = vadd.f32 %v273, %v3847
        %3849 = vmatprep.mubr.f32.mxu0 0.0
        %3850 = vmatmul.mubr.f32.gmra.mrb[0].mxu0 %v3657
        %v3851 = vpop.f32.mrb[0].mxu0
        %v3852 = vadd.f32 %v274, %v3851
        %v3853 = vpop.f32.mrb[0].mxu0
        %v3854 = vadd.f32 %v275, %v3853
        %3855 = vmatprep.mubr.f32.mxu0 0.0
        %3856 = vmatmul.mubr.f32.gmra.mrb[0].mxu0 %v3660
        %v3857 = vpop.f32.mrb[0].mxu0
        %v3858 = vadd.f32 %v276, %v3857
        %v3859 = vpop.f32.mrb[0].mxu0
        %v3860 = vadd.f32 %v277, %v3859
        %3861 = vmatprep.mubr.f32.mxu0 0.0
        %3862 = vmatmul.mubr.f32.gmra.mrb[0].mxu0 %v3663
        %v3863 = vpop.f32.mrb[0].mxu0
        %v3864 = vadd.f32 %v278, %v3863
        %v3865 = vpop.f32.mrb[0].mxu0
        %v3866 = vadd.f32 %v279, %v3865
        %3867 = vmatprep.mubr.f32.mxu0 0.0
        %3868 = vmatmul.mubr.f32.gmra.mrb[0].mxu0 %v3666
        %v3869 = vpop.f32.mrb[0].mxu0
        %v3870 = vadd.f32 %v280, %v3869
        %v3871 = vpop.f32.mrb[0].mxu0
        %v3872 = vadd.f32 %v281, %v3871
        %3873 = vmatprep.mubr.f32.mxu0 0.0
        %3874 = vmatmul.mubr.f32.gmra.mrb[0].mxu0 %v3669
        %v3875 = vpop.f32.mrb[0].mxu0
        %v3876 = vadd.f32 %v282, %v3875
        %v3877 = vpop.f32.mrb[0].mxu0
        %v3878 = vadd.f32 %v283, %v3877
        %3879 = vmatprep.mubr.f32.mxu0 0.0
        %3880 = vmatmul.mubr.f32.gmra.mrb[0].mxu0 %v3672
        %v3881 = vpop.f32.mrb[0].mxu0
        %v3882 = vadd.f32 %v284, %v3881
        %v3883 = vpop.f32.mrb[0].mxu0
        %v3884 = vadd.f32 %v285, %v3883
        %3885 = vmatprep.mubr.f32.mxu0 0.0
        %3886 = vmatmul.mubr.f32.gmra.mrb[0].mxu0 %v3675
        %v3887 = vpop.f32.mrb[0].mxu0
        %v3888 = vadd.f32 %v286, %v3887
        %v3889 = vpop.f32.mrb[0].mxu0
        %v3890 = vadd.f32 %v287, %v3889
        %3891 = vmatprep.mubr.f32.mxu0 0.0
        %3892 = vmatmul.mubr.f32.gmra.mrb[0].mxu0 %v3678
        %v3893 = vpop.f32.mrb[0].mxu0
        %v3894 = vadd.f32 %v288, %v3893
        %v3895 = vpop.f32.mrb[0].mxu0
        %v3896 = vadd.f32 %v289, %v3895
        %3897 = vmatprep.mubr.f32.mxu0 0.0
        %3898 = vmatmul.mubr.f32.gmra.mrb[0].mxu0 %v3681
        %v3899 = vpop.f32.mrb[0].mxu0
        %v3900 = vadd.f32 %v290, %v3899
        %v3901 = vpop.f32.mrb[0].mxu0
        %v3902 = vadd.f32 %v291, %v3901
        %3903 = vmatprep.mubr.f32.mxu0 0.0
        %3904 = vmatmul.mubr.f32.gmra.mrb[0].mxu0 %v3684
        %v3905 = vpop.f32.mrb[0].mxu0
        %v3906 = vadd.f32 %v292, %v3905
        %v3907 = vpop.f32.mrb[0].mxu0
        %v3908 = vadd.f32 %v293, %v3907
        %3909 = vmatprep.mubr.f32.mxu0 0.0
        %3910 = vmatmul.mubr.f32.gmra.mrb[0].mxu0 %v3687
        %v3911 = vpop.f32.mrb[0].mxu0
        %v3912 = vadd.f32 %v294, %v3911
        %v3913 = vpop.f32.mrb[0].mxu0
        %v3914 = vadd.f32 %v295, %v3913
        %3915 = vmatprep.mubr.f32.mxu0 0.0
        %3916 = vmatmul.mubr.f32.gmra.mrb[0].mxu0 %v3690
        %v3917 = vpop.f32.mrb[0].mxu0
        %v3918 = vadd.f32 %v296, %v3917
        %v3919 = vpop.f32.mrb[0].mxu0
        %v3920 = vadd.f32 %v297, %v3919
        %3921 = vmatprep.mubr.f32.mxu0 0.0
        %3922 = vmatmul.mubr.f32.gmra.mrb[0].mxu0 %v3693
        %v3923 = vpop.f32.mrb[0].mxu0
        %v3924 = vadd.f32 %v298, %v3923
        %v3925 = vpop.f32.mrb[0].mxu0
        %v3926 = vadd.f32 %v299, %v3925
        %3927 = vmatprep.mubr.f32.mxu0 0.0
        %3928 = vmatmul.mubr.f32.gmra.mrb[0].mxu0 %v3696
        %v3929 = vpop.f32.mrb[0].mxu0
        %v3930 = vadd.f32 %v300, %v3929
        %v3931 = vpop.f32.mrb[0].mxu0
        %v3932 = vadd.f32 %v301, %v3931
        %3933 = vmatprep.mubr.f32.mxu0 0.0
        %3934 = vmatmul.mubr.f32.gmra.mrb[0].mxu0 %v3699
        %v3935 = vpop.f32.mrb[0].mxu0
        %v3936 = vadd.f32 %v302, %v3935
        %v3937 = vpop.f32.mrb[0].mxu0
        %v3938 = vadd.f32 %v303, %v3937
        %3939 = vmatprep.mubr.f32.mxu0 0.0
        %3940 = vmatmul.mubr.f32.gmra.mrb[0].mxu0 %v3702
        %v3941 = vpop.f32.mrb[0].mxu0
        %v3942 = vadd.f32 %v304, %v3941
        %v3943 = vpop.f32.mrb[0].mxu0
        %v3944 = vadd.f32 %v305, %v3943
        %3945 = vmatprep.mubr.f32.mxu0 0.0
        %3946 = vmatmul.mubr.f32.gmra.mrb[0].mxu0 %v3705
        %v3947 = vpop.f32.mrb[0].mxu0
        %v3948 = vadd.f32 %v306, %v3947
        %v3949 = vpop.f32.mrb[0].mxu0
        %v3950 = vadd.f32 %v307, %v3949
        %3951 = vmatprep.mubr.f32.mxu0 0.0
        %3952 = vmatmul.mubr.f32.gmra.mrb[0].mxu0 %v3708
        %v3953 = vpop.f32.mrb[0].mxu0
        %v3954 = vadd.f32 %v308, %v3953
        %v3955 = vpop.f32.mrb[0].mxu0
        %v3956 = vadd.f32 %v309, %v3955
        %3957 = vmatprep.mubr.f32.mxu0 0.0
        %3958 = vmatmul.mubr.f32.gmra.mrb[0].mxu0 %v3711
        %v3959 = vpop.f32.mrb[0].mxu0
        %v3960 = vadd.f32 %v310, %v3959
        %v3961 = vpop.f32.mrb[0].mxu0
        %v3962 = vadd.f32 %v311, %v3961
        %3963 = vmatprep.mubr.f32.mxu0 0.0
        %3964 = vmatmul.mubr.f32.gmra.mrb[0].mxu0 %v3714
        %v3965 = vpop.f32.mrb[0].mxu0
        %v3966 = vadd.f32 %v312, %v3965
        %v3967 = vpop.f32.mrb[0].mxu0
        %v3968 = vadd.f32 %v313, %v3967
        %3969 = vmatprep.mubr.f32.mxu0 0.0
        %3970 = vmatmul.mubr.f32.gmra.mrb[0].mxu0 %v3717
        %v3971 = vpop.f32.mrb[0].mxu0
        %v3972 = vadd.f32 %v314, %v3971
        %v3973 = vpop.f32.mrb[0].mxu0
        %v3974 = vadd.f32 %v315, %v3973
        %3975 = vdwg.mxu0
        %v3976 = vmax.f32 %v3786, %v3798
        %v3977 = vmax.f32 %v3792, %v3804
        %v3978 = vmax.f32 %v3976, %v3810
        %v3979 = vmax.f32 %v3977, %v3816
        %v3980 = vmax.f32 %v3978, %v3822
        %v3981 = vmax.f32 %v3979, %v3828
        %v3982 = vmax.f32 %v3980, %v3834
        %v3983 = vmax.f32 %v3981, %v3840
        %v3984 = vmax.f32 %v3982, %v3846
        %v3985 = vmax.f32 %v3983, %v3852
        %v3986 = vmax.f32 %v3984, %v3858
        %v3987 = vmax.f32 %v3985, %v3864
        %v3988 = vmax.f32 %v3986, %v3870
        %v3989 = vmax.f32 %v3987, %v3876
        %v3990 = vmax.f32 %v3988, %v3882
        %v3991 = vmax.f32 %v3989, %v3888
        %v3992 = vmax.f32 %v3990, %v3894
        %v3993 = vmax.f32 %v3991, %v3900
        %v3994 = vmax.f32 %v3992, %v3906
        %v3995 = vmax.f32 %v3993, %v3912
        %v3996 = vmax.f32 %v3994, %v3918
        %v3997 = vmax.f32 %v3995, %v3924
        %v3998 = vmax.f32 %v3996, %v3930
        %v3999 = vmax.f32 %v3997, %v3936
        %v4000 = vmax.f32 %v3998, %v3942
        %v4001 = vmax.f32 %v3999, %v3948
        %v4002 = vmax.f32 %v4000, %v3954
        %v4003 = vmax.f32 %v4001, %v3960
        %v4004 = vmax.f32 %v4002, %v3966
        %v4005 = vmax.f32 %v4003, %v3972
        %v4006 = vmax.f32 %v4004, %v4005
        %v4007 = vrot.slane %v4006, 4
        %v4008 = vmax.f32 %v4006, %v4007
        %v4009 = vrot.slane %v4008, 2
        %v4010 = vmax.f32 %v4008, %v4009
        %v4011 = vrot.slane %v4010, 1
        %v4012 = vmax.f32 %v4010, %v4011
        %v4013 = vmax.f32 %v3788, %v3800
        %v4014 = vmax.f32 %v3794, %v3806
        %v4015 = vmax.f32 %v4013, %v3812
        %v4016 = vmax.f32 %v4014, %v3818
        %v4017 = vmax.f32 %v4015, %v3824
        %v4018 = vmax.f32 %v4016, %v3830
        %v4019 = vmax.f32 %v4017, %v3836
        %v4020 = vmax.f32 %v4018, %v3842
        %v4021 = vmax.f32 %v4019, %v3848
        %v4022 = vmax.f32 %v4020, %v3854
        %v4023 = vmax.f32 %v4021, %v3860
        %v4024 = vmax.f32 %v4022, %v3866
        %v4025 = vmax.f32 %v4023, %v3872
        %v4026 = vmax.f32 %v4024, %v3878
        %v4027 = vmax.f32 %v4025, %v3884
        %v4028 = vmax.f32 %v4026, %v3890
        %v4029 = vmax.f32 %v4027, %v3896
        %v4030 = vmax.f32 %v4028, %v3902
        %v4031 = vmax.f32 %v4029, %v3908
        %v4032 = vmax.f32 %v4030, %v3914
        %v4033 = vmax.f32 %v4031, %v3920
        %v4034 = vmax.f32 %v4032, %v3926
        %v4035 = vmax.f32 %v4033, %v3932
        %v4036 = vmax.f32 %v4034, %v3938
        %v4037 = vmax.f32 %v4035, %v3944
        %v4038 = vmax.f32 %v4036, %v3950
        %v4039 = vmax.f32 %v4037, %v3956
        %v4040 = vmax.f32 %v4038, %v3962
        %v4041 = vmax.f32 %v4039, %v3968
        %v4042 = vmax.f32 %v4040, %v3974
        %v4043 = vmax.f32 %v4041, %v4042
        %v4044 = vrot.slane %v4043, 4
        %v4045 = vmax.f32 %v4043, %v4044
        %v4046 = vrot.slane %v4045, 2
        %v4047 = vmax.f32 %v4045, %v4046
        %v4048 = vrot.slane %v4047, 1
        %v4049 = vmax.f32 %v4047, %v4048
        %v4050 = vsub.f32 %v3786, %v4012
        %v4051 = vsub.f32 %v3788, %v4049
        %v4052 = vsub.f32 %v3792, %v4012
        %v4053 = vsub.f32 %v3794, %v4049
        %v4054 = vsub.f32 %v3798, %v4012
        %v4055 = vsub.f32 %v3800, %v4049
        %v4056 = vsub.f32 %v3804, %v4012
        %v4057 = vsub.f32 %v3806, %v4049
        %v4058 = vsub.f32 %v3810, %v4012
        %v4059 = vsub.f32 %v3812, %v4049
        %v4060 = vsub.f32 %v3816, %v4012
        %v4061 = vsub.f32 %v3818, %v4049
        %v4062 = vsub.f32 %v3822, %v4012
        %v4063 = vsub.f32 %v3824, %v4049
        %v4064 = vsub.f32 %v3828, %v4012
        %v4065 = vsub.f32 %v3830, %v4049
        %v4066 = vsub.f32 %v3834, %v4012
        %v4067 = vsub.f32 %v3836, %v4049
        %v4068 = vsub.f32 %v3840, %v4012
        %v4069 = vsub.f32 %v3842, %v4049
        %v4070 = vsub.f32 %v3846, %v4012
        %v4071 = vsub.f32 %v3848, %v4049
        %v4072 = vsub.f32 %v3852, %v4012
        %v4073 = vsub.f32 %v3854, %v4049
        %v4074 = vsub.f32 %v3858, %v4012
        %v4075 = vsub.f32 %v3860, %v4049
        %v4076 = vsub.f32 %v3864, %v4012
        %v4077 = vsub.f32 %v3866, %v4049
        %v4078 = vsub.f32 %v3870, %v4012
        %v4079 = vsub.f32 %v3872, %v4049
        %v4080 = vsub.f32 %v3876, %v4012
        %v4081 = vsub.f32 %v3878, %v4049
        %v4082 = vsub.f32 %v3882, %v4012
        %v4083 = vsub.f32 %v3884, %v4049
        %v4084 = vsub.f32 %v3888, %v4012
        %v4085 = vsub.f32 %v3890, %v4049
        %v4086 = vsub.f32 %v3894, %v4012
        %v4087 = vsub.f32 %v3896, %v4049
        %v4088 = vsub.f32 %v3900, %v4012
        %v4089 = vsub.f32 %v3902, %v4049
        %v4090 = vsub.f32 %v3906, %v4012
        %v4091 = vsub.f32 %v3908, %v4049
        %v4092 = vsub.f32 %v3912, %v4012
        %v4093 = vsub.f32 %v3914, %v4049
        %v4094 = vsub.f32 %v3918, %v4012
        %v4095 = vsub.f32 %v3920, %v4049
        %v4096 = vsub.f32 %v3924, %v4012
        %v4097 = vsub.f32 %v3926, %v4049
        %v4098 = vsub.f32 %v3930, %v4012
        %v4099 = vsub.f32 %v3932, %v4049
        %v4100 = vsub.f32 %v3936, %v4012
        %v4101 = vsub.f32 %v3938, %v4049
        %v4102 = vsub.f32 %v3942, %v4012
        %v4103 = vsub.f32 %v3944, %v4049
        %v4104 = vsub.f32 %v3948, %v4012
        %v4105 = vsub.f32 %v3950, %v4049
        %v4106 = vsub.f32 %v3954, %v4012
        %v4107 = vsub.f32 %v3956, %v4049
        %v4108 = vsub.f32 %v3960, %v4012
        %v4109 = vsub.f32 %v3962, %v4049
        %v4110 = vsub.f32 %v3966, %v4012
        %v4111 = vsub.f32 %v3968, %v4049
        %v4112 = vsub.f32 %v3972, %v4012
        %v4113 = vsub.f32 %v3974, %v4049
        %v4114 = vmul.f32 %v4050, 1.442695
        %v4115 = vpow.pop %v4114
        %v4116 = vmul.f32 %v4051, 1.442695
        %v4117 = vpow.pop %v4116
        %v4118 = vmul.f32 %v4052, 1.442695
        %v4119 = vpow.pop %v4118
        %v4120 = vmul.f32 %v4053, 1.442695
        %v4121 = vpow.pop %v4120
        %v4122 = vmul.f32 %v4054, 1.442695
        %v4123 = vpow.pop %v4122
        %v4124 = vmul.f32 %v4055, 1.442695
        %v4125 = vpow.pop %v4124
        %v4126 = vmul.f32 %v4056, 1.442695
        %v4127 = vpow.pop %v4126
        %v4128 = vmul.f32 %v4057, 1.442695
        %v4129 = vpow.pop %v4128
        %v4130 = vmul.f32 %v4058, 1.442695
        %v4131 = vpow.pop %v4130
        %v4132 = vmul.f32 %v4059, 1.442695
        %v4133 = vpow.pop %v4132
        %v4134 = vmul.f32 %v4060, 1.442695
        %v4135 = vpow.pop %v4134
        %v4136 = vmul.f32 %v4061, 1.442695
        %v4137 = vpow.pop %v4136
        %v4138 = vmul.f32 %v4062, 1.442695
        %v4139 = vpow.pop %v4138
        %v4140 = vmul.f32 %v4063, 1.442695
        %v4141 = vpow.pop %v4140
        %v4142 = vmul.f32 %v4064, 1.442695
        %v4143 = vpow.pop %v4142
        %v4144 = vmul.f32 %v4065, 1.442695
        %v4145 = vpow.pop %v4144
        %v4146 = vmul.f32 %v4066, 1.442695
        %v4147 = vpow.pop %v4146
        %v4148 = vmul.f32 %v4067, 1.442695
        %v4149 = vpow.pop %v4148
        %v4150 = vmul.f32 %v4068, 1.442695
        %v4151 = vpow.pop %v4150
        %v4152 = vmul.f32 %v4069, 1.442695
        %v4153 = vpow.pop %v4152
        %v4154 = vmul.f32 %v4070, 1.442695
        %v4155 = vpow.pop %v4154
        %v4156 = vmul.f32 %v4071, 1.442695
        %v4157 = vpow.pop %v4156
        %v4158 = vmul.f32 %v4072, 1.442695
        %v4159 = vpow.pop %v4158
        %v4160 = vmul.f32 %v4073, 1.442695
        %v4161 = vpow.pop %v4160
        %v4162 = vmul.f32 %v4074, 1.442695
        %v4163 = vpow.pop %v4162
        %v4164 = vmul.f32 %v4075, 1.442695
        %v4165 = vpow.pop %v4164
        %v4166 = vmul.f32 %v4076, 1.442695
        %v4167 = vpow.pop %v4166
        %v4168 = vmul.f32 %v4077, 1.442695
        %v4169 = vpow.pop %v4168
        %v4170 = vmul.f32 %v4078, 1.442695
        %v4171 = vpow.pop %v4170
        %v4172 = vmul.f32 %v4079, 1.442695
        %v4173 = vpow.pop %v4172
        %v4174 = vmul.f32 %v4080, 1.442695
        %v4175 = vpow.pop %v4174
        %v4176 = vmul.f32 %v4081, 1.442695
        %v4177 = vpow.pop %v4176
        %v4178 = vmul.f32 %v4082, 1.442695
        %v4179 = vpow.pop %v4178
        %v4180 = vmul.f32 %v4083, 1.442695
        %v4181 = vpow.pop %v4180
        %v4182 = vmul.f32 %v4084, 1.442695
        %v4183 = vpow.pop %v4182
        %v4184 = vmul.f32 %v4085, 1.442695
        %v4185 = vpow.pop %v4184
        %v4186 = vmul.f32 %v4086, 1.442695
        %v4187 = vpow.pop %v4186
        %v4188 = vmul.f32 %v4087, 1.442695
        %v4189 = vpow.pop %v4188
        %v4190 = vmul.f32 %v4088, 1.442695
        %v4191 = vpow.pop %v4190
        %v4192 = vmul.f32 %v4089, 1.442695
        %v4193 = vpow.pop %v4192
        %v4194 = vmul.f32 %v4090, 1.442695
        %v4195 = vpow.pop %v4194
        %v4196 = vmul.f32 %v4091, 1.442695
        %v4197 = vpow.pop %v4196
        %v4198 = vmul.f32 %v4092, 1.442695
        %v4199 = vpow.pop %v4198
        %v4200 = vmul.f32 %v4093, 1.442695
        %v4201 = vpow.pop %v4200
        %v4202 = vmul.f32 %v4094, 1.442695
        %v4203 = vpow.pop %v4202
        %v4204 = vmul.f32 %v4095, 1.442695
        %v4205 = vpow.pop %v4204
        %v4206 = vmul.f32 %v4096, 1.442695
        %v4207 = vpow.pop %v4206
        %v4208 = vmul.f32 %v4097, 1.442695
        %v4209 = vpow.pop %v4208
        %v4210 = vmul.f32 %v4098, 1.442695
        %v4211 = vpow.pop %v4210
        %v4212 = vmul.f32 %v4099, 1.442695
        %v4213 = vpow.pop %v4212
        %v4214 = vmul.f32 %v4100, 1.442695
        %v4215 = vpow.pop %v4214
        %v4216 = vmul.f32 %v4101, 1.442695
        %v4217 = vpow.pop %v4216
        %v4218 = vmul.f32 %v4102, 1.442695
        %v4219 = vpow.pop %v4218
        %v4220 = vmul.f32 %v4103, 1.442695
        %v4221 = vpow.pop %v4220
        %v4222 = vmul.f32 %v4104, 1.442695
        %v4223 = vpow.pop %v4222
        %v4224 = vmul.f32 %v4105, 1.442695
        %v4225 = vpow.pop %v4224
        %v4226 = vmul.f32 %v4106, 1.442695
        %v4227 = vpow.pop %v4226
        %v4228 = vmul.f32 %v4107, 1.442695
        %v4229 = vpow.pop %v4228
        %v4230 = vmul.f32 %v4108, 1.442695
        %v4231 = vpow.pop %v4230
        %v4232 = vmul.f32 %v4109, 1.442695
        %v4233 = vpow.pop %v4232
        %v4234 = vmul.f32 %v4110, 1.442695
        %v4235 = vpow.pop %v4234
        %v4236 = vmul.f32 %v4111, 1.442695
        %v4237 = vpow.pop %v4236
        %v4238 = vmul.f32 %v4112, 1.442695
        %v4239 = vpow.pop %v4238
        %v4240 = vmul.f32 %v4113, 1.442695
        %v4241 = vpow.pop %v4240
        %v4242 = vadd.f32 %v4115, %v4119
        %v4243 = vadd.f32 %v4242, %v4123
        %v4244 = vadd.f32 %v4243, %v4127
        %v4245 = vadd.f32 %v4244, %v4131
        %v4246 = vadd.f32 %v4245, %v4135
        %v4247 = vadd.f32 %v4246, %v4139
        %v4248 = vadd.f32 %v4247, %v4143
        %v4249 = vadd.f32 %v4248, %v4147
        %v4250 = vadd.f32 %v4249, %v4151
        %v4251 = vadd.f32 %v4250, %v4155
        %v4252 = vadd.f32 %v4251, %v4159
        %v4253 = vadd.f32 %v4252, %v4163
        %v4254 = vadd.f32 %v4253, %v4167
        %v4255 = vadd.f32 %v4254, %v4171
        %v4256 = vadd.f32 %v4255, %v4175
        %v4257 = vadd.f32 %v4256, %v4179
        %v4258 = vadd.f32 %v4257, %v4183
        %v4259 = vadd.f32 %v4258, %v4187
        %v4260 = vadd.f32 %v4259, %v4191
        %v4261 = vadd.f32 %v4260, %v4195
        %v4262 = vadd.f32 %v4261, %v4199
        %v4263 = vadd.f32 %v4262, %v4203
        %v4264 = vadd.f32 %v4263, %v4207
        %v4265 = vadd.f32 %v4264, %v4211
        %v4266 = vadd.f32 %v4265, %v4215
        %v4267 = vadd.f32 %v4266, %v4219
        %v4268 = vadd.f32 %v4267, %v4223
        %v4269 = vadd.f32 %v4268, %v4227
        %v4270 = vadd.f32 %v4269, %v4231
        %v4271 = vadd.f32 %v4270, %v4235
        %v4272 = vadd.f32 %v4271, %v4239
        %v4273 = vrot.slane %v4272, 4
        %v4274 = vadd.f32 %v4272, %v4273
        %v4275 = vrot.slane %v4274, 2
        %v4276 = vadd.f32 %v4274, %v4275
        %v4277 = vrot.slane %v4276, 1
        %v4278 = vadd.f32 %v4276, %v4277
        %v4279 = vadd.f32 %v4117, %v4121
        %v4280 = vadd.f32 %v4279, %v4125
        %v4281 = vadd.f32 %v4280, %v4129
        %v4282 = vadd.f32 %v4281, %v4133
        %v4283 = vadd.f32 %v4282, %v4137
        %v4284 = vadd.f32 %v4283, %v4141
        %v4285 = vadd.f32 %v4284, %v4145
        %v4286 = vadd.f32 %v4285, %v4149
        %v4287 = vadd.f32 %v4286, %v4153
        %v4288 = vadd.f32 %v4287, %v4157
        %v4289 = vadd.f32 %v4288, %v4161
        %v4290 = vadd.f32 %v4289, %v4165
        %v4291 = vadd.f32 %v4290, %v4169
        %v4292 = vadd.f32 %v4291, %v4173
        %v4293 = vadd.f32 %v4292, %v4177
        %v4294 = vadd.f32 %v4293, %v4181
        %v4295 = vadd.f32 %v4294, %v4185
        %v4296 = vadd.f32 %v4295, %v4189
        %v4297 = vadd.f32 %v4296, %v4193
        %v4298 = vadd.f32 %v4297, %v4197
        %v4299 = vadd.f32 %v4298, %v4201
        %v4300 = vadd.f32 %v4299, %v4205
        %v4301 = vadd.f32 %v4300, %v4209
        %v4302 = vadd.f32 %v4301, %v4213
        %v4303 = vadd.f32 %v4302, %v4217
        %v4304 = vadd.f32 %v4303, %v4221
        %v4305 = vadd.f32 %v4304, %v4225
        %v4306 = vadd.f32 %v4305, %v4229
        %v4307 = vadd.f32 %v4306, %v4233
        %v4308 = vadd.f32 %v4307, %v4237
        %v4309 = vadd.f32 %v4308, %v4241
        %v4310 = vrot.slane %v4309, 4
        %v4311 = vadd.f32 %v4309, %v4310
        %v4312 = vrot.slane %v4311, 2
        %v4313 = vadd.f32 %v4311, %v4312
        %v4314 = vrot.slane %v4313, 1
        %v4315 = vadd.f32 %v4313, %v4314
        %s4316 = scalar_lea.vmem %s249, 64
        %v4317 = vld [vmem:[%s4316] sm:$0xff]
        %v4318 = vld [vmem:[%s4316 + $0x8] sm:$0xff]
        %4319 = vmatprep.subr.mxu0 %v4117
        %4320 = vmatpush1.msra.mxu0 %v4115
        %4321 = vmatprep.subr.mxu0 %v4121
        %4322 = vmatpush1.msra.mxu0 %v4119
        %4323 = vmatprep.subr.mxu0 %v4125
        %4324 = vmatpush1.msra.mxu0 %v4123
        %4325 = vmatprep.subr.mxu0 %v4129
        %4326 = vmatpush1.msra.mxu0 %v4127
        %4327 = vmatprep.subr.mxu0 %v4133
        %4328 = vmatpush1.msra.mxu0 %v4131
        %4329 = vmatprep.subr.mxu0 %v4137
        %4330 = vmatpush1.msra.mxu0 %v4135
        %4331 = vmatprep.subr.mxu0 %v4141
        %4332 = vmatpush1.msra.mxu0 %v4139
        %4333 = vmatprep.subr.mxu0 %v4145
        %4334 = vmatpush1.msra.mxu0 %v4143
        %4335 = vmatprep.subr.mxu0 %v4149
        %4336 = vmatpush1.msra.mxu0 %v4147
        %4337 = vmatprep.subr.mxu0 %v4153
        %4338 = vmatpush1.msra.mxu0 %v4151
        %4339 = vmatprep.subr.mxu0 %v4157
        %4340 = vmatpush1.msra.mxu0 %v4155
        %4341 = vmatprep.subr.mxu0 %v4161
        %4342 = vmatpush1.msra.mxu0 %v4159
        %4343 = vmatprep.subr.mxu0 %v4165
        %4344 = vmatpush1.msra.mxu0 %v4163
        %4345 = vmatprep.subr.mxu0 %v4169
        %4346 = vmatpush1.msra.mxu0 %v4167
        %4347 = vmatprep.subr.mxu0 %v4173
        %4348 = vmatpush1.msra.mxu0 %v4171
        %4349 = vmatprep.subr.mxu0 %v4177
        %4350 = vmatpush1.msra.mxu0 %v4175
        %4351 = vmatprep.subr.mxu0 %v4181
        %4352 = vmatpush1.msra.mxu0 %v4179
        %4353 = vmatprep.subr.mxu0 %v4185
        %4354 = vmatpush1.msra.mxu0 %v4183
        %4355 = vmatprep.subr.mxu0 %v4189
        %4356 = vmatpush1.msra.mxu0 %v4187
        %4357 = vmatprep.subr.mxu0 %v4193
        %4358 = vmatpush1.msra.mxu0 %v4191
        %4359 = vmatprep.subr.mxu0 %v4197
        %4360 = vmatpush1.msra.mxu0 %v4195
        %4361 = vmatprep.subr.mxu0 %v4201
        %4362 = vmatpush1.msra.mxu0 %v4199
        %4363 = vmatprep.subr.mxu0 %v4205
        %4364 = vmatpush1.msra.mxu0 %v4203
        %4365 = vmatprep.subr.mxu0 %v4209
        %4366 = vmatpush1.msra.mxu0 %v4207
        %4367 = vmatprep.subr.mxu0 %v4213
        %4368 = vmatpush1.msra.mxu0 %v4211
        %4369 = vmatprep.subr.mxu0 %v4217
        %4370 = vmatpush1.msra.mxu0 %v4215
        %4371 = vmatprep.subr.mxu0 %v4221
        %4372 = vmatpush1.msra.mxu0 %v4219
        %4373 = vmatprep.subr.mxu0 %v4225
        %4374 = vmatpush1.msra.mxu0 %v4223
        %4375 = vmatprep.subr.mxu0 %v4229
        %4376 = vmatpush1.msra.mxu0 %v4227
        %4377 = vmatprep.subr.mxu0 %v4233
        %4378 = vmatpush1.msra.mxu0 %v4231
        %4379 = vmatprep.subr.mxu0 %v4237
        %4380 = vmatpush1.msra.mxu0 %v4235
        %4381 = vmatprep.subr.mxu0 %v4241
        %4382 = vmatpush1.msra.mxu0 %v4239
        %4383 = vmatprep.mubr.f32.mxu0 %v4318
        %4384 = vmatmul.mubr.f32.gmra.mrb[0].mxu0 %v4317
        %v4385 = vpop.f32.mrb[0].mxu0
        %v4386 = vadd.f32 0.0, %v4385
        %v4387 = vpop.f32.mrb[0].mxu0
        %v4388 = vadd.f32 0.0, %v4387
        %4389 = vdwg.mxu0
        %v4390 = vrcp.pop %v4278
        %v4391 = vrcp.pop %v4315
        %v4392 = vmul.f32 %v4278, %v4390
        %v4393 = vmul.f32 %v4315, %v4391
        %v4394 = vsub.f32 2.0, %v4392
        %v4395 = vsub.f32 2.0, %v4393
        %v4396 = vmul.f32 %v4390, %v4394
        %v4397 = vmul.f32 %v4391, %v4395
        %v4398 = vmul.f32 %v4386, %v4396
        %v4399 = vmul.f32 %v4388, %v4397
        %s4400 = scalar_lea.vmem %s229, 64 [#allocation2]
        %4401 = vst [vmem:[%s4400] sm:$0xff] %v4398
        %4402 = vst [vmem:[%s4400 + $0x8] sm:$0xff] %v4399
        %s4403 = scalar_lea.vmem %s235, 80
        %v4404 = vld [vmem:[%s4403] sm:$0xff]
        %v4405 = vld [vmem:[%s4403 + $0x8] sm:$0xff]
        %v4406 = vmul.f32 %v4404, 0.35355338
        %v4407 = vmul.f32 %v4405, 0.35355338
        %s4408 = scalar_lea.vmem %s242, 1280
        %v4409 = vld [vmem:[%s4408] sm:$0xff]
        %v4410 = vld [vmem:[%s4408 + $0x8] sm:$0xff]
        %v4411 = vld [vmem:[%s4408 + $0x10] sm:$0xff]
        %v4412 = vld [vmem:[%s4408 + $0x18] sm:$0xff]
        %v4413 = vld [vmem:[%s4408 + $0x20] sm:$0xff]
        %v4414 = vld [vmem:[%s4408 + $0x28] sm:$0xff]
        %v4415 = vld [vmem:[%s4408 + $0x30] sm:$0xff]
        %v4416 = vld [vmem:[%s4408 + $0x38] sm:$0xff]
        %v4417 = vld [vmem:[%s4408 + $0x40] sm:$0xff]
        %v4418 = vld [vmem:[%s4408 + $0x48] sm:$0xff]
        %v4419 = vld [vmem:[%s4408 + $0x50] sm:$0xff]
        %v4420 = vld [vmem:[%s4408 + $0x58] sm:$0xff]
        %v4421 = vld [vmem:[%s4408 + $0x60] sm:$0xff]
        %v4422 = vld [vmem:[%s4408 + $0x68] sm:$0xff]
        %v4423 = vld [vmem:[%s4408 + $0x70] sm:$0xff]
        %v4424 = vld [vmem:[%s4408 + $0x78] sm:$0xff]
        %v4425 = vld [vmem:[%s4408 + $0x80] sm:$0xff]
        %v4426 = vld [vmem:[%s4408 + $0x88] sm:$0xff]
        %v4427 = vld [vmem:[%s4408 + $0x90] sm:$0xff]
        %v4428 = vld [vmem:[%s4408 + $0x98] sm:$0xff]
        %v4429 = vld [vmem:[%s4408 + $0xa0] sm:$0xff]
        %v4430 = vld [vmem:[%s4408 + $0xa8] sm:$0xff]
        %v4431 = vld [vmem:[%s4408 + $0xb0] sm:$0xff]
        %v4432 = vld [vmem:[%s4408 + $0xb8] sm:$0xff]
        %v4433 = vld [vmem:[%s4408 + $0xc0] sm:$0xff]
        %v4434 = vld [vmem:[%s4408 + $0xc8] sm:$0xff]
        %v4435 = vld [vmem:[%s4408 + $0xd0] sm:$0xff]
        %v4436 = vld [vmem:[%s4408 + $0xd8] sm:$0xff]
        %v4437 = vld [vmem:[%s4408 + $0xe0] sm:$0xff]
        %v4438 = vld [vmem:[%s4408 + $0xe8] sm:$0xff]
        %v4439 = vld [vmem:[%s4408 + $0xf0] sm:$0xff]
        %v4440 = vld [vmem:[%s4408 + $0xf8] sm:$0xff]
        %v4442 = vsel %vm352, %v4409, 0
        %v4445 = vsel %vm352, %v4410, 0
        %v4448 = vsel %vm352, %v4411, 0
        %v4451 = vsel %vm352, %v4412, 0
        %v4454 = vsel %vm352, %v4413, 0
        %v4457 = vsel %vm352, %v4414, 0
        %v4460 = vsel %vm352, %v4415, 0
        %v4463 = vsel %vm352, %v4416, 0
        %v4466 = vsel %vm352, %v4417, 0
        %v4469 = vsel %vm352, %v4418, 0
        %v4472 = vsel %vm352, %v4419, 0
        %v4475 = vsel %vm352, %v4420, 0
        %v4478 = vsel %vm352, %v4421, 0
        %v4481 = vsel %vm352, %v4422, 0
        %v4484 = vsel %vm352, %v4423, 0
        %v4487 = vsel %vm352, %v4424, 0
        %v4490 = vsel %vm352, %v4425, 0
        %v4493 = vsel %vm352, %v4426, 0
        %v4496 = vsel %vm352, %v4427, 0
        %v4499 = vsel %vm352, %v4428, 0
        %v4502 = vsel %vm352, %v4429, 0
        %v4505 = vsel %vm352, %v4430, 0
        %v4508 = vsel %vm352, %v4431, 0
        %v4511 = vsel %vm352, %v4432, 0
        %v4514 = vsel %vm352, %v4433, 0
        %v4517 = vsel %vm352, %v4434, 0
        %v4520 = vsel %vm352, %v4435, 0
        %v4523 = vsel %vm352, %v4436, 0
        %v4526 = vsel %vm352, %v4437, 0
        %v4529 = vsel %vm352, %v4438, 0
        %v4532 = vsel %vm352, %v4439, 0
        %v4535 = vsel %vm352, %v4440, 0
        %4537 = vmatprep.subr.mxu0 %v4407
        %4538 = vmatpush1.msra.mxu0 %v4406
        %4539 = vmatprep.subr.mxu0 0.0
        %4540 = vmatpush1.msra.mxu0 0.0
        %4541 = vmatprep.subr.mxu0 0.0
        %4542 = vmatpush1.msra.mxu0 0.0
        %4543 = vmatprep.subr.mxu0 0.0
        %4544 = vmatpush1.msra.mxu0 0.0
        %4545 = vmatprep.subr.mxu0 0.0
        %4546 = vmatpush1.msra.mxu0 0.0
        %4547 = vmatprep.subr.mxu0 0.0
        %4548 = vmatpush1.msra.mxu0 0.0
        %4549 = vmatprep.subr.mxu0 0.0
        %4550 = vmatpush1.msra.mxu0 0.0
        %4551 = vmatprep.subr.mxu0 0.0
        %4552 = vmatpush1.msra.mxu0 0.0
        %4553 = vmatprep.subr.mxu0 0.0
        %4554 = vmatpush1.msra.mxu0 0.0
        %4555 = vmatprep.subr.mxu0 0.0
        %4556 = vmatpush1.msra.mxu0 0.0
        %4557 = vmatprep.subr.mxu0 0.0
        %4558 = vmatpush1.msra.mxu0 0.0
        %4559 = vmatprep.subr.mxu0 0.0
        %4560 = vmatpush1.msra.mxu0 0.0
        %4561 = vmatprep.subr.mxu0 0.0
        %4562 = vmatpush1.msra.mxu0 0.0
        %4563 = vmatprep.subr.mxu0 0.0
        %4564 = vmatpush1.msra.mxu0 0.0
        %4565 = vmatprep.subr.mxu0 0.0
        %4566 = vmatpush1.msra.mxu0 0.0
        %4567 = vmatprep.subr.mxu0 0.0
        %4568 = vmatpush1.msra.mxu0 0.0
        %4569 = vmatprep.subr.mxu0 0.0
        %4570 = vmatpush1.msra.mxu0 0.0
        %4571 = vmatprep.subr.mxu0 0.0
        %4572 = vmatpush1.msra.mxu0 0.0
        %4573 = vmatprep.subr.mxu0 0.0
        %4574 = vmatpush1.msra.mxu0 0.0
        %4575 = vmatprep.subr.mxu0 0.0
        %4576 = vmatpush1.msra.mxu0 0.0
        %4577 = vmatprep.subr.mxu0 0.0
        %4578 = vmatpush1.msra.mxu0 0.0
        %4579 = vmatprep.subr.mxu0 0.0
        %4580 = vmatpush1.msra.mxu0 0.0
        %4581 = vmatprep.subr.mxu0 0.0
        %4582 = vmatpush1.msra.mxu0 0.0
        %4583 = vmatprep.subr.mxu0 0.0
        %4584 = vmatpush1.msra.mxu0 0.0
        %4585 = vmatprep.subr.mxu0 0.0
        %4586 = vmatpush1.msra.mxu0 0.0
        %4587 = vmatprep.subr.mxu0 0.0
        %4588 = vmatpush1.msra.mxu0 0.0
        %4589 = vmatprep.subr.mxu0 0.0
        %4590 = vmatpush1.msra.mxu0 0.0
        %4591 = vmatprep.subr.mxu0 0.0
        %4592 = vmatpush1.msra.mxu0 0.0
        %4593 = vmatprep.subr.mxu0 0.0
        %4594 = vmatpush1.msra.mxu0 0.0
        %4595 = vmatprep.subr.mxu0 0.0
        %4596 = vmatpush1.msra.mxu0 0.0
        %4597 = vmatprep.subr.mxu0 0.0
        %4598 = vmatpush1.msra.mxu0 0.0
        %4599 = vmatprep.subr.mxu0 0.0
        %4600 = vmatpush1.msra.mxu0 0.0
        %4601 = vmatprep.mubr.f32.mxu0 0.0
        %4602 = vmatmul.mubr.f32.gmra.mrb[0].mxu0 %v4442
        %v4603 = vpop.f32.mrb[0].mxu0
        %v4604 = vadd.f32 %v252, %v4603
        %v4605 = vpop.f32.mrb[0].mxu0
        %v4606 = vadd.f32 %v253, %v4605
        %4607 = vmatprep.mubr.f32.mxu0 0.0
        %4608 = vmatmul.mubr.f32.gmra.mrb[0].mxu0 %v4445
        %v4609 = vpop.f32.mrb[0].mxu0
        %v4610 = vadd.f32 %v254, %v4609
        %v4611 = vpop.f32.mrb[0].mxu0
        %v4612 = vadd.f32 %v255, %v4611
        %4613 = vmatprep.mubr.f32.mxu0 0.0
        %4614 = vmatmul.mubr.f32.gmra.mrb[0].mxu0 %v4448
        %v4615 = vpop.f32.mrb[0].mxu0
        %v4616 = vadd.f32 %v256, %v4615
        %v4617 = vpop.f32.mrb[0].mxu0
        %v4618 = vadd.f32 %v257, %v4617
        %4619 = vmatprep.mubr.f32.mxu0 0.0
        %4620 = vmatmul.mubr.f32.gmra.mrb[0].mxu0 %v4451
        %v4621 = vpop.f32.mrb[0].mxu0
        %v4622 = vadd.f32 %v258, %v4621
        %v4623 = vpop.f32.mrb[0].mxu0
        %v4624 = vadd.f32 %v259, %v4623
        %4625 = vmatprep.mubr.f32.mxu0 0.0
        %4626 = vmatmul.mubr.f32.gmra.mrb[0].mxu0 %v4454
        %v4627 = vpop.f32.mrb[0].mxu0
        %v4628 = vadd.f32 %v260, %v4627
        %v4629 = vpop.f32.mrb[0].mxu0
        %v4630 = vadd.f32 %v261, %v4629
        %4631 = vmatprep.mubr.f32.mxu0 0.0
        %4632 = vmatmul.mubr.f32.gmra.mrb[0].mxu0 %v4457
        %v4633 = vpop.f32.mrb[0].mxu0
        %v4634 = vadd.f32 %v262, %v4633
        %v4635 = vpop.f32.mrb[0].mxu0
        %v4636 = vadd.f32 %v263, %v4635
        %4637 = vmatprep.mubr.f32.mxu0 0.0
        %4638 = vmatmul.mubr.f32.gmra.mrb[0].mxu0 %v4460
        %v4639 = vpop.f32.mrb[0].mxu0
        %v4640 = vadd.f32 %v264, %v4639
        %v4641 = vpop.f32.mrb[0].mxu0
        %v4642 = vadd.f32 %v265, %v4641
        %4643 = vmatprep.mubr.f32.mxu0 0.0
        %4644 = vmatmul.mubr.f32.gmra.mrb[0].mxu0 %v4463
        %v4645 = vpop.f32.mrb[0].mxu0
        %v4646 = vadd.f32 %v266, %v4645
        %v4647 = vpop.f32.mrb[0].mxu0
        %v4648 = vadd.f32 %v267, %v4647
        %4649 = vmatprep.mubr.f32.mxu0 0.0
        %4650 = vmatmul.mubr.f32.gmra.mrb[0].mxu0 %v4466
        %v4651 = vpop.f32.mrb[0].mxu0
        %v4652 = vadd.f32 %v268, %v4651
        %v4653 = vpop.f32.mrb[0].mxu0
        %v4654 = vadd.f32 %v269, %v4653
        %4655 = vmatprep.mubr.f32.mxu0 0.0
        %4656 = vmatmul.mubr.f32.gmra.mrb[0].mxu0 %v4469
        %v4657 = vpop.f32.mrb[0].mxu0
        %v4658 = vadd.f32 %v270, %v4657
        %v4659 = vpop.f32.mrb[0].mxu0
        %v4660 = vadd.f32 %v271, %v4659
        %4661 = vmatprep.mubr.f32.mxu0 0.0
        %4662 = vmatmul.mubr.f32.gmra.mrb[0].mxu0 %v4472
        %v4663 = vpop.f32.mrb[0].mxu0
        %v4664 = vadd.f32 %v272, %v4663
        %v4665 = vpop.f32.mrb[0].mxu0
        %v4666 = vadd.f32 %v273, %v4665
        %4667 = vmatprep.mubr.f32.mxu0 0.0
        %4668 = vmatmul.mubr.f32.gmra.mrb[0].mxu0 %v4475
        %v4669 = vpop.f32.mrb[0].mxu0
        %v4670 = vadd.f32 %v274, %v4669
        %v4671 = vpop.f32.mrb[0].mxu0
        %v4672 = vadd.f32 %v275, %v4671
        %4673 = vmatprep.mubr.f32.mxu0 0.0
        %4674 = vmatmul.mubr.f32.gmra.mrb[0].mxu0 %v4478
        %v4675 = vpop.f32.mrb[0].mxu0
        %v4676 = vadd.f32 %v276, %v4675
        %v4677 = vpop.f32.mrb[0].mxu0
        %v4678 = vadd.f32 %v277, %v4677
        %4679 = vmatprep.mubr.f32.mxu0 0.0
        %4680 = vmatmul.mubr.f32.gmra.mrb[0].mxu0 %v4481
        %v4681 = vpop.f32.mrb[0].mxu0
        %v4682 = vadd.f32 %v278, %v4681
        %v4683 = vpop.f32.mrb[0].mxu0
        %v4684 = vadd.f32 %v279, %v4683
        %4685 = vmatprep.mubr.f32.mxu0 0.0
        %4686 = vmatmul.mubr.f32.gmra.mrb[0].mxu0 %v4484
        %v4687 = vpop.f32.mrb[0].mxu0
        %v4688 = vadd.f32 %v280, %v4687
        %v4689 = vpop.f32.mrb[0].mxu0
        %v4690 = vadd.f32 %v281, %v4689
        %4691 = vmatprep.mubr.f32.mxu0 0.0
        %4692 = vmatmul.mubr.f32.gmra.mrb[0].mxu0 %v4487
        %v4693 = vpop.f32.mrb[0].mxu0
        %v4694 = vadd.f32 %v282, %v4693
        %v4695 = vpop.f32.mrb[0].mxu0
        %v4696 = vadd.f32 %v283, %v4695
        %4697 = vmatprep.mubr.f32.mxu0 0.0
        %4698 = vmatmul.mubr.f32.gmra.mrb[0].mxu0 %v4490
        %v4699 = vpop.f32.mrb[0].mxu0
        %v4700 = vadd.f32 %v284, %v4699
        %v4701 = vpop.f32.mrb[0].mxu0
        %v4702 = vadd.f32 %v285, %v4701
        %4703 = vmatprep.mubr.f32.mxu0 0.0
        %4704 = vmatmul.mubr.f32.gmra.mrb[0].mxu0 %v4493
        %v4705 = vpop.f32.mrb[0].mxu0
        %v4706 = vadd.f32 %v286, %v4705
        %v4707 = vpop.f32.mrb[0].mxu0
        %v4708 = vadd.f32 %v287, %v4707
        %4709 = vmatprep.mubr.f32.mxu0 0.0
        %4710 = vmatmul.mubr.f32.gmra.mrb[0].mxu0 %v4496
        %v4711 = vpop.f32.mrb[0].mxu0
        %v4712 = vadd.f32 %v288, %v4711
        %v4713 = vpop.f32.mrb[0].mxu0
        %v4714 = vadd.f32 %v289, %v4713
        %4715 = vmatprep.mubr.f32.mxu0 0.0
        %4716 = vmatmul.mubr.f32.gmra.mrb[0].mxu0 %v4499
        %v4717 = vpop.f32.mrb[0].mxu0
        %v4718 = vadd.f32 %v290, %v4717
        %v4719 = vpop.f32.mrb[0].mxu0
        %v4720 = vadd.f32 %v291, %v4719
        %4721 = vmatprep.mubr.f32.mxu0 0.0
        %4722 = vmatmul.mubr.f32.gmra.mrb[0].mxu0 %v4502
        %v4723 = vpop.f32.mrb[0].mxu0
        %v4724 = vadd.f32 %v292, %v4723
        %v4725 = vpop.f32.mrb[0].mxu0
        %v4726 = vadd.f32 %v293, %v4725
        %4727 = vmatprep.mubr.f32.mxu0 0.0
        %4728 = vmatmul.mubr.f32.gmra.mrb[0].mxu0 %v4505
        %v4729 = vpop.f32.mrb[0].mxu0
        %v4730 = vadd.f32 %v294, %v4729
        %v4731 = vpop.f32.mrb[0].mxu0
        %v4732 = vadd.f32 %v295, %v4731
        %4733 = vmatprep.mubr.f32.mxu0 0.0
        %4734 = vmatmul.mubr.f32.gmra.mrb[0].mxu0 %v4508
        %v4735 = vpop.f32.mrb[0].mxu0
        %v4736 = vadd.f32 %v296, %v4735
        %v4737 = vpop.f32.mrb[0].mxu0
        %v4738 = vadd.f32 %v297, %v4737
        %4739 = vmatprep.mubr.f32.mxu0 0.0
        %4740 = vmatmul.mubr.f32.gmra.mrb[0].mxu0 %v4511
        %v4741 = vpop.f32.mrb[0].mxu0
        %v4742 = vadd.f32 %v298, %v4741
        %v4743 = vpop.f32.mrb[0].mxu0
        %v4744 = vadd.f32 %v299, %v4743
        %4745 = vmatprep.mubr.f32.mxu0 0.0
        %4746 = vmatmul.mubr.f32.gmra.mrb[0].mxu0 %v4514
        %v4747 = vpop.f32.mrb[0].mxu0
        %v4748 = vadd.f32 %v300, %v4747
        %v4749 = vpop.f32.mrb[0].mxu0
        %v4750 = vadd.f32 %v301, %v4749
        %4751 = vmatprep.mubr.f32.mxu0 0.0
        %4752 = vmatmul.mubr.f32.gmra.mrb[0].mxu0 %v4517
        %v4753 = vpop.f32.mrb[0].mxu0
        %v4754 = vadd.f32 %v302, %v4753
        %v4755 = vpop.f32.mrb[0].mxu0
        %v4756 = vadd.f32 %v303, %v4755
        %4757 = vmatprep.mubr.f32.mxu0 0.0
        %4758 = vmatmul.mubr.f32.gmra.mrb[0].mxu0 %v4520
        %v4759 = vpop.f32.mrb[0].mxu0
        %v4760 = vadd.f32 %v304, %v4759
        %v4761 = vpop.f32.mrb[0].mxu0
        %v4762 = vadd.f32 %v305, %v4761
        %4763 = vmatprep.mubr.f32.mxu0 0.0
        %4764 = vmatmul.mubr.f32.gmra.mrb[0].mxu0 %v4523
        %v4765 = vpop.f32.mrb[0].mxu0
        %v4766 = vadd.f32 %v306, %v4765
        %v4767 = vpop.f32.mrb[0].mxu0
        %v4768 = vadd.f32 %v307, %v4767
        %4769 = vmatprep.mubr.f32.mxu0 0.0
        %4770 = vmatmul.mubr.f32.gmra.mrb[0].mxu0 %v4526
        %v4771 = vpop.f32.mrb[0].mxu0
        %v4772 = vadd.f32 %v308, %v4771
        %v4773 = vpop.f32.mrb[0].mxu0
        %v4774 = vadd.f32 %v309, %v4773
        %4775 = vmatprep.mubr.f32.mxu0 0.0
        %4776 = vmatmul.mubr.f32.gmra.mrb[0].mxu0 %v4529
        %v4777 = vpop.f32.mrb[0].mxu0
        %v4778 = vadd.f32 %v310, %v4777
        %v4779 = vpop.f32.mrb[0].mxu0
        %v4780 = vadd.f32 %v311, %v4779
        %4781 = vmatprep.mubr.f32.mxu0 0.0
        %4782 = vmatmul.mubr.f32.gmra.mrb[0].mxu0 %v4532
        %v4783 = vpop.f32.mrb[0].mxu0
        %v4784 = vadd.f32 %v312, %v4783
        %v4785 = vpop.f32.mrb[0].mxu0
        %v4786 = vadd.f32 %v313, %v4785
        %4787 = vmatprep.mubr.f32.mxu0 0.0
        %4788 = vmatmul.mubr.f32.gmra.mrb[0].mxu0 %v4535
        %v4789 = vpop.f32.mrb[0].mxu0
        %v4790 = vadd.f32 %v314, %v4789
        %v4791 = vpop.f32.mrb[0].mxu0
        %v4792 = vadd.f32 %v315, %v4791
        %4793 = vdwg.mxu0
        %v4794 = vmax.f32 %v4604, %v4616
        %v4795 = vmax.f32 %v4610, %v4622
        %v4796 = vmax.f32 %v4794, %v4628
        %v4797 = vmax.f32 %v4795, %v4634
        %v4798 = vmax.f32 %v4796, %v4640
        %v4799 = vmax.f32 %v4797, %v4646
        %v4800 = vmax.f32 %v4798, %v4652
        %v4801 = vmax.f32 %v4799, %v4658
        %v4802 = vmax.f32 %v4800, %v4664
        %v4803 = vmax.f32 %v4801, %v4670
        %v4804 = vmax.f32 %v4802, %v4676
        %v4805 = vmax.f32 %v4803, %v4682
        %v4806 = vmax.f32 %v4804, %v4688
        %v4807 = vmax.f32 %v4805, %v4694
        %v4808 = vmax.f32 %v4806, %v4700
        %v4809 = vmax.f32 %v4807, %v4706
        %v4810 = vmax.f32 %v4808, %v4712
        %v4811 = vmax.f32 %v4809, %v4718
        %v4812 = vmax.f32 %v4810, %v4724
        %v4813 = vmax.f32 %v4811, %v4730
        %v4814 = vmax.f32 %v4812, %v4736
        %v4815 = vmax.f32 %v4813, %v4742
        %v4816 = vmax.f32 %v4814, %v4748
        %v4817 = vmax.f32 %v4815, %v4754
        %v4818 = vmax.f32 %v4816, %v4760
        %v4819 = vmax.f32 %v4817, %v4766
        %v4820 = vmax.f32 %v4818, %v4772
        %v4821 = vmax.f32 %v4819, %v4778
        %v4822 = vmax.f32 %v4820, %v4784
        %v4823 = vmax.f32 %v4821, %v4790
        %v4824 = vmax.f32 %v4822, %v4823
        %v4825 = vrot.slane %v4824, 4
        %v4826 = vmax.f32 %v4824, %v4825
        %v4827 = vrot.slane %v4826, 2
        %v4828 = vmax.f32 %v4826, %v4827
        %v4829 = vrot.slane %v4828, 1
        %v4830 = vmax.f32 %v4828, %v4829
        %v4831 = vmax.f32 %v4606, %v4618
        %v4832 = vmax.f32 %v4612, %v4624
        %v4833 = vmax.f32 %v4831, %v4630
        %v4834 = vmax.f32 %v4832, %v4636
        %v4835 = vmax.f32 %v4833, %v4642
        %v4836 = vmax.f32 %v4834, %v4648
        %v4837 = vmax.f32 %v4835, %v4654
        %v4838 = vmax.f32 %v4836, %v4660
        %v4839 = vmax.f32 %v4837, %v4666
        %v4840 = vmax.f32 %v4838, %v4672
        %v4841 = vmax.f32 %v4839, %v4678
        %v4842 = vmax.f32 %v4840, %v4684
        %v4843 = vmax.f32 %v4841, %v4690
        %v4844 = vmax.f32 %v4842, %v4696
        %v4845 = vmax.f32 %v4843, %v4702
        %v4846 = vmax.f32 %v4844, %v4708
        %v4847 = vmax.f32 %v4845, %v4714
        %v4848 = vmax.f32 %v4846, %v4720
        %v4849 = vmax.f32 %v4847, %v4726
        %v4850 = vmax.f32 %v4848, %v4732
        %v4851 = vmax.f32 %v4849, %v4738
        %v4852 = vmax.f32 %v4850, %v4744
        %v4853 = vmax.f32 %v4851, %v4750
        %v4854 = vmax.f32 %v4852, %v4756
        %v4855 = vmax.f32 %v4853, %v4762
        %v4856 = vmax.f32 %v4854, %v4768
        %v4857 = vmax.f32 %v4855, %v4774
        %v4858 = vmax.f32 %v4856, %v4780
        %v4859 = vmax.f32 %v4857, %v4786
        %v4860 = vmax.f32 %v4858, %v4792
        %v4861 = vmax.f32 %v4859, %v4860
        %v4862 = vrot.slane %v4861, 4
        %v4863 = vmax.f32 %v4861, %v4862
        %v4864 = vrot.slane %v4863, 2
        %v4865 = vmax.f32 %v4863, %v4864
        %v4866 = vrot.slane %v4865, 1
        %v4867 = vmax.f32 %v4865, %v4866
        %v4868 = vsub.f32 %v4604, %v4830
        %v4869 = vsub.f32 %v4606, %v4867
        %v4870 = vsub.f32 %v4610, %v4830
        %v4871 = vsub.f32 %v4612, %v4867
        %v4872 = vsub.f32 %v4616, %v4830
        %v4873 = vsub.f32 %v4618, %v4867
        %v4874 = vsub.f32 %v4622, %v4830
        %v4875 = vsub.f32 %v4624, %v4867
        %v4876 = vsub.f32 %v4628, %v4830
        %v4877 = vsub.f32 %v4630, %v4867
        %v4878 = vsub.f32 %v4634, %v4830
        %v4879 = vsub.f32 %v4636, %v4867
        %v4880 = vsub.f32 %v4640, %v4830
        %v4881 = vsub.f32 %v4642, %v4867
        %v4882 = vsub.f32 %v4646, %v4830
        %v4883 = vsub.f32 %v4648, %v4867
        %v4884 = vsub.f32 %v4652, %v4830
        %v4885 = vsub.f32 %v4654, %v4867
        %v4886 = vsub.f32 %v4658, %v4830
        %v4887 = vsub.f32 %v4660, %v4867
        %v4888 = vsub.f32 %v4664, %v4830
        %v4889 = vsub.f32 %v4666, %v4867
        %v4890 = vsub.f32 %v4670, %v4830
        %v4891 = vsub.f32 %v4672, %v4867
        %v4892 = vsub.f32 %v4676, %v4830
        %v4893 = vsub.f32 %v4678, %v4867
        %v4894 = vsub.f32 %v4682, %v4830
        %v4895 = vsub.f32 %v4684, %v4867
        %v4896 = vsub.f32 %v4688, %v4830
        %v4897 = vsub.f32 %v4690, %v4867
        %v4898 = vsub.f32 %v4694, %v4830
        %v4899 = vsub.f32 %v4696, %v4867
        %v4900 = vsub.f32 %v4700, %v4830
        %v4901 = vsub.f32 %v4702, %v4867
        %v4902 = vsub.f32 %v4706, %v4830
        %v4903 = vsub.f32 %v4708, %v4867
        %v4904 = vsub.f32 %v4712, %v4830
        %v4905 = vsub.f32 %v4714, %v4867
        %v4906 = vsub.f32 %v4718, %v4830
        %v4907 = vsub.f32 %v4720, %v4867
        %v4908 = vsub.f32 %v4724, %v4830
        %v4909 = vsub.f32 %v4726, %v4867
        %v4910 = vsub.f32 %v4730, %v4830
        %v4911 = vsub.f32 %v4732, %v4867
        %v4912 = vsub.f32 %v4736, %v4830
        %v4913 = vsub.f32 %v4738, %v4867
        %v4914 = vsub.f32 %v4742, %v4830
        %v4915 = vsub.f32 %v4744, %v4867
        %v4916 = vsub.f32 %v4748, %v4830
        %v4917 = vsub.f32 %v4750, %v4867
        %v4918 = vsub.f32 %v4754, %v4830
        %v4919 = vsub.f32 %v4756, %v4867
        %v4920 = vsub.f32 %v4760, %v4830
        %v4921 = vsub.f32 %v4762, %v4867
        %v4922 = vsub.f32 %v4766, %v4830
        %v4923 = vsub.f32 %v4768, %v4867
        %v4924 = vsub.f32 %v4772, %v4830
        %v4925 = vsub.f32 %v4774, %v4867
        %v4926 = vsub.f32 %v4778, %v4830
        %v4927 = vsub.f32 %v4780, %v4867
        %v4928 = vsub.f32 %v4784, %v4830
        %v4929 = vsub.f32 %v4786, %v4867
        %v4930 = vsub.f32 %v4790, %v4830
        %v4931 = vsub.f32 %v4792, %v4867
        %v4932 = vmul.f32 %v4868, 1.442695
        %v4933 = vpow.pop %v4932
        %v4934 = vmul.f32 %v4869, 1.442695
        %v4935 = vpow.pop %v4934
        %v4936 = vmul.f32 %v4870, 1.442695
        %v4937 = vpow.pop %v4936
        %v4938 = vmul.f32 %v4871, 1.442695
        %v4939 = vpow.pop %v4938
        %v4940 = vmul.f32 %v4872, 1.442695
        %v4941 = vpow.pop %v4940
        %v4942 = vmul.f32 %v4873, 1.442695
        %v4943 = vpow.pop %v4942
        %v4944 = vmul.f32 %v4874, 1.442695
        %v4945 = vpow.pop %v4944
        %v4946 = vmul.f32 %v4875, 1.442695
        %v4947 = vpow.pop %v4946
        %v4948 = vmul.f32 %v4876, 1.442695
        %v4949 = vpow.pop %v4948
        %v4950 = vmul.f32 %v4877, 1.442695
        %v4951 = vpow.pop %v4950
        %v4952 = vmul.f32 %v4878, 1.442695
        %v4953 = vpow.pop %v4952
        %v4954 = vmul.f32 %v4879, 1.442695
        %v4955 = vpow.pop %v4954
        %v4956 = vmul.f32 %v4880, 1.442695
        %v4957 = vpow.pop %v4956
        %v4958 = vmul.f32 %v4881, 1.442695
        %v4959 = vpow.pop %v4958
        %v4960 = vmul.f32 %v4882, 1.442695
        %v4961 = vpow.pop %v4960
        %v4962 = vmul.f32 %v4883, 1.442695
        %v4963 = vpow.pop %v4962
        %v4964 = vmul.f32 %v4884, 1.442695
        %v4965 = vpow.pop %v4964
        %v4966 = vmul.f32 %v4885, 1.442695
        %v4967 = vpow.pop %v4966
        %v4968 = vmul.f32 %v4886, 1.442695
        %v4969 = vpow.pop %v4968
        %v4970 = vmul.f32 %v4887, 1.442695
        %v4971 = vpow.pop %v4970
        %v4972 = vmul.f32 %v4888, 1.442695
        %v4973 = vpow.pop %v4972
        %v4974 = vmul.f32 %v4889, 1.442695
        %v4975 = vpow.pop %v4974
        %v4976 = vmul.f32 %v4890, 1.442695
        %v4977 = vpow.pop %v4976
        %v4978 = vmul.f32 %v4891, 1.442695
        %v4979 = vpow.pop %v4978
        %v4980 = vmul.f32 %v4892, 1.442695
        %v4981 = vpow.pop %v4980
        %v4982 = vmul.f32 %v4893, 1.442695
        %v4983 = vpow.pop %v4982
        %v4984 = vmul.f32 %v4894, 1.442695
        %v4985 = vpow.pop %v4984
        %v4986 = vmul.f32 %v4895, 1.442695
        %v4987 = vpow.pop %v4986
        %v4988 = vmul.f32 %v4896, 1.442695
        %v4989 = vpow.pop %v4988
        %v4990 = vmul.f32 %v4897, 1.442695
        %v4991 = vpow.pop %v4990
        %v4992 = vmul.f32 %v4898, 1.442695
        %v4993 = vpow.pop %v4992
        %v4994 = vmul.f32 %v4899, 1.442695
        %v4995 = vpow.pop %v4994
        %v4996 = vmul.f32 %v4900, 1.442695
        %v4997 = vpow.pop %v4996
        %v4998 = vmul.f32 %v4901, 1.442695
        %v4999 = vpow.pop %v4998
        %v5000 = vmul.f32 %v4902, 1.442695
        %v5001 = vpow.pop %v5000
        %v5002 = vmul.f32 %v4903, 1.442695
        %v5003 = vpow.pop %v5002
        %v5004 = vmul.f32 %v4904, 1.442695
        %v5005 = vpow.pop %v5004
        %v5006 = vmul.f32 %v4905, 1.442695
        %v5007 = vpow.pop %v5006
        %v5008 = vmul.f32 %v4906, 1.442695
        %v5009 = vpow.pop %v5008
        %v5010 = vmul.f32 %v4907, 1.442695
        %v5011 = vpow.pop %v5010
        %v5012 = vmul.f32 %v4908, 1.442695
        %v5013 = vpow.pop %v5012
        %v5014 = vmul.f32 %v4909, 1.442695
        %v5015 = vpow.pop %v5014
        %v5016 = vmul.f32 %v4910, 1.442695
        %v5017 = vpow.pop %v5016
        %v5018 = vmul.f32 %v4911, 1.442695
        %v5019 = vpow.pop %v5018
        %v5020 = vmul.f32 %v4912, 1.442695
        %v5021 = vpow.pop %v5020
        %v5022 = vmul.f32 %v4913, 1.442695
        %v5023 = vpow.pop %v5022
        %v5024 = vmul.f32 %v4914, 1.442695
        %v5025 = vpow.pop %v5024
        %v5026 = vmul.f32 %v4915, 1.442695
        %v5027 = vpow.pop %v5026
        %v5028 = vmul.f32 %v4916, 1.442695
        %v5029 = vpow.pop %v5028
        %v5030 = vmul.f32 %v4917, 1.442695
        %v5031 = vpow.pop %v5030
        %v5032 = vmul.f32 %v4918, 1.442695
        %v5033 = vpow.pop %v5032
        %v5034 = vmul.f32 %v4919, 1.442695
        %v5035 = vpow.pop %v5034
        %v5036 = vmul.f32 %v4920, 1.442695
        %v5037 = vpow.pop %v5036
        %v5038 = vmul.f32 %v4921, 1.442695
        %v5039 = vpow.pop %v5038
        %v5040 = vmul.f32 %v4922, 1.442695
        %v5041 = vpow.pop %v5040
        %v5042 = vmul.f32 %v4923, 1.442695
        %v5043 = vpow.pop %v5042
        %v5044 = vmul.f32 %v4924, 1.442695
        %v5045 = vpow.pop %v5044
        %v5046 = vmul.f32 %v4925, 1.442695
        %v5047 = vpow.pop %v5046
        %v5048 = vmul.f32 %v4926, 1.442695
        %v5049 = vpow.pop %v5048
        %v5050 = vmul.f32 %v4927, 1.442695
        %v5051 = vpow.pop %v5050
        %v5052 = vmul.f32 %v4928, 1.442695
        %v5053 = vpow.pop %v5052
        %v5054 = vmul.f32 %v4929, 1.442695
        %v5055 = vpow.pop %v5054
        %v5056 = vmul.f32 %v4930, 1.442695
        %v5057 = vpow.pop %v5056
        %v5058 = vmul.f32 %v4931, 1.442695
        %v5059 = vpow.pop %v5058
        %v5060 = vadd.f32 %v4933, %v4937
        %v5061 = vadd.f32 %v5060, %v4941
        %v5062 = vadd.f32 %v5061, %v4945
        %v5063 = vadd.f32 %v5062, %v4949
        %v5064 = vadd.f32 %v5063, %v4953
        %v5065 = vadd.f32 %v5064, %v4957
        %v5066 = vadd.f32 %v5065, %v4961
        %v5067 = vadd.f32 %v5066, %v4965
        %v5068 = vadd.f32 %v5067, %v4969
        %v5069 = vadd.f32 %v5068, %v4973
        %v5070 = vadd.f32 %v5069, %v4977
        %v5071 = vadd.f32 %v5070, %v4981
        %v5072 = vadd.f32 %v5071, %v4985
        %v5073 = vadd.f32 %v5072, %v4989
        %v5074 = vadd.f32 %v5073, %v4993
        %v5075 = vadd.f32 %v5074, %v4997
        %v5076 = vadd.f32 %v5075, %v5001
        %v5077 = vadd.f32 %v5076, %v5005
        %v5078 = vadd.f32 %v5077, %v5009
        %v5079 = vadd.f32 %v5078, %v5013
        %v5080 = vadd.f32 %v5079, %v5017
        %v5081 = vadd.f32 %v5080, %v5021
        %v5082 = vadd.f32 %v5081, %v5025
        %v5083 = vadd.f32 %v5082, %v5029
        %v5084 = vadd.f32 %v5083, %v5033
        %v5085 = vadd.f32 %v5084, %v5037
        %v5086 = vadd.f32 %v5085, %v5041
        %v5087 = vadd.f32 %v5086, %v5045
        %v5088 = vadd.f32 %v5087, %v5049
        %v5089 = vadd.f32 %v5088, %v5053
        %v5090 = vadd.f32 %v5089, %v5057
        %v5091 = vrot.slane %v5090, 4
        %v5092 = vadd.f32 %v5090, %v5091
        %v5093 = vrot.slane %v5092, 2
        %v5094 = vadd.f32 %v5092, %v5093
        %v5095 = vrot.slane %v5094, 1
        %v5096 = vadd.f32 %v5094, %v5095
        %v5097 = vadd.f32 %v4935, %v4939
        %v5098 = vadd.f32 %v5097, %v4943
        %v5099 = vadd.f32 %v5098, %v4947
        %v5100 = vadd.f32 %v5099, %v4951
        %v5101 = vadd.f32 %v5100, %v4955
        %v5102 = vadd.f32 %v5101, %v4959
        %v5103 = vadd.f32 %v5102, %v4963
        %v5104 = vadd.f32 %v5103, %v4967
        %v5105 = vadd.f32 %v5104, %v4971
        %v5106 = vadd.f32 %v5105, %v4975
        %v5107 = vadd.f32 %v5106, %v4979
        %v5108 = vadd.f32 %v5107, %v4983
        %v5109 = vadd.f32 %v5108, %v4987
        %v5110 = vadd.f32 %v5109, %v4991
        %v5111 = vadd.f32 %v5110, %v4995
        %v5112 = vadd.f32 %v5111, %v4999
        %v5113 = vadd.f32 %v5112, %v5003
        %v5114 = vadd.f32 %v5113, %v5007
        %v5115 = vadd.f32 %v5114, %v5011
        %v5116 = vadd.f32 %v5115, %v5015
        %v5117 = vadd.f32 %v5116, %v5019
        %v5118 = vadd.f32 %v5117, %v5023
        %v5119 = vadd.f32 %v5118, %v5027
        %v5120 = vadd.f32 %v5119, %v5031
        %v5121 = vadd.f32 %v5120, %v5035
        %v5122 = vadd.f32 %v5121, %v5039
        %v5123 = vadd.f32 %v5122, %v5043
        %v5124 = vadd.f32 %v5123, %v5047
        %v5125 = vadd.f32 %v5124, %v5051
        %v5126 = vadd.f32 %v5125, %v5055
        %v5127 = vadd.f32 %v5126, %v5059
        %v5128 = vrot.slane %v5127, 4
        %v5129 = vadd.f32 %v5127, %v5128
        %v5130 = vrot.slane %v5129, 2
        %v5131 = vadd.f32 %v5129, %v5130
        %v5132 = vrot.slane %v5131, 1
        %v5133 = vadd.f32 %v5131, %v5132
        %s5134 = scalar_lea.vmem %s249, 80
        %v5135 = vld [vmem:[%s5134] sm:$0xff]
        %v5136 = vld [vmem:[%s5134 + $0x8] sm:$0xff]
        %5137 = vmatprep.subr.mxu0 %v4935
        %5138 = vmatpush1.msra.mxu0 %v4933
        %5139 = vmatprep.subr.mxu0 %v4939
        %5140 = vmatpush1.msra.mxu0 %v4937
        %5141 = vmatprep.subr.mxu0 %v4943
        %5142 = vmatpush1.msra.mxu0 %v4941
        %5143 = vmatprep.subr.mxu0 %v4947
        %5144 = vmatpush1.msra.mxu0 %v4945
        %5145 = vmatprep.subr.mxu0 %v4951
        %5146 = vmatpush1.msra.mxu0 %v4949
        %5147 = vmatprep.subr.mxu0 %v4955
        %5148 = vmatpush1.msra.mxu0 %v4953
        %5149 = vmatprep.subr.mxu0 %v4959
        %5150 = vmatpush1.msra.mxu0 %v4957
        %5151 = vmatprep.subr.mxu0 %v4963
        %5152 = vmatpush1.msra.mxu0 %v4961
        %5153 = vmatprep.subr.mxu0 %v4967
        %5154 = vmatpush1.msra.mxu0 %v4965
        %5155 = vmatprep.subr.mxu0 %v4971
        %5156 = vmatpush1.msra.mxu0 %v4969
        %5157 = vmatprep.subr.mxu0 %v4975
        %5158 = vmatpush1.msra.mxu0 %v4973
        %5159 = vmatprep.subr.mxu0 %v4979
        %5160 = vmatpush1.msra.mxu0 %v4977
        %5161 = vmatprep.subr.mxu0 %v4983
        %5162 = vmatpush1.msra.mxu0 %v4981
        %5163 = vmatprep.subr.mxu0 %v4987
        %5164 = vmatpush1.msra.mxu0 %v4985
        %5165 = vmatprep.subr.mxu0 %v4991
        %5166 = vmatpush1.msra.mxu0 %v4989
        %5167 = vmatprep.subr.mxu0 %v4995
        %5168 = vmatpush1.msra.mxu0 %v4993
        %5169 = vmatprep.subr.mxu0 %v4999
        %5170 = vmatpush1.msra.mxu0 %v4997
        %5171 = vmatprep.subr.mxu0 %v5003
        %5172 = vmatpush1.msra.mxu0 %v5001
        %5173 = vmatprep.subr.mxu0 %v5007
        %5174 = vmatpush1.msra.mxu0 %v5005
        %5175 = vmatprep.subr.mxu0 %v5011
        %5176 = vmatpush1.msra.mxu0 %v5009
        %5177 = vmatprep.subr.mxu0 %v5015
        %5178 = vmatpush1.msra.mxu0 %v5013
        %5179 = vmatprep.subr.mxu0 %v5019
        %5180 = vmatpush1.msra.mxu0 %v5017
        %5181 = vmatprep.subr.mxu0 %v5023
        %5182 = vmatpush1.msra.mxu0 %v5021
        %5183 = vmatprep.subr.mxu0 %v5027
        %5184 = vmatpush1.msra.mxu0 %v5025
        %5185 = vmatprep.subr.mxu0 %v5031
        %5186 = vmatpush1.msra.mxu0 %v5029
        %5187 = vmatprep.subr.mxu0 %v5035
        %5188 = vmatpush1.msra.mxu0 %v5033
        %5189 = vmatprep.subr.mxu0 %v5039
        %5190 = vmatpush1.msra.mxu0 %v5037
        %5191 = vmatprep.subr.mxu0 %v5043
        %5192 = vmatpush1.msra.mxu0 %v5041
        %5193 = vmatprep.subr.mxu0 %v5047
        %5194 = vmatpush1.msra.mxu0 %v5045
        %5195 = vmatprep.subr.mxu0 %v5051
        %5196 = vmatpush1.msra.mxu0 %v5049
        %5197 = vmatprep.subr.mxu0 %v5055
        %5198 = vmatpush1.msra.mxu0 %v5053
        %5199 = vmatprep.subr.mxu0 %v5059
        %5200 = vmatpush1.msra.mxu0 %v5057
        %5201 = vmatprep.mubr.f32.mxu0 %v5136
        %5202 = vmatmul.mubr.f32.gmra.mrb[0].mxu0 %v5135
        %v5203 = vpop.f32.mrb[0].mxu0
        %v5204 = vadd.f32 0.0, %v5203
        %v5205 = vpop.f32.mrb[0].mxu0
        %v5206 = vadd.f32 0.0, %v5205
        %5207 = vdwg.mxu0
        %v5208 = vrcp.pop %v5096
        %v5209 = vrcp.pop %v5133
        %v5210 = vmul.f32 %v5096, %v5208
        %v5211 = vmul.f32 %v5133, %v5209
        %v5212 = vsub.f32 2.0, %v5210
        %v5213 = vsub.f32 2.0, %v5211
        %v5214 = vmul.f32 %v5208, %v5212
        %v5215 = vmul.f32 %v5209, %v5213
        %v5216 = vmul.f32 %v5204, %v5214
        %v5217 = vmul.f32 %v5206, %v5215
        %s5218 = scalar_lea.vmem %s229, 80 [#allocation2]
        %5219 = vst [vmem:[%s5218] sm:$0xff] %v5216
        %5220 = vst [vmem:[%s5218 + $0x8] sm:$0xff] %v5217
        %s5221 = scalar_lea.vmem %s235, 96
        %v5222 = vld [vmem:[%s5221] sm:$0xff]
        %v5223 = vld [vmem:[%s5221 + $0x8] sm:$0xff]
        %v5224 = vmul.f32 %v5222, 0.35355338
        %v5225 = vmul.f32 %v5223, 0.35355338
        %s5226 = scalar_lea.vmem %s242, 1536
        %v5227 = vld [vmem:[%s5226] sm:$0xff]
        %v5228 = vld [vmem:[%s5226 + $0x8] sm:$0xff]
        %v5229 = vld [vmem:[%s5226 + $0x10] sm:$0xff]
        %v5230 = vld [vmem:[%s5226 + $0x18] sm:$0xff]
        %v5231 = vld [vmem:[%s5226 + $0x20] sm:$0xff]
        %v5232 = vld [vmem:[%s5226 + $0x28] sm:$0xff]
        %v5233 = vld [vmem:[%s5226 + $0x30] sm:$0xff]
        %v5234 = vld [vmem:[%s5226 + $0x38] sm:$0xff]
        %v5235 = vld [vmem:[%s5226 + $0x40] sm:$0xff]
        %v5236 = vld [vmem:[%s5226 + $0x48] sm:$0xff]
        %v5237 = vld [vmem:[%s5226 + $0x50] sm:$0xff]
        %v5238 = vld [vmem:[%s5226 + $0x58] sm:$0xff]
        %v5239 = vld [vmem:[%s5226 + $0x60] sm:$0xff]
        %v5240 = vld [vmem:[%s5226 + $0x68] sm:$0xff]
        %v5241 = vld [vmem:[%s5226 + $0x70] sm:$0xff]
        %v5242 = vld [vmem:[%s5226 + $0x78] sm:$0xff]
        %v5243 = vld [vmem:[%s5226 + $0x80] sm:$0xff]
        %v5244 = vld [vmem:[%s5226 + $0x88] sm:$0xff]
        %v5245 = vld [vmem:[%s5226 + $0x90] sm:$0xff]
        %v5246 = vld [vmem:[%s5226 + $0x98] sm:$0xff]
        %v5247 = vld [vmem:[%s5226 + $0xa0] sm:$0xff]
        %v5248 = vld [vmem:[%s5226 + $0xa8] sm:$0xff]
        %v5249 = vld [vmem:[%s5226 + $0xb0] sm:$0xff]
        %v5250 = vld [vmem:[%s5226 + $0xb8] sm:$0xff]
        %v5251 = vld [vmem:[%s5226 + $0xc0] sm:$0xff]
        %v5252 = vld [vmem:[%s5226 + $0xc8] sm:$0xff]
        %v5253 = vld [vmem:[%s5226 + $0xd0] sm:$0xff]
        %v5254 = vld [vmem:[%s5226 + $0xd8] sm:$0xff]
        %v5255 = vld [vmem:[%s5226 + $0xe0] sm:$0xff]
        %v5256 = vld [vmem:[%s5226 + $0xe8] sm:$0xff]
        %v5257 = vld [vmem:[%s5226 + $0xf0] sm:$0xff]
        %v5258 = vld [vmem:[%s5226 + $0xf8] sm:$0xff]
        %v5260 = vsel %vm352, %v5227, 0
        %v5263 = vsel %vm352, %v5228, 0
        %v5266 = vsel %vm352, %v5229, 0
        %v5269 = vsel %vm352, %v5230, 0
        %v5272 = vsel %vm352, %v5231, 0
        %v5275 = vsel %vm352, %v5232, 0
        %v5278 = vsel %vm352, %v5233, 0
        %v5281 = vsel %vm352, %v5234, 0
        %v5284 = vsel %vm352, %v5235, 0
        %v5287 = vsel %vm352, %v5236, 0
        %v5290 = vsel %vm352, %v5237, 0
        %v5293 = vsel %vm352, %v5238, 0
        %v5296 = vsel %vm352, %v5239, 0
        %v5299 = vsel %vm352, %v5240, 0
        %v5302 = vsel %vm352, %v5241, 0
        %v5305 = vsel %vm352, %v5242, 0
        %v5308 = vsel %vm352, %v5243, 0
        %v5311 = vsel %vm352, %v5244, 0
        %v5314 = vsel %vm352, %v5245, 0
        %v5317 = vsel %vm352, %v5246, 0
        %v5320 = vsel %vm352, %v5247, 0
        %v5323 = vsel %vm352, %v5248, 0
        %v5326 = vsel %vm352, %v5249, 0
        %v5329 = vsel %vm352, %v5250, 0
        %v5332 = vsel %vm352, %v5251, 0
        %v5335 = vsel %vm352, %v5252, 0
        %v5338 = vsel %vm352, %v5253, 0
        %v5341 = vsel %vm352, %v5254, 0
        %v5344 = vsel %vm352, %v5255, 0
        %v5347 = vsel %vm352, %v5256, 0
        %v5350 = vsel %vm352, %v5257, 0
        %v5353 = vsel %vm352, %v5258, 0
        %5355 = vmatprep.subr.mxu0 %v5225
        %5356 = vmatpush1.msra.mxu0 %v5224
        %5357 = vmatprep.subr.mxu0 0.0
        %5358 = vmatpush1.msra.mxu0 0.0
        %5359 = vmatprep.subr.mxu0 0.0
        %5360 = vmatpush1.msra.mxu0 0.0
        %5361 = vmatprep.subr.mxu0 0.0
        %5362 = vmatpush1.msra.mxu0 0.0
        %5363 = vmatprep.subr.mxu0 0.0
        %5364 = vmatpush1.msra.mxu0 0.0
        %5365 = vmatprep.subr.mxu0 0.0
        %5366 = vmatpush1.msra.mxu0 0.0
        %5367 = vmatprep.subr.mxu0 0.0
        %5368 = vmatpush1.msra.mxu0 0.0
        %5369 = vmatprep.subr.mxu0 0.0
        %5370 = vmatpush1.msra.mxu0 0.0
        %5371 = vmatprep.subr.mxu0 0.0
        %5372 = vmatpush1.msra.mxu0 0.0
        %5373 = vmatprep.subr.mxu0 0.0
        %5374 = vmatpush1.msra.mxu0 0.0
        %5375 = vmatprep.subr.mxu0 0.0
        %5376 = vmatpush1.msra.mxu0 0.0
        %5377 = vmatprep.subr.mxu0 0.0
        %5378 = vmatpush1.msra.mxu0 0.0
        %5379 = vmatprep.subr.mxu0 0.0
        %5380 = vmatpush1.msra.mxu0 0.0
        %5381 = vmatprep.subr.mxu0 0.0
        %5382 = vmatpush1.msra.mxu0 0.0
        %5383 = vmatprep.subr.mxu0 0.0
        %5384 = vmatpush1.msra.mxu0 0.0
        %5385 = vmatprep.subr.mxu0 0.0
        %5386 = vmatpush1.msra.mxu0 0.0
        %5387 = vmatprep.subr.mxu0 0.0
        %5388 = vmatpush1.msra.mxu0 0.0
        %5389 = vmatprep.subr.mxu0 0.0
        %5390 = vmatpush1.msra.mxu0 0.0
        %5391 = vmatprep.subr.mxu0 0.0
        %5392 = vmatpush1.msra.mxu0 0.0
        %5393 = vmatprep.subr.mxu0 0.0
        %5394 = vmatpush1.msra.mxu0 0.0
        %5395 = vmatprep.subr.mxu0 0.0
        %5396 = vmatpush1.msra.mxu0 0.0
        %5397 = vmatprep.subr.mxu0 0.0
        %5398 = vmatpush1.msra.mxu0 0.0
        %5399 = vmatprep.subr.mxu0 0.0
        %5400 = vmatpush1.msra.mxu0 0.0
        %5401 = vmatprep.subr.mxu0 0.0
        %5402 = vmatpush1.msra.mxu0 0.0
        %5403 = vmatprep.subr.mxu0 0.0
        %5404 = vmatpush1.msra.mxu0 0.0
        %5405 = vmatprep.subr.mxu0 0.0
        %5406 = vmatpush1.msra.mxu0 0.0
        %5407 = vmatprep.subr.mxu0 0.0
        %5408 = vmatpush1.msra.mxu0 0.0
        %5409 = vmatprep.subr.mxu0 0.0
        %5410 = vmatpush1.msra.mxu0 0.0
        %5411 = vmatprep.subr.mxu0 0.0
        %5412 = vmatpush1.msra.mxu0 0.0
        %5413 = vmatprep.subr.mxu0 0.0
        %5414 = vmatpush1.msra.mxu0 0.0
        %5415 = vmatprep.subr.mxu0 0.0
        %5416 = vmatpush1.msra.mxu0 0.0
        %5417 = vmatprep.subr.mxu0 0.0
        %5418 = vmatpush1.msra.mxu0 0.0
        %5419 = vmatprep.mubr.f32.mxu0 0.0
        %5420 = vmatmul.mubr.f32.gmra.mrb[0].mxu0 %v5260
        %v5421 = vpop.f32.mrb[0].mxu0
        %v5422 = vadd.f32 %v252, %v5421
        %v5423 = vpop.f32.mrb[0].mxu0
        %v5424 = vadd.f32 %v253, %v5423
        %5425 = vmatprep.mubr.f32.mxu0 0.0
        %5426 = vmatmul.mubr.f32.gmra.mrb[0].mxu0 %v5263
        %v5427 = vpop.f32.mrb[0].mxu0
        %v5428 = vadd.f32 %v254, %v5427
        %v5429 = vpop.f32.mrb[0].mxu0
        %v5430 = vadd.f32 %v255, %v5429
        %5431 = vmatprep.mubr.f32.mxu0 0.0
        %5432 = vmatmul.mubr.f32.gmra.mrb[0].mxu0 %v5266
        %v5433 = vpop.f32.mrb[0].mxu0
        %v5434 = vadd.f32 %v256, %v5433
        %v5435 = vpop.f32.mrb[0].mxu0
        %v5436 = vadd.f32 %v257, %v5435
        %5437 = vmatprep.mubr.f32.mxu0 0.0
        %5438 = vmatmul.mubr.f32.gmra.mrb[0].mxu0 %v5269
        %v5439 = vpop.f32.mrb[0].mxu0
        %v5440 = vadd.f32 %v258, %v5439
        %v5441 = vpop.f32.mrb[0].mxu0
        %v5442 = vadd.f32 %v259, %v5441
        %5443 = vmatprep.mubr.f32.mxu0 0.0
        %5444 = vmatmul.mubr.f32.gmra.mrb[0].mxu0 %v5272
        %v5445 = vpop.f32.mrb[0].mxu0
        %v5446 = vadd.f32 %v260, %v5445
        %v5447 = vpop.f32.mrb[0].mxu0
        %v5448 = vadd.f32 %v261, %v5447
        %5449 = vmatprep.mubr.f32.mxu0 0.0
        %5450 = vmatmul.mubr.f32.gmra.mrb[0].mxu0 %v5275
        %v5451 = vpop.f32.mrb[0].mxu0
        %v5452 = vadd.f32 %v262, %v5451
        %v5453 = vpop.f32.mrb[0].mxu0
        %v5454 = vadd.f32 %v263, %v5453
        %5455 = vmatprep.mubr.f32.mxu0 0.0
        %5456 = vmatmul.mubr.f32.gmra.mrb[0].mxu0 %v5278
        %v5457 = vpop.f32.mrb[0].mxu0
        %v5458 = vadd.f32 %v264, %v5457
        %v5459 = vpop.f32.mrb[0].mxu0
        %v5460 = vadd.f32 %v265, %v5459
        %5461 = vmatprep.mubr.f32.mxu0 0.0
        %5462 = vmatmul.mubr.f32.gmra.mrb[0].mxu0 %v5281
        %v5463 = vpop.f32.mrb[0].mxu0
        %v5464 = vadd.f32 %v266, %v5463
        %v5465 = vpop.f32.mrb[0].mxu0
        %v5466 = vadd.f32 %v267, %v5465
        %5467 = vmatprep.mubr.f32.mxu0 0.0
        %5468 = vmatmul.mubr.f32.gmra.mrb[0].mxu0 %v5284
        %v5469 = vpop.f32.mrb[0].mxu0
        %v5470 = vadd.f32 %v268, %v5469
        %v5471 = vpop.f32.mrb[0].mxu0
        %v5472 = vadd.f32 %v269, %v5471
        %5473 = vmatprep.mubr.f32.mxu0 0.0
        %5474 = vmatmul.mubr.f32.gmra.mrb[0].mxu0 %v5287
        %v5475 = vpop.f32.mrb[0].mxu0
        %v5476 = vadd.f32 %v270, %v5475
        %v5477 = vpop.f32.mrb[0].mxu0
        %v5478 = vadd.f32 %v271, %v5477
        %5479 = vmatprep.mubr.f32.mxu0 0.0
        %5480 = vmatmul.mubr.f32.gmra.mrb[0].mxu0 %v5290
        %v5481 = vpop.f32.mrb[0].mxu0
        %v5482 = vadd.f32 %v272, %v5481
        %v5483 = vpop.f32.mrb[0].mxu0
        %v5484 = vadd.f32 %v273, %v5483
        %5485 = vmatprep.mubr.f32.mxu0 0.0
        %5486 = vmatmul.mubr.f32.gmra.mrb[0].mxu0 %v5293
        %v5487 = vpop.f32.mrb[0].mxu0
        %v5488 = vadd.f32 %v274, %v5487
        %v5489 = vpop.f32.mrb[0].mxu0
        %v5490 = vadd.f32 %v275, %v5489
        %5491 = vmatprep.mubr.f32.mxu0 0.0
        %5492 = vmatmul.mubr.f32.gmra.mrb[0].mxu0 %v5296
        %v5493 = vpop.f32.mrb[0].mxu0
        %v5494 = vadd.f32 %v276, %v5493
        %v5495 = vpop.f32.mrb[0].mxu0
        %v5496 = vadd.f32 %v277, %v5495
        %5497 = vmatprep.mubr.f32.mxu0 0.0
        %5498 = vmatmul.mubr.f32.gmra.mrb[0].mxu0 %v5299
        %v5499 = vpop.f32.mrb[0].mxu0
        %v5500 = vadd.f32 %v278, %v5499
        %v5501 = vpop.f32.mrb[0].mxu0
        %v5502 = vadd.f32 %v279, %v5501
        %5503 = vmatprep.mubr.f32.mxu0 0.0
        %5504 = vmatmul.mubr.f32.gmra.mrb[0].mxu0 %v5302
        %v5505 = vpop.f32.mrb[0].mxu0
        %v5506 = vadd.f32 %v280, %v5505
        %v5507 = vpop.f32.mrb[0].mxu0
        %v5508 = vadd.f32 %v281, %v5507
        %5509 = vmatprep.mubr.f32.mxu0 0.0
        %5510 = vmatmul.mubr.f32.gmra.mrb[0].mxu0 %v5305
        %v5511 = vpop.f32.mrb[0].mxu0
        %v5512 = vadd.f32 %v282, %v5511
        %v5513 = vpop.f32.mrb[0].mxu0
        %v5514 = vadd.f32 %v283, %v5513
        %5515 = vmatprep.mubr.f32.mxu0 0.0
        %5516 = vmatmul.mubr.f32.gmra.mrb[0].mxu0 %v5308
        %v5517 = vpop.f32.mrb[0].mxu0
        %v5518 = vadd.f32 %v284, %v5517
        %v5519 = vpop.f32.mrb[0].mxu0
        %v5520 = vadd.f32 %v285, %v5519
        %5521 = vmatprep.mubr.f32.mxu0 0.0
        %5522 = vmatmul.mubr.f32.gmra.mrb[0].mxu0 %v5311
        %v5523 = vpop.f32.mrb[0].mxu0
        %v5524 = vadd.f32 %v286, %v5523
        %v5525 = vpop.f32.mrb[0].mxu0
        %v5526 = vadd.f32 %v287, %v5525
        %5527 = vmatprep.mubr.f32.mxu0 0.0
        %5528 = vmatmul.mubr.f32.gmra.mrb[0].mxu0 %v5314
        %v5529 = vpop.f32.mrb[0].mxu0
        %v5530 = vadd.f32 %v288, %v5529
        %v5531 = vpop.f32.mrb[0].mxu0
        %v5532 = vadd.f32 %v289, %v5531
        %5533 = vmatprep.mubr.f32.mxu0 0.0
        %5534 = vmatmul.mubr.f32.gmra.mrb[0].mxu0 %v5317
        %v5535 = vpop.f32.mrb[0].mxu0
        %v5536 = vadd.f32 %v290, %v5535
        %v5537 = vpop.f32.mrb[0].mxu0
        %v5538 = vadd.f32 %v291, %v5537
        %5539 = vmatprep.mubr.f32.mxu0 0.0
        %5540 = vmatmul.mubr.f32.gmra.mrb[0].mxu0 %v5320
        %v5541 = vpop.f32.mrb[0].mxu0
        %v5542 = vadd.f32 %v292, %v5541
        %v5543 = vpop.f32.mrb[0].mxu0
        %v5544 = vadd.f32 %v293, %v5543
        %5545 = vmatprep.mubr.f32.mxu0 0.0
        %5546 = vmatmul.mubr.f32.gmra.mrb[0].mxu0 %v5323
        %v5547 = vpop.f32.mrb[0].mxu0
        %v5548 = vadd.f32 %v294, %v5547
        %v5549 = vpop.f32.mrb[0].mxu0
        %v5550 = vadd.f32 %v295, %v5549
        %5551 = vmatprep.mubr.f32.mxu0 0.0
        %5552 = vmatmul.mubr.f32.gmra.mrb[0].mxu0 %v5326
        %v5553 = vpop.f32.mrb[0].mxu0
        %v5554 = vadd.f32 %v296, %v5553
        %v5555 = vpop.f32.mrb[0].mxu0
        %v5556 = vadd.f32 %v297, %v5555
        %5557 = vmatprep.mubr.f32.mxu0 0.0
        %5558 = vmatmul.mubr.f32.gmra.mrb[0].mxu0 %v5329
        %v5559 = vpop.f32.mrb[0].mxu0
        %v5560 = vadd.f32 %v298, %v5559
        %v5561 = vpop.f32.mrb[0].mxu0
        %v5562 = vadd.f32 %v299, %v5561
        %5563 = vmatprep.mubr.f32.mxu0 0.0
        %5564 = vmatmul.mubr.f32.gmra.mrb[0].mxu0 %v5332
        %v5565 = vpop.f32.mrb[0].mxu0
        %v5566 = vadd.f32 %v300, %v5565
        %v5567 = vpop.f32.mrb[0].mxu0
        %v5568 = vadd.f32 %v301, %v5567
        %5569 = vmatprep.mubr.f32.mxu0 0.0
        %5570 = vmatmul.mubr.f32.gmra.mrb[0].mxu0 %v5335
        %v5571 = vpop.f32.mrb[0].mxu0
        %v5572 = vadd.f32 %v302, %v5571
        %v5573 = vpop.f32.mrb[0].mxu0
        %v5574 = vadd.f32 %v303, %v5573
        %5575 = vmatprep.mubr.f32.mxu0 0.0
        %5576 = vmatmul.mubr.f32.gmra.mrb[0].mxu0 %v5338
        %v5577 = vpop.f32.mrb[0].mxu0
        %v5578 = vadd.f32 %v304, %v5577
        %v5579 = vpop.f32.mrb[0].mxu0
        %v5580 = vadd.f32 %v305, %v5579
        %5581 = vmatprep.mubr.f32.mxu0 0.0
        %5582 = vmatmul.mubr.f32.gmra.mrb[0].mxu0 %v5341
        %v5583 = vpop.f32.mrb[0].mxu0
        %v5584 = vadd.f32 %v306, %v5583
        %v5585 = vpop.f32.mrb[0].mxu0
        %v5586 = vadd.f32 %v307, %v5585
        %5587 = vmatprep.mubr.f32.mxu0 0.0
        %5588 = vmatmul.mubr.f32.gmra.mrb[0].mxu0 %v5344
        %v5589 = vpop.f32.mrb[0].mxu0
        %v5590 = vadd.f32 %v308, %v5589
        %v5591 = vpop.f32.mrb[0].mxu0
        %v5592 = vadd.f32 %v309, %v5591
        %5593 = vmatprep.mubr.f32.mxu0 0.0
        %5594 = vmatmul.mubr.f32.gmra.mrb[0].mxu0 %v5347
        %v5595 = vpop.f32.mrb[0].mxu0
        %v5596 = vadd.f32 %v310, %v5595
        %v5597 = vpop.f32.mrb[0].mxu0
        %v5598 = vadd.f32 %v311, %v5597
        %5599 = vmatprep.mubr.f32.mxu0 0.0
        %5600 = vmatmul.mubr.f32.gmra.mrb[0].mxu0 %v5350
        %v5601 = vpop.f32.mrb[0].mxu0
        %v5602 = vadd.f32 %v312, %v5601
        %v5603 = vpop.f32.mrb[0].mxu0
        %v5604 = vadd.f32 %v313, %v5603
        %5605 = vmatprep.mubr.f32.mxu0 0.0
        %5606 = vmatmul.mubr.f32.gmra.mrb[0].mxu0 %v5353
        %v5607 = vpop.f32.mrb[0].mxu0
        %v5608 = vadd.f32 %v314, %v5607
        %v5609 = vpop.f32.mrb[0].mxu0
        %v5610 = vadd.f32 %v315, %v5609
        %5611 = vdwg.mxu0
        %v5612 = vmax.f32 %v5422, %v5434
        %v5613 = vmax.f32 %v5428, %v5440
        %v5614 = vmax.f32 %v5612, %v5446
        %v5615 = vmax.f32 %v5613, %v5452
        %v5616 = vmax.f32 %v5614, %v5458
        %v5617 = vmax.f32 %v5615, %v5464
        %v5618 = vmax.f32 %v5616, %v5470
        %v5619 = vmax.f32 %v5617, %v5476
        %v5620 = vmax.f32 %v5618, %v5482
        %v5621 = vmax.f32 %v5619, %v5488
        %v5622 = vmax.f32 %v5620, %v5494
        %v5623 = vmax.f32 %v5621, %v5500
        %v5624 = vmax.f32 %v5622, %v5506
        %v5625 = vmax.f32 %v5623, %v5512
        %v5626 = vmax.f32 %v5624, %v5518
        %v5627 = vmax.f32 %v5625, %v5524
        %v5628 = vmax.f32 %v5626, %v5530
        %v5629 = vmax.f32 %v5627, %v5536
        %v5630 = vmax.f32 %v5628, %v5542
        %v5631 = vmax.f32 %v5629, %v5548
        %v5632 = vmax.f32 %v5630, %v5554
        %v5633 = vmax.f32 %v5631, %v5560
        %v5634 = vmax.f32 %v5632, %v5566
        %v5635 = vmax.f32 %v5633, %v5572
        %v5636 = vmax.f32 %v5634, %v5578
        %v5637 = vmax.f32 %v5635, %v5584
        %v5638 = vmax.f32 %v5636, %v5590
        %v5639 = vmax.f32 %v5637, %v5596
        %v5640 = vmax.f32 %v5638, %v5602
        %v5641 = vmax.f32 %v5639, %v5608
        %v5642 = vmax.f32 %v5640, %v5641
        %v5643 = vrot.slane %v5642, 4
        %v5644 = vmax.f32 %v5642, %v5643
        %v5645 = vrot.slane %v5644, 2
        %v5646 = vmax.f32 %v5644, %v5645
        %v5647 = vrot.slane %v5646, 1
        %v5648 = vmax.f32 %v5646, %v5647
        %v5649 = vmax.f32 %v5424, %v5436
        %v5650 = vmax.f32 %v5430, %v5442
        %v5651 = vmax.f32 %v5649, %v5448
        %v5652 = vmax.f32 %v5650, %v5454
        %v5653 = vmax.f32 %v5651, %v5460
        %v5654 = vmax.f32 %v5652, %v5466
        %v5655 = vmax.f32 %v5653, %v5472
        %v5656 = vmax.f32 %v5654, %v5478
        %v5657 = vmax.f32 %v5655, %v5484
        %v5658 = vmax.f32 %v5656, %v5490
        %v5659 = vmax.f32 %v5657, %v5496
        %v5660 = vmax.f32 %v5658, %v5502
        %v5661 = vmax.f32 %v5659, %v5508
        %v5662 = vmax.f32 %v5660, %v5514
        %v5663 = vmax.f32 %v5661, %v5520
        %v5664 = vmax.f32 %v5662, %v5526
        %v5665 = vmax.f32 %v5663, %v5532
        %v5666 = vmax.f32 %v5664, %v5538
        %v5667 = vmax.f32 %v5665, %v5544
        %v5668 = vmax.f32 %v5666, %v5550
        %v5669 = vmax.f32 %v5667, %v5556
        %v5670 = vmax.f32 %v5668, %v5562
        %v5671 = vmax.f32 %v5669, %v5568
        %v5672 = vmax.f32 %v5670, %v5574
        %v5673 = vmax.f32 %v5671, %v5580
        %v5674 = vmax.f32 %v5672, %v5586
        %v5675 = vmax.f32 %v5673, %v5592
        %v5676 = vmax.f32 %v5674, %v5598
        %v5677 = vmax.f32 %v5675, %v5604
        %v5678 = vmax.f32 %v5676, %v5610
        %v5679 = vmax.f32 %v5677, %v5678
        %v5680 = vrot.slane %v5679, 4
        %v5681 = vmax.f32 %v5679, %v5680
        %v5682 = vrot.slane %v5681, 2
        %v5683 = vmax.f32 %v5681, %v5682
        %v5684 = vrot.slane %v5683, 1
        %v5685 = vmax.f32 %v5683, %v5684
        %v5686 = vsub.f32 %v5422, %v5648
        %v5687 = vsub.f32 %v5424, %v5685
        %v5688 = vsub.f32 %v5428, %v5648
        %v5689 = vsub.f32 %v5430, %v5685
        %v5690 = vsub.f32 %v5434, %v5648
        %v5691 = vsub.f32 %v5436, %v5685
        %v5692 = vsub.f32 %v5440, %v5648
        %v5693 = vsub.f32 %v5442, %v5685
        %v5694 = vsub.f32 %v5446, %v5648
        %v5695 = vsub.f32 %v5448, %v5685
        %v5696 = vsub.f32 %v5452, %v5648
        %v5697 = vsub.f32 %v5454, %v5685
        %v5698 = vsub.f32 %v5458, %v5648
        %v5699 = vsub.f32 %v5460, %v5685
        %v5700 = vsub.f32 %v5464, %v5648
        %v5701 = vsub.f32 %v5466, %v5685
        %v5702 = vsub.f32 %v5470, %v5648
        %v5703 = vsub.f32 %v5472, %v5685
        %v5704 = vsub.f32 %v5476, %v5648
        %v5705 = vsub.f32 %v5478, %v5685
        %v5706 = vsub.f32 %v5482, %v5648
        %v5707 = vsub.f32 %v5484, %v5685
        %v5708 = vsub.f32 %v5488, %v5648
        %v5709 = vsub.f32 %v5490, %v5685
        %v5710 = vsub.f32 %v5494, %v5648
        %v5711 = vsub.f32 %v5496, %v5685
        %v5712 = vsub.f32 %v5500, %v5648
        %v5713 = vsub.f32 %v5502, %v5685
        %v5714 = vsub.f32 %v5506, %v5648
        %v5715 = vsub.f32 %v5508, %v5685
        %v5716 = vsub.f32 %v5512, %v5648
        %v5717 = vsub.f32 %v5514, %v5685
        %v5718 = vsub.f32 %v5518, %v5648
        %v5719 = vsub.f32 %v5520, %v5685
        %v5720 = vsub.f32 %v5524, %v5648
        %v5721 = vsub.f32 %v5526, %v5685
        %v5722 = vsub.f32 %v5530, %v5648
        %v5723 = vsub.f32 %v5532, %v5685
        %v5724 = vsub.f32 %v5536, %v5648
        %v5725 = vsub.f32 %v5538, %v5685
        %v5726 = vsub.f32 %v5542, %v5648
        %v5727 = vsub.f32 %v5544, %v5685
        %v5728 = vsub.f32 %v5548, %v5648
        %v5729 = vsub.f32 %v5550, %v5685
        %v5730 = vsub.f32 %v5554, %v5648
        %v5731 = vsub.f32 %v5556, %v5685
        %v5732 = vsub.f32 %v5560, %v5648
        %v5733 = vsub.f32 %v5562, %v5685
        %v5734 = vsub.f32 %v5566, %v5648
        %v5735 = vsub.f32 %v5568, %v5685
        %v5736 = vsub.f32 %v5572, %v5648
        %v5737 = vsub.f32 %v5574, %v5685
        %v5738 = vsub.f32 %v5578, %v5648
        %v5739 = vsub.f32 %v5580, %v5685
        %v5740 = vsub.f32 %v5584, %v5648
        %v5741 = vsub.f32 %v5586, %v5685
        %v5742 = vsub.f32 %v5590, %v5648
        %v5743 = vsub.f32 %v5592, %v5685
        %v5744 = vsub.f32 %v5596, %v5648
        %v5745 = vsub.f32 %v5598, %v5685
        %v5746 = vsub.f32 %v5602, %v5648
        %v5747 = vsub.f32 %v5604, %v5685
        %v5748 = vsub.f32 %v5608, %v5648
        %v5749 = vsub.f32 %v5610, %v5685
        %v5750 = vmul.f32 %v5686, 1.442695
        %v5751 = vpow.pop %v5750
        %v5752 = vmul.f32 %v5687, 1.442695
        %v5753 = vpow.pop %v5752
        %v5754 = vmul.f32 %v5688, 1.442695
        %v5755 = vpow.pop %v5754
        %v5756 = vmul.f32 %v5689, 1.442695
        %v5757 = vpow.pop %v5756
        %v5758 = vmul.f32 %v5690, 1.442695
        %v5759 = vpow.pop %v5758
        %v5760 = vmul.f32 %v5691, 1.442695
        %v5761 = vpow.pop %v5760
        %v5762 = vmul.f32 %v5692, 1.442695
        %v5763 = vpow.pop %v5762
        %v5764 = vmul.f32 %v5693, 1.442695
        %v5765 = vpow.pop %v5764
        %v5766 = vmul.f32 %v5694, 1.442695
        %v5767 = vpow.pop %v5766
        %v5768 = vmul.f32 %v5695, 1.442695
        %v5769 = vpow.pop %v5768
        %v5770 = vmul.f32 %v5696, 1.442695
        %v5771 = vpow.pop %v5770
        %v5772 = vmul.f32 %v5697, 1.442695
        %v5773 = vpow.pop %v5772
        %v5774 = vmul.f32 %v5698, 1.442695
        %v5775 = vpow.pop %v5774
        %v5776 = vmul.f32 %v5699, 1.442695
        %v5777 = vpow.pop %v5776
        %v5778 = vmul.f32 %v5700, 1.442695
        %v5779 = vpow.pop %v5778
        %v5780 = vmul.f32 %v5701, 1.442695
        %v5781 = vpow.pop %v5780
        %v5782 = vmul.f32 %v5702, 1.442695
        %v5783 = vpow.pop %v5782
        %v5784 = vmul.f32 %v5703, 1.442695
        %v5785 = vpow.pop %v5784
        %v5786 = vmul.f32 %v5704, 1.442695
        %v5787 = vpow.pop %v5786
        %v5788 = vmul.f32 %v5705, 1.442695
        %v5789 = vpow.pop %v5788
        %v5790 = vmul.f32 %v5706, 1.442695
        %v5791 = vpow.pop %v5790
        %v5792 = vmul.f32 %v5707, 1.442695
        %v5793 = vpow.pop %v5792
        %v5794 = vmul.f32 %v5708, 1.442695
        %v5795 = vpow.pop %v5794
        %v5796 = vmul.f32 %v5709, 1.442695
        %v5797 = vpow.pop %v5796
        %v5798 = vmul.f32 %v5710, 1.442695
        %v5799 = vpow.pop %v5798
        %v5800 = vmul.f32 %v5711, 1.442695
        %v5801 = vpow.pop %v5800
        %v5802 = vmul.f32 %v5712, 1.442695
        %v5803 = vpow.pop %v5802
        %v5804 = vmul.f32 %v5713, 1.442695
        %v5805 = vpow.pop %v5804
        %v5806 = vmul.f32 %v5714, 1.442695
        %v5807 = vpow.pop %v5806
        %v5808 = vmul.f32 %v5715, 1.442695
        %v5809 = vpow.pop %v5808
        %v5810 = vmul.f32 %v5716, 1.442695
        %v5811 = vpow.pop %v5810
        %v5812 = vmul.f32 %v5717, 1.442695
        %v5813 = vpow.pop %v5812
        %v5814 = vmul.f32 %v5718, 1.442695
        %v5815 = vpow.pop %v5814
        %v5816 = vmul.f32 %v5719, 1.442695
        %v5817 = vpow.pop %v5816
        %v5818 = vmul.f32 %v5720, 1.442695
        %v5819 = vpow.pop %v5818
        %v5820 = vmul.f32 %v5721, 1.442695
        %v5821 = vpow.pop %v5820
        %v5822 = vmul.f32 %v5722, 1.442695
        %v5823 = vpow.pop %v5822
        %v5824 = vmul.f32 %v5723, 1.442695
        %v5825 = vpow.pop %v5824
        %v5826 = vmul.f32 %v5724, 1.442695
        %v5827 = vpow.pop %v5826
        %v5828 = vmul.f32 %v5725, 1.442695
        %v5829 = vpow.pop %v5828
        %v5830 = vmul.f32 %v5726, 1.442695
        %v5831 = vpow.pop %v5830
        %v5832 = vmul.f32 %v5727, 1.442695
        %v5833 = vpow.pop %v5832
        %v5834 = vmul.f32 %v5728, 1.442695
        %v5835 = vpow.pop %v5834
        %v5836 = vmul.f32 %v5729, 1.442695
        %v5837 = vpow.pop %v5836
        %v5838 = vmul.f32 %v5730, 1.442695
        %v5839 = vpow.pop %v5838
        %v5840 = vmul.f32 %v5731, 1.442695
        %v5841 = vpow.pop %v5840
        %v5842 = vmul.f32 %v5732, 1.442695
        %v5843 = vpow.pop %v5842
        %v5844 = vmul.f32 %v5733, 1.442695
        %v5845 = vpow.pop %v5844
        %v5846 = vmul.f32 %v5734, 1.442695
        %v5847 = vpow.pop %v5846
        %v5848 = vmul.f32 %v5735, 1.442695
        %v5849 = vpow.pop %v5848
        %v5850 = vmul.f32 %v5736, 1.442695
        %v5851 = vpow.pop %v5850
        %v5852 = vmul.f32 %v5737, 1.442695
        %v5853 = vpow.pop %v5852
        %v5854 = vmul.f32 %v5738, 1.442695
        %v5855 = vpow.pop %v5854
        %v5856 = vmul.f32 %v5739, 1.442695
        %v5857 = vpow.pop %v5856
        %v5858 = vmul.f32 %v5740, 1.442695
        %v5859 = vpow.pop %v5858
        %v5860 = vmul.f32 %v5741, 1.442695
        %v5861 = vpow.pop %v5860
        %v5862 = vmul.f32 %v5742, 1.442695
        %v5863 = vpow.pop %v5862
        %v5864 = vmul.f32 %v5743, 1.442695
        %v5865 = vpow.pop %v5864
        %v5866 = vmul.f32 %v5744, 1.442695
        %v5867 = vpow.pop %v5866
        %v5868 = vmul.f32 %v5745, 1.442695
        %v5869 = vpow.pop %v5868
        %v5870 = vmul.f32 %v5746, 1.442695
        %v5871 = vpow.pop %v5870
        %v5872 = vmul.f32 %v5747, 1.442695
        %v5873 = vpow.pop %v5872
        %v5874 = vmul.f32 %v5748, 1.442695
        %v5875 = vpow.pop %v5874
        %v5876 = vmul.f32 %v5749, 1.442695
        %v5877 = vpow.pop %v5876
        %v5878 = vadd.f32 %v5751, %v5755
        %v5879 = vadd.f32 %v5878, %v5759
        %v5880 = vadd.f32 %v5879, %v5763
        %v5881 = vadd.f32 %v5880, %v5767
        %v5882 = vadd.f32 %v5881, %v5771
        %v5883 = vadd.f32 %v5882, %v5775
        %v5884 = vadd.f32 %v5883, %v5779
        %v5885 = vadd.f32 %v5884, %v5783
        %v5886 = vadd.f32 %v5885, %v5787
        %v5887 = vadd.f32 %v5886, %v5791
        %v5888 = vadd.f32 %v5887, %v5795
        %v5889 = vadd.f32 %v5888, %v5799
        %v5890 = vadd.f32 %v5889, %v5803
        %v5891 = vadd.f32 %v5890, %v5807
        %v5892 = vadd.f32 %v5891, %v5811
        %v5893 = vadd.f32 %v5892, %v5815
        %v5894 = vadd.f32 %v5893, %v5819
        %v5895 = vadd.f32 %v5894, %v5823
        %v5896 = vadd.f32 %v5895, %v5827
        %v5897 = vadd.f32 %v5896, %v5831
        %v5898 = vadd.f32 %v5897, %v5835
        %v5899 = vadd.f32 %v5898, %v5839
        %v5900 = vadd.f32 %v5899, %v5843
        %v5901 = vadd.f32 %v5900, %v5847
        %v5902 = vadd.f32 %v5901, %v5851
        %v5903 = vadd.f32 %v5902, %v5855
        %v5904 = vadd.f32 %v5903, %v5859
        %v5905 = vadd.f32 %v5904, %v5863
        %v5906 = vadd.f32 %v5905, %v5867
        %v5907 = vadd.f32 %v5906, %v5871
        %v5908 = vadd.f32 %v5907, %v5875
        %v5909 = vrot.slane %v5908, 4
        %v5910 = vadd.f32 %v5908, %v5909
        %v5911 = vrot.slane %v5910, 2
        %v5912 = vadd.f32 %v5910, %v5911
        %v5913 = vrot.slane %v5912, 1
        %v5914 = vadd.f32 %v5912, %v5913
        %v5915 = vadd.f32 %v5753, %v5757
        %v5916 = vadd.f32 %v5915, %v5761
        %v5917 = vadd.f32 %v5916, %v5765
        %v5918 = vadd.f32 %v5917, %v5769
        %v5919 = vadd.f32 %v5918, %v5773
        %v5920 = vadd.f32 %v5919, %v5777
        %v5921 = vadd.f32 %v5920, %v5781
        %v5922 = vadd.f32 %v5921, %v5785
        %v5923 = vadd.f32 %v5922, %v5789
        %v5924 = vadd.f32 %v5923, %v5793
        %v5925 = vadd.f32 %v5924, %v5797
        %v5926 = vadd.f32 %v5925, %v5801
        %v5927 = vadd.f32 %v5926, %v5805
        %v5928 = vadd.f32 %v5927, %v5809
        %v5929 = vadd.f32 %v5928, %v5813
        %v5930 = vadd.f32 %v5929, %v5817
        %v5931 = vadd.f32 %v5930, %v5821
        %v5932 = vadd.f32 %v5931, %v5825
        %v5933 = vadd.f32 %v5932, %v5829
        %v5934 = vadd.f32 %v5933, %v5833
        %v5935 = vadd.f32 %v5934, %v5837
        %v5936 = vadd.f32 %v5935, %v5841
        %v5937 = vadd.f32 %v5936, %v5845
        %v5938 = vadd.f32 %v5937, %v5849
        %v5939 = vadd.f32 %v5938, %v5853
        %v5940 = vadd.f32 %v5939, %v5857
        %v5941 = vadd.f32 %v5940, %v5861
        %v5942 = vadd.f32 %v5941, %v5865
        %v5943 = vadd.f32 %v5942, %v5869
        %v5944 = vadd.f32 %v5943, %v5873
        %v5945 = vadd.f32 %v5944, %v5877
        %v5946 = vrot.slane %v5945, 4
        %v5947 = vadd.f32 %v5945, %v5946
        %v5948 = vrot.slane %v5947, 2
        %v5949 = vadd.f32 %v5947, %v5948
        %v5950 = vrot.slane %v5949, 1
        %v5951 = vadd.f32 %v5949, %v5950
        %s5952 = scalar_lea.vmem %s249, 96
        %v5953 = vld [vmem:[%s5952] sm:$0xff]
        %v5954 = vld [vmem:[%s5952 + $0x8] sm:$0xff]
        %5955 = vmatprep.subr.mxu0 %v5753
        %5956 = vmatpush1.msra.mxu0 %v5751
        %5957 = vmatprep.subr.mxu0 %v5757
        %5958 = vmatpush1.msra.mxu0 %v5755
        %5959 = vmatprep.subr.mxu0 %v5761
        %5960 = vmatpush1.msra.mxu0 %v5759
        %5961 = vmatprep.subr.mxu0 %v5765
        %5962 = vmatpush1.msra.mxu0 %v5763
        %5963 = vmatprep.subr.mxu0 %v5769
        %5964 = vmatpush1.msra.mxu0 %v5767
        %5965 = vmatprep.subr.mxu0 %v5773
        %5966 = vmatpush1.msra.mxu0 %v5771
        %5967 = vmatprep.subr.mxu0 %v5777
        %5968 = vmatpush1.msra.mxu0 %v5775
        %5969 = vmatprep.subr.mxu0 %v5781
        %5970 = vmatpush1.msra.mxu0 %v5779
        %5971 = vmatprep.subr.mxu0 %v5785
        %5972 = vmatpush1.msra.mxu0 %v5783
        %5973 = vmatprep.subr.mxu0 %v5789
        %5974 = vmatpush1.msra.mxu0 %v5787
        %5975 = vmatprep.subr.mxu0 %v5793
        %5976 = vmatpush1.msra.mxu0 %v5791
        %5977 = vmatprep.subr.mxu0 %v5797
        %5978 = vmatpush1.msra.mxu0 %v5795
        %5979 = vmatprep.subr.mxu0 %v5801
        %5980 = vmatpush1.msra.mxu0 %v5799
        %5981 = vmatprep.subr.mxu0 %v5805
        %5982 = vmatpush1.msra.mxu0 %v5803
        %5983 = vmatprep.subr.mxu0 %v5809
        %5984 = vmatpush1.msra.mxu0 %v5807
        %5985 = vmatprep.subr.mxu0 %v5813
        %5986 = vmatpush1.msra.mxu0 %v5811
        %5987 = vmatprep.subr.mxu0 %v5817
        %5988 = vmatpush1.msra.mxu0 %v5815
        %5989 = vmatprep.subr.mxu0 %v5821
        %5990 = vmatpush1.msra.mxu0 %v5819
        %5991 = vmatprep.subr.mxu0 %v5825
        %5992 = vmatpush1.msra.mxu0 %v5823
        %5993 = vmatprep.subr.mxu0 %v5829
        %5994 = vmatpush1.msra.mxu0 %v5827
        %5995 = vmatprep.subr.mxu0 %v5833
        %5996 = vmatpush1.msra.mxu0 %v5831
        %5997 = vmatprep.subr.mxu0 %v5837
        %5998 = vmatpush1.msra.mxu0 %v5835
        %5999 = vmatprep.subr.mxu0 %v5841
        %6000 = vmatpush1.msra.mxu0 %v5839
        %6001 = vmatprep.subr.mxu0 %v5845
        %6002 = vmatpush1.msra.mxu0 %v5843
        %6003 = vmatprep.subr.mxu0 %v5849
        %6004 = vmatpush1.msra.mxu0 %v5847
        %6005 = vmatprep.subr.mxu0 %v5853
        %6006 = vmatpush1.msra.mxu0 %v5851
        %6007 = vmatprep.subr.mxu0 %v5857
        %6008 = vmatpush1.msra.mxu0 %v5855
        %6009 = vmatprep.subr.mxu0 %v5861
        %6010 = vmatpush1.msra.mxu0 %v5859
        %6011 = vmatprep.subr.mxu0 %v5865
        %6012 = vmatpush1.msra.mxu0 %v5863
        %6013 = vmatprep.subr.mxu0 %v5869
        %6014 = vmatpush1.msra.mxu0 %v5867
        %6015 = vmatprep.subr.mxu0 %v5873
        %6016 = vmatpush1.msra.mxu0 %v5871
        %6017 = vmatprep.subr.mxu0 %v5877
        %6018 = vmatpush1.msra.mxu0 %v5875
        %6019 = vmatprep.mubr.f32.mxu0 %v5954
        %6020 = vmatmul.mubr.f32.gmra.mrb[0].mxu0 %v5953
        %v6021 = vpop.f32.mrb[0].mxu0
        %v6022 = vadd.f32 0.0, %v6021
        %v6023 = vpop.f32.mrb[0].mxu0
        %v6024 = vadd.f32 0.0, %v6023
        %6025 = vdwg.mxu0
        %v6026 = vrcp.pop %v5914
        %v6027 = vrcp.pop %v5951
        %v6028 = vmul.f32 %v5914, %v6026
        %v6029 = vmul.f32 %v5951, %v6027
        %v6030 = vsub.f32 2.0, %v6028
        %v6031 = vsub.f32 2.0, %v6029
        %v6032 = vmul.f32 %v6026, %v6030
        %v6033 = vmul.f32 %v6027, %v6031
        %v6034 = vmul.f32 %v6022, %v6032
        %v6035 = vmul.f32 %v6024, %v6033
        %s6036 = scalar_lea.vmem %s229, 96 [#allocation2]
        %6037 = vst [vmem:[%s6036] sm:$0xff] %v6034
        %6038 = vst [vmem:[%s6036 + $0x8] sm:$0xff] %v6035
        %s6039 = scalar_lea.vmem %s235, 112
        %v6040 = vld [vmem:[%s6039] sm:$0xff]
        %v6041 = vld [vmem:[%s6039 + $0x8] sm:$0xff]
        %v6042 = vmul.f32 %v6040, 0.35355338
        %v6043 = vmul.f32 %v6041, 0.35355338
        %s6044 = scalar_lea.vmem %s242, 1792
        %v6045 = vld [vmem:[%s6044] sm:$0xff]
        %v6046 = vld [vmem:[%s6044 + $0x8] sm:$0xff]
        %v6047 = vld [vmem:[%s6044 + $0x10] sm:$0xff]
        %v6048 = vld [vmem:[%s6044 + $0x18] sm:$0xff]
        %v6049 = vld [vmem:[%s6044 + $0x20] sm:$0xff]
        %v6050 = vld [vmem:[%s6044 + $0x28] sm:$0xff]
        %v6051 = vld [vmem:[%s6044 + $0x30] sm:$0xff]
        %v6052 = vld [vmem:[%s6044 + $0x38] sm:$0xff]
        %v6053 = vld [vmem:[%s6044 + $0x40] sm:$0xff]
        %v6054 = vld [vmem:[%s6044 + $0x48] sm:$0xff]
        %v6055 = vld [vmem:[%s6044 + $0x50] sm:$0xff]
        %v6056 = vld [vmem:[%s6044 + $0x58] sm:$0xff]
        %v6057 = vld [vmem:[%s6044 + $0x60] sm:$0xff]
        %v6058 = vld [vmem:[%s6044 + $0x68] sm:$0xff]
        %v6059 = vld [vmem:[%s6044 + $0x70] sm:$0xff]
        %v6060 = vld [vmem:[%s6044 + $0x78] sm:$0xff]
        %v6061 = vld [vmem:[%s6044 + $0x80] sm:$0xff]
        %v6062 = vld [vmem:[%s6044 + $0x88] sm:$0xff]
        %v6063 = vld [vmem:[%s6044 + $0x90] sm:$0xff]
        %v6064 = vld [vmem:[%s6044 + $0x98] sm:$0xff]
        %v6065 = vld [vmem:[%s6044 + $0xa0] sm:$0xff]
        %v6066 = vld [vmem:[%s6044 + $0xa8] sm:$0xff]
        %v6067 = vld [vmem:[%s6044 + $0xb0] sm:$0xff]
        %v6068 = vld [vmem:[%s6044 + $0xb8] sm:$0xff]
        %v6069 = vld [vmem:[%s6044 + $0xc0] sm:$0xff]
        %v6070 = vld [vmem:[%s6044 + $0xc8] sm:$0xff]
        %v6071 = vld [vmem:[%s6044 + $0xd0] sm:$0xff]
        %v6072 = vld [vmem:[%s6044 + $0xd8] sm:$0xff]
        %v6073 = vld [vmem:[%s6044 + $0xe0] sm:$0xff]
        %v6074 = vld [vmem:[%s6044 + $0xe8] sm:$0xff]
        %v6075 = vld [vmem:[%s6044 + $0xf0] sm:$0xff]
        %v6076 = vld [vmem:[%s6044 + $0xf8] sm:$0xff]
        %v6078 = vsel %vm352, %v6045, 0
        %v6081 = vsel %vm352, %v6046, 0
        %v6084 = vsel %vm352, %v6047, 0
        %v6087 = vsel %vm352, %v6048, 0
        %v6090 = vsel %vm352, %v6049, 0
        %v6093 = vsel %vm352, %v6050, 0
        %v6096 = vsel %vm352, %v6051, 0
        %v6099 = vsel %vm352, %v6052, 0
        %v6102 = vsel %vm352, %v6053, 0
        %v6105 = vsel %vm352, %v6054, 0
        %v6108 = vsel %vm352, %v6055, 0
        %v6111 = vsel %vm352, %v6056, 0
        %v6114 = vsel %vm352, %v6057, 0
        %v6117 = vsel %vm352, %v6058, 0
        %v6120 = vsel %vm352, %v6059, 0
        %v6123 = vsel %vm352, %v6060, 0
        %v6126 = vsel %vm352, %v6061, 0
        %v6129 = vsel %vm352, %v6062, 0
        %v6132 = vsel %vm352, %v6063, 0
        %v6135 = vsel %vm352, %v6064, 0
        %v6138 = vsel %vm352, %v6065, 0
        %v6141 = vsel %vm352, %v6066, 0
        %v6144 = vsel %vm352, %v6067, 0
        %v6147 = vsel %vm352, %v6068, 0
        %v6150 = vsel %vm352, %v6069, 0
        %v6153 = vsel %vm352, %v6070, 0
        %v6156 = vsel %vm352, %v6071, 0
        %v6159 = vsel %vm352, %v6072, 0
        %v6162 = vsel %vm352, %v6073, 0
        %v6165 = vsel %vm352, %v6074, 0
        %v6168 = vsel %vm352, %v6075, 0
        %v6171 = vsel %vm352, %v6076, 0
        %6173 = vmatprep.subr.mxu0 %v6043
        %6174 = vmatpush1.msra.mxu0 %v6042
        %6175 = vmatprep.subr.mxu0 0.0
        %6176 = vmatpush1.msra.mxu0 0.0
        %6177 = vmatprep.subr.mxu0 0.0
        %6178 = vmatpush1.msra.mxu0 0.0
        %6179 = vmatprep.subr.mxu0 0.0
        %6180 = vmatpush1.msra.mxu0 0.0
        %6181 = vmatprep.subr.mxu0 0.0
        %6182 = vmatpush1.msra.mxu0 0.0
        %6183 = vmatprep.subr.mxu0 0.0
        %6184 = vmatpush1.msra.mxu0 0.0
        %6185 = vmatprep.subr.mxu0 0.0
        %6186 = vmatpush1.msra.mxu0 0.0
        %6187 = vmatprep.subr.mxu0 0.0
        %6188 = vmatpush1.msra.mxu0 0.0
        %6189 = vmatprep.subr.mxu0 0.0
        %6190 = vmatpush1.msra.mxu0 0.0
        %6191 = vmatprep.subr.mxu0 0.0
        %6192 = vmatpush1.msra.mxu0 0.0
        %6193 = vmatprep.subr.mxu0 0.0
        %6194 = vmatpush1.msra.mxu0 0.0
        %6195 = vmatprep.subr.mxu0 0.0
        %6196 = vmatpush1.msra.mxu0 0.0
        %6197 = vmatprep.subr.mxu0 0.0
        %6198 = vmatpush1.msra.mxu0 0.0
        %6199 = vmatprep.subr.mxu0 0.0
        %6200 = vmatpush1.msra.mxu0 0.0
        %6201 = vmatprep.subr.mxu0 0.0
        %6202 = vmatpush1.msra.mxu0 0.0
        %6203 = vmatprep.subr.mxu0 0.0
        %6204 = vmatpush1.msra.mxu0 0.0
        %6205 = vmatprep.subr.mxu0 0.0
        %6206 = vmatpush1.msra.mxu0 0.0
        %6207 = vmatprep.subr.mxu0 0.0
        %6208 = vmatpush1.msra.mxu0 0.0
        %6209 = vmatprep.subr.mxu0 0.0
        %6210 = vmatpush1.msra.mxu0 0.0
        %6211 = vmatprep.subr.mxu0 0.0
        %6212 = vmatpush1.msra.mxu0 0.0
        %6213 = vmatprep.subr.mxu0 0.0
        %6214 = vmatpush1.msra.mxu0 0.0
        %6215 = vmatprep.subr.mxu0 0.0
        %6216 = vmatpush1.msra.mxu0 0.0
        %6217 = vmatprep.subr.mxu0 0.0
        %6218 = vmatpush1.msra.mxu0 0.0
        %6219 = vmatprep.subr.mxu0 0.0
        %6220 = vmatpush1.msra.mxu0 0.0
        %6221 = vmatprep.subr.mxu0 0.0
        %6222 = vmatpush1.msra.mxu0 0.0
        %6223 = vmatprep.subr.mxu0 0.0
        %6224 = vmatpush1.msra.mxu0 0.0
        %6225 = vmatprep.subr.mxu0 0.0
        %6226 = vmatpush1.msra.mxu0 0.0
        %6227 = vmatprep.subr.mxu0 0.0
        %6228 = vmatpush1.msra.mxu0 0.0
        %6229 = vmatprep.subr.mxu0 0.0
        %6230 = vmatpush1.msra.mxu0 0.0
        %6231 = vmatprep.subr.mxu0 0.0
        %6232 = vmatpush1.msra.mxu0 0.0
        %6233 = vmatprep.subr.mxu0 0.0
        %6234 = vmatpush1.msra.mxu0 0.0
        %6235 = vmatprep.subr.mxu0 0.0
        %6236 = vmatpush1.msra.mxu0 0.0
        %6237 = vmatprep.mubr.f32.mxu0 0.0
        %6238 = vmatmul.mubr.f32.gmra.mrb[0].mxu0 %v6078
        %v6239 = vpop.f32.mrb[0].mxu0
        %v6240 = vadd.f32 %v252, %v6239
        %v6241 = vpop.f32.mrb[0].mxu0
        %v6242 = vadd.f32 %v253, %v6241
        %6243 = vmatprep.mubr.f32.mxu0 0.0
        %6244 = vmatmul.mubr.f32.gmra.mrb[0].mxu0 %v6081
        %v6245 = vpop.f32.mrb[0].mxu0
        %v6246 = vadd.f32 %v254, %v6245
        %v6247 = vpop.f32.mrb[0].mxu0
        %v6248 = vadd.f32 %v255, %v6247
        %6249 = vmatprep.mubr.f32.mxu0 0.0
        %6250 = vmatmul.mubr.f32.gmra.mrb[0].mxu0 %v6084
        %v6251 = vpop.f32.mrb[0].mxu0
        %v6252 = vadd.f32 %v256, %v6251
        %v6253 = vpop.f32.mrb[0].mxu0
        %v6254 = vadd.f32 %v257, %v6253
        %6255 = vmatprep.mubr.f32.mxu0 0.0
        %6256 = vmatmul.mubr.f32.gmra.mrb[0].mxu0 %v6087
        %v6257 = vpop.f32.mrb[0].mxu0
        %v6258 = vadd.f32 %v258, %v6257
        %v6259 = vpop.f32.mrb[0].mxu0
        %v6260 = vadd.f32 %v259, %v6259
        %6261 = vmatprep.mubr.f32.mxu0 0.0
        %6262 = vmatmul.mubr.f32.gmra.mrb[0].mxu0 %v6090
        %v6263 = vpop.f32.mrb[0].mxu0
        %v6264 = vadd.f32 %v260, %v6263
        %v6265 = vpop.f32.mrb[0].mxu0
        %v6266 = vadd.f32 %v261, %v6265
        %6267 = vmatprep.mubr.f32.mxu0 0.0
        %6268 = vmatmul.mubr.f32.gmra.mrb[0].mxu0 %v6093
        %v6269 = vpop.f32.mrb[0].mxu0
        %v6270 = vadd.f32 %v262, %v6269
        %v6271 = vpop.f32.mrb[0].mxu0
        %v6272 = vadd.f32 %v263, %v6271
        %6273 = vmatprep.mubr.f32.mxu0 0.0
        %6274 = vmatmul.mubr.f32.gmra.mrb[0].mxu0 %v6096
        %v6275 = vpop.f32.mrb[0].mxu0
        %v6276 = vadd.f32 %v264, %v6275
        %v6277 = vpop.f32.mrb[0].mxu0
        %v6278 = vadd.f32 %v265, %v6277
        %6279 = vmatprep.mubr.f32.mxu0 0.0
        %6280 = vmatmul.mubr.f32.gmra.mrb[0].mxu0 %v6099
        %v6281 = vpop.f32.mrb[0].mxu0
        %v6282 = vadd.f32 %v266, %v6281
        %v6283 = vpop.f32.mrb[0].mxu0
        %v6284 = vadd.f32 %v267, %v6283
        %6285 = vmatprep.mubr.f32.mxu0 0.0
        %6286 = vmatmul.mubr.f32.gmra.mrb[0].mxu0 %v6102
        %v6287 = vpop.f32.mrb[0].mxu0
        %v6288 = vadd.f32 %v268, %v6287
        %v6289 = vpop.f32.mrb[0].mxu0
        %v6290 = vadd.f32 %v269, %v6289
        %6291 = vmatprep.mubr.f32.mxu0 0.0
        %6292 = vmatmul.mubr.f32.gmra.mrb[0].mxu0 %v6105
        %v6293 = vpop.f32.mrb[0].mxu0
        %v6294 = vadd.f32 %v270, %v6293
        %v6295 = vpop.f32.mrb[0].mxu0
        %v6296 = vadd.f32 %v271, %v6295
        %6297 = vmatprep.mubr.f32.mxu0 0.0
        %6298 = vmatmul.mubr.f32.gmra.mrb[0].mxu0 %v6108
        %v6299 = vpop.f32.mrb[0].mxu0
        %v6300 = vadd.f32 %v272, %v6299
        %v6301 = vpop.f32.mrb[0].mxu0
        %v6302 = vadd.f32 %v273, %v6301
        %6303 = vmatprep.mubr.f32.mxu0 0.0
        %6304 = vmatmul.mubr.f32.gmra.mrb[0].mxu0 %v6111
        %v6305 = vpop.f32.mrb[0].mxu0
        %v6306 = vadd.f32 %v274, %v6305
        %v6307 = vpop.f32.mrb[0].mxu0
        %v6308 = vadd.f32 %v275, %v6307
        %6309 = vmatprep.mubr.f32.mxu0 0.0
        %6310 = vmatmul.mubr.f32.gmra.mrb[0].mxu0 %v6114
        %v6311 = vpop.f32.mrb[0].mxu0
        %v6312 = vadd.f32 %v276, %v6311
        %v6313 = vpop.f32.mrb[0].mxu0
        %v6314 = vadd.f32 %v277, %v6313
        %6315 = vmatprep.mubr.f32.mxu0 0.0
        %6316 = vmatmul.mubr.f32.gmra.mrb[0].mxu0 %v6117
        %v6317 = vpop.f32.mrb[0].mxu0
        %v6318 = vadd.f32 %v278, %v6317
        %v6319 = vpop.f32.mrb[0].mxu0
        %v6320 = vadd.f32 %v279, %v6319
        %6321 = vmatprep.mubr.f32.mxu0 0.0
        %6322 = vmatmul.mubr.f32.gmra.mrb[0].mxu0 %v6120
        %v6323 = vpop.f32.mrb[0].mxu0
        %v6324 = vadd.f32 %v280, %v6323
        %v6325 = vpop.f32.mrb[0].mxu0
        %v6326 = vadd.f32 %v281, %v6325
        %6327 = vmatprep.mubr.f32.mxu0 0.0
        %6328 = vmatmul.mubr.f32.gmra.mrb[0].mxu0 %v6123
        %v6329 = vpop.f32.mrb[0].mxu0
        %v6330 = vadd.f32 %v282, %v6329
        %v6331 = vpop.f32.mrb[0].mxu0
        %v6332 = vadd.f32 %v283, %v6331
        %6333 = vmatprep.mubr.f32.mxu0 0.0
        %6334 = vmatmul.mubr.f32.gmra.mrb[0].mxu0 %v6126
        %v6335 = vpop.f32.mrb[0].mxu0
        %v6336 = vadd.f32 %v284, %v6335
        %v6337 = vpop.f32.mrb[0].mxu0
        %v6338 = vadd.f32 %v285, %v6337
        %6339 = vmatprep.mubr.f32.mxu0 0.0
        %6340 = vmatmul.mubr.f32.gmra.mrb[0].mxu0 %v6129
        %v6341 = vpop.f32.mrb[0].mxu0
        %v6342 = vadd.f32 %v286, %v6341
        %v6343 = vpop.f32.mrb[0].mxu0
        %v6344 = vadd.f32 %v287, %v6343
        %6345 = vmatprep.mubr.f32.mxu0 0.0
        %6346 = vmatmul.mubr.f32.gmra.mrb[0].mxu0 %v6132
        %v6347 = vpop.f32.mrb[0].mxu0
        %v6348 = vadd.f32 %v288, %v6347
        %v6349 = vpop.f32.mrb[0].mxu0
        %v6350 = vadd.f32 %v289, %v6349
        %6351 = vmatprep.mubr.f32.mxu0 0.0
        %6352 = vmatmul.mubr.f32.gmra.mrb[0].mxu0 %v6135
        %v6353 = vpop.f32.mrb[0].mxu0
        %v6354 = vadd.f32 %v290, %v6353
        %v6355 = vpop.f32.mrb[0].mxu0
        %v6356 = vadd.f32 %v291, %v6355
        %6357 = vmatprep.mubr.f32.mxu0 0.0
        %6358 = vmatmul.mubr.f32.gmra.mrb[0].mxu0 %v6138
        %v6359 = vpop.f32.mrb[0].mxu0
        %v6360 = vadd.f32 %v292, %v6359
        %v6361 = vpop.f32.mrb[0].mxu0
        %v6362 = vadd.f32 %v293, %v6361
        %6363 = vmatprep.mubr.f32.mxu0 0.0
        %6364 = vmatmul.mubr.f32.gmra.mrb[0].mxu0 %v6141
        %v6365 = vpop.f32.mrb[0].mxu0
        %v6366 = vadd.f32 %v294, %v6365
        %v6367 = vpop.f32.mrb[0].mxu0
        %v6368 = vadd.f32 %v295, %v6367
        %6369 = vmatprep.mubr.f32.mxu0 0.0
        %6370 = vmatmul.mubr.f32.gmra.mrb[0].mxu0 %v6144
        %v6371 = vpop.f32.mrb[0].mxu0
        %v6372 = vadd.f32 %v296, %v6371
        %v6373 = vpop.f32.mrb[0].mxu0
        %v6374 = vadd.f32 %v297, %v6373
        %6375 = vmatprep.mubr.f32.mxu0 0.0
        %6376 = vmatmul.mubr.f32.gmra.mrb[0].mxu0 %v6147
        %v6377 = vpop.f32.mrb[0].mxu0
        %v6378 = vadd.f32 %v298, %v6377
        %v6379 = vpop.f32.mrb[0].mxu0
        %v6380 = vadd.f32 %v299, %v6379
        %6381 = vmatprep.mubr.f32.mxu0 0.0
        %6382 = vmatmul.mubr.f32.gmra.mrb[0].mxu0 %v6150
        %v6383 = vpop.f32.mrb[0].mxu0
        %v6384 = vadd.f32 %v300, %v6383
        %v6385 = vpop.f32.mrb[0].mxu0
        %v6386 = vadd.f32 %v301, %v6385
        %6387 = vmatprep.mubr.f32.mxu0 0.0
        %6388 = vmatmul.mubr.f32.gmra.mrb[0].mxu0 %v6153
        %v6389 = vpop.f32.mrb[0].mxu0
        %v6390 = vadd.f32 %v302, %v6389
        %v6391 = vpop.f32.mrb[0].mxu0
        %v6392 = vadd.f32 %v303, %v6391
        %6393 = vmatprep.mubr.f32.mxu0 0.0
        %6394 = vmatmul.mubr.f32.gmra.mrb[0].mxu0 %v6156
        %v6395 = vpop.f32.mrb[0].mxu0
        %v6396 = vadd.f32 %v304, %v6395
        %v6397 = vpop.f32.mrb[0].mxu0
        %v6398 = vadd.f32 %v305, %v6397
        %6399 = vmatprep.mubr.f32.mxu0 0.0
        %6400 = vmatmul.mubr.f32.gmra.mrb[0].mxu0 %v6159
        %v6401 = vpop.f32.mrb[0].mxu0
        %v6402 = vadd.f32 %v306, %v6401
        %v6403 = vpop.f32.mrb[0].mxu0
        %v6404 = vadd.f32 %v307, %v6403
        %6405 = vmatprep.mubr.f32.mxu0 0.0
        %6406 = vmatmul.mubr.f32.gmra.mrb[0].mxu0 %v6162
        %v6407 = vpop.f32.mrb[0].mxu0
        %v6408 = vadd.f32 %v308, %v6407
        %v6409 = vpop.f32.mrb[0].mxu0
        %v6410 = vadd.f32 %v309, %v6409
        %6411 = vmatprep.mubr.f32.mxu0 0.0
        %6412 = vmatmul.mubr.f32.gmra.mrb[0].mxu0 %v6165
        %v6413 = vpop.f32.mrb[0].mxu0
        %v6414 = vadd.f32 %v310, %v6413
        %v6415 = vpop.f32.mrb[0].mxu0
        %v6416 = vadd.f32 %v311, %v6415
        %6417 = vmatprep.mubr.f32.mxu0 0.0
        %6418 = vmatmul.mubr.f32.gmra.mrb[0].mxu0 %v6168
        %v6419 = vpop.f32.mrb[0].mxu0
        %v6420 = vadd.f32 %v312, %v6419
        %v6421 = vpop.f32.mrb[0].mxu0
        %v6422 = vadd.f32 %v313, %v6421
        %6423 = vmatprep.mubr.f32.mxu0 0.0
        %6424 = vmatmul.mubr.f32.gmra.mrb[0].mxu0 %v6171
        %v6425 = vpop.f32.mrb[0].mxu0
        %v6426 = vadd.f32 %v314, %v6425
        %v6427 = vpop.f32.mrb[0].mxu0
        %v6428 = vadd.f32 %v315, %v6427
        %6429 = vdwg.mxu0
        %v6430 = vmax.f32 %v6240, %v6252
        %v6431 = vmax.f32 %v6246, %v6258
        %v6432 = vmax.f32 %v6430, %v6264
        %v6433 = vmax.f32 %v6431, %v6270
        %v6434 = vmax.f32 %v6432, %v6276
        %v6435 = vmax.f32 %v6433, %v6282
        %v6436 = vmax.f32 %v6434, %v6288
        %v6437 = vmax.f32 %v6435, %v6294
        %v6438 = vmax.f32 %v6436, %v6300
        %v6439 = vmax.f32 %v6437, %v6306
        %v6440 = vmax.f32 %v6438, %v6312
        %v6441 = vmax.f32 %v6439, %v6318
        %v6442 = vmax.f32 %v6440, %v6324
        %v6443 = vmax.f32 %v6441, %v6330
        %v6444 = vmax.f32 %v6442, %v6336
        %v6445 = vmax.f32 %v6443, %v6342
        %v6446 = vmax.f32 %v6444, %v6348
        %v6447 = vmax.f32 %v6445, %v6354
        %v6448 = vmax.f32 %v6446, %v6360
        %v6449 = vmax.f32 %v6447, %v6366
        %v6450 = vmax.f32 %v6448, %v6372
        %v6451 = vmax.f32 %v6449, %v6378
        %v6452 = vmax.f32 %v6450, %v6384
        %v6453 = vmax.f32 %v6451, %v6390
        %v6454 = vmax.f32 %v6452, %v6396
        %v6455 = vmax.f32 %v6453, %v6402
        %v6456 = vmax.f32 %v6454, %v6408
        %v6457 = vmax.f32 %v6455, %v6414
        %v6458 = vmax.f32 %v6456, %v6420
        %v6459 = vmax.f32 %v6457, %v6426
        %v6460 = vmax.f32 %v6458, %v6459
        %v6461 = vrot.slane %v6460, 4
        %v6462 = vmax.f32 %v6460, %v6461
        %v6463 = vrot.slane %v6462, 2
        %v6464 = vmax.f32 %v6462, %v6463
        %v6465 = vrot.slane %v6464, 1
        %v6466 = vmax.f32 %v6464, %v6465
        %v6467 = vmax.f32 %v6242, %v6254
        %v6468 = vmax.f32 %v6248, %v6260
        %v6469 = vmax.f32 %v6467, %v6266
        %v6470 = vmax.f32 %v6468, %v6272
        %v6471 = vmax.f32 %v6469, %v6278
        %v6472 = vmax.f32 %v6470, %v6284
        %v6473 = vmax.f32 %v6471, %v6290
        %v6474 = vmax.f32 %v6472, %v6296
        %v6475 = vmax.f32 %v6473, %v6302
        %v6476 = vmax.f32 %v6474, %v6308
        %v6477 = vmax.f32 %v6475, %v6314
        %v6478 = vmax.f32 %v6476, %v6320
        %v6479 = vmax.f32 %v6477, %v6326
        %v6480 = vmax.f32 %v6478, %v6332
        %v6481 = vmax.f32 %v6479, %v6338
        %v6482 = vmax.f32 %v6480, %v6344
        %v6483 = vmax.f32 %v6481, %v6350
        %v6484 = vmax.f32 %v6482, %v6356
        %v6485 = vmax.f32 %v6483, %v6362
        %v6486 = vmax.f32 %v6484, %v6368
        %v6487 = vmax.f32 %v6485, %v6374
        %v6488 = vmax.f32 %v6486, %v6380
        %v6489 = vmax.f32 %v6487, %v6386
        %v6490 = vmax.f32 %v6488, %v6392
        %v6491 = vmax.f32 %v6489, %v6398
        %v6492 = vmax.f32 %v6490, %v6404
        %v6493 = vmax.f32 %v6491, %v6410
        %v6494 = vmax.f32 %v6492, %v6416
        %v6495 = vmax.f32 %v6493, %v6422
        %v6496 = vmax.f32 %v6494, %v6428
        %v6497 = vmax.f32 %v6495, %v6496
        %v6498 = vrot.slane %v6497, 4
        %v6499 = vmax.f32 %v6497, %v6498
        %v6500 = vrot.slane %v6499, 2
        %v6501 = vmax.f32 %v6499, %v6500
        %v6502 = vrot.slane %v6501, 1
        %v6503 = vmax.f32 %v6501, %v6502
        %v6504 = vsub.f32 %v6240, %v6466
        %v6505 = vsub.f32 %v6242, %v6503
        %v6506 = vsub.f32 %v6246, %v6466
        %v6507 = vsub.f32 %v6248, %v6503
        %v6508 = vsub.f32 %v6252, %v6466
        %v6509 = vsub.f32 %v6254, %v6503
        %v6510 = vsub.f32 %v6258, %v6466
        %v6511 = vsub.f32 %v6260, %v6503
        %v6512 = vsub.f32 %v6264, %v6466
        %v6513 = vsub.f32 %v6266, %v6503
        %v6514 = vsub.f32 %v6270, %v6466
        %v6515 = vsub.f32 %v6272, %v6503
        %v6516 = vsub.f32 %v6276, %v6466
        %v6517 = vsub.f32 %v6278, %v6503
        %v6518 = vsub.f32 %v6282, %v6466
        %v6519 = vsub.f32 %v6284, %v6503
        %v6520 = vsub.f32 %v6288, %v6466
        %v6521 = vsub.f32 %v6290, %v6503
        %v6522 = vsub.f32 %v6294, %v6466
        %v6523 = vsub.f32 %v6296, %v6503
        %v6524 = vsub.f32 %v6300, %v6466
        %v6525 = vsub.f32 %v6302, %v6503
        %v6526 = vsub.f32 %v6306, %v6466
        %v6527 = vsub.f32 %v6308, %v6503
        %v6528 = vsub.f32 %v6312, %v6466
        %v6529 = vsub.f32 %v6314, %v6503
        %v6530 = vsub.f32 %v6318, %v6466
        %v6531 = vsub.f32 %v6320, %v6503
        %v6532 = vsub.f32 %v6324, %v6466
        %v6533 = vsub.f32 %v6326, %v6503
        %v6534 = vsub.f32 %v6330, %v6466
        %v6535 = vsub.f32 %v6332, %v6503
        %v6536 = vsub.f32 %v6336, %v6466
        %v6537 = vsub.f32 %v6338, %v6503
        %v6538 = vsub.f32 %v6342, %v6466
        %v6539 = vsub.f32 %v6344, %v6503
        %v6540 = vsub.f32 %v6348, %v6466
        %v6541 = vsub.f32 %v6350, %v6503
        %v6542 = vsub.f32 %v6354, %v6466
        %v6543 = vsub.f32 %v6356, %v6503
        %v6544 = vsub.f32 %v6360, %v6466
        %v6545 = vsub.f32 %v6362, %v6503
        %v6546 = vsub.f32 %v6366, %v6466
        %v6547 = vsub.f32 %v6368, %v6503
        %v6548 = vsub.f32 %v6372, %v6466
        %v6549 = vsub.f32 %v6374, %v6503
        %v6550 = vsub.f32 %v6378, %v6466
        %v6551 = vsub.f32 %v6380, %v6503
        %v6552 = vsub.f32 %v6384, %v6466
        %v6553 = vsub.f32 %v6386, %v6503
        %v6554 = vsub.f32 %v6390, %v6466
        %v6555 = vsub.f32 %v6392, %v6503
        %v6556 = vsub.f32 %v6396, %v6466
        %v6557 = vsub.f32 %v6398, %v6503
        %v6558 = vsub.f32 %v6402, %v6466
        %v6559 = vsub.f32 %v6404, %v6503
        %v6560 = vsub.f32 %v6408, %v6466
        %v6561 = vsub.f32 %v6410, %v6503
        %v6562 = vsub.f32 %v6414, %v6466
        %v6563 = vsub.f32 %v6416, %v6503
        %v6564 = vsub.f32 %v6420, %v6466
        %v6565 = vsub.f32 %v6422, %v6503
        %v6566 = vsub.f32 %v6426, %v6466
        %v6567 = vsub.f32 %v6428, %v6503
        %v6568 = vmul.f32 %v6504, 1.442695
        %v6569 = vpow.pop %v6568
        %v6570 = vmul.f32 %v6505, 1.442695
        %v6571 = vpow.pop %v6570
        %v6572 = vmul.f32 %v6506, 1.442695
        %v6573 = vpow.pop %v6572
        %v6574 = vmul.f32 %v6507, 1.442695
        %v6575 = vpow.pop %v6574
        %v6576 = vmul.f32 %v6508, 1.442695
        %v6577 = vpow.pop %v6576
        %v6578 = vmul.f32 %v6509, 1.442695
        %v6579 = vpow.pop %v6578
        %v6580 = vmul.f32 %v6510, 1.442695
        %v6581 = vpow.pop %v6580
        %v6582 = vmul.f32 %v6511, 1.442695
        %v6583 = vpow.pop %v6582
        %v6584 = vmul.f32 %v6512, 1.442695
        %v6585 = vpow.pop %v6584
        %v6586 = vmul.f32 %v6513, 1.442695
        %v6587 = vpow.pop %v6586
        %v6588 = vmul.f32 %v6514, 1.442695
        %v6589 = vpow.pop %v6588
        %v6590 = vmul.f32 %v6515, 1.442695
        %v6591 = vpow.pop %v6590
        %v6592 = vmul.f32 %v6516, 1.442695
        %v6593 = vpow.pop %v6592
        %v6594 = vmul.f32 %v6517, 1.442695
        %v6595 = vpow.pop %v6594
        %v6596 = vmul.f32 %v6518, 1.442695
        %v6597 = vpow.pop %v6596
        %v6598 = vmul.f32 %v6519, 1.442695
        %v6599 = vpow.pop %v6598
        %v6600 = vmul.f32 %v6520, 1.442695
        %v6601 = vpow.pop %v6600
        %v6602 = vmul.f32 %v6521, 1.442695
        %v6603 = vpow.pop %v6602
        %v6604 = vmul.f32 %v6522, 1.442695
        %v6605 = vpow.pop %v6604
        %v6606 = vmul.f32 %v6523, 1.442695
        %v6607 = vpow.pop %v6606
        %v6608 = vmul.f32 %v6524, 1.442695
        %v6609 = vpow.pop %v6608
        %v6610 = vmul.f32 %v6525, 1.442695
        %v6611 = vpow.pop %v6610
        %v6612 = vmul.f32 %v6526, 1.442695
        %v6613 = vpow.pop %v6612
        %v6614 = vmul.f32 %v6527, 1.442695
        %v6615 = vpow.pop %v6614
        %v6616 = vmul.f32 %v6528, 1.442695
        %v6617 = vpow.pop %v6616
        %v6618 = vmul.f32 %v6529, 1.442695
        %v6619 = vpow.pop %v6618
        %v6620 = vmul.f32 %v6530, 1.442695
        %v6621 = vpow.pop %v6620
        %v6622 = vmul.f32 %v6531, 1.442695
        %v6623 = vpow.pop %v6622
        %v6624 = vmul.f32 %v6532, 1.442695
        %v6625 = vpow.pop %v6624
        %v6626 = vmul.f32 %v6533, 1.442695
        %v6627 = vpow.pop %v6626
        %v6628 = vmul.f32 %v6534, 1.442695
        %v6629 = vpow.pop %v6628
        %v6630 = vmul.f32 %v6535, 1.442695
        %v6631 = vpow.pop %v6630
        %v6632 = vmul.f32 %v6536, 1.442695
        %v6633 = vpow.pop %v6632
        %v6634 = vmul.f32 %v6537, 1.442695
        %v6635 = vpow.pop %v6634
        %v6636 = vmul.f32 %v6538, 1.442695
        %v6637 = vpow.pop %v6636
        %v6638 = vmul.f32 %v6539, 1.442695
        %v6639 = vpow.pop %v6638
        %v6640 = vmul.f32 %v6540, 1.442695
        %v6641 = vpow.pop %v6640
        %v6642 = vmul.f32 %v6541, 1.442695
        %v6643 = vpow.pop %v6642
        %v6644 = vmul.f32 %v6542, 1.442695
        %v6645 = vpow.pop %v6644
        %v6646 = vmul.f32 %v6543, 1.442695
        %v6647 = vpow.pop %v6646
        %v6648 = vmul.f32 %v6544, 1.442695
        %v6649 = vpow.pop %v6648
        %v6650 = vmul.f32 %v6545, 1.442695
        %v6651 = vpow.pop %v6650
        %v6652 = vmul.f32 %v6546, 1.442695
        %v6653 = vpow.pop %v6652
        %v6654 = vmul.f32 %v6547, 1.442695
        %v6655 = vpow.pop %v6654
        %v6656 = vmul.f32 %v6548, 1.442695
        %v6657 = vpow.pop %v6656
        %v6658 = vmul.f32 %v6549, 1.442695
        %v6659 = vpow.pop %v6658
        %v6660 = vmul.f32 %v6550, 1.442695
        %v6661 = vpow.pop %v6660
        %v6662 = vmul.f32 %v6551, 1.442695
        %v6663 = vpow.pop %v6662
        %v6664 = vmul.f32 %v6552, 1.442695
        %v6665 = vpow.pop %v6664
        %v6666 = vmul.f32 %v6553, 1.442695
        %v6667 = vpow.pop %v6666
        %v6668 = vmul.f32 %v6554, 1.442695
        %v6669 = vpow.pop %v6668
        %v6670 = vmul.f32 %v6555, 1.442695
        %v6671 = vpow.pop %v6670
        %v6672 = vmul.f32 %v6556, 1.442695
        %v6673 = vpow.pop %v6672
        %v6674 = vmul.f32 %v6557, 1.442695
        %v6675 = vpow.pop %v6674
        %v6676 = vmul.f32 %v6558, 1.442695
        %v6677 = vpow.pop %v6676
        %v6678 = vmul.f32 %v6559, 1.442695
        %v6679 = vpow.pop %v6678
        %v6680 = vmul.f32 %v6560, 1.442695
        %v6681 = vpow.pop %v6680
        %v6682 = vmul.f32 %v6561, 1.442695
        %v6683 = vpow.pop %v6682
        %v6684 = vmul.f32 %v6562, 1.442695
        %v6685 = vpow.pop %v6684
        %v6686 = vmul.f32 %v6563, 1.442695
        %v6687 = vpow.pop %v6686
        %v6688 = vmul.f32 %v6564, 1.442695
        %v6689 = vpow.pop %v6688
        %v6690 = vmul.f32 %v6565, 1.442695
        %v6691 = vpow.pop %v6690
        %v6692 = vmul.f32 %v6566, 1.442695
        %v6693 = vpow.pop %v6692
        %v6694 = vmul.f32 %v6567, 1.442695
        %v6695 = vpow.pop %v6694
        %v6696 = vadd.f32 %v6569, %v6573
        %v6697 = vadd.f32 %v6696, %v6577
        %v6698 = vadd.f32 %v6697, %v6581
        %v6699 = vadd.f32 %v6698, %v6585
        %v6700 = vadd.f32 %v6699, %v6589
        %v6701 = vadd.f32 %v6700, %v6593
        %v6702 = vadd.f32 %v6701, %v6597
        %v6703 = vadd.f32 %v6702, %v6601
        %v6704 = vadd.f32 %v6703, %v6605
        %v6705 = vadd.f32 %v6704, %v6609
        %v6706 = vadd.f32 %v6705, %v6613
        %v6707 = vadd.f32 %v6706, %v6617
        %v6708 = vadd.f32 %v6707, %v6621
        %v6709 = vadd.f32 %v6708, %v6625
        %v6710 = vadd.f32 %v6709, %v6629
        %v6711 = vadd.f32 %v6710, %v6633
        %v6712 = vadd.f32 %v6711, %v6637
        %v6713 = vadd.f32 %v6712, %v6641
        %v6714 = vadd.f32 %v6713, %v6645
        %v6715 = vadd.f32 %v6714, %v6649
        %v6716 = vadd.f32 %v6715, %v6653
        %v6717 = vadd.f32 %v6716, %v6657
        %v6718 = vadd.f32 %v6717, %v6661
        %v6719 = vadd.f32 %v6718, %v6665
        %v6720 = vadd.f32 %v6719, %v6669
        %v6721 = vadd.f32 %v6720, %v6673
        %v6722 = vadd.f32 %v6721, %v6677
        %v6723 = vadd.f32 %v6722, %v6681
        %v6724 = vadd.f32 %v6723, %v6685
        %v6725 = vadd.f32 %v6724, %v6689
        %v6726 = vadd.f32 %v6725, %v6693
        %v6727 = vrot.slane %v6726, 4
        %v6728 = vadd.f32 %v6726, %v6727
        %v6729 = vrot.slane %v6728, 2
        %v6730 = vadd.f32 %v6728, %v6729
        %v6731 = vrot.slane %v6730, 1
        %v6732 = vadd.f32 %v6730, %v6731
        %v6733 = vadd.f32 %v6571, %v6575
        %v6734 = vadd.f32 %v6733, %v6579
        %v6735 = vadd.f32 %v6734, %v6583
        %v6736 = vadd.f32 %v6735, %v6587
        %v6737 = vadd.f32 %v6736, %v6591
        %v6738 = vadd.f32 %v6737, %v6595
        %v6739 = vadd.f32 %v6738, %v6599
        %v6740 = vadd.f32 %v6739, %v6603
        %v6741 = vadd.f32 %v6740, %v6607
        %v6742 = vadd.f32 %v6741, %v6611
        %v6743 = vadd.f32 %v6742, %v6615
        %v6744 = vadd.f32 %v6743, %v6619
        %v6745 = vadd.f32 %v6744, %v6623
        %v6746 = vadd.f32 %v6745, %v6627
        %v6747 = vadd.f32 %v6746, %v6631
        %v6748 = vadd.f32 %v6747, %v6635
        %v6749 = vadd.f32 %v6748, %v6639
        %v6750 = vadd.f32 %v6749, %v6643
        %v6751 = vadd.f32 %v6750, %v6647
        %v6752 = vadd.f32 %v6751, %v6651
        %v6753 = vadd.f32 %v6752, %v6655
        %v6754 = vadd.f32 %v6753, %v6659
        %v6755 = vadd.f32 %v6754, %v6663
        %v6756 = vadd.f32 %v6755, %v6667
        %v6757 = vadd.f32 %v6756, %v6671
        %v6758 = vadd.f32 %v6757, %v6675
        %v6759 = vadd.f32 %v6758, %v6679
        %v6760 = vadd.f32 %v6759, %v6683
        %v6761 = vadd.f32 %v6760, %v6687
        %v6762 = vadd.f32 %v6761, %v6691
        %v6763 = vadd.f32 %v6762, %v6695
        %v6764 = vrot.slane %v6763, 4
        %v6765 = vadd.f32 %v6763, %v6764
        %v6766 = vrot.slane %v6765, 2
        %v6767 = vadd.f32 %v6765, %v6766
        %v6768 = vrot.slane %v6767, 1
        %v6769 = vadd.f32 %v6767, %v6768
        %s6770 = scalar_lea.vmem %s249, 112
        %v6771 = vld [vmem:[%s6770] sm:$0xff]
        %v6772 = vld [vmem:[%s6770 + $0x8] sm:$0xff]
        %6773 = vmatprep.subr.mxu0 %v6571
        %6774 = vmatpush1.msra.mxu0 %v6569
        %6775 = vmatprep.subr.mxu0 %v6575
        %6776 = vmatpush1.msra.mxu0 %v6573
        %6777 = vmatprep.subr.mxu0 %v6579
        %6778 = vmatpush1.msra.mxu0 %v6577
        %6779 = vmatprep.subr.mxu0 %v6583
        %6780 = vmatpush1.msra.mxu0 %v6581
        %6781 = vmatprep.subr.mxu0 %v6587
        %6782 = vmatpush1.msra.mxu0 %v6585
        %6783 = vmatprep.subr.mxu0 %v6591
        %6784 = vmatpush1.msra.mxu0 %v6589
        %6785 = vmatprep.subr.mxu0 %v6595
        %6786 = vmatpush1.msra.mxu0 %v6593
        %6787 = vmatprep.subr.mxu0 %v6599
        %6788 = vmatpush1.msra.mxu0 %v6597
        %6789 = vmatprep.subr.mxu0 %v6603
        %6790 = vmatpush1.msra.mxu0 %v6601
        %6791 = vmatprep.subr.mxu0 %v6607
        %6792 = vmatpush1.msra.mxu0 %v6605
        %6793 = vmatprep.subr.mxu0 %v6611
        %6794 = vmatpush1.msra.mxu0 %v6609
        %6795 = vmatprep.subr.mxu0 %v6615
        %6796 = vmatpush1.msra.mxu0 %v6613
        %6797 = vmatprep.subr.mxu0 %v6619
        %6798 = vmatpush1.msra.mxu0 %v6617
        %6799 = vmatprep.subr.mxu0 %v6623
        %6800 = vmatpush1.msra.mxu0 %v6621
        %6801 = vmatprep.subr.mxu0 %v6627
        %6802 = vmatpush1.msra.mxu0 %v6625
        %6803 = vmatprep.subr.mxu0 %v6631
        %6804 = vmatpush1.msra.mxu0 %v6629
        %6805 = vmatprep.subr.mxu0 %v6635
        %6806 = vmatpush1.msra.mxu0 %v6633
        %6807 = vmatprep.subr.mxu0 %v6639
        %6808 = vmatpush1.msra.mxu0 %v6637
        %6809 = vmatprep.subr.mxu0 %v6643
        %6810 = vmatpush1.msra.mxu0 %v6641
        %6811 = vmatprep.subr.mxu0 %v6647
        %6812 = vmatpush1.msra.mxu0 %v6645
        %6813 = vmatprep.subr.mxu0 %v6651
        %6814 = vmatpush1.msra.mxu0 %v6649
        %6815 = vmatprep.subr.mxu0 %v6655
        %6816 = vmatpush1.msra.mxu0 %v6653
        %6817 = vmatprep.subr.mxu0 %v6659
        %6818 = vmatpush1.msra.mxu0 %v6657
        %6819 = vmatprep.subr.mxu0 %v6663
        %6820 = vmatpush1.msra.mxu0 %v6661
        %6821 = vmatprep.subr.mxu0 %v6667
        %6822 = vmatpush1.msra.mxu0 %v6665
        %6823 = vmatprep.subr.mxu0 %v6671
        %6824 = vmatpush1.msra.mxu0 %v6669
        %6825 = vmatprep.subr.mxu0 %v6675
        %6826 = vmatpush1.msra.mxu0 %v6673
        %6827 = vmatprep.subr.mxu0 %v6679
        %6828 = vmatpush1.msra.mxu0 %v6677
        %6829 = vmatprep.subr.mxu0 %v6683
        %6830 = vmatpush1.msra.mxu0 %v6681
        %6831 = vmatprep.subr.mxu0 %v6687
        %6832 = vmatpush1.msra.mxu0 %v6685
        %6833 = vmatprep.subr.mxu0 %v6691
        %6834 = vmatpush1.msra.mxu0 %v6689
        %6835 = vmatprep.subr.mxu0 %v6695
        %6836 = vmatpush1.msra.mxu0 %v6693
        %6837 = vmatprep.mubr.f32.mxu0 %v6772
        %6838 = vmatmul.mubr.f32.gmra.mrb[0].mxu0 %v6771
        %v6839 = vpop.f32.mrb[0].mxu0
        %v6840 = vadd.f32 0.0, %v6839
        %v6841 = vpop.f32.mrb[0].mxu0
        %v6842 = vadd.f32 0.0, %v6841
        %6843 = vdwg.mxu0
        %v6844 = vrcp.pop %v6732
        %v6845 = vrcp.pop %v6769
        %v6846 = vmul.f32 %v6732, %v6844
        %v6847 = vmul.f32 %v6769, %v6845
        %v6848 = vsub.f32 2.0, %v6846
        %v6849 = vsub.f32 2.0, %v6847
        %v6850 = vmul.f32 %v6844, %v6848
        %v6851 = vmul.f32 %v6845, %v6849
        %v6852 = vmul.f32 %v6840, %v6850
        %v6853 = vmul.f32 %v6842, %v6851
        %s6854 = scalar_lea.vmem %s229, 112 [#allocation2]
        %6855 = vst [vmem:[%s6854] sm:$0xff] %v6852
        %6856 = vst [vmem:[%s6854 + $0x8] sm:$0xff] %v6853
        %s6857 = sand.u32 %s125, 1
        %s6858 = scalar_lea.sflag [#allocation3], %s6857
        %s6859 = sand.u32 %s125, 1
        %s6860 = smul.addr %s6859, 128
        %s6861 = scalar_lea.vmem [#allocation2], %s6860
        // Predicated region
        $region37: #{tpu_custom_call.1} parent=35 // pred_check
          %p6862 = pneg %p135
        $region38: #{tpu_custom_call.1} parent=35 // pred_check_branch
          %6864 = sbr.rel (%p6862) target = $region40
        $region39: #{tpu_custom_call.1} parent=35 // pred_region
          %s6865 = smul.u32 8, %s18
          %s6867 = ssub.s32 2048, 2048
          %6868 = vsyncadd %s6858, %s6867
          %s6869 = smul.addr %s6865, 2
          %s6870 = smul.addr %s6869, 128
          %s6871 = scalar_lea.hbm %s4, %s6870
          %s6872 = sshll.u32 %s6861, 4
          %s6873 = int_to_ptr.vmem [resolvable:$true] %s6872
          %6878 = dma.vmem_to_hbm [thread:$0]  %s6873, 2048, %s6871, %s6858, 256, 256, 16
        $region40: #{tpu_custom_call.1} parent=35 // pred_fallthru
          _
      $region36: #{tpu_custom_call.1} parent=5 // pred_fallthru
        _
      %p6879 = scmp.le.s32.totalorder 2, %s13
      // Predicated region
      $region41: #{tpu_custom_call.1} parent=5 // pred_check
        %p6880 = pneg %p6879
      $region42: #{tpu_custom_call.1} parent=5 // pred_check_branch
        %6882 = sbr.rel (%p6880) target = $region44
      $region43: #{tpu_custom_call.1} parent=5 // pred_region
        %s6883 = ssub.s32 %s13, 2
        // Predicated region
        $region45: #{tpu_custom_call.1} parent=43 // pred_check
          %p6884 = pneg %p141
        $region46: #{tpu_custom_call.1} parent=43 // pred_check_branch
          %6886 = sbr.rel (%p6884) target = $region48
        $region47: #{tpu_custom_call.1} parent=43 // pred_region
          %s6887 = sand.u32 %s126, 1
          %s6888 = scalar_lea.sflag [#allocation3], %s6887
          %s6889 = sand.u32 %s126, 1
          %s6890 = smul.addr %s6889, 128
          %s6891 = scalar_lea.vmem [#allocation2], %s6890
          %6892 = dma.done %s6888, 2048
        $region48: #{tpu_custom_call.1} parent=43 // pred_fallthru
          _
      $region44: #{tpu_custom_call.1} parent=5 // pred_fallthru
        _
    $region6: #{tpu_custom_call.1} parent=1 // loop_footer
      %s17 = sadd.s32 1, %s13
    $region7: #{tpu_custom_call.1} parent=1 // loop_footer_branch
      %12 = sbr.rel target = $region3
    $region8: #{tpu_custom_call.1} parent=1 // loop_exit
      _
    %6893 = vsyncpa [#allocation3], 1
    %s6894 = scalar_lea.sflag [#allocation3], 1
    %6895 = vsyncpa %s6894, 1

</llo_original>
